<compile_context>
chip_gen: v7x
topology: tpu7x:2x2x1
jax: 0.10.0
libtpu: 0.0.40
codegen_flags: <defaults>
</compile_context>

<pallas_src>
import functools

import jax
import jax.numpy as jnp
from jax.experimental import pallas as pl
from jax.experimental.pallas import tpu as pltpu

FP = 128  # padded feature width (one full lane tile)


def _round_up(x, m):
    return ((x + m - 1) // m) * m


# ----------------------------- Pallas kernels -----------------------------

def sage_layer_kernel(nz_ref, a_ref, xn_ref, xs_ref, inv_ref, ws_ref, wn_ref,
                      b_ref, o_ref, acc_ref, *, relu):
    """out[i] = X[i] @ W_self + ((A_cnt @ X)[i] * inv_deg[i]) @ W_neigh + b (opt. ReLU).

    grid = (row_tiles, k_tiles), reduction axis last. A is int8 edge counts; the
    exact mean aggregation is recovered via the per-row 1/deg scale in the epilogue.
    All-zero A tiles (nz == 0) skip the MXU work.
    """
    i = pl.program_id(0)
    k = pl.program_id(1)

    @pl.when(k == 0)
    def _init():
        acc_ref[...] = jnp.zeros_like(acc_ref)

    @pl.when(nz_ref[i, k] > 0)                 # block-sparse skip of empty A tiles
    def _accum():
        # int8 -> f32 -> bf16 upcast on the VPU; hides under the A-tile DMA.
        a16 = a_ref[...].astype(jnp.float32).astype(jnp.bfloat16)
        acc_ref[...] += jnp.dot(a16, xn_ref[...],
                                preferred_element_type=jnp.float32)

    @pl.when(k == pl.num_programs(1) - 1)
    def _epilogue():
        neigh = acc_ref[...] * inv_ref[...]    # exact mean: counts * (1/deg), f32
        out = jnp.dot(xs_ref[...], ws_ref[...], preferred_element_type=jnp.float32)
        out += jnp.dot(neigh.astype(jnp.bfloat16), wn_ref[...],
                       preferred_element_type=jnp.float32)
        out += b_ref[...]                      # f32 epilogue (v5e-safe)
        if relu:
            out = jnp.maximum(out, 0.0)
        o_ref[...] = out.astype(o_ref.dtype)


def edge_dot_kernel(h_ref, src_ref, dst_ref, o_ref):
    """u_dot_v with E on the lane axis: o[0, e] = <h[src[e]], h[dst[e]]>.

    h stays resident in VMEM; endpoint rows are gathered with one-hot MXU matmuls,
    so no [FP, E] arrays or transposes ever round-trip through HBM.
    """
    # TODO(synk): at large N replace the one-hot matmul gather with a DMA row-gather.
    n_pad = h_ref.shape[0]
    te = o_ref.shape[1]
    h = h_ref[...]                                                # (n_pad, FP) f32
    rows = jax.lax.broadcasted_iota(jnp.int32, (n_pad, te), 0)
    one_u = (rows == src_ref[...]).astype(jnp.float32)            # (n_pad, te)
    one_v = (rows == dst_ref[...]).astype(jnp.float32)
    dn = (((0,), (0,)), ((), ()))                                 # contract node dim
    hu = jax.lax.dot_general(h, one_u, dn, preferred_element_type=jnp.float32)
    hv = jax.lax.dot_general(h, one_v, dn, preferred_element_type=jnp.float32)
    o_ref[...] = jnp.sum(hu * hv, axis=0, keepdims=True)          # (1, te) lane-dense


# ----------------------------- wrappers -----------------------------

def sage_layer(a_i8, nz, inv_deg, x, w_self, w_neigh, b, *, relu, tm, tk):
    """One SAGEConv(mean) layer on padded inputs.

    a_i8:    [Np, Np]  int8 in-edge counts (Np multiple of 512)
    nz:      [Np/tm, Np/tk] int32 nonzero count per A block (scalar-prefetched)
    inv_deg: [Np, 1]   f32 1/in-degree (0 where degree 0)
    x:       [Np, FP]  f32 node features (zero-padded lanes)
    w_self / w_neigh: [FP, FP] bf16, b: [1, FP] f32
    """
    n_pad, fp = x.shape
    x16 = x.astype(jnp.bfloat16)
    rt, kt = n_pad // tm, n_pad // tk

    flops = 2 * n_pad * n_pad * fp + 2 * 2 * n_pad * fp * fp
    bytes_accessed = (a_i8.size                         # int8 adjacency counts
                      + rt * x16.size * 2               # X re-streamed once per row tile
                      + x16.size * 2                    # self-feature stream
                      + inv_deg.size * 4 + b.size * 4
                      + (w_self.size + w_neigh.size) * 2
                      + n_pad * fp * 4)                 # output

    return pl.pallas_call(
        functools.partial(sage_layer_kernel, relu=relu),
        out_shape=jax.ShapeDtypeStruct((n_pad, fp), jnp.float32),
        grid_spec=pltpu.PrefetchScalarGridSpec(
            num_scalar_prefetch=1,
            grid=(rt, kt),
            in_specs=[
                pl.BlockSpec((tm, tk), lambda i, k, nz: (i, k)),   # A counts (int8)
                pl.BlockSpec((tk, fp), lambda i, k, nz: (k, 0)),   # X rows feeding A@X
                pl.BlockSpec((tm, fp), lambda i, k, nz: (i, 0)),   # X rows for self term
                pl.BlockSpec((tm, 1), lambda i, k, nz: (i, 0)),    # 1/deg for row tile
                pl.BlockSpec((fp, fp), lambda i, k, nz: (0, 0)),   # W_self
                pl.BlockSpec((fp, fp), lambda i, k, nz: (0, 0)),   # W_neigh
                pl.BlockSpec((1, fp), lambda i, k, nz: (0, 0)),    # bias
            ],
            out_specs=pl.BlockSpec((tm, fp), lambda i, k, nz: (i, 0)),
            scratch_shapes=[pltpu.VMEM((tm, fp), jnp.float32)],
        ),
        compiler_params=pltpu.CompilerParams(
            dimension_semantics=("parallel", "arbitrary"),
            vmem_limit_bytes=32 * 1024 * 1024,    # safe under v7x's 64 MiB physical VMEM
        ),
        cost_estimate=pl.CostEstimate(flops=flops, transcendentals=0,
                                      bytes_accessed=bytes_accessed),
    )(nz, a_i8, x16, x16, inv_deg, w_self, w_neigh, b)


def edge_dot(h, src, dst):
    """Per-edge dot product; one (or few) big lane-dense grid step(s)."""
    e = src.shape[0]
    n_pad, fp = h.shape
    te = min(1024, _round_up(e, 128))
    ep = _round_up(e, te)
    src_p = jnp.zeros((1, ep), jnp.int32).at[0, :e].set(src.astype(jnp.int32))
    dst_p = jnp.zeros((1, ep), jnp.int32).at[0, :e].set(dst.astype(jnp.int32))

    out = pl.pallas_call(
        edge_dot_kernel,
        out_shape=jax.ShapeDtypeStruct((1, ep), jnp.float32),
        grid=(ep // te,),
        in_specs=[
            pl.BlockSpec((n_pad, fp), lambda ei: (0, 0)),   # h resident in VMEM
            pl.BlockSpec((1, te), lambda ei: (0, ei)),      # src indices
            pl.BlockSpec((1, te), lambda ei: (0, ei)),      # dst indices
        ],
        out_specs=pl.BlockSpec((1, te), lambda ei: (0, ei)),
        compiler_params=pltpu.CompilerParams(dimension_semantics=("parallel",)),
    )(h, src_p, dst_p)
    return out[0, :e].reshape(e, 1)


def model_forward(params, a_i8, nz, inv_deg, src, dst, x_pad, *, tm, tk):
    """Model.forward(g, x): SAGE (2 layers) then per-edge dot-product score [E, 1]."""
    h = sage_layer(a_i8, nz, inv_deg, x_pad, params["w_self1"], params["w_neigh1"],
                   params["b1"], relu=True, tm=tm, tk=tk)
    h = sage_layer(a_i8, nz, inv_deg, h, params["w_self2"], params["w_neigh2"],
                   params["b2"], relu=False, tm=tm, tk=tk)
    # TODO(synk): at small N the two layers + edge scorer could fuse into one
    # pallas_call with h resident in VMEM (A still streams twice); modest win.
    return edge_dot(h, src, dst)


# ----------------------------- setup helpers -----------------------------

def choose_tiles(n):
    """Pad N so large tiles divide and the row-tile count is even (v7x 2-TC balance)."""
    n_pad = _round_up(max(n, 512), 512)
    tm = 256                                  # row tiles = n_pad/256, always even >= 2
    tk = 1024 if n_pad % 1024 == 0 else 512   # fills MXU K depth, always divides n_pad
    return n_pad, tm, tk


def build_graph_arrays(src, dst, n_pad, tm, tk):
    """int8 edge-count adjacency, per-row 1/deg, and per-(i,k) nonzero block counts."""
    a = jnp.zeros((n_pad, n_pad), jnp.float32).at[dst, src].add(1.0)
    deg = a.sum(axis=1, keepdims=True)
    inv_deg = jnp.where(deg > 0.0, 1.0 / deg, 0.0)          # (n_pad, 1) f32
    # TODO(synk): int8 counts overflow if >127 parallel edges share an (u, v) pair.
    a_i8 = a.astype(jnp.int8)
    rt, kt = n_pad // tm, n_pad // tk
    nz = (a != 0.0).reshape(rt, tm, kt, tk).sum(axis=(1, 3)).astype(jnp.int32)
    return a_i8, inv_deg, nz


def init_params(key, in_f, hid_f, out_f, fp=FP):
    ks = jax.random.split(key, 6)

    def lin(k, fi, fo):  # [in, out] layout (== PyTorch weight.T), zero-padded to FP
        w = jax.random.normal(k, (fi, fo), jnp.float32) / jnp.sqrt(fi)
        return jnp.zeros((fp, fp), jnp.float32).at[:fi, :fo].set(w).astype(jnp.bfloat16)

    def bias(k, fo):
        return jnp.zeros((1, fp), jnp.float32).at[0, :fo].set(
            0.1 * jax.random.normal(k, (fo,), jnp.float32))

    return {
        "w_self1": lin(ks[0], in_f, hid_f), "w_neigh1": lin(ks[1], in_f, hid_f),
        "b1": bias(ks[2], hid_f),
        "w_self2": lin(ks[3], hid_f, out_f), "w_neigh2": lin(ks[4], hid_f, out_f),
        "b2": bias(ks[5], out_f),
    }


# ----------------------------- main -----------------------------

if __name__ == "__main__":
    N, E = 300, 640                      # nodes, edges (small but multi-tile)
    IN_F, HID_F, OUT_F = 8, 32, 16

    key = jax.random.PRNGKey(0)
    k_x, k_src, k_dst, k_p = jax.random.split(key, 4)

    x = jax.random.normal(k_x, (N, IN_F), jnp.float32)
    src = jax.random.randint(k_src, (E,), 0, N)
    dst = jax.random.randint(k_dst, (E,), 0, N)

    n_pad, tm, tk = choose_tiles(N)                       # N=300 -> 512, tm=256, tk=512
    x_pad = jnp.zeros((n_pad, FP), jnp.float32).at[:N, :IN_F].set(x)
    a_i8, inv_deg, nz = build_graph_arrays(src, dst, n_pad, tm, tk)
    params = init_params(k_p, IN_F, HID_F, OUT_F)

    fwd = jax.jit(functools.partial(model_forward, tm=tm, tk=tk))
    scores = fwd(params, a_i8, nz, inv_deg, src, dst, x_pad)   # [E, 1]
    jax.block_until_ready(scores)

    # Reference mirroring the kernel's bf16-input / f32-accumulate math.
    a16_ref = a_i8.astype(jnp.float32).astype(jnp.bfloat16)

    def ref_layer(xx, ws, wn, b, relu):
        x16 = xx.astype(jnp.bfloat16)
        neigh = jnp.dot(a16_ref, x16, preferred_element_type=jnp.float32) * inv_deg
        out = (jnp.dot(x16, ws, preferred_element_type=jnp.float32)
               + jnp.dot(neigh.astype(jnp.bfloat16), wn, preferred_element_type=jnp.float32)
               + b)
        return jnp.maximum(out, 0.0) if relu else out

    h_ref = ref_layer(x_pad, params["w_self1"], params["w_neigh1"], params["b1"], True)
    h_ref = ref_layer(h_ref, params["w_self2"], params["w_neigh2"], params["b2"], False)
    ref = jnp.sum(h_ref[src] * h_ref[dst], axis=-1, keepdims=True)

    assert scores.shape == (E, 1)
    assert bool(jnp.allclose(scores, ref, atol=1e-2, rtol=1e-2))

    print("KERNEL_OK")
</pallas_src>

<mosaic_0001>
module attributes {stable_mosaic.version = 11 : i64} {
  func.func @sage_layer_kernel(%arg0: i32, %arg1: i32, %arg2: memref<2x1xi32, #tpu.memory_space<smem>>, %arg3: memref<256x512xi8, #tpu.memory_space<vmem>>, %arg4: memref<512x128xbf16, #tpu.memory_space<vmem>>, %arg5: memref<256x128xbf16, #tpu.memory_space<vmem>>, %arg6: memref<256x1xf32, #tpu.memory_space<vmem>>, %arg7: memref<128x128xbf16, #tpu.memory_space<vmem>>, %arg8: memref<128x128xbf16, #tpu.memory_space<vmem>>, %arg9: memref<1x128xf32, #tpu.memory_space<vmem>>, %arg10: memref<256x128xf32, #tpu.memory_space<vmem>>, %arg11: memref<256x128xf32, #tpu.memory_space<vmem>>) attributes {dimension_semantics = [#tpu.dimension_semantics<parallel>, #tpu.dimension_semantics<arbitrary>], iteration_bounds = array<i64: 2, 1>, scalar_prefetch = 1 : i64, scratch_operands = 1 : i64, tpu.core_type = #tpu.core_type<tc>, window_params = [{transform_indices = @transform_0, window_bounds = array<i64: 256, 512>}, {transform_indices = @transform_1, window_bounds = array<i64: 512, 128>}, {transform_indices = @transform_2, window_bounds = array<i64: 256, 128>}, {transform_indices = @transform_3, window_bounds = array<i64: 256, 1>}, {pipeline_mode = #tpu.pipeline_mode<synchronous>, transform_indices = @transform_4, window_bounds = array<i64: 128, 128>}, {pipeline_mode = #tpu.pipeline_mode<synchronous>, transform_indices = @transform_5, window_bounds = array<i64: 128, 128>}, {pipeline_mode = #tpu.pipeline_mode<synchronous>, transform_indices = @transform_6, window_bounds = array<i64: 1, 128>}, {transform_indices = @transform_7, window_bounds = array<i64: 256, 128>}]} {
    %c0_i32 = arith.constant 0 : i32
    %0 = arith.cmpi eq, %arg1, %c0_i32 : i32
    %1 = arith.extui %0 : i1 to i32
    %c0_i32_0 = arith.constant 0 : i32
    %2 = arith.cmpi ne, %1, %c0_i32_0 : i32
    scf.if %2 {
      %cst = arith.constant 0.000000e+00 : f32
      %12 = vector.broadcast %cst : f32 to vector<256x128xf32>
      %c0 = arith.constant 0 : index
      %c0_5 = arith.constant 0 : index
      %13 = vector.load %arg11[%c0, %c0_5] : memref<256x128xf32, #tpu.memory_space<vmem>>, vector<256x128xf32>
      tpu.vector_store %arg11[%c0, %c0_5], %12 {strides = array<i32>} : memref<256x128xf32, #tpu.memory_space<vmem>>, vector<256x128xf32>,
    } else {
    }
    %3 = arith.index_cast %arg0 : i32 to index
    %4 = arith.index_cast %arg1 : i32 to index
    %5 = memref.load %arg2[%3, %4] : memref<2x1xi32, #tpu.memory_space<smem>>
    %c0_i32_1 = arith.constant 0 : i32
    %6 = arith.cmpi sgt, %5, %c0_i32_1 : i32
    %7 = arith.extui %6 : i1 to i32
    %c0_i32_2 = arith.constant 0 : i32
    %8 = arith.cmpi ne, %7, %c0_i32_2 : i32
    scf.if %8 {
      %c0 = arith.constant 0 : index
      %c0_5 = arith.constant 0 : index
      %12 = vector.load %arg3[%c0, %c0_5] : memref<256x512xi8, #tpu.memory_space<vmem>>, vector<256x512xi8>
      %13 = arith.sitofp %12 : vector<256x512xi8> to vector<256x512xf32>
      %14 = arith.truncf %13 : vector<256x512xf32> to vector<256x512xbf16>
      %c0_6 = arith.constant 0 : index
      %c0_7 = arith.constant 0 : index
      %15 = vector.load %arg11[%c0_6, %c0_7] : memref<256x128xf32, #tpu.memory_space<vmem>>, vector<256x128xf32>
      %c0_8 = arith.constant 0 : index
      %c0_9 = arith.constant 0 : index
      %16 = vector.load %arg4[%c0_8, %c0_9] : memref<512x128xbf16, #tpu.memory_space<vmem>>, vector<512x128xbf16>
      %cst = arith.constant dense<0.000000e+00> : vector<256x128xf32>
      %17 = tpu.matmul %14, %16, %cst {dimension_numbers = #tpu.dot_dimension_numbers<[1], [0], [0], [1], [0, 0, 1, 1], [], []>} : vector<256x512xbf16>, vector<512x128xbf16>, vector<256x128xf32> -> vector<256x128xf32>
      %18 = arith.addf %15, %17 : vector<256x128xf32>
      %c0_10 = arith.constant 0 : index
      %c0_11 = arith.constant 0 : index
      %19 = vector.load %arg11[%c0_10, %c0_11] : memref<256x128xf32, #tpu.memory_space<vmem>>, vector<256x128xf32>
      tpu.vector_store %arg11[%c0_10, %c0_11], %18 {strides = array<i32>} : memref<256x128xf32, #tpu.memory_space<vmem>>, vector<256x128xf32>,
    } else {
    }
    %c0_i32_3 = arith.constant 0 : i32
    %9 = arith.cmpi eq, %arg1, %c0_i32_3 : i32
    %10 = arith.extui %9 : i1 to i32
    %c0_i32_4 = arith.constant 0 : i32
    %11 = arith.cmpi ne, %10, %c0_i32_4 : i32
    scf.if %11 {
      %c0 = arith.constant 0 : index
      %c0_5 = arith.constant 0 : index
      %12 = vector.load %arg11[%c0, %c0_5] : memref<256x128xf32, #tpu.memory_space<vmem>>, vector<256x128xf32>
      %c0_6 = arith.constant 0 : index
      %c0_7 = arith.constant 0 : index
      %13 = vector.load %arg6[%c0_6, %c0_7] : memref<256x1xf32, #tpu.memory_space<vmem>>, vector<256x1xf32>
      %14 = vector.broadcast %13 : vector<256x1xf32> to vector<256x128xf32>
      %15 = arith.mulf %12, %14 : vector<256x128xf32>
      %c0_8 = arith.constant 0 : index
      %c0_9 = arith.constant 0 : index
      %16 = vector.load %arg5[%c0_8, %c0_9] : memref<256x128xbf16, #tpu.memory_space<vmem>>, vector<256x128xbf16>
      %c0_10 = arith.constant 0 : index
      %c0_11 = arith.constant 0 : index
      %17 = vector.load %arg7[%c0_10, %c0_11] : memref<128x128xbf16, #tpu.memory_space<vmem>>, vector<128x128xbf16>
      %cst = arith.constant dense<0.000000e+00> : vector<256x128xf32>
      %18 = tpu.matmul %16, %17, %cst {dimension_numbers = #tpu.dot_dimension_numbers<[1], [0], [0], [1], [0, 0, 1, 1], [], []>} : vector<256x128xbf16>, vector<128x128xbf16>, vector<256x128xf32> -> vector<256x128xf32>
      %19 = arith.truncf %15 : vector<256x128xf32> to vector<256x128xbf16>
      %c0_12 = arith.constant 0 : index
      %c0_13 = arith.constant 0 : index
      %20 = vector.load %arg8[%c0_12, %c0_13] : memref<128x128xbf16, #tpu.memory_space<vmem>>, vector<128x128xbf16>
      %cst_14 = arith.constant dense<0.000000e+00> : vector<256x128xf32>
      %21 = tpu.matmul %19, %20, %cst_14 {dimension_numbers = #tpu.dot_dimension_numbers<[1], [0], [0], [1], [0, 0, 1, 1], [], []>} : vector<256x128xbf16>, vector<128x128xbf16>, vector<256x128xf32> -> vector<256x128xf32>
      %22 = arith.addf %18, %21 : vector<256x128xf32>
      %c0_15 = arith.constant 0 : index
      %c0_16 = arith.constant 0 : index
      %23 = vector.load %arg9[%c0_15, %c0_16] : memref<1x128xf32, #tpu.memory_space<vmem>>, vector<1x128xf32>
      %24 = vector.broadcast %23 : vector<1x128xf32> to vector<256x128xf32>
      %25 = arith.addf %22, %24 : vector<256x128xf32>
      %cst_17 = arith.constant 0.000000e+00 : f32
      %26 = vector.broadcast %cst_17 : f32 to vector<256x128xf32>
      %27 = arith.maximumf %25, %26 : vector<256x128xf32>
      %c0_18 = arith.constant 0 : index
      %c0_19 = arith.constant 0 : index
      %28 = vector.load %arg10[%c0_18, %c0_19] : memref<256x128xf32, #tpu.memory_space<vmem>>, vector<256x128xf32>
      tpu.vector_store %arg10[%c0_18, %c0_19], %27 {strides = array<i32>} : memref<256x128xf32, #tpu.memory_space<vmem>>, vector<256x128xf32>,
    } else {
    }
    return
  }
  func.func @transform_0(%arg0: i32, %arg1: i32, %arg2: memref<2x1xi32, #tpu.memory_space<smem>>) -> (i32, i32) {
    %c0_i32 = arith.constant 0 : i32
    return %arg0, %arg1 : i32, i32
  }
  func.func @transform_1(%arg0: i32, %arg1: i32, %arg2: memref<2x1xi32, #tpu.memory_space<smem>>) -> (i32, i32) {
    %c0_i32 = arith.constant 0 : i32
    %c0_i32_0 = arith.constant 0 : i32
    return %arg1, %c0_i32 : i32, i32
  }
  func.func @transform_2(%arg0: i32, %arg1: i32, %arg2: memref<2x1xi32, #tpu.memory_space<smem>>) -> (i32, i32) {
    %c0_i32 = arith.constant 0 : i32
    %c0_i32_0 = arith.constant 0 : i32
    return %arg0, %c0_i32 : i32, i32
  }
  func.func @transform_3(%arg0: i32, %arg1: i32, %arg2: memref<2x1xi32, #tpu.memory_space<smem>>) -> (i32, i32) {
    %c0_i32 = arith.constant 0 : i32
    %c0_i32_0 = arith.constant 0 : i32
    return %arg0, %c0_i32 : i32, i32
  }
  func.func @transform_4(%arg0: i32, %arg1: i32, %arg2: memref<2x1xi32, #tpu.memory_space<smem>>) -> (i32, i32) {
    %c0_i32 = arith.constant 0 : i32
    %c0_i32_0 = arith.constant 0 : i32
    %c0_i32_1 = arith.constant 0 : i32
    return %c0_i32, %c0_i32_0 : i32, i32
  }
  func.func @transform_5(%arg0: i32, %arg1: i32, %arg2: memref<2x1xi32, #tpu.memory_space<smem>>) -> (i32, i32) {
    %c0_i32 = arith.constant 0 : i32
    %c0_i32_0 = arith.constant 0 : i32
    %c0_i32_1 = arith.constant 0 : i32
    return %c0_i32, %c0_i32_0 : i32, i32
  }
  func.func @transform_6(%arg0: i32, %arg1: i32, %arg2: memref<2x1xi32, #tpu.memory_space<smem>>) -> (i32, i32) {
    %c0_i32 = arith.constant 0 : i32
    %c0_i32_0 = arith.constant 0 : i32
    %c0_i32_1 = arith.constant 0 : i32
    return %c0_i32, %c0_i32_0 : i32, i32
  }
  func.func @transform_7(%arg0: i32, %arg1: i32, %arg2: memref<2x1xi32, #tpu.memory_space<smem>>) -> (i32, i32) {
    %c0_i32 = arith.constant 0 : i32
    %c0_i32_0 = arith.constant 0 : i32
    return %arg0, %c0_i32 : i32, i32
  }
}

module attributes {stable_mosaic.version = 11 : i64} {
  func.func @sage_layer_kernel(%arg0: i32, %arg1: i32, %arg2: memref<2x1xi32, #tpu.memory_space<smem>>, %arg3: memref<256x512xi8, #tpu.memory_space<vmem>>, %arg4: memref<512x128xbf16, #tpu.memory_space<vmem>>, %arg5: memref<256x128xbf16, #tpu.memory_space<vmem>>, %arg6: memref<256x1xf32, #tpu.memory_space<vmem>>, %arg7: memref<128x128xbf16, #tpu.memory_space<vmem>>, %arg8: memref<128x128xbf16, #tpu.memory_space<vmem>>, %arg9: memref<1x128xf32, #tpu.memory_space<vmem>>, %arg10: memref<256x128xf32, #tpu.memory_space<vmem>>, %arg11: memref<256x128xf32, #tpu.memory_space<vmem>>) attributes {dimension_semantics = [#tpu.dimension_semantics<parallel>, #tpu.dimension_semantics<arbitrary>], iteration_bounds = array<i64: 2, 1>, scalar_prefetch = 1 : i64, scratch_operands = 1 : i64, tpu.core_type = #tpu.core_type<tc>, window_params = [{transform_indices = @transform_0, window_bounds = array<i64: 256, 512>}, {transform_indices = @transform_1, window_bounds = array<i64: 512, 128>}, {transform_indices = @transform_2, window_bounds = array<i64: 256, 128>}, {transform_indices = @transform_3, window_bounds = array<i64: 256, 1>}, {pipeline_mode = #tpu.pipeline_mode<synchronous>, transform_indices = @transform_4, window_bounds = array<i64: 128, 128>}, {pipeline_mode = #tpu.pipeline_mode<synchronous>, transform_indices = @transform_5, window_bounds = array<i64: 128, 128>}, {pipeline_mode = #tpu.pipeline_mode<synchronous>, transform_indices = @transform_6, window_bounds = array<i64: 1, 128>}, {transform_indices = @transform_7, window_bounds = array<i64: 256, 128>}]} {
    %c0_i32 = arith.constant 0 : i32
    %0 = arith.cmpi eq, %arg1, %c0_i32 : i32
    %1 = arith.extui %0 : i1 to i32
    %c0_i32_0 = arith.constant 0 : i32
    %2 = arith.cmpi ne, %1, %c0_i32_0 : i32
    scf.if %2 {
      %cst = arith.constant 0.000000e+00 : f32
      %12 = vector.broadcast %cst : f32 to vector<256x128xf32>
      %c0 = arith.constant 0 : index
      %c0_5 = arith.constant 0 : index
      %13 = vector.load %arg11[%c0, %c0_5] : memref<256x128xf32, #tpu.memory_space<vmem>>, vector<256x128xf32>
      tpu.vector_store %arg11[%c0, %c0_5], %12 {strides = array<i32>} : memref<256x128xf32, #tpu.memory_space<vmem>>, vector<256x128xf32>,
    } else {
    }
    %3 = arith.index_cast %arg0 : i32 to index
    %4 = arith.index_cast %arg1 : i32 to index
    %5 = memref.load %arg2[%3, %4] : memref<2x1xi32, #tpu.memory_space<smem>>
    %c0_i32_1 = arith.constant 0 : i32
    %6 = arith.cmpi sgt, %5, %c0_i32_1 : i32
    %7 = arith.extui %6 : i1 to i32
    %c0_i32_2 = arith.constant 0 : i32
    %8 = arith.cmpi ne, %7, %c0_i32_2 : i32
    scf.if %8 {
      %c0 = arith.constant 0 : index
      %c0_5 = arith.constant 0 : index
      %12 = vector.load %arg3[%c0, %c0_5] : memref<256x512xi8, #tpu.memory_space<vmem>>, vector<256x512xi8>
      %13 = arith.sitofp %12 : vector<256x512xi8> to vector<256x512xf32>
      %14 = arith.truncf %13 : vector<256x512xf32> to vector<256x512xbf16>
      %c0_6 = arith.constant 0 : index
      %c0_7 = arith.constant 0 : index
      %15 = vector.load %arg11[%c0_6, %c0_7] : memref<256x128xf32, #tpu.memory_space<vmem>>, vector<256x128xf32>
      %c0_8 = arith.constant 0 : index
      %c0_9 = arith.constant 0 : index
      %16 = vector.load %arg4[%c0_8, %c0_9] : memref<512x128xbf16, #tpu.memory_space<vmem>>, vector<512x128xbf16>
      %cst = arith.constant dense<0.000000e+00> : vector<256x128xf32>
      %17 = tpu.matmul %14, %16, %cst {dimension_numbers = #tpu.dot_dimension_numbers<[1], [0], [0], [1], [0, 0, 1, 1], [], []>} : vector<256x512xbf16>, vector<512x128xbf16>, vector<256x128xf32> -> vector<256x128xf32>
      %18 = arith.addf %15, %17 : vector<256x128xf32>
      %c0_10 = arith.constant 0 : index
      %c0_11 = arith.constant 0 : index
      %19 = vector.load %arg11[%c0_10, %c0_11] : memref<256x128xf32, #tpu.memory_space<vmem>>, vector<256x128xf32>
      tpu.vector_store %arg11[%c0_10, %c0_11], %18 {strides = array<i32>} : memref<256x128xf32, #tpu.memory_space<vmem>>, vector<256x128xf32>,
    } else {
    }
    %c0_i32_3 = arith.constant 0 : i32
    %9 = arith.cmpi eq, %arg1, %c0_i32_3 : i32
    %10 = arith.extui %9 : i1 to i32
    %c0_i32_4 = arith.constant 0 : i32
    %11 = arith.cmpi ne, %10, %c0_i32_4 : i32
    scf.if %11 {
      %c0 = arith.constant 0 : index
      %c0_5 = arith.constant 0 : index
      %12 = vector.load %arg11[%c0, %c0_5] : memref<256x128xf32, #tpu.memory_space<vmem>>, vector<256x128xf32>
      %c0_6 = arith.constant 0 : index
      %c0_7 = arith.constant 0 : index
      %13 = vector.load %arg6[%c0_6, %c0_7] : memref<256x1xf32, #tpu.memory_space<vmem>>, vector<256x1xf32>
      %14 = vector.broadcast %13 : vector<256x1xf32> to vector<256x128xf32>
      %15 = arith.mulf %12, %14 : vector<256x128xf32>
      %c0_8 = arith.constant 0 : index
      %c0_9 = arith.constant 0 : index
      %16 = vector.load %arg5[%c0_8, %c0_9] : memref<256x128xbf16, #tpu.memory_space<vmem>>, vector<256x128xbf16>
      %c0_10 = arith.constant 0 : index
      %c0_11 = arith.constant 0 : index
      %17 = vector.load %arg7[%c0_10, %c0_11] : memref<128x128xbf16, #tpu.memory_space<vmem>>, vector<128x128xbf16>
      %cst = arith.constant dense<0.000000e+00> : vector<256x128xf32>
      %18 = tpu.matmul %16, %17, %cst {dimension_numbers = #tpu.dot_dimension_numbers<[1], [0], [0], [1], [0, 0, 1, 1], [], []>} : vector<256x128xbf16>, vector<128x128xbf16>, vector<256x128xf32> -> vector<256x128xf32>
      %19 = arith.truncf %15 : vector<256x128xf32> to vector<256x128xbf16>
      %c0_12 = arith.constant 0 : index
      %c0_13 = arith.constant 0 : index
      %20 = vector.load %arg8[%c0_12, %c0_13] : memref<128x128xbf16, #tpu.memory_space<vmem>>, vector<128x128xbf16>
      %cst_14 = arith.constant dense<0.000000e+00> : vector<256x128xf32>
      %21 = tpu.matmul %19, %20, %cst_14 {dimension_numbers = #tpu.dot_dimension_numbers<[1], [0], [0], [1], [0, 0, 1, 1], [], []>} : vector<256x128xbf16>, vector<128x128xbf16>, vector<256x128xf32> -> vector<256x128xf32>
      %22 = arith.addf %18, %21 : vector<256x128xf32>
      %c0_15 = arith.constant 0 : index
      %c0_16 = arith.constant 0 : index
      %23 = vector.load %arg9[%c0_15, %c0_16] : memref<1x128xf32, #tpu.memory_space<vmem>>, vector<1x128xf32>
      %24 = vector.broadcast %23 : vector<1x128xf32> to vector<256x128xf32>
      %25 = arith.addf %22, %24 : vector<256x128xf32>
      %c0_17 = arith.constant 0 : index
      %c0_18 = arith.constant 0 : index
      %26 = vector.load %arg10[%c0_17, %c0_18] : memref<256x128xf32, #tpu.memory_space<vmem>>, vector<256x128xf32>
      tpu.vector_store %arg10[%c0_17, %c0_18], %25 {strides = array<i32>} : memref<256x128xf32, #tpu.memory_space<vmem>>, vector<256x128xf32>,
    } else {
    }
    return
  }
  func.func @transform_0(%arg0: i32, %arg1: i32, %arg2: memref<2x1xi32, #tpu.memory_space<smem>>) -> (i32, i32) {
    %c0_i32 = arith.constant 0 : i32
    return %arg0, %arg1 : i32, i32
  }
  func.func @transform_1(%arg0: i32, %arg1: i32, %arg2: memref<2x1xi32, #tpu.memory_space<smem>>) -> (i32, i32) {
    %c0_i32 = arith.constant 0 : i32
    %c0_i32_0 = arith.constant 0 : i32
    return %arg1, %c0_i32 : i32, i32
  }
  func.func @transform_2(%arg0: i32, %arg1: i32, %arg2: memref<2x1xi32, #tpu.memory_space<smem>>) -> (i32, i32) {
    %c0_i32 = arith.constant 0 : i32
    %c0_i32_0 = arith.constant 0 : i32
    return %arg0, %c0_i32 : i32, i32
  }
  func.func @transform_3(%arg0: i32, %arg1: i32, %arg2: memref<2x1xi32, #tpu.memory_space<smem>>) -> (i32, i32) {
    %c0_i32 = arith.constant 0 : i32
    %c0_i32_0 = arith.constant 0 : i32
    return %arg0, %c0_i32 : i32, i32
  }
  func.func @transform_4(%arg0: i32, %arg1: i32, %arg2: memref<2x1xi32, #tpu.memory_space<smem>>) -> (i32, i32) {
    %c0_i32 = arith.constant 0 : i32
    %c0_i32_0 = arith.constant 0 : i32
    %c0_i32_1 = arith.constant 0 : i32
    return %c0_i32, %c0_i32_0 : i32, i32
  }
  func.func @transform_5(%arg0: i32, %arg1: i32, %arg2: memref<2x1xi32, #tpu.memory_space<smem>>) -> (i32, i32) {
    %c0_i32 = arith.constant 0 : i32
    %c0_i32_0 = arith.constant 0 : i32
    %c0_i32_1 = arith.constant 0 : i32
    return %c0_i32, %c0_i32_0 : i32, i32
  }
  func.func @transform_6(%arg0: i32, %arg1: i32, %arg2: memref<2x1xi32, #tpu.memory_space<smem>>) -> (i32, i32) {
    %c0_i32 = arith.constant 0 : i32
    %c0_i32_0 = arith.constant 0 : i32
    %c0_i32_1 = arith.constant 0 : i32
    return %c0_i32, %c0_i32_0 : i32, i32
  }
  func.func @transform_7(%arg0: i32, %arg1: i32, %arg2: memref<2x1xi32, #tpu.memory_space<smem>>) -> (i32, i32) {
    %c0_i32 = arith.constant 0 : i32
    %c0_i32_0 = arith.constant 0 : i32
    return %arg0, %c0_i32 : i32, i32
  }
}

module attributes {stable_mosaic.version = 11 : i64} {
  func.func @edge_dot_kernel(%arg0: i32, %arg1: memref<512x128xf32, #tpu.memory_space<vmem>>, %arg2: memref<1x640xi32, #tpu.memory_space<vmem>>, %arg3: memref<1x640xi32, #tpu.memory_space<vmem>>, %arg4: memref<1x640xf32, #tpu.memory_space<vmem>>) attributes {dimension_semantics = [#tpu.dimension_semantics<parallel>], iteration_bounds = array<i64: 1>, scalar_prefetch = 0 : i64, scratch_operands = 0 : i64, tpu.core_type = #tpu.core_type<tc>, window_params = [{pipeline_mode = #tpu.pipeline_mode<synchronous>, transform_indices = @transform_0, window_bounds = array<i64: 512, 128>}, {transform_indices = @transform_1, window_bounds = array<i64: 1, 640>}, {transform_indices = @transform_2, window_bounds = array<i64: 1, 640>}, {transform_indices = @transform_3, window_bounds = array<i64: 1, 640>}]} {
    %c0 = arith.constant 0 : index
    %c0_0 = arith.constant 0 : index
    %0 = vector.load %arg1[%c0, %c0_0] : memref<512x128xf32, #tpu.memory_space<vmem>>, vector<512x128xf32>
    %1 = tpu.iota {dimensions = array<i32: 0>} : vector<512x640xi32>
    %c0_1 = arith.constant 0 : index
    %c0_2 = arith.constant 0 : index
    %2 = vector.load %arg2[%c0_1, %c0_2] : memref<1x640xi32, #tpu.memory_space<vmem>>, vector<1x640xi32>
    %3 = vector.broadcast %2 : vector<1x640xi32> to vector<512x640xi32>
    %4 = arith.cmpi eq, %1, %3 : vector<512x640xi32>
    %5 = arith.extui %4 : vector<512x640xi1> to vector<512x640xi32>
    %6 = arith.sitofp %5 : vector<512x640xi32> to vector<512x640xf32>
    %c0_3 = arith.constant 0 : index
    %c0_4 = arith.constant 0 : index
    %7 = vector.load %arg3[%c0_3, %c0_4] : memref<1x640xi32, #tpu.memory_space<vmem>>, vector<1x640xi32>
    %8 = vector.broadcast %7 : vector<1x640xi32> to vector<512x640xi32>
    %9 = arith.cmpi eq, %1, %8 : vector<512x640xi32>
    %10 = arith.extui %9 : vector<512x640xi1> to vector<512x640xi32>
    %11 = arith.sitofp %10 : vector<512x640xi32> to vector<512x640xf32>
    %cst = arith.constant dense<0.000000e+00> : vector<128x640xf32>
    %12 = tpu.matmul %0, %6, %cst {dimension_numbers = #tpu.dot_dimension_numbers<[0], [0], [1], [1], [0, 1, 1, 1], [], []>} : vector<512x128xf32>, vector<512x640xf32>, vector<128x640xf32> -> vector<128x640xf32>
    %cst_5 = arith.constant dense<0.000000e+00> : vector<128x640xf32>
    %13 = tpu.matmul %0, %11, %cst_5 {dimension_numbers = #tpu.dot_dimension_numbers<[0], [0], [1], [1], [0, 1, 1, 1], [], []>} : vector<512x128xf32>, vector<512x640xf32>, vector<128x640xf32> -> vector<128x640xf32>
    %14 = arith.mulf %12, %13 : vector<128x640xf32>
    %cst_6 = arith.constant dense<0.000000e+00> : vector<640xf32>
    %15 = vector.multi_reduction <add>, %14, %cst_6 [0] : vector<128x640xf32> to vector<640xf32>
    %16 = vector.shape_cast %15 : vector<640xf32> to vector<1x640xf32>
    %c0_7 = arith.constant 0 : index
    %c0_8 = arith.constant 0 : index
    %17 = vector.load %arg4[%c0_7, %c0_8] : memref<1x640xf32, #tpu.memory_space<vmem>>, vector<1x640xf32>
    tpu.vector_store %arg4[%c0_7, %c0_8], %16 {strides = array<i32>} : memref<1x640xf32, #tpu.memory_space<vmem>>, vector<1x640xf32>,
    return
  }
  func.func @transform_0(%arg0: i32) -> (i32, i32) {
    %c0_i32 = arith.constant 0 : i32
    %c0_i32_0 = arith.constant 0 : i32
    %c0_i32_1 = arith.constant 0 : i32
    return %c0_i32, %c0_i32_0 : i32, i32
  }
  func.func @transform_1(%arg0: i32) -> (i32, i32) {
    %c0_i32 = arith.constant 0 : i32
    %c0_i32_0 = arith.constant 0 : i32
    return %c0_i32, %arg0 : i32, i32
  }
  func.func @transform_2(%arg0: i32) -> (i32, i32) {
    %c0_i32 = arith.constant 0 : i32
    %c0_i32_0 = arith.constant 0 : i32
    return %c0_i32, %arg0 : i32, i32
  }
  func.func @transform_3(%arg0: i32) -> (i32, i32) {
    %c0_i32 = arith.constant 0 : i32
    %c0_i32_0 = arith.constant 0 : i32
    return %c0_i32, %arg0 : i32, i32
  }
}

</mosaic_0001>

<llo_original>
// kernel: model_forward.3
$region0: #{model_forward.3}
  #allocation0 [shape = 'u32[]', space=smem, size = 0x4, offset = 0x4, fixed_abs, tag = 'smem constant byte address 0x4 - core index']
  #allocation1 [shape = 'u32[144,128]{1,0:T(1,128)}', space=vmem, size = 0x12000, scoped, tag = 'internal scratch']
  #allocation2 [shape = 'f32[256,128]{1,0:T(8,128)}', space=vmem, size = 0x20000, scoped, tag = 'scratch operand']
  #allocation3 [shape = 's32[1]{0}', space=sflag, size = 0x4, scoped, tag = 'scoped memory for model_forward.3']
  #allocation4 [shape = 'u8[1024]{0}', space=smem, size = 0x400, scoped, tag = 'prefetched SMEM operand 0']
  %s0 = inlined_call_operand.vmem [shape: s32[2,1], index: 0, kind: input, shape index: {}]
  %s1 = inlined_call_operand.vmem [shape: s8[512,512], index: 1, kind: input, shape index: {}]
  %s2 = inlined_call_operand.vmem [shape: bf16[512,128], index: 2, kind: input, shape index: {}, may-alias: {2,3}]
  %s3 = inlined_call_operand.vmem [shape: bf16[512,128], index: 3, kind: input, shape index: {}, may-alias: {2,3}]
  %s4 = inlined_call_operand.vmem [shape: f32[512,1], index: 4, kind: input, shape index: {}]
  %s5 = inlined_call_operand.vmem [shape: bf16[128,128], index: 5, kind: input, shape index: {}]
  %s6 = inlined_call_operand.vmem [shape: bf16[128,128], index: 6, kind: input, shape index: {}]
  %s7 = inlined_call_operand.vmem [shape: f32[1,128], index: 7, kind: input, shape index: {}]
  %s8 = inlined_call_operand.vmem [shape: f32[512,128], index: 8, kind: output, shape index: {}]
  %s9 = sld [smem:[#allocation0]]
  $region73: #{model_forward.3} parent=0
    _
  %s11 = ssub.s32 1, %s9
  %s12 = scalar_select 0, %s11, %s9
  %s13 = sshll.u32 %s0, 4
  %s14 = int_to_ptr.vmem [resolvable:$true] %s13
  %16 = dma.vmem_to_smem %s14, 32, [#allocation4], [#allocation3]
  %17 = dma.done [#allocation3], 32
  %18 = sfence
  loop: start=0, step=1, limit=4
  $region2: #{model_forward.3} parent=0 // loop_pre_header
    _
  $region3: #{model_forward.3} parent=0 // loop_header
    %s20 = sphi 0, %s24
    %p21 = scmp.ge.s32.totalorder %s20, 4
    %s27 = sphi 0, %s39
    %s28 = sphi 0, %s35
    %s29 = sphi 0, %s27
    %s30 = sphi 0, %s28
    %s31 = sphi 0, %s29
    %s32 = sphi 0, %s30
    %s44 = sphi 0, %s46
    %s47 = sphi 0, %s44
    %s48 = sphi 0, %s47
    %s64 = sphi 0, %s48
    %s70 = sphi 0, %s72
    %s73 = sphi 0, %s70
    %s74 = sphi 0, %s73
    %s90 = sphi 0, %s74
    %s96 = sphi 0, %s98
    %s99 = sphi 0, %s96
    %s100 = sphi 0, %s99
    %s116 = sphi 0, %s100
    %s122 = sphi 0, %s124
    %s125 = sphi 0, %s122
    %s126 = sphi 0, %s125
    %s142 = sphi 0, %s126
    %s146 = sphi 0, %s146
    %s148 = sphi 0, %s146
    %s149 = sphi 0, %s148
    %s163 = sphi 0, %s149
    %s167 = sphi 0, %s167
    %s169 = sphi 0, %s167
    %s170 = sphi 0, %s169
    %s184 = sphi 0, %s170
    %s188 = sphi 0, %s188
    %s190 = sphi 0, %s188
    %s191 = sphi 0, %s190
    %s205 = sphi 0, %s191
    %s211 = sphi 0, %s213
    %s214 = sphi 0, %s211
    %s215 = sphi 0, %s214
    %s231 = sphi 0, %s215
  $region4: #{model_forward.3} parent=0 // loop_header_branch
    %23 = sbr.rel (%p21) target = $region8
  $region5: #{model_forward.3} parent=0 // loop_body
    %s25 = ssub.s32 %s20, 1
    %s26 = ssub.s32 %s20, 2
    %s33 = sadd.s32 1, %s28
    %p34 = scmp.ge.s32.totalorder %s33, 1
    %s35 = scalar_select %p34, 0, %s33
    %s36 = sadd.s32 1, %s27
    %s37 = scalar_select %p34, %s36, %s27
    %p38 = scmp.ge.s32.totalorder %s37, 2
    %s39 = scalar_select %p38, 0, %s37
    %s40 = ssub.s32 %s27, %s39
    %s41 = ssub.s32 %s28, %s35
    %s42 = sor.u32 %s40, %s41
    %p43 = scmp.eq.s32.totalorder %s42, 0
    %s45 = sadd.s32 %s44, 1
    %s46 = scalar_select %p43, %s44, %s45
    %p49 = pneg %p43
    %p50 = scmp.eq.s32.totalorder %s20, 1
    %p51 = por %p49, %p50
    %p52 = scmp.ne.s32.totalorder %s44, %s47
    %p53 = scmp.eq.s32.totalorder %s20, 0
    %p54 = por %p52, %p53
    %p55 = scmp.ne.s32.totalorder %s44, %s47
    %p56 = scmp.eq.s32.totalorder %s25, 1
    %p57 = por %p55, %p56
    %p58 = scmp.ne.s32.totalorder %s47, %s48
    %p59 = scmp.eq.s32.totalorder %s25, 0
    %p60 = por %p58, %p59
    %p61 = scmp.ne.s32.totalorder %s47, %s48
    %p62 = scmp.eq.s32.totalorder %s26, 1
    %p63 = por %p61, %p62
    %p65 = scmp.ne.s32.totalorder %s48, %s64
    %p66 = scmp.eq.s32.totalorder %s26, 0
    %p67 = por %p65, %p66
    %s68 = ssub.s32 %s28, %s35
    %p69 = scmp.eq.s32.totalorder %s68, 0
    %s71 = sadd.s32 %s70, 1
    %s72 = scalar_select %p69, %s70, %s71
    %p75 = pneg %p69
    %p76 = scmp.eq.s32.totalorder %s20, 1
    %p77 = por %p75, %p76
    %p78 = scmp.ne.s32.totalorder %s70, %s73
    %p79 = scmp.eq.s32.totalorder %s20, 0
    %p80 = por %p78, %p79
    %p81 = scmp.ne.s32.totalorder %s70, %s73
    %p82 = scmp.eq.s32.totalorder %s25, 1
    %p83 = por %p81, %p82
    %p84 = scmp.ne.s32.totalorder %s73, %s74
    %p85 = scmp.eq.s32.totalorder %s25, 0
    %p86 = por %p84, %p85
    %p87 = scmp.ne.s32.totalorder %s73, %s74
    %p88 = scmp.eq.s32.totalorder %s26, 1
    %p89 = por %p87, %p88
    %p91 = scmp.ne.s32.totalorder %s74, %s90
    %p92 = scmp.eq.s32.totalorder %s26, 0
    %p93 = por %p91, %p92
    %s94 = ssub.s32 %s27, %s39
    %p95 = scmp.eq.s32.totalorder %s94, 0
    %s97 = sadd.s32 %s96, 1
    %s98 = scalar_select %p95, %s96, %s97
    %p101 = pneg %p95
    %p102 = scmp.eq.s32.totalorder %s20, 1
    %p103 = por %p101, %p102
    %p104 = scmp.ne.s32.totalorder %s96, %s99
    %p105 = scmp.eq.s32.totalorder %s20, 0
    %p106 = por %p104, %p105
    %p107 = scmp.ne.s32.totalorder %s96, %s99
    %p108 = scmp.eq.s32.totalorder %s25, 1
    %p109 = por %p107, %p108
    %p110 = scmp.ne.s32.totalorder %s99, %s100
    %p111 = scmp.eq.s32.totalorder %s25, 0
    %p112 = por %p110, %p111
    %p113 = scmp.ne.s32.totalorder %s99, %s100
    %p114 = scmp.eq.s32.totalorder %s26, 1
    %p115 = por %p113, %p114
    %p117 = scmp.ne.s32.totalorder %s100, %s116
    %p118 = scmp.eq.s32.totalorder %s26, 0
    %p119 = por %p117, %p118
    %s120 = ssub.s32 %s27, %s39
    %p121 = scmp.eq.s32.totalorder %s120, 0
    %s123 = sadd.s32 %s122, 1
    %s124 = scalar_select %p121, %s122, %s123
    %p127 = pneg %p121
    %p128 = scmp.eq.s32.totalorder %s20, 1
    %p129 = por %p127, %p128
    %p130 = scmp.ne.s32.totalorder %s122, %s125
    %p131 = scmp.eq.s32.totalorder %s20, 0
    %p132 = por %p130, %p131
    %p133 = scmp.ne.s32.totalorder %s122, %s125
    %p134 = scmp.eq.s32.totalorder %s25, 1
    %p135 = por %p133, %p134
    %p136 = scmp.ne.s32.totalorder %s125, %s126
    %p137 = scmp.eq.s32.totalorder %s25, 0
    %p138 = por %p136, %p137
    %p139 = scmp.ne.s32.totalorder %s125, %s126
    %p140 = scmp.eq.s32.totalorder %s26, 1
    %p141 = por %p139, %p140
    %p143 = scmp.ne.s32.totalorder %s126, %s142
    %p144 = scmp.eq.s32.totalorder %s26, 0
    %p145 = por %p143, %p144
    %s147 = sadd.s32 %s146, 1
    %p150 = scmp.eq.s32.totalorder %s20, 1
    %p151 = scmp.ne.s32.totalorder %s146, %s148
    %p152 = scmp.eq.s32.totalorder %s20, 0
    %p153 = por %p151, %p152
    %p154 = scmp.ne.s32.totalorder %s146, %s148
    %p155 = scmp.eq.s32.totalorder %s25, 1
    %p156 = por %p154, %p155
    %p157 = scmp.ne.s32.totalorder %s148, %s149
    %p158 = scmp.eq.s32.totalorder %s25, 0
    %p159 = por %p157, %p158
    %p160 = scmp.ne.s32.totalorder %s148, %s149
    %p161 = scmp.eq.s32.totalorder %s26, 1
    %p162 = por %p160, %p161
    %p164 = scmp.ne.s32.totalorder %s149, %s163
    %p165 = scmp.eq.s32.totalorder %s26, 0
    %p166 = por %p164, %p165
    %s168 = sadd.s32 %s167, 1
    %p171 = scmp.eq.s32.totalorder %s20, 1
    %p172 = scmp.ne.s32.totalorder %s167, %s169
    %p173 = scmp.eq.s32.totalorder %s20, 0
    %p174 = por %p172, %p173
    %p175 = scmp.ne.s32.totalorder %s167, %s169
    %p176 = scmp.eq.s32.totalorder %s25, 1
    %p177 = por %p175, %p176
    %p178 = scmp.ne.s32.totalorder %s169, %s170
    %p179 = scmp.eq.s32.totalorder %s25, 0
    %p180 = por %p178, %p179
    %p181 = scmp.ne.s32.totalorder %s169, %s170
    %p182 = scmp.eq.s32.totalorder %s26, 1
    %p183 = por %p181, %p182
    %p185 = scmp.ne.s32.totalorder %s170, %s184
    %p186 = scmp.eq.s32.totalorder %s26, 0
    %p187 = por %p185, %p186
    %s189 = sadd.s32 %s188, 1
    %p192 = scmp.eq.s32.totalorder %s20, 1
    %p193 = scmp.ne.s32.totalorder %s188, %s190
    %p194 = scmp.eq.s32.totalorder %s20, 0
    %p195 = por %p193, %p194
    %p196 = scmp.ne.s32.totalorder %s188, %s190
    %p197 = scmp.eq.s32.totalorder %s25, 1
    %p198 = por %p196, %p197
    %p199 = scmp.ne.s32.totalorder %s190, %s191
    %p200 = scmp.eq.s32.totalorder %s25, 0
    %p201 = por %p199, %p200
    %p202 = scmp.ne.s32.totalorder %s190, %s191
    %p203 = scmp.eq.s32.totalorder %s26, 1
    %p204 = por %p202, %p203
    %p206 = scmp.ne.s32.totalorder %s191, %s205
    %p207 = scmp.eq.s32.totalorder %s26, 0
    %p208 = por %p206, %p207
    %s209 = ssub.s32 %s27, %s39
    %p210 = scmp.eq.s32.totalorder %s209, 0
    %s212 = sadd.s32 %s211, 1
    %s213 = scalar_select %p210, %s211, %s212
    %p216 = pneg %p210
    %p217 = scmp.eq.s32.totalorder %s20, 1
    %p218 = por %p216, %p217
    %p219 = scmp.ne.s32.totalorder %s211, %s214
    %p220 = scmp.eq.s32.totalorder %s20, 0
    %p221 = por %p219, %p220
    %p222 = scmp.ne.s32.totalorder %s211, %s214
    %p223 = scmp.eq.s32.totalorder %s25, 1
    %p224 = por %p222, %p223
    %p225 = scmp.ne.s32.totalorder %s214, %s215
    %p226 = scmp.eq.s32.totalorder %s25, 0
    %p227 = por %p225, %p226
    %p228 = scmp.ne.s32.totalorder %s214, %s215
    %p229 = scmp.eq.s32.totalorder %s26, 1
    %p230 = por %p228, %p229
    %p232 = scmp.ne.s32.totalorder %s215, %s231
    %p233 = scmp.eq.s32.totalorder %s26, 0
    %p234 = por %p232, %p233
    %p235 = scmp.le.s32.totalorder 1, %s20
    %p236 = scmp.lt.s32.totalorder %s20, 3
    %p237 = pnand %p235, %p236
    %p238 = pneg %p237
    // Predicated region
    $region9: #{model_forward.3} parent=5 // pred_check
      _
    $region10: #{model_forward.3} parent=5 // pred_check_branch
      %240 = sbr.rel (%p237) target = $region12
    $region11: #{model_forward.3} parent=5 // pred_region
      %s241 = ssub.s32 %s20, 1
      // Predicated region
      $region13: #{model_forward.3} parent=11 // pred_check
        %p242 = pneg %p86
      $region14: #{model_forward.3} parent=11 // pred_check_branch
        %244 = sbr.rel (%p242) target = $region16
      $region15: #{model_forward.3} parent=11 // pred_region
        %s245 = smul.u32 64, %s30
        %p246 = scmp.lt.s32.totalorder %s245, 63
        %s247 = scalar_select %p246, %s245, 63
        %s248 = smul.addr %s247, 4
        %s249 = scalar_lea.vmem %s2, %s248
        %s250 = smul.u32 64, %s30
      $region16: #{model_forward.3} parent=11 // pred_fallthru
        _
      // Predicated region
      $region17: #{model_forward.3} parent=11 // pred_check
        %p251 = pneg %p159
      $region18: #{model_forward.3} parent=11 // pred_check_branch
        %253 = sbr.rel (%p251) target = $region20
      $region19: #{model_forward.3} parent=11 // pred_region
        _
      $region20: #{model_forward.3} parent=11 // pred_fallthru
        _
      // Predicated region
      $region21: #{model_forward.3} parent=11 // pred_check
        %p254 = pneg %p180
      $region22: #{model_forward.3} parent=11 // pred_check_branch
        %256 = sbr.rel (%p254) target = $region24
      $region23: #{model_forward.3} parent=11 // pred_region
        _
      $region24: #{model_forward.3} parent=11 // pred_fallthru
        _
      // Predicated region
      $region25: #{model_forward.3} parent=11 // pred_check
        %p257 = pneg %p201
      $region26: #{model_forward.3} parent=11 // pred_check_branch
        %259 = sbr.rel (%p257) target = $region28
      $region27: #{model_forward.3} parent=11 // pred_region
        _
      $region28: #{model_forward.3} parent=11 // pred_fallthru
        _
    $region12: #{model_forward.3} parent=5 // pred_fallthru
      _
    %p260 = scmp.lt.s32.totalorder %s20, 2
    // Predicated region
    $region29: #{model_forward.3} parent=5 // pred_check
      %p261 = pneg %p260
    $region30: #{model_forward.3} parent=5 // pred_check_branch
      %263 = sbr.rel (%p261) target = $region32
    $region31: #{model_forward.3} parent=5 // pred_region
      // Predicated region
      $region33: #{model_forward.3} parent=31 // pred_check
        %p264 = pneg %p54
      $region34: #{model_forward.3} parent=31 // pred_check_branch
        %266 = sbr.rel (%p264) target = $region36
      $region35: #{model_forward.3} parent=31 // pred_region
        %s267 = smul.u32 8, %s27
        %s268 = smul.u32 4, %s28
        %p269 = scmp.lt.s32.totalorder %s267, 15
        %s270 = scalar_select %p269, %s267, 15
        %p271 = scmp.lt.s32.totalorder %s268, 3
        %s272 = scalar_select %p271, %s268, 3
        %s273 = smul.addr %s270, 4
        %s274 = sadd.s32 %s272, %s273
        %s275 = smul.addr %s274, 8
        %s276 = scalar_lea.vmem %s1, %s275
        %s277 = smul.u32 8, %s27
        %s278 = smul.u32 4, %s28
      $region36: #{model_forward.3} parent=31 // pred_fallthru
        _
      // Predicated region
      $region37: #{model_forward.3} parent=31 // pred_check
        %p279 = pneg %p106
      $region38: #{model_forward.3} parent=31 // pred_check_branch
        %281 = sbr.rel (%p279) target = $region40
      $region39: #{model_forward.3} parent=31 // pred_region
        %s282 = smul.u32 32, %s27
        %p283 = scmp.lt.s32.totalorder %s282, 63
        %s284 = scalar_select %p283, %s282, 63
        %s285 = smul.addr %s284, 4
        %s286 = scalar_lea.vmem %s3, %s285
        %s287 = smul.u32 32, %s27
      $region40: #{model_forward.3} parent=31 // pred_fallthru
        _
      // Predicated region
      $region41: #{model_forward.3} parent=31 // pred_check
        %p288 = pneg %p132
      $region42: #{model_forward.3} parent=31 // pred_check_branch
        %290 = sbr.rel (%p288) target = $region44
      $region43: #{model_forward.3} parent=31 // pred_region
        %s291 = smul.u32 32, %s27
        %p292 = scmp.lt.s32.totalorder %s291, 63
        %s293 = scalar_select %p292, %s291, 63
        %s294 = smul.addr %s293, 8
        %s295 = scalar_lea.vmem %s4, %s294
        %s296 = smul.u32 32, %s27
      $region44: #{model_forward.3} parent=31 // pred_fallthru
        _
    $region32: #{model_forward.3} parent=5 // pred_fallthru
      _
    %p297 = scmp.le.s32.totalorder 1, %s20
    %p298 = scmp.lt.s32.totalorder %s20, 3
    %p299 = pnand %p297, %p298
    %p300 = pneg %p299
    // Predicated region
    $region45: #{model_forward.3} parent=5 // pred_check
      _
    $region46: #{model_forward.3} parent=5 // pred_check_branch
      %302 = sbr.rel (%p299) target = $region48
    $region47: #{model_forward.3} parent=5 // pred_region
      %s303 = ssub.s32 %s20, 1
      %s304 = smul.u32 8, %s29
      %s305 = smul.u32 4, %s30
      %p306 = scmp.lt.s32.totalorder %s304, 15
      %s307 = scalar_select %p306, %s304, 15
      %p308 = scmp.lt.s32.totalorder %s305, 3
      %s309 = scalar_select %p308, %s305, 3
      %s310 = smul.addr %s307, 4
      %s311 = sadd.s32 %s309, %s310
      %s312 = smul.addr %s311, 8
      %s313 = scalar_lea.vmem %s1, %s312
      %p314 = pneg %p60
      %p315 = pneg %p57
      %s316 = smul.u32 64, %s30
      %p317 = scmp.lt.s32.totalorder %s316, 63
      %s318 = scalar_select %p317, %s316, 63
      %s319 = smul.addr %s318, 4
      %s320 = scalar_lea.vmem %s2, %s319
      %p321 = pneg %p86
      %p322 = pneg %p83
      %s323 = smul.u32 32, %s29
      %p324 = scmp.lt.s32.totalorder %s323, 63
      %s325 = scalar_select %p324, %s323, 63
      %s326 = smul.addr %s325, 4
      %s327 = scalar_lea.vmem %s3, %s326
      %p328 = pneg %p112
      %p329 = pneg %p109
      %s330 = smul.u32 32, %s29
      %p331 = scmp.lt.s32.totalorder %s330, 63
      %s332 = scalar_select %p331, %s330, 63
      %s333 = smul.addr %s332, 8
      %s334 = scalar_lea.vmem %s4, %s333
      %p335 = pneg %p138
      %p336 = pneg %p135
      %p337 = pneg %p159
      %p338 = pneg %p156
      %p339 = pneg %p180
      %p340 = pneg %p177
      %p341 = pneg %p201
      %p342 = pneg %p198
      %p343 = pneg %p227
      %p344 = pneg %p224
      %s345 = smul.u32 32, %s29
      %p346 = scmp.lt.s32.totalorder %s345, 63
      %s347 = scalar_select %p346, %s345, 63
      %s348 = smul.addr %s347, 8
      %s349 = scalar_lea.vmem %s8, %s348
      %s350 = smul.u32 8, %s29
      %s351 = smul.u32 4, %s30
      %p352 = scmp.lt.s32.totalorder %s350, 15
      %s353 = scalar_select %p352, %s350, 15
      %p354 = scmp.lt.s32.totalorder %s351, 3
      %s355 = scalar_select %p354, %s351, 3
      %s356 = smul.addr %s353, 4
      %s357 = sadd.s32 %s355, %s356
      %s358 = smul.addr %s357, 8
      %s359 = scalar_lea.vmem %s1, %s358
      %s360 = smul.u32 8, %s29
      %s361 = smul.u32 4, %s30
      %s362 = smul.u32 64, %s30
      %p363 = scmp.lt.s32.totalorder %s362, 63
      %s364 = scalar_select %p363, %s362, 63
      %s365 = smul.addr %s364, 4
      %s366 = scalar_lea.vmem %s2, %s365
      %s367 = smul.u32 64, %s30
      %s368 = smul.u32 32, %s29
      %p369 = scmp.lt.s32.totalorder %s368, 63
      %s370 = scalar_select %p369, %s368, 63
      %s371 = smul.addr %s370, 4
      %s372 = scalar_lea.vmem %s3, %s371
      %s373 = smul.u32 32, %s29
      %s374 = smul.u32 32, %s29
      %p375 = scmp.lt.s32.totalorder %s374, 63
      %s376 = scalar_select %p375, %s374, 63
      %s377 = smul.addr %s376, 8
      %s378 = scalar_lea.vmem %s4, %s377
      %s379 = smul.u32 32, %s29
      %s380 = smul.u32 32, %s29
      %p381 = scmp.lt.s32.totalorder %s380, 63
      %s382 = scalar_select %p381, %s380, 63
      %s383 = smul.addr %s382, 8
      %s384 = scalar_lea.vmem %s8, %s383
      %s385 = smul.u32 32, %s29
      %p387 = scmp.eq.s32.totalorder %s30, 0
      // Predicated region
      $region49: #{model_forward.3} parent=47 // pred_check
        %p388 = pneg %p387
      $region50: #{model_forward.3} parent=47 // pred_check_branch
        %390 = sbr.rel (%p388) target = $region52
      $region51: #{model_forward.3} parent=47 // pred_region
        %391 = vst [vmem:[#allocation2] sm:$0xff] 0.0
        %392 = vst [vmem:[#allocation2 + $0x8] sm:$0xff] 0.0
        %393 = vst [vmem:[#allocation2 + $0x10] sm:$0xff] 0.0
        %394 = vst [vmem:[#allocation2 + $0x18] sm:$0xff] 0.0
        %395 = vst [vmem:[#allocation2 + $0x20] sm:$0xff] 0.0
        %396 = vst [vmem:[#allocation2 + $0x28] sm:$0xff] 0.0
        %397 = vst [vmem:[#allocation2 + $0x30] sm:$0xff] 0.0
        %398 = vst [vmem:[#allocation2 + $0x38] sm:$0xff] 0.0
        %399 = vst [vmem:[#allocation2 + $0x40] sm:$0xff] 0.0
        %400 = vst [vmem:[#allocation2 + $0x48] sm:$0xff] 0.0
        %401 = vst [vmem:[#allocation2 + $0x50] sm:$0xff] 0.0
        %402 = vst [vmem:[#allocation2 + $0x58] sm:$0xff] 0.0
        %403 = vst [vmem:[#allocation2 + $0x60] sm:$0xff] 0.0
        %404 = vst [vmem:[#allocation2 + $0x68] sm:$0xff] 0.0
        %405 = vst [vmem:[#allocation2 + $0x70] sm:$0xff] 0.0
        %406 = vst [vmem:[#allocation2 + $0x78] sm:$0xff] 0.0
        %407 = vst [vmem:[#allocation2 + $0x80] sm:$0xff] 0.0
        %408 = vst [vmem:[#allocation2 + $0x88] sm:$0xff] 0.0
        %409 = vst [vmem:[#allocation2 + $0x90] sm:$0xff] 0.0
        %410 = vst [vmem:[#allocation2 + $0x98] sm:$0xff] 0.0
        %411 = vst [vmem:[#allocation2 + $0xa0] sm:$0xff] 0.0
        %412 = vst [vmem:[#allocation2 + $0xa8] sm:$0xff] 0.0
        %413 = vst [vmem:[#allocation2 + $0xb0] sm:$0xff] 0.0
        %414 = vst [vmem:[#allocation2 + $0xb8] sm:$0xff] 0.0
        %415 = vst [vmem:[#allocation2 + $0xc0] sm:$0xff] 0.0
        %416 = vst [vmem:[#allocation2 + $0xc8] sm:$0xff] 0.0
        %417 = vst [vmem:[#allocation2 + $0xd0] sm:$0xff] 0.0
        %418 = vst [vmem:[#allocation2 + $0xd8] sm:$0xff] 0.0
        %419 = vst [vmem:[#allocation2 + $0xe0] sm:$0xff] 0.0
        %420 = vst [vmem:[#allocation2 + $0xe8] sm:$0xff] 0.0
        %421 = vst [vmem:[#allocation2 + $0xf0] sm:$0xff] 0.0
        %422 = vst [vmem:[#allocation2 + $0xf8] sm:$0xff] 0.0
      $region52: #{model_forward.3} parent=47 // pred_fallthru
        _
      %s423 = sshra.s32 %s30, 7
      %s424 = sand.u32 %s30, 127
      %s425 = sadd.s32 %s423, %s29
      %s426 = smul.u32 %s425, 128
      %s427 = sshra.s32 %s30, 7
      %s428 = sand.u32 %s30, 127
      %s429 = sadd.s32 %s426, %s428
      %s430 = sld [smem:[#allocation4 + %s429]]
      %p431 = scmp.gt.s32.totalorder %s430, 0
      // Predicated region
      $region53: #{model_forward.3} parent=47 // pred_check
        %p432 = pneg %p431
      $region54: #{model_forward.3} parent=47 // pred_check_branch
        %434 = sbr.rel (%p432) target = $region56
      $region55: #{model_forward.3} parent=47 // pred_region
        %v435 = vld [vmem:[%s359] sm:$0xff]
        %v436 = vld [vmem:[%s359 + $0x8] sm:$0xff]
        %v437 = vld [vmem:[%s359 + $0x10] sm:$0xff]
        %v438 = vld [vmem:[%s359 + $0x18] sm:$0xff]
        %v439 = vld [vmem:[%s359 + $0x20] sm:$0xff]
        %v440 = vld [vmem:[%s359 + $0x28] sm:$0xff]
        %v441 = vld [vmem:[%s359 + $0x30] sm:$0xff]
        %v442 = vld [vmem:[%s359 + $0x38] sm:$0xff]
        %v443 = vld [vmem:[%s359 + $0x40] sm:$0xff]
        %v444 = vld [vmem:[%s359 + $0x48] sm:$0xff]
        %v445 = vld [vmem:[%s359 + $0x50] sm:$0xff]
        %v446 = vld [vmem:[%s359 + $0x58] sm:$0xff]
        %v447 = vld [vmem:[%s359 + $0x60] sm:$0xff]
        %v448 = vld [vmem:[%s359 + $0x68] sm:$0xff]
        %v449 = vld [vmem:[%s359 + $0x70] sm:$0xff]
        %v450 = vld [vmem:[%s359 + $0x78] sm:$0xff]
        %v451 = vld [vmem:[%s359 + $0x80] sm:$0xff]
        %v452 = vld [vmem:[%s359 + $0x88] sm:$0xff]
        %v453 = vld [vmem:[%s359 + $0x90] sm:$0xff]
        %v454 = vld [vmem:[%s359 + $0x98] sm:$0xff]
        %v455 = vld [vmem:[%s359 + $0xa0] sm:$0xff]
        %v456 = vld [vmem:[%s359 + $0xa8] sm:$0xff]
        %v457 = vld [vmem:[%s359 + $0xb0] sm:$0xff]
        %v458 = vld [vmem:[%s359 + $0xb8] sm:$0xff]
        %v459 = vld [vmem:[%s359 + $0xc0] sm:$0xff]
        %v460 = vld [vmem:[%s359 + $0xc8] sm:$0xff]
        %v461 = vld [vmem:[%s359 + $0xd0] sm:$0xff]
        %v462 = vld [vmem:[%s359 + $0xd8] sm:$0xff]
        %v463 = vld [vmem:[%s359 + $0xe0] sm:$0xff]
        %v464 = vld [vmem:[%s359 + $0xe8] sm:$0xff]
        %v465 = vld [vmem:[%s359 + $0xf0] sm:$0xff]
        %v466 = vld [vmem:[%s359 + $0xf8] sm:$0xff]
        %v467 = vunpack.c.l.s8.bf16 %v435
        %v468 = vunpack.c.l.s8.bf16 %v436
        %v469 = vunpack.c.l.s8.bf16 %v437
        %v470 = vunpack.c.l.s8.bf16 %v438
        %v471 = vunpack.c.h.s8.bf16 %v435
        %v472 = vunpack.c.h.s8.bf16 %v436
        %v473 = vunpack.c.h.s8.bf16 %v437
        %v474 = vunpack.c.h.s8.bf16 %v438
        %v475 = vunpack.c.l.s8.bf16 %v439
        %v476 = vunpack.c.l.s8.bf16 %v440
        %v477 = vunpack.c.l.s8.bf16 %v441
        %v478 = vunpack.c.l.s8.bf16 %v442
        %v479 = vunpack.c.h.s8.bf16 %v439
        %v480 = vunpack.c.h.s8.bf16 %v440
        %v481 = vunpack.c.h.s8.bf16 %v441
        %v482 = vunpack.c.h.s8.bf16 %v442
        %v483 = vunpack.c.l.s8.bf16 %v443
        %v484 = vunpack.c.l.s8.bf16 %v444
        %v485 = vunpack.c.l.s8.bf16 %v445
        %v486 = vunpack.c.l.s8.bf16 %v446
        %v487 = vunpack.c.h.s8.bf16 %v443
        %v488 = vunpack.c.h.s8.bf16 %v444
        %v489 = vunpack.c.h.s8.bf16 %v445
        %v490 = vunpack.c.h.s8.bf16 %v446
        %v491 = vunpack.c.l.s8.bf16 %v447
        %v492 = vunpack.c.l.s8.bf16 %v448
        %v493 = vunpack.c.l.s8.bf16 %v449
        %v494 = vunpack.c.l.s8.bf16 %v450
        %v495 = vunpack.c.h.s8.bf16 %v447
        %v496 = vunpack.c.h.s8.bf16 %v448
        %v497 = vunpack.c.h.s8.bf16 %v449
        %v498 = vunpack.c.h.s8.bf16 %v450
        %v499 = vunpack.c.l.s8.bf16 %v451
        %v500 = vunpack.c.l.s8.bf16 %v452
        %v501 = vunpack.c.l.s8.bf16 %v453
        %v502 = vunpack.c.l.s8.bf16 %v454
        %v503 = vunpack.c.h.s8.bf16 %v451
        %v504 = vunpack.c.h.s8.bf16 %v452
        %v505 = vunpack.c.h.s8.bf16 %v453
        %v506 = vunpack.c.h.s8.bf16 %v454
        %v507 = vunpack.c.l.s8.bf16 %v455
        %v508 = vunpack.c.l.s8.bf16 %v456
        %v509 = vunpack.c.l.s8.bf16 %v457
        %v510 = vunpack.c.l.s8.bf16 %v458
        %v511 = vunpack.c.h.s8.bf16 %v455
        %v512 = vunpack.c.h.s8.bf16 %v456
        %v513 = vunpack.c.h.s8.bf16 %v457
        %v514 = vunpack.c.h.s8.bf16 %v458
        %v515 = vunpack.c.l.s8.bf16 %v459
        %v516 = vunpack.c.l.s8.bf16 %v460
        %v517 = vunpack.c.l.s8.bf16 %v461
        %v518 = vunpack.c.l.s8.bf16 %v462
        %v519 = vunpack.c.h.s8.bf16 %v459
        %v520 = vunpack.c.h.s8.bf16 %v460
        %v521 = vunpack.c.h.s8.bf16 %v461
        %v522 = vunpack.c.h.s8.bf16 %v462
        %v523 = vunpack.c.l.s8.bf16 %v463
        %v524 = vunpack.c.l.s8.bf16 %v464
        %v525 = vunpack.c.l.s8.bf16 %v465
        %v526 = vunpack.c.l.s8.bf16 %v466
        %v527 = vunpack.c.h.s8.bf16 %v463
        %v528 = vunpack.c.h.s8.bf16 %v464
        %v529 = vunpack.c.h.s8.bf16 %v465
        %v530 = vunpack.c.h.s8.bf16 %v466
        %v531 = vld [vmem:[#allocation2] sm:$0xff]
        %v532 = vld [vmem:[#allocation2 + $0x8] sm:$0xff]
        %v533 = vld [vmem:[#allocation2 + $0x10] sm:$0xff]
        %v534 = vld [vmem:[#allocation2 + $0x18] sm:$0xff]
        %v535 = vld [vmem:[#allocation2 + $0x20] sm:$0xff]
        %v536 = vld [vmem:[#allocation2 + $0x28] sm:$0xff]
        %v537 = vld [vmem:[#allocation2 + $0x30] sm:$0xff]
        %v538 = vld [vmem:[#allocation2 + $0x38] sm:$0xff]
        %v539 = vld [vmem:[#allocation2 + $0x40] sm:$0xff]
        %v540 = vld [vmem:[#allocation2 + $0x48] sm:$0xff]
        %v541 = vld [vmem:[#allocation2 + $0x50] sm:$0xff]
        %v542 = vld [vmem:[#allocation2 + $0x58] sm:$0xff]
        %v543 = vld [vmem:[#allocation2 + $0x60] sm:$0xff]
        %v544 = vld [vmem:[#allocation2 + $0x68] sm:$0xff]
        %v545 = vld [vmem:[#allocation2 + $0x70] sm:$0xff]
        %v546 = vld [vmem:[#allocation2 + $0x78] sm:$0xff]
        %v547 = vld [vmem:[#allocation2 + $0x80] sm:$0xff]
        %v548 = vld [vmem:[#allocation2 + $0x88] sm:$0xff]
        %v549 = vld [vmem:[#allocation2 + $0x90] sm:$0xff]
        %v550 = vld [vmem:[#allocation2 + $0x98] sm:$0xff]
        %v551 = vld [vmem:[#allocation2 + $0xa0] sm:$0xff]
        %v552 = vld [vmem:[#allocation2 + $0xa8] sm:$0xff]
        %v553 = vld [vmem:[#allocation2 + $0xb0] sm:$0xff]
        %v554 = vld [vmem:[#allocation2 + $0xb8] sm:$0xff]
        %v555 = vld [vmem:[#allocation2 + $0xc0] sm:$0xff]
        %v556 = vld [vmem:[#allocation2 + $0xc8] sm:$0xff]
        %v557 = vld [vmem:[#allocation2 + $0xd0] sm:$0xff]
        %v558 = vld [vmem:[#allocation2 + $0xd8] sm:$0xff]
        %v559 = vld [vmem:[#allocation2 + $0xe0] sm:$0xff]
        %v560 = vld [vmem:[#allocation2 + $0xe8] sm:$0xff]
        %v561 = vld [vmem:[#allocation2 + $0xf0] sm:$0xff]
        %v562 = vld [vmem:[#allocation2 + $0xf8] sm:$0xff]
        %v563 = vld [vmem:[%s366] sm:$0xf]
        %v564 = vld [vmem:[%s366 + $0x4] sm:$0xf]
        %v565 = vld [vmem:[%s366 + $0x8] sm:$0xf]
        %v566 = vld [vmem:[%s366 + $0xc] sm:$0xf]
        %v567 = vld [vmem:[%s366 + $0x10] sm:$0xf]
        %v568 = vld [vmem:[%s366 + $0x14] sm:$0xf]
        %v569 = vld [vmem:[%s366 + $0x18] sm:$0xf]
        %v570 = vld [vmem:[%s366 + $0x1c] sm:$0xf]
        %v571 = vld [vmem:[%s366 + $0x20] sm:$0xf]
        %v572 = vld [vmem:[%s366 + $0x24] sm:$0xf]
        %v573 = vld [vmem:[%s366 + $0x28] sm:$0xf]
        %v574 = vld [vmem:[%s366 + $0x2c] sm:$0xf]
        %v575 = vld [vmem:[%s366 + $0x30] sm:$0xf]
        %v576 = vld [vmem:[%s366 + $0x34] sm:$0xf]
        %v577 = vld [vmem:[%s366 + $0x38] sm:$0xf]
        %v578 = vld [vmem:[%s366 + $0x3c] sm:$0xf]
        %v579 = vld [vmem:[%s366 + $0x40] sm:$0xf]
        %v580 = vld [vmem:[%s366 + $0x44] sm:$0xf]
        %v581 = vld [vmem:[%s366 + $0x48] sm:$0xf]
        %v582 = vld [vmem:[%s366 + $0x4c] sm:$0xf]
        %v583 = vld [vmem:[%s366 + $0x50] sm:$0xf]
        %v584 = vld [vmem:[%s366 + $0x54] sm:$0xf]
        %v585 = vld [vmem:[%s366 + $0x58] sm:$0xf]
        %v586 = vld [vmem:[%s366 + $0x5c] sm:$0xf]
        %v587 = vld [vmem:[%s366 + $0x60] sm:$0xf]
        %v588 = vld [vmem:[%s366 + $0x64] sm:$0xf]
        %v589 = vld [vmem:[%s366 + $0x68] sm:$0xf]
        %v590 = vld [vmem:[%s366 + $0x6c] sm:$0xf]
        %v591 = vld [vmem:[%s366 + $0x70] sm:$0xf]
        %v592 = vld [vmem:[%s366 + $0x74] sm:$0xf]
        %v593 = vld [vmem:[%s366 + $0x78] sm:$0xf]
        %v594 = vld [vmem:[%s366 + $0x7c] sm:$0xf]
        %v595 = vld [vmem:[%s366 + $0x80] sm:$0xf]
        %v596 = vld [vmem:[%s366 + $0x84] sm:$0xf]
        %v597 = vld [vmem:[%s366 + $0x88] sm:$0xf]
        %v598 = vld [vmem:[%s366 + $0x8c] sm:$0xf]
        %v599 = vld [vmem:[%s366 + $0x90] sm:$0xf]
        %v600 = vld [vmem:[%s366 + $0x94] sm:$0xf]
        %v601 = vld [vmem:[%s366 + $0x98] sm:$0xf]
        %v602 = vld [vmem:[%s366 + $0x9c] sm:$0xf]
        %v603 = vld [vmem:[%s366 + $0xa0] sm:$0xf]
        %v604 = vld [vmem:[%s366 + $0xa4] sm:$0xf]
        %v605 = vld [vmem:[%s366 + $0xa8] sm:$0xf]
        %v606 = vld [vmem:[%s366 + $0xac] sm:$0xf]
        %v607 = vld [vmem:[%s366 + $0xb0] sm:$0xf]
        %v608 = vld [vmem:[%s366 + $0xb4] sm:$0xf]
        %v609 = vld [vmem:[%s366 + $0xb8] sm:$0xf]
        %v610 = vld [vmem:[%s366 + $0xbc] sm:$0xf]
        %v611 = vld [vmem:[%s366 + $0xc0] sm:$0xf]
        %v612 = vld [vmem:[%s366 + $0xc4] sm:$0xf]
        %v613 = vld [vmem:[%s366 + $0xc8] sm:$0xf]
        %v614 = vld [vmem:[%s366 + $0xcc] sm:$0xf]
        %v615 = vld [vmem:[%s366 + $0xd0] sm:$0xf]
        %v616 = vld [vmem:[%s366 + $0xd4] sm:$0xf]
        %v617 = vld [vmem:[%s366 + $0xd8] sm:$0xf]
        %v618 = vld [vmem:[%s366 + $0xdc] sm:$0xf]
        %v619 = vld [vmem:[%s366 + $0xe0] sm:$0xf]
        %v620 = vld [vmem:[%s366 + $0xe4] sm:$0xf]
        %v621 = vld [vmem:[%s366 + $0xe8] sm:$0xf]
        %v622 = vld [vmem:[%s366 + $0xec] sm:$0xf]
        %v623 = vld [vmem:[%s366 + $0xf0] sm:$0xf]
        %v624 = vld [vmem:[%s366 + $0xf4] sm:$0xf]
        %v625 = vld [vmem:[%s366 + $0xf8] sm:$0xf]
        %v626 = vld [vmem:[%s366 + $0xfc] sm:$0xf]
        %v691 = vunpack.c.l.b16 %v563
        %v692 = vunpack.c.l.b16 %v564
        %v693 = vunpack.c.l.b16 %v565
        %v694 = vunpack.c.l.b16 %v566
        %v695 = vunpack.c.l.b16 %v567
        %v696 = vunpack.c.l.b16 %v568
        %v697 = vunpack.c.l.b16 %v569
        %v698 = vunpack.c.l.b16 %v570
        %v699 = vunpack.c.l.b16 %v571
        %v700 = vunpack.c.l.b16 %v572
        %v701 = vunpack.c.l.b16 %v573
        %v702 = vunpack.c.l.b16 %v574
        %v703 = vunpack.c.l.b16 %v575
        %v704 = vunpack.c.l.b16 %v576
        %v705 = vunpack.c.l.b16 %v577
        %v706 = vunpack.c.l.b16 %v578
        %v707 = vunpack.c.l.b16 %v579
        %v708 = vunpack.c.l.b16 %v580
        %v709 = vunpack.c.l.b16 %v581
        %v710 = vunpack.c.l.b16 %v582
        %v711 = vunpack.c.l.b16 %v583
        %v712 = vunpack.c.l.b16 %v584
        %v713 = vunpack.c.l.b16 %v585
        %v714 = vunpack.c.l.b16 %v586
        %v715 = vunpack.c.l.b16 %v587
        %v716 = vunpack.c.l.b16 %v588
        %v717 = vunpack.c.l.b16 %v589
        %v718 = vunpack.c.l.b16 %v590
        %v719 = vunpack.c.l.b16 %v591
        %v720 = vunpack.c.l.b16 %v592
        %v721 = vunpack.c.l.b16 %v593
        %v722 = vunpack.c.l.b16 %v594
        %v723 = vunpack.c.l.b16 %v595
        %v724 = vunpack.c.l.b16 %v596
        %v725 = vunpack.c.l.b16 %v597
        %v726 = vunpack.c.l.b16 %v598
        %v727 = vunpack.c.l.b16 %v599
        %v728 = vunpack.c.l.b16 %v600
        %v729 = vunpack.c.l.b16 %v601
        %v730 = vunpack.c.l.b16 %v602
        %v731 = vunpack.c.l.b16 %v603
        %v732 = vunpack.c.l.b16 %v604
        %v733 = vunpack.c.l.b16 %v605
        %v734 = vunpack.c.l.b16 %v606
        %v735 = vunpack.c.l.b16 %v607
        %v736 = vunpack.c.l.b16 %v608
        %v737 = vunpack.c.l.b16 %v609
        %v738 = vunpack.c.l.b16 %v610
        %v739 = vunpack.c.l.b16 %v611
        %v740 = vunpack.c.l.b16 %v612
        %v741 = vunpack.c.l.b16 %v613
        %v742 = vunpack.c.l.b16 %v614
        %v743 = vunpack.c.l.b16 %v615
        %v744 = vunpack.c.l.b16 %v616
        %v745 = vunpack.c.l.b16 %v617
        %v746 = vunpack.c.l.b16 %v618
        %v747 = vunpack.c.l.b16 %v619
        %v748 = vunpack.c.l.b16 %v620
        %v749 = vunpack.c.l.b16 %v621
        %v750 = vunpack.c.l.b16 %v622
        %v751 = vunpack.c.l.b16 %v623
        %v752 = vunpack.c.l.b16 %v624
        %v753 = vunpack.c.l.b16 %v625
        %v754 = vunpack.c.l.b16 %v626
        %v755 = vpack.c.b16 %v692, %v691
        %v756 = vpack.c.b16 %v694, %v693
        %v757 = vpack.c.b16 %v696, %v695
        %v758 = vpack.c.b16 %v698, %v697
        %v759 = vpack.c.b16 %v700, %v699
        %v760 = vpack.c.b16 %v702, %v701
        %v761 = vpack.c.b16 %v704, %v703
        %v762 = vpack.c.b16 %v706, %v705
        %v763 = vpack.c.b16 %v708, %v707
        %v764 = vpack.c.b16 %v710, %v709
        %v765 = vpack.c.b16 %v712, %v711
        %v766 = vpack.c.b16 %v714, %v713
        %v767 = vpack.c.b16 %v716, %v715
        %v768 = vpack.c.b16 %v718, %v717
        %v769 = vpack.c.b16 %v720, %v719
        %v770 = vpack.c.b16 %v722, %v721
        %v771 = vpack.c.b16 %v724, %v723
        %v772 = vpack.c.b16 %v726, %v725
        %v773 = vpack.c.b16 %v728, %v727
        %v774 = vpack.c.b16 %v730, %v729
        %v775 = vpack.c.b16 %v732, %v731
        %v776 = vpack.c.b16 %v734, %v733
        %v777 = vpack.c.b16 %v736, %v735
        %v778 = vpack.c.b16 %v738, %v737
        %v779 = vpack.c.b16 %v740, %v739
        %v780 = vpack.c.b16 %v742, %v741
        %v781 = vpack.c.b16 %v744, %v743
        %v782 = vpack.c.b16 %v746, %v745
        %v783 = vpack.c.b16 %v748, %v747
        %v784 = vpack.c.b16 %v750, %v749
        %v785 = vpack.c.b16 %v752, %v751
        %v786 = vpack.c.b16 %v754, %v753
        %819 = vmatprep.subr.bf16.mxu0 0
        %820 = vmatpush1.bf16.msra.mxu0 %v755
        %821 = vmatprep.subr.bf16.mxu0 0
        %822 = vmatpush1.bf16.msra.mxu0 %v756
        %823 = vmatprep.subr.bf16.mxu0 0
        %824 = vmatpush1.bf16.msra.mxu0 %v757
        %825 = vmatprep.subr.bf16.mxu0 0
        %826 = vmatpush1.bf16.msra.mxu0 %v758
        %827 = vmatprep.subr.bf16.mxu0 0
        %828 = vmatpush1.bf16.msra.mxu0 %v759
        %829 = vmatprep.subr.bf16.mxu0 0
        %830 = vmatpush1.bf16.msra.mxu0 %v760
        %831 = vmatprep.subr.bf16.mxu0 0
        %832 = vmatpush1.bf16.msra.mxu0 %v761
        %833 = vmatprep.subr.bf16.mxu0 0
        %834 = vmatpush1.bf16.msra.mxu0 %v762
        %835 = vmatprep.subr.bf16.mxu0 0
        %836 = vmatpush1.bf16.msra.mxu0 %v763
        %837 = vmatprep.subr.bf16.mxu0 0
        %838 = vmatpush1.bf16.msra.mxu0 %v764
        %839 = vmatprep.subr.bf16.mxu0 0
        %840 = vmatpush1.bf16.msra.mxu0 %v765
        %841 = vmatprep.subr.bf16.mxu0 0
        %842 = vmatpush1.bf16.msra.mxu0 %v766
        %843 = vmatprep.subr.bf16.mxu0 0
        %844 = vmatpush1.bf16.msra.mxu0 %v767
        %845 = vmatprep.subr.bf16.mxu0 0
        %846 = vmatpush1.bf16.msra.mxu0 %v768
        %847 = vmatprep.subr.bf16.mxu0 0
        %848 = vmatpush1.bf16.msra.mxu0 %v769
        %849 = vmatprep.subr.bf16.mxu0 0
        %850 = vmatpush1.bf16.msra.mxu0 %v770
        %851 = vmatprep.mubr.bf16.mxu0 %v468
        %852 = vmatmul.mubr.bf16.gmra.mrb[0].mxu0 %v467
        %v853 = vpop.f32.mrb[0].mxu0
        %v854 = vadd.f32 0.0, %v853
        %v855 = vpop.f32.mrb[0].mxu0
        %v856 = vpop.f32.mrb[0].mxu0
        %v857 = vadd.f32 0.0, %v856
        %v858 = vpop.f32.mrb[0].mxu0
        %859 = vmatprep.mubr.bf16.mxu0 %v472
        %860 = vmatmul.mubr.bf16.gmra.mrb[0].mxu0 %v471
        %v861 = vpop.f32.mrb[0].mxu0
        %v862 = vadd.f32 0.0, %v861
        %v863 = vpop.f32.mrb[0].mxu0
        %v864 = vpop.f32.mrb[0].mxu0
        %v865 = vadd.f32 0.0, %v864
        %v866 = vpop.f32.mrb[0].mxu0
        %867 = vmatprep.mubr.bf16.mxu0 %v476
        %868 = vmatmul.mubr.bf16.gmra.mrb[0].mxu0 %v475
        %v869 = vpop.f32.mrb[0].mxu0
        %v870 = vadd.f32 0.0, %v869
        %v871 = vpop.f32.mrb[0].mxu0
        %v872 = vpop.f32.mrb[0].mxu0
        %v873 = vadd.f32 0.0, %v872
        %v874 = vpop.f32.mrb[0].mxu0
        %875 = vmatprep.mubr.bf16.mxu0 %v480
        %876 = vmatmul.mubr.bf16.gmra.mrb[0].mxu0 %v479
        %v877 = vpop.f32.mrb[0].mxu0
        %v878 = vadd.f32 0.0, %v877
        %v879 = vpop.f32.mrb[0].mxu0
        %v880 = vpop.f32.mrb[0].mxu0
        %v881 = vadd.f32 0.0, %v880
        %v882 = vpop.f32.mrb[0].mxu0
        %883 = vmatprep.mubr.bf16.mxu0 %v484
        %884 = vmatmul.mubr.bf16.gmra.mrb[0].mxu0 %v483
        %v885 = vpop.f32.mrb[0].mxu0
        %v886 = vadd.f32 0.0, %v885
        %v887 = vpop.f32.mrb[0].mxu0
        %v888 = vpop.f32.mrb[0].mxu0
        %v889 = vadd.f32 0.0, %v888
        %v890 = vpop.f32.mrb[0].mxu0
        %891 = vmatprep.mubr.bf16.mxu0 %v488
        %892 = vmatmul.mubr.bf16.gmra.mrb[0].mxu0 %v487
        %v893 = vpop.f32.mrb[0].mxu0
        %v894 = vadd.f32 0.0, %v893
        %v895 = vpop.f32.mrb[0].mxu0
        %v896 = vpop.f32.mrb[0].mxu0
        %v897 = vadd.f32 0.0, %v896
        %v898 = vpop.f32.mrb[0].mxu0
        %899 = vmatprep.mubr.bf16.mxu0 %v492
        %900 = vmatmul.mubr.bf16.gmra.mrb[0].mxu0 %v491
        %v901 = vpop.f32.mrb[0].mxu0
        %v902 = vadd.f32 0.0, %v901
        %v903 = vpop.f32.mrb[0].mxu0
        %v904 = vpop.f32.mrb[0].mxu0
        %v905 = vadd.f32 0.0, %v904
        %v906 = vpop.f32.mrb[0].mxu0
        %907 = vmatprep.mubr.bf16.mxu0 %v496
        %908 = vmatmul.mubr.bf16.gmra.mrb[0].mxu0 %v495
        %v909 = vpop.f32.mrb[0].mxu0
        %v910 = vadd.f32 0.0, %v909
        %v911 = vpop.f32.mrb[0].mxu0
        %v912 = vpop.f32.mrb[0].mxu0
        %v913 = vadd.f32 0.0, %v912
        %v914 = vpop.f32.mrb[0].mxu0
        %915 = vmatprep.mubr.bf16.mxu0 %v500
        %916 = vmatmul.mubr.bf16.gmra.mrb[0].mxu0 %v499
        %v917 = vpop.f32.mrb[0].mxu0
        %v918 = vadd.f32 0.0, %v917
        %v919 = vpop.f32.mrb[0].mxu0
        %v920 = vpop.f32.mrb[0].mxu0
        %v921 = vadd.f32 0.0, %v920
        %v922 = vpop.f32.mrb[0].mxu0
        %923 = vmatprep.mubr.bf16.mxu0 %v504
        %924 = vmatmul.mubr.bf16.gmra.mrb[0].mxu0 %v503
        %v925 = vpop.f32.mrb[0].mxu0
        %v926 = vadd.f32 0.0, %v925
        %v927 = vpop.f32.mrb[0].mxu0
        %v928 = vpop.f32.mrb[0].mxu0
        %v929 = vadd.f32 0.0, %v928
        %v930 = vpop.f32.mrb[0].mxu0
        %931 = vmatprep.mubr.bf16.mxu0 %v508
        %932 = vmatmul.mubr.bf16.gmra.mrb[0].mxu0 %v507
        %v933 = vpop.f32.mrb[0].mxu0
        %v934 = vadd.f32 0.0, %v933
        %v935 = vpop.f32.mrb[0].mxu0
        %v936 = vpop.f32.mrb[0].mxu0
        %v937 = vadd.f32 0.0, %v936
        %v938 = vpop.f32.mrb[0].mxu0
        %939 = vmatprep.mubr.bf16.mxu0 %v512
        %940 = vmatmul.mubr.bf16.gmra.mrb[0].mxu0 %v511
        %v941 = vpop.f32.mrb[0].mxu0
        %v942 = vadd.f32 0.0, %v941
        %v943 = vpop.f32.mrb[0].mxu0
        %v944 = vpop.f32.mrb[0].mxu0
        %v945 = vadd.f32 0.0, %v944
        %v946 = vpop.f32.mrb[0].mxu0
        %947 = vmatprep.mubr.bf16.mxu0 %v516
        %948 = vmatmul.mubr.bf16.gmra.mrb[0].mxu0 %v515
        %v949 = vpop.f32.mrb[0].mxu0
        %v950 = vadd.f32 0.0, %v949
        %v951 = vpop.f32.mrb[0].mxu0
        %v952 = vpop.f32.mrb[0].mxu0
        %v953 = vadd.f32 0.0, %v952
        %v954 = vpop.f32.mrb[0].mxu0
        %955 = vmatprep.mubr.bf16.mxu0 %v520
        %956 = vmatmul.mubr.bf16.gmra.mrb[0].mxu0 %v519
        %v957 = vpop.f32.mrb[0].mxu0
        %v958 = vadd.f32 0.0, %v957
        %v959 = vpop.f32.mrb[0].mxu0
        %v960 = vpop.f32.mrb[0].mxu0
        %v961 = vadd.f32 0.0, %v960
        %v962 = vpop.f32.mrb[0].mxu0
        %963 = vmatprep.mubr.bf16.mxu0 %v524
        %964 = vmatmul.mubr.bf16.gmra.mrb[0].mxu0 %v523
        %v965 = vpop.f32.mrb[0].mxu0
        %v966 = vadd.f32 0.0, %v965
        %v967 = vpop.f32.mrb[0].mxu0
        %v968 = vpop.f32.mrb[0].mxu0
        %v969 = vadd.f32 0.0, %v968
        %v970 = vpop.f32.mrb[0].mxu0
        %971 = vmatprep.mubr.bf16.mxu0 %v528
        %972 = vmatmul.mubr.bf16.gmra.mrb[0].mxu0 %v527
        %v973 = vpop.f32.mrb[0].mxu0
        %v974 = vadd.f32 0.0, %v973
        %v975 = vpop.f32.mrb[0].mxu0
        %v976 = vpop.f32.mrb[0].mxu0
        %v977 = vadd.f32 0.0, %v976
        %v978 = vpop.f32.mrb[0].mxu0
        %979 = vdwg.mxu0
        %980 = vmatprep.subr.bf16.mxu0 0
        %981 = vmatpush1.bf16.msra.mxu0 %v771
        %982 = vmatprep.subr.bf16.mxu0 0
        %983 = vmatpush1.bf16.msra.mxu0 %v772
        %984 = vmatprep.subr.bf16.mxu0 0
        %985 = vmatpush1.bf16.msra.mxu0 %v773
        %986 = vmatprep.subr.bf16.mxu0 0
        %987 = vmatpush1.bf16.msra.mxu0 %v774
        %988 = vmatprep.subr.bf16.mxu0 0
        %989 = vmatpush1.bf16.msra.mxu0 %v775
        %990 = vmatprep.subr.bf16.mxu0 0
        %991 = vmatpush1.bf16.msra.mxu0 %v776
        %992 = vmatprep.subr.bf16.mxu0 0
        %993 = vmatpush1.bf16.msra.mxu0 %v777
        %994 = vmatprep.subr.bf16.mxu0 0
        %995 = vmatpush1.bf16.msra.mxu0 %v778
        %996 = vmatprep.subr.bf16.mxu0 0
        %997 = vmatpush1.bf16.msra.mxu0 %v779
        %998 = vmatprep.subr.bf16.mxu0 0
        %999 = vmatpush1.bf16.msra.mxu0 %v780
        %1000 = vmatprep.subr.bf16.mxu0 0
        %1001 = vmatpush1.bf16.msra.mxu0 %v781
        %1002 = vmatprep.subr.bf16.mxu0 0
        %1003 = vmatpush1.bf16.msra.mxu0 %v782
        %1004 = vmatprep.subr.bf16.mxu0 0
        %1005 = vmatpush1.bf16.msra.mxu0 %v783
        %1006 = vmatprep.subr.bf16.mxu0 0
        %1007 = vmatpush1.bf16.msra.mxu0 %v784
        %1008 = vmatprep.subr.bf16.mxu0 0
        %1009 = vmatpush1.bf16.msra.mxu0 %v785
        %1010 = vmatprep.subr.bf16.mxu0 0
        %1011 = vmatpush1.bf16.msra.mxu0 %v786
        %1012 = vmatprep.mubr.bf16.mxu0 %v470
        %1013 = vmatmul.mubr.bf16.gmra.mrb[0].mxu0 %v469
        %v1014 = vpop.f32.mrb[0].mxu0
        %v1015 = vadd.f32 %v854, %v1014
        %v1016 = vpop.f32.mrb[0].mxu0
        %v1017 = vpop.f32.mrb[0].mxu0
        %v1018 = vadd.f32 %v857, %v1017
        %v1019 = vpop.f32.mrb[0].mxu0
        %1020 = vmatprep.mubr.bf16.mxu0 %v474
        %1021 = vmatmul.mubr.bf16.gmra.mrb[0].mxu0 %v473
        %v1022 = vpop.f32.mrb[0].mxu0
        %v1023 = vadd.f32 %v862, %v1022
        %v1024 = vpop.f32.mrb[0].mxu0
        %v1025 = vpop.f32.mrb[0].mxu0
        %v1026 = vadd.f32 %v865, %v1025
        %v1027 = vpop.f32.mrb[0].mxu0
        %1028 = vmatprep.mubr.bf16.mxu0 %v478
        %1029 = vmatmul.mubr.bf16.gmra.mrb[0].mxu0 %v477
        %v1030 = vpop.f32.mrb[0].mxu0
        %v1031 = vadd.f32 %v870, %v1030
        %v1032 = vpop.f32.mrb[0].mxu0
        %v1033 = vpop.f32.mrb[0].mxu0
        %v1034 = vadd.f32 %v873, %v1033
        %v1035 = vpop.f32.mrb[0].mxu0
        %1036 = vmatprep.mubr.bf16.mxu0 %v482
        %1037 = vmatmul.mubr.bf16.gmra.mrb[0].mxu0 %v481
        %v1038 = vpop.f32.mrb[0].mxu0
        %v1039 = vadd.f32 %v878, %v1038
        %v1040 = vpop.f32.mrb[0].mxu0
        %v1041 = vpop.f32.mrb[0].mxu0
        %v1042 = vadd.f32 %v881, %v1041
        %v1043 = vpop.f32.mrb[0].mxu0
        %1044 = vmatprep.mubr.bf16.mxu0 %v486
        %1045 = vmatmul.mubr.bf16.gmra.mrb[0].mxu0 %v485
        %v1046 = vpop.f32.mrb[0].mxu0
        %v1047 = vadd.f32 %v886, %v1046
        %v1048 = vpop.f32.mrb[0].mxu0
        %v1049 = vpop.f32.mrb[0].mxu0
        %v1050 = vadd.f32 %v889, %v1049
        %v1051 = vpop.f32.mrb[0].mxu0
        %1052 = vmatprep.mubr.bf16.mxu0 %v490
        %1053 = vmatmul.mubr.bf16.gmra.mrb[0].mxu0 %v489
        %v1054 = vpop.f32.mrb[0].mxu0
        %v1055 = vadd.f32 %v894, %v1054
        %v1056 = vpop.f32.mrb[0].mxu0
        %v1057 = vpop.f32.mrb[0].mxu0
        %v1058 = vadd.f32 %v897, %v1057
        %v1059 = vpop.f32.mrb[0].mxu0
        %1060 = vmatprep.mubr.bf16.mxu0 %v494
        %1061 = vmatmul.mubr.bf16.gmra.mrb[0].mxu0 %v493
        %v1062 = vpop.f32.mrb[0].mxu0
        %v1063 = vadd.f32 %v902, %v1062
        %v1064 = vpop.f32.mrb[0].mxu0
        %v1065 = vpop.f32.mrb[0].mxu0
        %v1066 = vadd.f32 %v905, %v1065
        %v1067 = vpop.f32.mrb[0].mxu0
        %1068 = vmatprep.mubr.bf16.mxu0 %v498
        %1069 = vmatmul.mubr.bf16.gmra.mrb[0].mxu0 %v497
        %v1070 = vpop.f32.mrb[0].mxu0
        %v1071 = vadd.f32 %v910, %v1070
        %v1072 = vpop.f32.mrb[0].mxu0
        %v1073 = vpop.f32.mrb[0].mxu0
        %v1074 = vadd.f32 %v913, %v1073
        %v1075 = vpop.f32.mrb[0].mxu0
        %1076 = vmatprep.mubr.bf16.mxu0 %v502
        %1077 = vmatmul.mubr.bf16.gmra.mrb[0].mxu0 %v501
        %v1078 = vpop.f32.mrb[0].mxu0
        %v1079 = vadd.f32 %v918, %v1078
        %v1080 = vpop.f32.mrb[0].mxu0
        %v1081 = vpop.f32.mrb[0].mxu0
        %v1082 = vadd.f32 %v921, %v1081
        %v1083 = vpop.f32.mrb[0].mxu0
        %1084 = vmatprep.mubr.bf16.mxu0 %v506
        %1085 = vmatmul.mubr.bf16.gmra.mrb[0].mxu0 %v505
        %v1086 = vpop.f32.mrb[0].mxu0
        %v1087 = vadd.f32 %v926, %v1086
        %v1088 = vpop.f32.mrb[0].mxu0
        %v1089 = vpop.f32.mrb[0].mxu0
        %v1090 = vadd.f32 %v929, %v1089
        %v1091 = vpop.f32.mrb[0].mxu0
        %1092 = vmatprep.mubr.bf16.mxu0 %v510
        %1093 = vmatmul.mubr.bf16.gmra.mrb[0].mxu0 %v509
        %v1094 = vpop.f32.mrb[0].mxu0
        %v1095 = vadd.f32 %v934, %v1094
        %v1096 = vpop.f32.mrb[0].mxu0
        %v1097 = vpop.f32.mrb[0].mxu0
        %v1098 = vadd.f32 %v937, %v1097
        %v1099 = vpop.f32.mrb[0].mxu0
        %1100 = vmatprep.mubr.bf16.mxu0 %v514
        %1101 = vmatmul.mubr.bf16.gmra.mrb[0].mxu0 %v513
        %v1102 = vpop.f32.mrb[0].mxu0
        %v1103 = vadd.f32 %v942, %v1102
        %v1104 = vpop.f32.mrb[0].mxu0
        %v1105 = vpop.f32.mrb[0].mxu0
        %v1106 = vadd.f32 %v945, %v1105
        %v1107 = vpop.f32.mrb[0].mxu0
        %1108 = vmatprep.mubr.bf16.mxu0 %v518
        %1109 = vmatmul.mubr.bf16.gmra.mrb[0].mxu0 %v517
        %v1110 = vpop.f32.mrb[0].mxu0
        %v1111 = vadd.f32 %v950, %v1110
        %v1112 = vpop.f32.mrb[0].mxu0
        %v1113 = vpop.f32.mrb[0].mxu0
        %v1114 = vadd.f32 %v953, %v1113
        %v1115 = vpop.f32.mrb[0].mxu0
        %1116 = vmatprep.mubr.bf16.mxu0 %v522
        %1117 = vmatmul.mubr.bf16.gmra.mrb[0].mxu0 %v521
        %v1118 = vpop.f32.mrb[0].mxu0
        %v1119 = vadd.f32 %v958, %v1118
        %v1120 = vpop.f32.mrb[0].mxu0
        %v1121 = vpop.f32.mrb[0].mxu0
        %v1122 = vadd.f32 %v961, %v1121
        %v1123 = vpop.f32.mrb[0].mxu0
        %1124 = vmatprep.mubr.bf16.mxu0 %v526
        %1125 = vmatmul.mubr.bf16.gmra.mrb[0].mxu0 %v525
        %v1126 = vpop.f32.mrb[0].mxu0
        %v1127 = vadd.f32 %v966, %v1126
        %v1128 = vpop.f32.mrb[0].mxu0
        %v1129 = vpop.f32.mrb[0].mxu0
        %v1130 = vadd.f32 %v969, %v1129
        %v1131 = vpop.f32.mrb[0].mxu0
        %1132 = vmatprep.mubr.bf16.mxu0 %v530
        %1133 = vmatmul.mubr.bf16.gmra.mrb[0].mxu0 %v529
        %v1134 = vpop.f32.mrb[0].mxu0
        %v1135 = vadd.f32 %v974, %v1134
        %v1136 = vpop.f32.mrb[0].mxu0
        %v1137 = vpop.f32.mrb[0].mxu0
        %v1138 = vadd.f32 %v977, %v1137
        %v1139 = vpop.f32.mrb[0].mxu0
        %1140 = vdwg.mxu0
        %v1141 = vadd.f32 %v531, %v1015
        %v1142 = vadd.f32 %v532, %v1018
        %v1143 = vadd.f32 %v533, %v1023
        %v1144 = vadd.f32 %v534, %v1026
        %v1145 = vadd.f32 %v535, %v1031
        %v1146 = vadd.f32 %v536, %v1034
        %v1147 = vadd.f32 %v537, %v1039
        %v1148 = vadd.f32 %v538, %v1042
        %v1149 = vadd.f32 %v539, %v1047
        %v1150 = vadd.f32 %v540, %v1050
        %v1151 = vadd.f32 %v541, %v1055
        %v1152 = vadd.f32 %v542, %v1058
        %v1153 = vadd.f32 %v543, %v1063
        %v1154 = vadd.f32 %v544, %v1066
        %v1155 = vadd.f32 %v545, %v1071
        %v1156 = vadd.f32 %v546, %v1074
        %v1157 = vadd.f32 %v547, %v1079
        %v1158 = vadd.f32 %v548, %v1082
        %v1159 = vadd.f32 %v549, %v1087
        %v1160 = vadd.f32 %v550, %v1090
        %v1161 = vadd.f32 %v551, %v1095
        %v1162 = vadd.f32 %v552, %v1098
        %v1163 = vadd.f32 %v553, %v1103
        %v1164 = vadd.f32 %v554, %v1106
        %v1165 = vadd.f32 %v555, %v1111
        %v1166 = vadd.f32 %v556, %v1114
        %v1167 = vadd.f32 %v557, %v1119
        %v1168 = vadd.f32 %v558, %v1122
        %v1169 = vadd.f32 %v559, %v1127
        %v1170 = vadd.f32 %v560, %v1130
        %v1171 = vadd.f32 %v561, %v1135
        %v1172 = vadd.f32 %v562, %v1138
        %1173 = vst [vmem:[#allocation2] sm:$0xff] %v1141
        %1174 = vst [vmem:[#allocation2 + $0x8] sm:$0xff] %v1142
        %1175 = vst [vmem:[#allocation2 + $0x10] sm:$0xff] %v1143
        %1176 = vst [vmem:[#allocation2 + $0x18] sm:$0xff] %v1144
        %1177 = vst [vmem:[#allocation2 + $0x20] sm:$0xff] %v1145
        %1178 = vst [vmem:[#allocation2 + $0x28] sm:$0xff] %v1146
        %1179 = vst [vmem:[#allocation2 + $0x30] sm:$0xff] %v1147
        %1180 = vst [vmem:[#allocation2 + $0x38] sm:$0xff] %v1148
        %1181 = vst [vmem:[#allocation2 + $0x40] sm:$0xff] %v1149
        %1182 = vst [vmem:[#allocation2 + $0x48] sm:$0xff] %v1150
        %1183 = vst [vmem:[#allocation2 + $0x50] sm:$0xff] %v1151
        %1184 = vst [vmem:[#allocation2 + $0x58] sm:$0xff] %v1152
        %1185 = vst [vmem:[#allocation2 + $0x60] sm:$0xff] %v1153
        %1186 = vst [vmem:[#allocation2 + $0x68] sm:$0xff] %v1154
        %1187 = vst [vmem:[#allocation2 + $0x70] sm:$0xff] %v1155
        %1188 = vst [vmem:[#allocation2 + $0x78] sm:$0xff] %v1156
        %1189 = vst [vmem:[#allocation2 + $0x80] sm:$0xff] %v1157
        %1190 = vst [vmem:[#allocation2 + $0x88] sm:$0xff] %v1158
        %1191 = vst [vmem:[#allocation2 + $0x90] sm:$0xff] %v1159
        %1192 = vst [vmem:[#allocation2 + $0x98] sm:$0xff] %v1160
        %1193 = vst [vmem:[#allocation2 + $0xa0] sm:$0xff] %v1161
        %1194 = vst [vmem:[#allocation2 + $0xa8] sm:$0xff] %v1162
        %1195 = vst [vmem:[#allocation2 + $0xb0] sm:$0xff] %v1163
        %1196 = vst [vmem:[#allocation2 + $0xb8] sm:$0xff] %v1164
        %1197 = vst [vmem:[#allocation2 + $0xc0] sm:$0xff] %v1165
        %1198 = vst [vmem:[#allocation2 + $0xc8] sm:$0xff] %v1166
        %1199 = vst [vmem:[#allocation2 + $0xd0] sm:$0xff] %v1167
        %1200 = vst [vmem:[#allocation2 + $0xd8] sm:$0xff] %v1168
        %1201 = vst [vmem:[#allocation2 + $0xe0] sm:$0xff] %v1169
        %1202 = vst [vmem:[#allocation2 + $0xe8] sm:$0xff] %v1170
        %1203 = vst [vmem:[#allocation2 + $0xf0] sm:$0xff] %v1171
        %1204 = vst [vmem:[#allocation2 + $0xf8] sm:$0xff] %v1172
      $region56: #{model_forward.3} parent=47 // pred_fallthru
        _
      // Predicated region
      $region57: #{model_forward.3} parent=47 // pred_check
        %p1205 = pneg %p387
      $region58: #{model_forward.3} parent=47 // pred_check_branch
        %1207 = sbr.rel (%p1205) target = $region60
      $region59: #{model_forward.3} parent=47 // pred_region
        %v1208 = vld [vmem:[#allocation2] sm:$0xff]
        %v1209 = vld [vmem:[#allocation2 + $0x8] sm:$0xff]
        %v1210 = vld [vmem:[#allocation2 + $0x10] sm:$0xff]
        %v1211 = vld [vmem:[#allocation2 + $0x18] sm:$0xff]
        %v1212 = vld [vmem:[#allocation2 + $0x20] sm:$0xff]
        %v1213 = vld [vmem:[#allocation2 + $0x28] sm:$0xff]
        %v1214 = vld [vmem:[#allocation2 + $0x30] sm:$0xff]
        %v1215 = vld [vmem:[#allocation2 + $0x38] sm:$0xff]
        %v1216 = vld [vmem:[#allocation2 + $0x40] sm:$0xff]
        %v1217 = vld [vmem:[#allocation2 + $0x48] sm:$0xff]
        %v1218 = vld [vmem:[#allocation2 + $0x50] sm:$0xff]
        %v1219 = vld [vmem:[#allocation2 + $0x58] sm:$0xff]
        %v1220 = vld [vmem:[#allocation2 + $0x60] sm:$0xff]
        %v1221 = vld [vmem:[#allocation2 + $0x68] sm:$0xff]
        %v1222 = vld [vmem:[#allocation2 + $0x70] sm:$0xff]
        %v1223 = vld [vmem:[#allocation2 + $0x78] sm:$0xff]
        %v1224 = vld [vmem:[#allocation2 + $0x80] sm:$0xff]
        %v1225 = vld [vmem:[#allocation2 + $0x88] sm:$0xff]
        %v1226 = vld [vmem:[#allocation2 + $0x90] sm:$0xff]
        %v1227 = vld [vmem:[#allocation2 + $0x98] sm:$0xff]
        %v1228 = vld [vmem:[#allocation2 + $0xa0] sm:$0xff]
        %v1229 = vld [vmem:[#allocation2 + $0xa8] sm:$0xff]
        %v1230 = vld [vmem:[#allocation2 + $0xb0] sm:$0xff]
        %v1231 = vld [vmem:[#allocation2 + $0xb8] sm:$0xff]
        %v1232 = vld [vmem:[#allocation2 + $0xc0] sm:$0xff]
        %v1233 = vld [vmem:[#allocation2 + $0xc8] sm:$0xff]
        %v1234 = vld [vmem:[#allocation2 + $0xd0] sm:$0xff]
        %v1235 = vld [vmem:[#allocation2 + $0xd8] sm:$0xff]
        %v1236 = vld [vmem:[#allocation2 + $0xe0] sm:$0xff]
        %v1237 = vld [vmem:[#allocation2 + $0xe8] sm:$0xff]
        %v1238 = vld [vmem:[#allocation2 + $0xf0] sm:$0xff]
        %v1239 = vld [vmem:[#allocation2 + $0xf8] sm:$0xff]
        %v1240 = vld [vmem:[%s378] sm:$0xff]
        %v1241 = vld [vmem:[%s378 + $0x8] sm:$0xff]
        %v1242 = vld [vmem:[%s378 + $0x10] sm:$0xff]
        %v1243 = vld [vmem:[%s378 + $0x18] sm:$0xff]
        %v1244 = vld [vmem:[%s378 + $0x20] sm:$0xff]
        %v1245 = vld [vmem:[%s378 + $0x28] sm:$0xff]
        %v1246 = vld [vmem:[%s378 + $0x30] sm:$0xff]
        %v1247 = vld [vmem:[%s378 + $0x38] sm:$0xff]
        %v1248 = vld [vmem:[%s378 + $0x40] sm:$0xff]
        %v1249 = vld [vmem:[%s378 + $0x48] sm:$0xff]
        %v1250 = vld [vmem:[%s378 + $0x50] sm:$0xff]
        %v1251 = vld [vmem:[%s378 + $0x58] sm:$0xff]
        %v1252 = vld [vmem:[%s378 + $0x60] sm:$0xff]
        %v1253 = vld [vmem:[%s378 + $0x68] sm:$0xff]
        %v1254 = vld [vmem:[%s378 + $0x70] sm:$0xff]
        %v1255 = vld [vmem:[%s378 + $0x78] sm:$0xff]
        %v1256 = vld [vmem:[%s378 + $0x80] sm:$0xff]
        %v1257 = vld [vmem:[%s378 + $0x88] sm:$0xff]
        %v1258 = vld [vmem:[%s378 + $0x90] sm:$0xff]
        %v1259 = vld [vmem:[%s378 + $0x98] sm:$0xff]
        %v1260 = vld [vmem:[%s378 + $0xa0] sm:$0xff]
        %v1261 = vld [vmem:[%s378 + $0xa8] sm:$0xff]
        %v1262 = vld [vmem:[%s378 + $0xb0] sm:$0xff]
        %v1263 = vld [vmem:[%s378 + $0xb8] sm:$0xff]
        %v1264 = vld [vmem:[%s378 + $0xc0] sm:$0xff]
        %v1265 = vld [vmem:[%s378 + $0xc8] sm:$0xff]
        %v1266 = vld [vmem:[%s378 + $0xd0] sm:$0xff]
        %v1267 = vld [vmem:[%s378 + $0xd8] sm:$0xff]
        %v1268 = vld [vmem:[%s378 + $0xe0] sm:$0xff]
        %v1269 = vld [vmem:[%s378 + $0xe8] sm:$0xff]
        %v1270 = vld [vmem:[%s378 + $0xf0] sm:$0xff]
        %v1271 = vld [vmem:[%s378 + $0xf8] sm:$0xff]
        %1273 = vset.pattern.permute.xlu0 0
        %1274 = vperm.xlu0 %1273, %v1240
        %v1275 = vpop.permute.xlu0 %1274
        %1278 = vset.pattern.permute.xlu0 0
        %1279 = vperm.xlu0 %1278, %v1241
        %v1280 = vpop.permute.xlu0 %1279
        %1283 = vset.pattern.permute.xlu0 0
        %1284 = vperm.xlu0 %1283, %v1242
        %v1285 = vpop.permute.xlu0 %1284
        %1288 = vset.pattern.permute.xlu0 0
        %1289 = vperm.xlu0 %1288, %v1243
        %v1290 = vpop.permute.xlu0 %1289
        %1293 = vset.pattern.permute.xlu0 0
        %1294 = vperm.xlu0 %1293, %v1244
        %v1295 = vpop.permute.xlu0 %1294
        %1298 = vset.pattern.permute.xlu0 0
        %1299 = vperm.xlu0 %1298, %v1245
        %v1300 = vpop.permute.xlu0 %1299
        %1303 = vset.pattern.permute.xlu0 0
        %1304 = vperm.xlu0 %1303, %v1246
        %v1305 = vpop.permute.xlu0 %1304
        %1308 = vset.pattern.permute.xlu0 0
        %1309 = vperm.xlu0 %1308, %v1247
        %v1310 = vpop.permute.xlu0 %1309
        %1313 = vset.pattern.permute.xlu0 0
        %1314 = vperm.xlu0 %1313, %v1248
        %v1315 = vpop.permute.xlu0 %1314
        %1318 = vset.pattern.permute.xlu0 0
        %1319 = vperm.xlu0 %1318, %v1249
        %v1320 = vpop.permute.xlu0 %1319
        %1323 = vset.pattern.permute.xlu0 0
        %1324 = vperm.xlu0 %1323, %v1250
        %v1325 = vpop.permute.xlu0 %1324
        %1328 = vset.pattern.permute.xlu0 0
        %1329 = vperm.xlu0 %1328, %v1251
        %v1330 = vpop.permute.xlu0 %1329
        %1333 = vset.pattern.permute.xlu0 0
        %1334 = vperm.xlu0 %1333, %v1252
        %v1335 = vpop.permute.xlu0 %1334
        %1338 = vset.pattern.permute.xlu0 0
        %1339 = vperm.xlu0 %1338, %v1253
        %v1340 = vpop.permute.xlu0 %1339
        %1343 = vset.pattern.permute.xlu0 0
        %1344 = vperm.xlu0 %1343, %v1254
        %v1345 = vpop.permute.xlu0 %1344
        %1348 = vset.pattern.permute.xlu0 0
        %1349 = vperm.xlu0 %1348, %v1255
        %v1350 = vpop.permute.xlu0 %1349
        %1353 = vset.pattern.permute.xlu0 0
        %1354 = vperm.xlu0 %1353, %v1256
        %v1355 = vpop.permute.xlu0 %1354
        %1358 = vset.pattern.permute.xlu0 0
        %1359 = vperm.xlu0 %1358, %v1257
        %v1360 = vpop.permute.xlu0 %1359
        %1363 = vset.pattern.permute.xlu0 0
        %1364 = vperm.xlu0 %1363, %v1258
        %v1365 = vpop.permute.xlu0 %1364
        %1368 = vset.pattern.permute.xlu0 0
        %1369 = vperm.xlu0 %1368, %v1259
        %v1370 = vpop.permute.xlu0 %1369
        %1373 = vset.pattern.permute.xlu0 0
        %1374 = vperm.xlu0 %1373, %v1260
        %v1375 = vpop.permute.xlu0 %1374
        %1378 = vset.pattern.permute.xlu0 0
        %1379 = vperm.xlu0 %1378, %v1261
        %v1380 = vpop.permute.xlu0 %1379
        %1383 = vset.pattern.permute.xlu0 0
        %1384 = vperm.xlu0 %1383, %v1262
        %v1385 = vpop.permute.xlu0 %1384
        %1388 = vset.pattern.permute.xlu0 0
        %1389 = vperm.xlu0 %1388, %v1263
        %v1390 = vpop.permute.xlu0 %1389
        %1393 = vset.pattern.permute.xlu0 0
        %1394 = vperm.xlu0 %1393, %v1264
        %v1395 = vpop.permute.xlu0 %1394
        %1398 = vset.pattern.permute.xlu0 0
        %1399 = vperm.xlu0 %1398, %v1265
        %v1400 = vpop.permute.xlu0 %1399
        %1403 = vset.pattern.permute.xlu0 0
        %1404 = vperm.xlu0 %1403, %v1266
        %v1405 = vpop.permute.xlu0 %1404
        %1408 = vset.pattern.permute.xlu0 0
        %1409 = vperm.xlu0 %1408, %v1267
        %v1410 = vpop.permute.xlu0 %1409
        %1413 = vset.pattern.permute.xlu0 0
        %1414 = vperm.xlu0 %1413, %v1268
        %v1415 = vpop.permute.xlu0 %1414
        %1418 = vset.pattern.permute.xlu0 0
        %1419 = vperm.xlu0 %1418, %v1269
        %v1420 = vpop.permute.xlu0 %1419
        %1423 = vset.pattern.permute.xlu0 0
        %1424 = vperm.xlu0 %1423, %v1270
        %v1425 = vpop.permute.xlu0 %1424
        %1428 = vset.pattern.permute.xlu0 0
        %1429 = vperm.xlu0 %1428, %v1271
        %v1430 = vpop.permute.xlu0 %1429
        %v1432 = vmul.f32 %v1208, %v1275
        %v1433 = vmul.f32 %v1209, %v1280
        %v1434 = vmul.f32 %v1210, %v1285
        %v1435 = vmul.f32 %v1211, %v1290
        %v1436 = vmul.f32 %v1212, %v1295
        %v1437 = vmul.f32 %v1213, %v1300
        %v1438 = vmul.f32 %v1214, %v1305
        %v1439 = vmul.f32 %v1215, %v1310
        %v1440 = vmul.f32 %v1216, %v1315
        %v1441 = vmul.f32 %v1217, %v1320
        %v1442 = vmul.f32 %v1218, %v1325
        %v1443 = vmul.f32 %v1219, %v1330
        %v1444 = vmul.f32 %v1220, %v1335
        %v1445 = vmul.f32 %v1221, %v1340
        %v1446 = vmul.f32 %v1222, %v1345
        %v1447 = vmul.f32 %v1223, %v1350
        %v1448 = vmul.f32 %v1224, %v1355
        %v1449 = vmul.f32 %v1225, %v1360
        %v1450 = vmul.f32 %v1226, %v1365
        %v1451 = vmul.f32 %v1227, %v1370
        %v1452 = vmul.f32 %v1228, %v1375
        %v1453 = vmul.f32 %v1229, %v1380
        %v1454 = vmul.f32 %v1230, %v1385
        %v1455 = vmul.f32 %v1231, %v1390
        %v1456 = vmul.f32 %v1232, %v1395
        %v1457 = vmul.f32 %v1233, %v1400
        %v1458 = vmul.f32 %v1234, %v1405
        %v1459 = vmul.f32 %v1235, %v1410
        %v1460 = vmul.f32 %v1236, %v1415
        %v1461 = vmul.f32 %v1237, %v1420
        %v1462 = vmul.f32 %v1238, %v1425
        %v1463 = vmul.f32 %v1239, %v1430
        %v1464 = vld [vmem:[%s372] sm:$0xf]
        %v1465 = vld [vmem:[%s372 + $0x4] sm:$0xf]
        %v1466 = vld [vmem:[%s372 + $0x8] sm:$0xf]
        %v1467 = vld [vmem:[%s372 + $0xc] sm:$0xf]
        %v1468 = vld [vmem:[%s372 + $0x10] sm:$0xf]
        %v1469 = vld [vmem:[%s372 + $0x14] sm:$0xf]
        %v1470 = vld [vmem:[%s372 + $0x18] sm:$0xf]
        %v1471 = vld [vmem:[%s372 + $0x1c] sm:$0xf]
        %v1472 = vld [vmem:[%s372 + $0x20] sm:$0xf]
        %v1473 = vld [vmem:[%s372 + $0x24] sm:$0xf]
        %v1474 = vld [vmem:[%s372 + $0x28] sm:$0xf]
        %v1475 = vld [vmem:[%s372 + $0x2c] sm:$0xf]
        %v1476 = vld [vmem:[%s372 + $0x30] sm:$0xf]
        %v1477 = vld [vmem:[%s372 + $0x34] sm:$0xf]
        %v1478 = vld [vmem:[%s372 + $0x38] sm:$0xf]
        %v1479 = vld [vmem:[%s372 + $0x3c] sm:$0xf]
        %v1480 = vld [vmem:[%s372 + $0x40] sm:$0xf]
        %v1481 = vld [vmem:[%s372 + $0x44] sm:$0xf]
        %v1482 = vld [vmem:[%s372 + $0x48] sm:$0xf]
        %v1483 = vld [vmem:[%s372 + $0x4c] sm:$0xf]
        %v1484 = vld [vmem:[%s372 + $0x50] sm:$0xf]
        %v1485 = vld [vmem:[%s372 + $0x54] sm:$0xf]
        %v1486 = vld [vmem:[%s372 + $0x58] sm:$0xf]
        %v1487 = vld [vmem:[%s372 + $0x5c] sm:$0xf]
        %v1488 = vld [vmem:[%s372 + $0x60] sm:$0xf]
        %v1489 = vld [vmem:[%s372 + $0x64] sm:$0xf]
        %v1490 = vld [vmem:[%s372 + $0x68] sm:$0xf]
        %v1491 = vld [vmem:[%s372 + $0x6c] sm:$0xf]
        %v1492 = vld [vmem:[%s372 + $0x70] sm:$0xf]
        %v1493 = vld [vmem:[%s372 + $0x74] sm:$0xf]
        %v1494 = vld [vmem:[%s372 + $0x78] sm:$0xf]
        %v1495 = vld [vmem:[%s372 + $0x7c] sm:$0xf]
        %v1496 = vld [vmem:[%s5] sm:$0xf]
        %v1497 = vld [vmem:[%s5 + $0x4] sm:$0xf]
        %v1498 = vld [vmem:[%s5 + $0x8] sm:$0xf]
        %v1499 = vld [vmem:[%s5 + $0xc] sm:$0xf]
        %v1500 = vld [vmem:[%s5 + $0x10] sm:$0xf]
        %v1501 = vld [vmem:[%s5 + $0x14] sm:$0xf]
        %v1502 = vld [vmem:[%s5 + $0x18] sm:$0xf]
        %v1503 = vld [vmem:[%s5 + $0x1c] sm:$0xf]
        %v1504 = vld [vmem:[%s5 + $0x20] sm:$0xf]
        %v1505 = vld [vmem:[%s5 + $0x24] sm:$0xf]
        %v1506 = vld [vmem:[%s5 + $0x28] sm:$0xf]
        %v1507 = vld [vmem:[%s5 + $0x2c] sm:$0xf]
        %v1508 = vld [vmem:[%s5 + $0x30] sm:$0xf]
        %v1509 = vld [vmem:[%s5 + $0x34] sm:$0xf]
        %v1510 = vld [vmem:[%s5 + $0x38] sm:$0xf]
        %v1511 = vld [vmem:[%s5 + $0x3c] sm:$0xf]
        %v1512 = vpack.c.bf16 %v1433, %v1432
        %v1513 = vpack.c.bf16 %v1435, %v1434
        %v1514 = vpack.c.bf16 %v1437, %v1436
        %v1515 = vpack.c.bf16 %v1439, %v1438
        %v1516 = vpack.c.bf16 %v1441, %v1440
        %v1517 = vpack.c.bf16 %v1443, %v1442
        %v1518 = vpack.c.bf16 %v1445, %v1444
        %v1519 = vpack.c.bf16 %v1447, %v1446
        %v1520 = vpack.c.bf16 %v1449, %v1448
        %v1521 = vpack.c.bf16 %v1451, %v1450
        %v1522 = vpack.c.bf16 %v1453, %v1452
        %v1523 = vpack.c.bf16 %v1455, %v1454
        %v1524 = vpack.c.bf16 %v1457, %v1456
        %v1525 = vpack.c.bf16 %v1459, %v1458
        %v1526 = vpack.c.bf16 %v1461, %v1460
        %v1527 = vpack.c.bf16 %v1463, %v1462
        %v1528 = vld [vmem:[%s6] sm:$0xf]
        %v1529 = vld [vmem:[%s6 + $0x4] sm:$0xf]
        %v1530 = vld [vmem:[%s6 + $0x8] sm:$0xf]
        %v1531 = vld [vmem:[%s6 + $0xc] sm:$0xf]
        %v1532 = vld [vmem:[%s6 + $0x10] sm:$0xf]
        %v1533 = vld [vmem:[%s6 + $0x14] sm:$0xf]
        %v1534 = vld [vmem:[%s6 + $0x18] sm:$0xf]
        %v1535 = vld [vmem:[%s6 + $0x1c] sm:$0xf]
        %v1536 = vld [vmem:[%s6 + $0x20] sm:$0xf]
        %v1537 = vld [vmem:[%s6 + $0x24] sm:$0xf]
        %v1538 = vld [vmem:[%s6 + $0x28] sm:$0xf]
        %v1539 = vld [vmem:[%s6 + $0x2c] sm:$0xf]
        %v1540 = vld [vmem:[%s6 + $0x30] sm:$0xf]
        %v1541 = vld [vmem:[%s6 + $0x34] sm:$0xf]
        %v1542 = vld [vmem:[%s6 + $0x38] sm:$0xf]
        %v1543 = vld [vmem:[%s6 + $0x3c] sm:$0xf]
        %v1560 = vunpack.c.l.b16 %v1528
        %v1561 = vunpack.c.l.b16 %v1529
        %v1562 = vunpack.c.l.b16 %v1530
        %v1563 = vunpack.c.l.b16 %v1531
        %v1564 = vunpack.c.l.b16 %v1532
        %v1565 = vunpack.c.l.b16 %v1533
        %v1566 = vunpack.c.l.b16 %v1534
        %v1567 = vunpack.c.l.b16 %v1535
        %v1568 = vunpack.c.l.b16 %v1536
        %v1569 = vunpack.c.l.b16 %v1537
        %v1570 = vunpack.c.l.b16 %v1538
        %v1571 = vunpack.c.l.b16 %v1539
        %v1572 = vunpack.c.l.b16 %v1540
        %v1573 = vunpack.c.l.b16 %v1541
        %v1574 = vunpack.c.l.b16 %v1542
        %v1575 = vunpack.c.l.b16 %v1543
        %v1576 = vpack.c.b16 %v1561, %v1560
        %v1577 = vpack.c.b16 %v1563, %v1562
        %v1578 = vpack.c.b16 %v1565, %v1564
        %v1579 = vpack.c.b16 %v1567, %v1566
        %v1580 = vpack.c.b16 %v1569, %v1568
        %v1581 = vpack.c.b16 %v1571, %v1570
        %v1582 = vpack.c.b16 %v1573, %v1572
        %v1583 = vpack.c.b16 %v1575, %v1574
        %1592 = vmatprep.subr.bf16.mxu0 0
        %1593 = vmatpush1.bf16.msra.mxu0 %v1576
        %1594 = vmatprep.subr.bf16.mxu0 0
        %1595 = vmatpush1.bf16.msra.mxu0 %v1577
        %1596 = vmatprep.subr.bf16.mxu0 0
        %1597 = vmatpush1.bf16.msra.mxu0 %v1578
        %1598 = vmatprep.subr.bf16.mxu0 0
        %1599 = vmatpush1.bf16.msra.mxu0 %v1579
        %1600 = vmatprep.subr.bf16.mxu0 0
        %1601 = vmatpush1.bf16.msra.mxu0 %v1580
        %1602 = vmatprep.subr.bf16.mxu0 0
        %1603 = vmatpush1.bf16.msra.mxu0 %v1581
        %1604 = vmatprep.subr.bf16.mxu0 0
        %1605 = vmatpush1.bf16.msra.mxu0 %v1582
        %1606 = vmatprep.subr.bf16.mxu0 0
        %1607 = vmatpush1.bf16.msra.mxu0 %v1583
        %1608 = vmatprep.subr.bf16.mxu0 0
        %1609 = vmatpush1.bf16.msra.mxu0 0
        %1610 = vmatprep.subr.bf16.mxu0 0
        %1611 = vmatpush1.bf16.msra.mxu0 0
        %1612 = vmatprep.subr.bf16.mxu0 0
        %1613 = vmatpush1.bf16.msra.mxu0 0
        %1614 = vmatprep.subr.bf16.mxu0 0
        %1615 = vmatpush1.bf16.msra.mxu0 0
        %1616 = vmatprep.subr.bf16.mxu0 0
        %1617 = vmatpush1.bf16.msra.mxu0 0
        %1618 = vmatprep.subr.bf16.mxu0 0
        %1619 = vmatpush1.bf16.msra.mxu0 0
        %1620 = vmatprep.subr.bf16.mxu0 0
        %1621 = vmatpush1.bf16.msra.mxu0 0
        %1622 = vmatprep.subr.bf16.mxu0 0
        %1623 = vmatpush1.bf16.msra.mxu0 0
        %1624 = vmatprep.mubr.bf16.mxu0 0
        %1625 = vmatmul.mubr.bf16.gmra.mrb[0].mxu0 %v1512
        %v1626 = vpop.f32.mrb[0].mxu0
        %v1627 = vadd.f32 0.0, %v1626
        %v1628 = vpop.f32.mrb[0].mxu0
        %v1629 = vpop.f32.mrb[0].mxu0
        %v1630 = vadd.f32 0.0, %v1629
        %v1631 = vpop.f32.mrb[0].mxu0
        %1632 = vmatprep.mubr.bf16.mxu0 0
        %1633 = vmatmul.mubr.bf16.gmra.mrb[0].mxu0 %v1513
        %v1634 = vpop.f32.mrb[0].mxu0
        %v1635 = vadd.f32 0.0, %v1634
        %v1636 = vpop.f32.mrb[0].mxu0
        %v1637 = vpop.f32.mrb[0].mxu0
        %v1638 = vadd.f32 0.0, %v1637
        %v1639 = vpop.f32.mrb[0].mxu0
        %1640 = vmatprep.mubr.bf16.mxu0 0
        %1641 = vmatmul.mubr.bf16.gmra.mrb[0].mxu0 %v1514
        %v1642 = vpop.f32.mrb[0].mxu0
        %v1643 = vadd.f32 0.0, %v1642
        %v1644 = vpop.f32.mrb[0].mxu0
        %v1645 = vpop.f32.mrb[0].mxu0
        %v1646 = vadd.f32 0.0, %v1645
        %v1647 = vpop.f32.mrb[0].mxu0
        %1648 = vmatprep.mubr.bf16.mxu0 0
        %1649 = vmatmul.mubr.bf16.gmra.mrb[0].mxu0 %v1515
        %v1650 = vpop.f32.mrb[0].mxu0
        %v1651 = vadd.f32 0.0, %v1650
        %v1652 = vpop.f32.mrb[0].mxu0
        %v1653 = vpop.f32.mrb[0].mxu0
        %v1654 = vadd.f32 0.0, %v1653
        %v1655 = vpop.f32.mrb[0].mxu0
        %1656 = vmatprep.mubr.bf16.mxu0 0
        %1657 = vmatmul.mubr.bf16.gmra.mrb[0].mxu0 %v1516
        %v1658 = vpop.f32.mrb[0].mxu0
        %v1659 = vadd.f32 0.0, %v1658
        %v1660 = vpop.f32.mrb[0].mxu0
        %v1661 = vpop.f32.mrb[0].mxu0
        %v1662 = vadd.f32 0.0, %v1661
        %v1663 = vpop.f32.mrb[0].mxu0
        %1664 = vmatprep.mubr.bf16.mxu0 0
        %1665 = vmatmul.mubr.bf16.gmra.mrb[0].mxu0 %v1517
        %v1666 = vpop.f32.mrb[0].mxu0
        %v1667 = vadd.f32 0.0, %v1666
        %v1668 = vpop.f32.mrb[0].mxu0
        %v1669 = vpop.f32.mrb[0].mxu0
        %v1670 = vadd.f32 0.0, %v1669
        %v1671 = vpop.f32.mrb[0].mxu0
        %1672 = vmatprep.mubr.bf16.mxu0 0
        %1673 = vmatmul.mubr.bf16.gmra.mrb[0].mxu0 %v1518
        %v1674 = vpop.f32.mrb[0].mxu0
        %v1675 = vadd.f32 0.0, %v1674
        %v1676 = vpop.f32.mrb[0].mxu0
        %v1677 = vpop.f32.mrb[0].mxu0
        %v1678 = vadd.f32 0.0, %v1677
        %v1679 = vpop.f32.mrb[0].mxu0
        %1680 = vmatprep.mubr.bf16.mxu0 0
        %1681 = vmatmul.mubr.bf16.gmra.mrb[0].mxu0 %v1519
        %v1682 = vpop.f32.mrb[0].mxu0
        %v1683 = vadd.f32 0.0, %v1682
        %v1684 = vpop.f32.mrb[0].mxu0
        %v1685 = vpop.f32.mrb[0].mxu0
        %v1686 = vadd.f32 0.0, %v1685
        %v1687 = vpop.f32.mrb[0].mxu0
        %1688 = vmatprep.mubr.bf16.mxu0 0
        %1689 = vmatmul.mubr.bf16.gmra.mrb[0].mxu0 %v1520
        %v1690 = vpop.f32.mrb[0].mxu0
        %v1691 = vadd.f32 0.0, %v1690
        %v1692 = vpop.f32.mrb[0].mxu0
        %v1693 = vpop.f32.mrb[0].mxu0
        %v1694 = vadd.f32 0.0, %v1693
        %v1695 = vpop.f32.mrb[0].mxu0
        %1696 = vmatprep.mubr.bf16.mxu0 0
        %1697 = vmatmul.mubr.bf16.gmra.mrb[0].mxu0 %v1521
        %v1698 = vpop.f32.mrb[0].mxu0
        %v1699 = vadd.f32 0.0, %v1698
        %v1700 = vpop.f32.mrb[0].mxu0
        %v1701 = vpop.f32.mrb[0].mxu0
        %v1702 = vadd.f32 0.0, %v1701
        %v1703 = vpop.f32.mrb[0].mxu0
        %1704 = vmatprep.mubr.bf16.mxu0 0
        %1705 = vmatmul.mubr.bf16.gmra.mrb[0].mxu0 %v1522
        %v1706 = vpop.f32.mrb[0].mxu0
        %v1707 = vadd.f32 0.0, %v1706
        %v1708 = vpop.f32.mrb[0].mxu0
        %v1709 = vpop.f32.mrb[0].mxu0
        %v1710 = vadd.f32 0.0, %v1709
        %v1711 = vpop.f32.mrb[0].mxu0
        %1712 = vmatprep.mubr.bf16.mxu0 0
        %1713 = vmatmul.mubr.bf16.gmra.mrb[0].mxu0 %v1523
        %v1714 = vpop.f32.mrb[0].mxu0
        %v1715 = vadd.f32 0.0, %v1714
        %v1716 = vpop.f32.mrb[0].mxu0
        %v1717 = vpop.f32.mrb[0].mxu0
        %v1718 = vadd.f32 0.0, %v1717
        %v1719 = vpop.f32.mrb[0].mxu0
        %1720 = vmatprep.mubr.bf16.mxu0 0
        %1721 = vmatmul.mubr.bf16.gmra.mrb[0].mxu0 %v1524
        %v1722 = vpop.f32.mrb[0].mxu0
        %v1723 = vadd.f32 0.0, %v1722
        %v1724 = vpop.f32.mrb[0].mxu0
        %v1725 = vpop.f32.mrb[0].mxu0
        %v1726 = vadd.f32 0.0, %v1725
        %v1727 = vpop.f32.mrb[0].mxu0
        %1728 = vmatprep.mubr.bf16.mxu0 0
        %1729 = vmatmul.mubr.bf16.gmra.mrb[0].mxu0 %v1525
        %v1730 = vpop.f32.mrb[0].mxu0
        %v1731 = vadd.f32 0.0, %v1730
        %v1732 = vpop.f32.mrb[0].mxu0
        %v1733 = vpop.f32.mrb[0].mxu0
        %v1734 = vadd.f32 0.0, %v1733
        %v1735 = vpop.f32.mrb[0].mxu0
        %1736 = vmatprep.mubr.bf16.mxu0 0
        %1737 = vmatmul.mubr.bf16.gmra.mrb[0].mxu0 %v1526
        %v1738 = vpop.f32.mrb[0].mxu0
        %v1739 = vadd.f32 0.0, %v1738
        %v1740 = vpop.f32.mrb[0].mxu0
        %v1741 = vpop.f32.mrb[0].mxu0
        %v1742 = vadd.f32 0.0, %v1741
        %v1743 = vpop.f32.mrb[0].mxu0
        %1744 = vmatprep.mubr.bf16.mxu0 0
        %1745 = vmatmul.mubr.bf16.gmra.mrb[0].mxu0 %v1527
        %v1746 = vpop.f32.mrb[0].mxu0
        %v1747 = vadd.f32 0.0, %v1746
        %v1748 = vpop.f32.mrb[0].mxu0
        %v1749 = vpop.f32.mrb[0].mxu0
        %v1750 = vadd.f32 0.0, %v1749
        %v1751 = vpop.f32.mrb[0].mxu0
        %1752 = vdwg.mxu0
        %v1785 = vunpack.c.l.b16 %v1464
        %v1786 = vunpack.c.l.b16 %v1465
        %v1787 = vunpack.c.l.b16 %v1466
        %v1788 = vunpack.c.l.b16 %v1467
        %v1789 = vunpack.c.l.b16 %v1468
        %v1790 = vunpack.c.l.b16 %v1469
        %v1791 = vunpack.c.l.b16 %v1470
        %v1792 = vunpack.c.l.b16 %v1471
        %v1793 = vunpack.c.l.b16 %v1472
        %v1794 = vunpack.c.l.b16 %v1473
        %v1795 = vunpack.c.l.b16 %v1474
        %v1796 = vunpack.c.l.b16 %v1475
        %v1797 = vunpack.c.l.b16 %v1476
        %v1798 = vunpack.c.l.b16 %v1477
        %v1799 = vunpack.c.l.b16 %v1478
        %v1800 = vunpack.c.l.b16 %v1479
        %v1801 = vunpack.c.l.b16 %v1480
        %v1802 = vunpack.c.l.b16 %v1481
        %v1803 = vunpack.c.l.b16 %v1482
        %v1804 = vunpack.c.l.b16 %v1483
        %v1805 = vunpack.c.l.b16 %v1484
        %v1806 = vunpack.c.l.b16 %v1485
        %v1807 = vunpack.c.l.b16 %v1486
        %v1808 = vunpack.c.l.b16 %v1487
        %v1809 = vunpack.c.l.b16 %v1488
        %v1810 = vunpack.c.l.b16 %v1489
        %v1811 = vunpack.c.l.b16 %v1490
        %v1812 = vunpack.c.l.b16 %v1491
        %v1813 = vunpack.c.l.b16 %v1492
        %v1814 = vunpack.c.l.b16 %v1493
        %v1815 = vunpack.c.l.b16 %v1494
        %v1816 = vunpack.c.l.b16 %v1495
        %v1817 = vpack.c.b16 %v1786, %v1785
        %v1818 = vpack.c.b16 %v1788, %v1787
        %v1819 = vpack.c.b16 %v1790, %v1789
        %v1820 = vpack.c.b16 %v1792, %v1791
        %v1821 = vpack.c.b16 %v1794, %v1793
        %v1822 = vpack.c.b16 %v1796, %v1795
        %v1823 = vpack.c.b16 %v1798, %v1797
        %v1824 = vpack.c.b16 %v1800, %v1799
        %v1825 = vpack.c.b16 %v1802, %v1801
        %v1826 = vpack.c.b16 %v1804, %v1803
        %v1827 = vpack.c.b16 %v1806, %v1805
        %v1828 = vpack.c.b16 %v1808, %v1807
        %v1829 = vpack.c.b16 %v1810, %v1809
        %v1830 = vpack.c.b16 %v1812, %v1811
        %v1831 = vpack.c.b16 %v1814, %v1813
        %v1832 = vpack.c.b16 %v1816, %v1815
        %v1865 = vunpack.c.l.b16 %v1496
        %v1866 = vunpack.c.l.b16 %v1497
        %v1867 = vunpack.c.l.b16 %v1498
        %v1868 = vunpack.c.l.b16 %v1499
        %v1869 = vunpack.c.l.b16 %v1500
        %v1870 = vunpack.c.l.b16 %v1501
        %v1871 = vunpack.c.l.b16 %v1502
        %v1872 = vunpack.c.l.b16 %v1503
        %v1873 = vunpack.c.l.b16 %v1504
        %v1874 = vunpack.c.l.b16 %v1505
        %v1875 = vunpack.c.l.b16 %v1506
        %v1876 = vunpack.c.l.b16 %v1507
        %v1877 = vunpack.c.l.b16 %v1508
        %v1878 = vunpack.c.l.b16 %v1509
        %v1879 = vunpack.c.l.b16 %v1510
        %v1880 = vunpack.c.l.b16 %v1511
        %v1881 = vpack.c.b16 %v1866, %v1865
        %v1882 = vpack.c.b16 %v1868, %v1867
        %v1883 = vpack.c.b16 %v1870, %v1869
        %v1884 = vpack.c.b16 %v1872, %v1871
        %v1885 = vpack.c.b16 %v1874, %v1873
        %v1886 = vpack.c.b16 %v1876, %v1875
        %v1887 = vpack.c.b16 %v1878, %v1877
        %v1888 = vpack.c.b16 %v1880, %v1879
        %1897 = vmatprep.subr.bf16.mxu0 0
        %1898 = vmatpush1.bf16.msra.mxu0 %v1881
        %1899 = vmatprep.subr.bf16.mxu0 0
        %1900 = vmatpush1.bf16.msra.mxu0 %v1882
        %1901 = vmatprep.subr.bf16.mxu0 0
        %1902 = vmatpush1.bf16.msra.mxu0 %v1883
        %1903 = vmatprep.subr.bf16.mxu0 0
        %1904 = vmatpush1.bf16.msra.mxu0 %v1884
        %1905 = vmatprep.subr.bf16.mxu0 0
        %1906 = vmatpush1.bf16.msra.mxu0 %v1885
        %1907 = vmatprep.subr.bf16.mxu0 0
        %1908 = vmatpush1.bf16.msra.mxu0 %v1886
        %1909 = vmatprep.subr.bf16.mxu0 0
        %1910 = vmatpush1.bf16.msra.mxu0 %v1887
        %1911 = vmatprep.subr.bf16.mxu0 0
        %1912 = vmatpush1.bf16.msra.mxu0 %v1888
        %1913 = vmatprep.subr.bf16.mxu0 0
        %1914 = vmatpush1.bf16.msra.mxu0 0
        %1915 = vmatprep.subr.bf16.mxu0 0
        %1916 = vmatpush1.bf16.msra.mxu0 0
        %1917 = vmatprep.subr.bf16.mxu0 0
        %1918 = vmatpush1.bf16.msra.mxu0 0
        %1919 = vmatprep.subr.bf16.mxu0 0
        %1920 = vmatpush1.bf16.msra.mxu0 0
        %1921 = vmatprep.subr.bf16.mxu0 0
        %1922 = vmatpush1.bf16.msra.mxu0 0
        %1923 = vmatprep.subr.bf16.mxu0 0
        %1924 = vmatpush1.bf16.msra.mxu0 0
        %1925 = vmatprep.subr.bf16.mxu0 0
        %1926 = vmatpush1.bf16.msra.mxu0 0
        %1927 = vmatprep.subr.bf16.mxu0 0
        %1928 = vmatpush1.bf16.msra.mxu0 0
        %1929 = vmatprep.mubr.bf16.mxu0 0
        %1930 = vmatmul.mubr.bf16.gmra.mrb[0].mxu0 %v1817
        %v1931 = vpop.f32.mrb[0].mxu0
        %v1932 = vadd.f32 %v1627, %v1931
        %v1933 = vpop.f32.mrb[0].mxu0
        %v1934 = vpop.f32.mrb[0].mxu0
        %v1935 = vadd.f32 %v1630, %v1934
        %v1936 = vpop.f32.mrb[0].mxu0
        %1937 = vmatprep.mubr.bf16.mxu0 0
        %1938 = vmatmul.mubr.bf16.gmra.mrb[0].mxu0 %v1818
        %v1939 = vpop.f32.mrb[0].mxu0
        %v1940 = vadd.f32 %v1635, %v1939
        %v1941 = vpop.f32.mrb[0].mxu0
        %v1942 = vpop.f32.mrb[0].mxu0
        %v1943 = vadd.f32 %v1638, %v1942
        %v1944 = vpop.f32.mrb[0].mxu0
        %1945 = vmatprep.mubr.bf16.mxu0 0
        %1946 = vmatmul.mubr.bf16.gmra.mrb[0].mxu0 %v1819
        %v1947 = vpop.f32.mrb[0].mxu0
        %v1948 = vadd.f32 %v1643, %v1947
        %v1949 = vpop.f32.mrb[0].mxu0
        %v1950 = vpop.f32.mrb[0].mxu0
        %v1951 = vadd.f32 %v1646, %v1950
        %v1952 = vpop.f32.mrb[0].mxu0
        %1953 = vmatprep.mubr.bf16.mxu0 0
        %1954 = vmatmul.mubr.bf16.gmra.mrb[0].mxu0 %v1820
        %v1955 = vpop.f32.mrb[0].mxu0
        %v1956 = vadd.f32 %v1651, %v1955
        %v1957 = vpop.f32.mrb[0].mxu0
        %v1958 = vpop.f32.mrb[0].mxu0
        %v1959 = vadd.f32 %v1654, %v1958
        %v1960 = vpop.f32.mrb[0].mxu0
        %1961 = vmatprep.mubr.bf16.mxu0 0
        %1962 = vmatmul.mubr.bf16.gmra.mrb[0].mxu0 %v1821
        %v1963 = vpop.f32.mrb[0].mxu0
        %v1964 = vadd.f32 %v1659, %v1963
        %v1965 = vpop.f32.mrb[0].mxu0
        %v1966 = vpop.f32.mrb[0].mxu0
        %v1967 = vadd.f32 %v1662, %v1966
        %v1968 = vpop.f32.mrb[0].mxu0
        %1969 = vmatprep.mubr.bf16.mxu0 0
        %1970 = vmatmul.mubr.bf16.gmra.mrb[0].mxu0 %v1822
        %v1971 = vpop.f32.mrb[0].mxu0
        %v1972 = vadd.f32 %v1667, %v1971
        %v1973 = vpop.f32.mrb[0].mxu0
        %v1974 = vpop.f32.mrb[0].mxu0
        %v1975 = vadd.f32 %v1670, %v1974
        %v1976 = vpop.f32.mrb[0].mxu0
        %1977 = vmatprep.mubr.bf16.mxu0 0
        %1978 = vmatmul.mubr.bf16.gmra.mrb[0].mxu0 %v1823
        %v1979 = vpop.f32.mrb[0].mxu0
        %v1980 = vadd.f32 %v1675, %v1979
        %v1981 = vpop.f32.mrb[0].mxu0
        %v1982 = vpop.f32.mrb[0].mxu0
        %v1983 = vadd.f32 %v1678, %v1982
        %v1984 = vpop.f32.mrb[0].mxu0
        %1985 = vmatprep.mubr.bf16.mxu0 0
        %1986 = vmatmul.mubr.bf16.gmra.mrb[0].mxu0 %v1824
        %v1987 = vpop.f32.mrb[0].mxu0
        %v1988 = vadd.f32 %v1683, %v1987
        %v1989 = vpop.f32.mrb[0].mxu0
        %v1990 = vpop.f32.mrb[0].mxu0
        %v1991 = vadd.f32 %v1686, %v1990
        %v1992 = vpop.f32.mrb[0].mxu0
        %1993 = vmatprep.mubr.bf16.mxu0 0
        %1994 = vmatmul.mubr.bf16.gmra.mrb[0].mxu0 %v1825
        %v1995 = vpop.f32.mrb[0].mxu0
        %v1996 = vadd.f32 %v1691, %v1995
        %v1997 = vpop.f32.mrb[0].mxu0
        %v1998 = vpop.f32.mrb[0].mxu0
        %v1999 = vadd.f32 %v1694, %v1998
        %v2000 = vpop.f32.mrb[0].mxu0
        %2001 = vmatprep.mubr.bf16.mxu0 0
        %2002 = vmatmul.mubr.bf16.gmra.mrb[0].mxu0 %v1826
        %v2003 = vpop.f32.mrb[0].mxu0
        %v2004 = vadd.f32 %v1699, %v2003
        %v2005 = vpop.f32.mrb[0].mxu0
        %v2006 = vpop.f32.mrb[0].mxu0
        %v2007 = vadd.f32 %v1702, %v2006
        %v2008 = vpop.f32.mrb[0].mxu0
        %2009 = vmatprep.mubr.bf16.mxu0 0
        %2010 = vmatmul.mubr.bf16.gmra.mrb[0].mxu0 %v1827
        %v2011 = vpop.f32.mrb[0].mxu0
        %v2012 = vadd.f32 %v1707, %v2011
        %v2013 = vpop.f32.mrb[0].mxu0
        %v2014 = vpop.f32.mrb[0].mxu0
        %v2015 = vadd.f32 %v1710, %v2014
        %v2016 = vpop.f32.mrb[0].mxu0
        %2017 = vmatprep.mubr.bf16.mxu0 0
        %2018 = vmatmul.mubr.bf16.gmra.mrb[0].mxu0 %v1828
        %v2019 = vpop.f32.mrb[0].mxu0
        %v2020 = vadd.f32 %v1715, %v2019
        %v2021 = vpop.f32.mrb[0].mxu0
        %v2022 = vpop.f32.mrb[0].mxu0
        %v2023 = vadd.f32 %v1718, %v2022
        %v2024 = vpop.f32.mrb[0].mxu0
        %2025 = vmatprep.mubr.bf16.mxu0 0
        %2026 = vmatmul.mubr.bf16.gmra.mrb[0].mxu0 %v1829
        %v2027 = vpop.f32.mrb[0].mxu0
        %v2028 = vadd.f32 %v1723, %v2027
        %v2029 = vpop.f32.mrb[0].mxu0
        %v2030 = vpop.f32.mrb[0].mxu0
        %v2031 = vadd.f32 %v1726, %v2030
        %v2032 = vpop.f32.mrb[0].mxu0
        %2033 = vmatprep.mubr.bf16.mxu0 0
        %2034 = vmatmul.mubr.bf16.gmra.mrb[0].mxu0 %v1830
        %v2035 = vpop.f32.mrb[0].mxu0
        %v2036 = vadd.f32 %v1731, %v2035
        %v2037 = vpop.f32.mrb[0].mxu0
        %v2038 = vpop.f32.mrb[0].mxu0
        %v2039 = vadd.f32 %v1734, %v2038
        %v2040 = vpop.f32.mrb[0].mxu0
        %2041 = vmatprep.mubr.bf16.mxu0 0
        %2042 = vmatmul.mubr.bf16.gmra.mrb[0].mxu0 %v1831
        %v2043 = vpop.f32.mrb[0].mxu0
        %v2044 = vadd.f32 %v1739, %v2043
        %v2045 = vpop.f32.mrb[0].mxu0
        %v2046 = vpop.f32.mrb[0].mxu0
        %v2047 = vadd.f32 %v1742, %v2046
        %v2048 = vpop.f32.mrb[0].mxu0
        %2049 = vmatprep.mubr.bf16.mxu0 0
        %2050 = vmatmul.mubr.bf16.gmra.mrb[0].mxu0 %v1832
        %v2051 = vpop.f32.mrb[0].mxu0
        %v2052 = vadd.f32 %v1747, %v2051
        %v2053 = vpop.f32.mrb[0].mxu0
        %v2054 = vpop.f32.mrb[0].mxu0
        %v2055 = vadd.f32 %v1750, %v2054
        %v2056 = vpop.f32.mrb[0].mxu0
        %2057 = vdwg.mxu0
        %v2058 = vld [vmem:[%s7] sm:$0x1]
        %v2060 = vlaneseq
        %v2061 = vshrl.u32 %v2060, 7
        %v2062 = vsub.s32 0, %v2061
        %v2063 = vrot.slane %v2058, %v2062
        %v2065 = vadd.f32 %v1932, %v2063
        %v2066 = vadd.f32 %v1935, %v2063
        %v2067 = vadd.f32 %v1940, %v2063
        %v2068 = vadd.f32 %v1943, %v2063
        %v2069 = vadd.f32 %v1948, %v2063
        %v2070 = vadd.f32 %v1951, %v2063
        %v2071 = vadd.f32 %v1956, %v2063
        %v2072 = vadd.f32 %v1959, %v2063
        %v2073 = vadd.f32 %v1964, %v2063
        %v2074 = vadd.f32 %v1967, %v2063
        %v2075 = vadd.f32 %v1972, %v2063
        %v2076 = vadd.f32 %v1975, %v2063
        %v2077 = vadd.f32 %v1980, %v2063
        %v2078 = vadd.f32 %v1983, %v2063
        %v2079 = vadd.f32 %v1988, %v2063
        %v2080 = vadd.f32 %v1991, %v2063
        %v2081 = vadd.f32 %v1996, %v2063
        %v2082 = vadd.f32 %v1999, %v2063
        %v2083 = vadd.f32 %v2004, %v2063
        %v2084 = vadd.f32 %v2007, %v2063
        %v2085 = vadd.f32 %v2012, %v2063
        %v2086 = vadd.f32 %v2015, %v2063
        %v2087 = vadd.f32 %v2020, %v2063
        %v2088 = vadd.f32 %v2023, %v2063
        %v2089 = vadd.f32 %v2028, %v2063
        %v2090 = vadd.f32 %v2031, %v2063
        %v2091 = vadd.f32 %v2036, %v2063
        %v2092 = vadd.f32 %v2039, %v2063
        %v2093 = vadd.f32 %v2044, %v2063
        %v2094 = vadd.f32 %v2047, %v2063
        %v2095 = vadd.f32 %v2052, %v2063
        %v2096 = vadd.f32 %v2055, %v2063
        %v2097 = vmax.f32 %v2065, 0.0
        %v2098 = vmax.f32 %v2066, 0.0
        %v2099 = vmax.f32 %v2067, 0.0
        %v2100 = vmax.f32 %v2068, 0.0
        %v2101 = vmax.f32 %v2069, 0.0
        %v2102 = vmax.f32 %v2070, 0.0
        %v2103 = vmax.f32 %v2071, 0.0
        %v2104 = vmax.f32 %v2072, 0.0
        %v2105 = vmax.f32 %v2073, 0.0
        %v2106 = vmax.f32 %v2074, 0.0
        %v2107 = vmax.f32 %v2075, 0.0
        %v2108 = vmax.f32 %v2076, 0.0
        %v2109 = vmax.f32 %v2077, 0.0
        %v2110 = vmax.f32 %v2078, 0.0
        %v2111 = vmax.f32 %v2079, 0.0
        %v2112 = vmax.f32 %v2080, 0.0
        %v2113 = vmax.f32 %v2081, 0.0
        %v2114 = vmax.f32 %v2082, 0.0
        %v2115 = vmax.f32 %v2083, 0.0
        %v2116 = vmax.f32 %v2084, 0.0
        %v2117 = vmax.f32 %v2085, 0.0
        %v2118 = vmax.f32 %v2086, 0.0
        %v2119 = vmax.f32 %v2087, 0.0
        %v2120 = vmax.f32 %v2088, 0.0
        %v2121 = vmax.f32 %v2089, 0.0
        %v2122 = vmax.f32 %v2090, 0.0
        %v2123 = vmax.f32 %v2091, 0.0
        %v2124 = vmax.f32 %v2092, 0.0
        %v2125 = vmax.f32 %v2093, 0.0
        %v2126 = vmax.f32 %v2094, 0.0
        %v2127 = vmax.f32 %v2095, 0.0
        %v2128 = vmax.f32 %v2096, 0.0
        %2129 = vst [vmem:[%s384] sm:$0xff] %v2097
        %2130 = vst [vmem:[%s384 + $0x8] sm:$0xff] %v2098
        %2131 = vst [vmem:[%s384 + $0x10] sm:$0xff] %v2099
        %2132 = vst [vmem:[%s384 + $0x18] sm:$0xff] %v2100
        %2133 = vst [vmem:[%s384 + $0x20] sm:$0xff] %v2101
        %2134 = vst [vmem:[%s384 + $0x28] sm:$0xff] %v2102
        %2135 = vst [vmem:[%s384 + $0x30] sm:$0xff] %v2103
        %2136 = vst [vmem:[%s384 + $0x38] sm:$0xff] %v2104
        %2137 = vst [vmem:[%s384 + $0x40] sm:$0xff] %v2105
        %2138 = vst [vmem:[%s384 + $0x48] sm:$0xff] %v2106
        %2139 = vst [vmem:[%s384 + $0x50] sm:$0xff] %v2107
        %2140 = vst [vmem:[%s384 + $0x58] sm:$0xff] %v2108
        %2141 = vst [vmem:[%s384 + $0x60] sm:$0xff] %v2109
        %2142 = vst [vmem:[%s384 + $0x68] sm:$0xff] %v2110
        %2143 = vst [vmem:[%s384 + $0x70] sm:$0xff] %v2111
        %2144 = vst [vmem:[%s384 + $0x78] sm:$0xff] %v2112
        %2145 = vst [vmem:[%s384 + $0x80] sm:$0xff] %v2113
        %2146 = vst [vmem:[%s384 + $0x88] sm:$0xff] %v2114
        %2147 = vst [vmem:[%s384 + $0x90] sm:$0xff] %v2115
        %2148 = vst [vmem:[%s384 + $0x98] sm:$0xff] %v2116
        %2149 = vst [vmem:[%s384 + $0xa0] sm:$0xff] %v2117
        %2150 = vst [vmem:[%s384 + $0xa8] sm:$0xff] %v2118
        %2151 = vst [vmem:[%s384 + $0xb0] sm:$0xff] %v2119
        %2152 = vst [vmem:[%s384 + $0xb8] sm:$0xff] %v2120
        %2153 = vst [vmem:[%s384 + $0xc0] sm:$0xff] %v2121
        %2154 = vst [vmem:[%s384 + $0xc8] sm:$0xff] %v2122
        %2155 = vst [vmem:[%s384 + $0xd0] sm:$0xff] %v2123
        %2156 = vst [vmem:[%s384 + $0xd8] sm:$0xff] %v2124
        %2157 = vst [vmem:[%s384 + $0xe0] sm:$0xff] %v2125
        %2158 = vst [vmem:[%s384 + $0xe8] sm:$0xff] %v2126
        %2159 = vst [vmem:[%s384 + $0xf0] sm:$0xff] %v2127
        %2160 = vst [vmem:[%s384 + $0xf8] sm:$0xff] %v2128
      $region60: #{model_forward.3} parent=47 // pred_fallthru
        _
      %s2161 = smul.u32 32, %s29
      %p2162 = scmp.lt.s32.totalorder %s2161, 63
      %s2163 = scalar_select %p2162, %s2161, 63
      %s2164 = smul.addr %s2163, 8
      %s2165 = scalar_lea.vmem %s8, %s2164
      // Predicated region
      $region61: #{model_forward.3} parent=47 // pred_check
        %p2166 = pneg %p224
      $region62: #{model_forward.3} parent=47 // pred_check_branch
        %2168 = sbr.rel (%p2166) target = $region64
      $region63: #{model_forward.3} parent=47 // pred_region
        %s2169 = smul.u32 32, %s29
      $region64: #{model_forward.3} parent=47 // pred_fallthru
        _
    $region48: #{model_forward.3} parent=5 // pred_fallthru
      _
    %p2170 = scmp.le.s32.totalorder 2, %s20
    // Predicated region
    $region65: #{model_forward.3} parent=5 // pred_check
      %p2171 = pneg %p2170
    $region66: #{model_forward.3} parent=5 // pred_check_branch
      %2173 = sbr.rel (%p2171) target = $region68
    $region67: #{model_forward.3} parent=5 // pred_region
      %s2174 = ssub.s32 %s20, 2
      // Predicated region
      $region69: #{model_forward.3} parent=67 // pred_check
        %p2175 = pneg %p230
      $region70: #{model_forward.3} parent=67 // pred_check_branch
        %2177 = sbr.rel (%p2175) target = $region72
      $region71: #{model_forward.3} parent=67 // pred_region
        %s2178 = smul.u32 32, %s31
        %p2179 = scmp.lt.s32.totalorder %s2178, 63
        %s2180 = scalar_select %p2179, %s2178, 63
        %s2181 = smul.addr %s2180, 8
        %s2182 = scalar_lea.vmem %s8, %s2181
      $region72: #{model_forward.3} parent=67 // pred_fallthru
        _
    $region68: #{model_forward.3} parent=5 // pred_fallthru
      _
  $region6: #{model_forward.3} parent=0 // loop_footer
    %s24 = sadd.s32 1, %s20
  $region7: #{model_forward.3} parent=0 // loop_footer_branch
    %19 = sbr.rel target = $region3
  $region8: #{model_forward.3} parent=0 // loop_exit
    _

// kernel: model_forward.4
$region0: #{model_forward.4}
  #allocation0 [shape = 'u32[]', space=smem, size = 0x4, offset = 0x4, fixed_abs, tag = 'smem constant byte address 0x4 - core index']
  #allocation1 [shape = 'u32[144,128]{1,0:T(1,128)}', space=vmem, size = 0x12000, scoped, tag = 'internal scratch']
  #allocation2 [shape = 'f32[256,128]{1,0:T(8,128)}', space=vmem, size = 0x20000, scoped, tag = 'scratch operand']
  #allocation3 [shape = 's32[1]{0}', space=sflag, size = 0x4, scoped, tag = 'scoped memory for model_forward.4']
  #allocation4 [shape = 'u8[1024]{0}', space=smem, size = 0x400, scoped, tag = 'prefetched SMEM operand 0']
  %s0 = inlined_call_operand.vmem [shape: s32[2,1], index: 0, kind: input, shape index: {}]
  %s1 = inlined_call_operand.vmem [shape: s8[512,512], index: 1, kind: input, shape index: {}]
  %s2 = inlined_call_operand.vmem [shape: bf16[512,128], index: 2, kind: input, shape index: {}, may-alias: {2,3}]
  %s3 = inlined_call_operand.vmem [shape: bf16[512,128], index: 3, kind: input, shape index: {}, may-alias: {2,3}]
  %s4 = inlined_call_operand.vmem [shape: f32[512,1], index: 4, kind: input, shape index: {}]
  %s5 = inlined_call_operand.vmem [shape: bf16[128,128], index: 5, kind: input, shape index: {}]
  %s6 = inlined_call_operand.vmem [shape: bf16[128,128], index: 6, kind: input, shape index: {}]
  %s7 = inlined_call_operand.vmem [shape: f32[1,128], index: 7, kind: input, shape index: {}]
  %s8 = inlined_call_operand.vmem [shape: f32[512,128], index: 8, kind: output, shape index: {}]
  %s9 = sld [smem:[#allocation0]]
  $region73: #{model_forward.4} parent=0
    _
  %s11 = ssub.s32 1, %s9
  %s12 = scalar_select 0, %s11, %s9
  %s13 = sshll.u32 %s0, 4
  %s14 = int_to_ptr.vmem [resolvable:$true] %s13
  %16 = dma.vmem_to_smem %s14, 32, [#allocation4], [#allocation3]
  %17 = dma.done [#allocation3], 32
  %18 = sfence
  loop: start=0, step=1, limit=4
  $region2: #{model_forward.4} parent=0 // loop_pre_header
    _
  $region3: #{model_forward.4} parent=0 // loop_header
    %s20 = sphi 0, %s24
    %p21 = scmp.ge.s32.totalorder %s20, 4
    %s27 = sphi 0, %s39
    %s28 = sphi 0, %s35
    %s29 = sphi 0, %s27
    %s30 = sphi 0, %s28
    %s31 = sphi 0, %s29
    %s32 = sphi 0, %s30
    %s44 = sphi 0, %s46
    %s47 = sphi 0, %s44
    %s48 = sphi 0, %s47
    %s64 = sphi 0, %s48
    %s70 = sphi 0, %s72
    %s73 = sphi 0, %s70
    %s74 = sphi 0, %s73
    %s90 = sphi 0, %s74
    %s96 = sphi 0, %s98
    %s99 = sphi 0, %s96
    %s100 = sphi 0, %s99
    %s116 = sphi 0, %s100
    %s122 = sphi 0, %s124
    %s125 = sphi 0, %s122
    %s126 = sphi 0, %s125
    %s142 = sphi 0, %s126
    %s146 = sphi 0, %s146
    %s148 = sphi 0, %s146
    %s149 = sphi 0, %s148
    %s163 = sphi 0, %s149
    %s167 = sphi 0, %s167
    %s169 = sphi 0, %s167
    %s170 = sphi 0, %s169
    %s184 = sphi 0, %s170
    %s188 = sphi 0, %s188
    %s190 = sphi 0, %s188
    %s191 = sphi 0, %s190
    %s205 = sphi 0, %s191
    %s211 = sphi 0, %s213
    %s214 = sphi 0, %s211
    %s215 = sphi 0, %s214
    %s231 = sphi 0, %s215
  $region4: #{model_forward.4} parent=0 // loop_header_branch
    %23 = sbr.rel (%p21) target = $region8
  $region5: #{model_forward.4} parent=0 // loop_body
    %s25 = ssub.s32 %s20, 1
    %s26 = ssub.s32 %s20, 2
    %s33 = sadd.s32 1, %s28
    %p34 = scmp.ge.s32.totalorder %s33, 1
    %s35 = scalar_select %p34, 0, %s33
    %s36 = sadd.s32 1, %s27
    %s37 = scalar_select %p34, %s36, %s27
    %p38 = scmp.ge.s32.totalorder %s37, 2
    %s39 = scalar_select %p38, 0, %s37
    %s40 = ssub.s32 %s27, %s39
    %s41 = ssub.s32 %s28, %s35
    %s42 = sor.u32 %s40, %s41
    %p43 = scmp.eq.s32.totalorder %s42, 0
    %s45 = sadd.s32 %s44, 1
    %s46 = scalar_select %p43, %s44, %s45
    %p49 = pneg %p43
    %p50 = scmp.eq.s32.totalorder %s20, 1
    %p51 = por %p49, %p50
    %p52 = scmp.ne.s32.totalorder %s44, %s47
    %p53 = scmp.eq.s32.totalorder %s20, 0
    %p54 = por %p52, %p53
    %p55 = scmp.ne.s32.totalorder %s44, %s47
    %p56 = scmp.eq.s32.totalorder %s25, 1
    %p57 = por %p55, %p56
    %p58 = scmp.ne.s32.totalorder %s47, %s48
    %p59 = scmp.eq.s32.totalorder %s25, 0
    %p60 = por %p58, %p59
    %p61 = scmp.ne.s32.totalorder %s47, %s48
    %p62 = scmp.eq.s32.totalorder %s26, 1
    %p63 = por %p61, %p62
    %p65 = scmp.ne.s32.totalorder %s48, %s64
    %p66 = scmp.eq.s32.totalorder %s26, 0
    %p67 = por %p65, %p66
    %s68 = ssub.s32 %s28, %s35
    %p69 = scmp.eq.s32.totalorder %s68, 0
    %s71 = sadd.s32 %s70, 1
    %s72 = scalar_select %p69, %s70, %s71
    %p75 = pneg %p69
    %p76 = scmp.eq.s32.totalorder %s20, 1
    %p77 = por %p75, %p76
    %p78 = scmp.ne.s32.totalorder %s70, %s73
    %p79 = scmp.eq.s32.totalorder %s20, 0
    %p80 = por %p78, %p79
    %p81 = scmp.ne.s32.totalorder %s70, %s73
    %p82 = scmp.eq.s32.totalorder %s25, 1
    %p83 = por %p81, %p82
    %p84 = scmp.ne.s32.totalorder %s73, %s74
    %p85 = scmp.eq.s32.totalorder %s25, 0
    %p86 = por %p84, %p85
    %p87 = scmp.ne.s32.totalorder %s73, %s74
    %p88 = scmp.eq.s32.totalorder %s26, 1
    %p89 = por %p87, %p88
    %p91 = scmp.ne.s32.totalorder %s74, %s90
    %p92 = scmp.eq.s32.totalorder %s26, 0
    %p93 = por %p91, %p92
    %s94 = ssub.s32 %s27, %s39
    %p95 = scmp.eq.s32.totalorder %s94, 0
    %s97 = sadd.s32 %s96, 1
    %s98 = scalar_select %p95, %s96, %s97
    %p101 = pneg %p95
    %p102 = scmp.eq.s32.totalorder %s20, 1
    %p103 = por %p101, %p102
    %p104 = scmp.ne.s32.totalorder %s96, %s99
    %p105 = scmp.eq.s32.totalorder %s20, 0
    %p106 = por %p104, %p105
    %p107 = scmp.ne.s32.totalorder %s96, %s99
    %p108 = scmp.eq.s32.totalorder %s25, 1
    %p109 = por %p107, %p108
    %p110 = scmp.ne.s32.totalorder %s99, %s100
    %p111 = scmp.eq.s32.totalorder %s25, 0
    %p112 = por %p110, %p111
    %p113 = scmp.ne.s32.totalorder %s99, %s100
    %p114 = scmp.eq.s32.totalorder %s26, 1
    %p115 = por %p113, %p114
    %p117 = scmp.ne.s32.totalorder %s100, %s116
    %p118 = scmp.eq.s32.totalorder %s26, 0
    %p119 = por %p117, %p118
    %s120 = ssub.s32 %s27, %s39
    %p121 = scmp.eq.s32.totalorder %s120, 0
    %s123 = sadd.s32 %s122, 1
    %s124 = scalar_select %p121, %s122, %s123
    %p127 = pneg %p121
    %p128 = scmp.eq.s32.totalorder %s20, 1
    %p129 = por %p127, %p128
    %p130 = scmp.ne.s32.totalorder %s122, %s125
    %p131 = scmp.eq.s32.totalorder %s20, 0
    %p132 = por %p130, %p131
    %p133 = scmp.ne.s32.totalorder %s122, %s125
    %p134 = scmp.eq.s32.totalorder %s25, 1
    %p135 = por %p133, %p134
    %p136 = scmp.ne.s32.totalorder %s125, %s126
    %p137 = scmp.eq.s32.totalorder %s25, 0
    %p138 = por %p136, %p137
    %p139 = scmp.ne.s32.totalorder %s125, %s126
    %p140 = scmp.eq.s32.totalorder %s26, 1
    %p141 = por %p139, %p140
    %p143 = scmp.ne.s32.totalorder %s126, %s142
    %p144 = scmp.eq.s32.totalorder %s26, 0
    %p145 = por %p143, %p144
    %s147 = sadd.s32 %s146, 1
    %p150 = scmp.eq.s32.totalorder %s20, 1
    %p151 = scmp.ne.s32.totalorder %s146, %s148
    %p152 = scmp.eq.s32.totalorder %s20, 0
    %p153 = por %p151, %p152
    %p154 = scmp.ne.s32.totalorder %s146, %s148
    %p155 = scmp.eq.s32.totalorder %s25, 1
    %p156 = por %p154, %p155
    %p157 = scmp.ne.s32.totalorder %s148, %s149
    %p158 = scmp.eq.s32.totalorder %s25, 0
    %p159 = por %p157, %p158
    %p160 = scmp.ne.s32.totalorder %s148, %s149
    %p161 = scmp.eq.s32.totalorder %s26, 1
    %p162 = por %p160, %p161
    %p164 = scmp.ne.s32.totalorder %s149, %s163
    %p165 = scmp.eq.s32.totalorder %s26, 0
    %p166 = por %p164, %p165
    %s168 = sadd.s32 %s167, 1
    %p171 = scmp.eq.s32.totalorder %s20, 1
    %p172 = scmp.ne.s32.totalorder %s167, %s169
    %p173 = scmp.eq.s32.totalorder %s20, 0
    %p174 = por %p172, %p173
    %p175 = scmp.ne.s32.totalorder %s167, %s169
    %p176 = scmp.eq.s32.totalorder %s25, 1
    %p177 = por %p175, %p176
    %p178 = scmp.ne.s32.totalorder %s169, %s170
    %p179 = scmp.eq.s32.totalorder %s25, 0
    %p180 = por %p178, %p179
    %p181 = scmp.ne.s32.totalorder %s169, %s170
    %p182 = scmp.eq.s32.totalorder %s26, 1
    %p183 = por %p181, %p182
    %p185 = scmp.ne.s32.totalorder %s170, %s184
    %p186 = scmp.eq.s32.totalorder %s26, 0
    %p187 = por %p185, %p186
    %s189 = sadd.s32 %s188, 1
    %p192 = scmp.eq.s32.totalorder %s20, 1
    %p193 = scmp.ne.s32.totalorder %s188, %s190
    %p194 = scmp.eq.s32.totalorder %s20, 0
    %p195 = por %p193, %p194
    %p196 = scmp.ne.s32.totalorder %s188, %s190
    %p197 = scmp.eq.s32.totalorder %s25, 1
    %p198 = por %p196, %p197
    %p199 = scmp.ne.s32.totalorder %s190, %s191
    %p200 = scmp.eq.s32.totalorder %s25, 0
    %p201 = por %p199, %p200
    %p202 = scmp.ne.s32.totalorder %s190, %s191
    %p203 = scmp.eq.s32.totalorder %s26, 1
    %p204 = por %p202, %p203
    %p206 = scmp.ne.s32.totalorder %s191, %s205
    %p207 = scmp.eq.s32.totalorder %s26, 0
    %p208 = por %p206, %p207
    %s209 = ssub.s32 %s27, %s39
    %p210 = scmp.eq.s32.totalorder %s209, 0
    %s212 = sadd.s32 %s211, 1
    %s213 = scalar_select %p210, %s211, %s212
    %p216 = pneg %p210
    %p217 = scmp.eq.s32.totalorder %s20, 1
    %p218 = por %p216, %p217
    %p219 = scmp.ne.s32.totalorder %s211, %s214
    %p220 = scmp.eq.s32.totalorder %s20, 0
    %p221 = por %p219, %p220
    %p222 = scmp.ne.s32.totalorder %s211, %s214
    %p223 = scmp.eq.s32.totalorder %s25, 1
    %p224 = por %p222, %p223
    %p225 = scmp.ne.s32.totalorder %s214, %s215
    %p226 = scmp.eq.s32.totalorder %s25, 0
    %p227 = por %p225, %p226
    %p228 = scmp.ne.s32.totalorder %s214, %s215
    %p229 = scmp.eq.s32.totalorder %s26, 1
    %p230 = por %p228, %p229
    %p232 = scmp.ne.s32.totalorder %s215, %s231
    %p233 = scmp.eq.s32.totalorder %s26, 0
    %p234 = por %p232, %p233
    %p235 = scmp.le.s32.totalorder 1, %s20
    %p236 = scmp.lt.s32.totalorder %s20, 3
    %p237 = pnand %p235, %p236
    %p238 = pneg %p237
    // Predicated region
    $region9: #{model_forward.4} parent=5 // pred_check
      _
    $region10: #{model_forward.4} parent=5 // pred_check_branch
      %240 = sbr.rel (%p237) target = $region12
    $region11: #{model_forward.4} parent=5 // pred_region
      %s241 = ssub.s32 %s20, 1
      // Predicated region
      $region13: #{model_forward.4} parent=11 // pred_check
        %p242 = pneg %p86
      $region14: #{model_forward.4} parent=11 // pred_check_branch
        %244 = sbr.rel (%p242) target = $region16
      $region15: #{model_forward.4} parent=11 // pred_region
        %s245 = smul.u32 64, %s30
        %p246 = scmp.lt.s32.totalorder %s245, 63
        %s247 = scalar_select %p246, %s245, 63
        %s248 = smul.addr %s247, 4
        %s249 = scalar_lea.vmem %s2, %s248
        %s250 = smul.u32 64, %s30
      $region16: #{model_forward.4} parent=11 // pred_fallthru
        _
      // Predicated region
      $region17: #{model_forward.4} parent=11 // pred_check
        %p251 = pneg %p159
      $region18: #{model_forward.4} parent=11 // pred_check_branch
        %253 = sbr.rel (%p251) target = $region20
      $region19: #{model_forward.4} parent=11 // pred_region
        _
      $region20: #{model_forward.4} parent=11 // pred_fallthru
        _
      // Predicated region
      $region21: #{model_forward.4} parent=11 // pred_check
        %p254 = pneg %p180
      $region22: #{model_forward.4} parent=11 // pred_check_branch
        %256 = sbr.rel (%p254) target = $region24
      $region23: #{model_forward.4} parent=11 // pred_region
        _
      $region24: #{model_forward.4} parent=11 // pred_fallthru
        _
      // Predicated region
      $region25: #{model_forward.4} parent=11 // pred_check
        %p257 = pneg %p201
      $region26: #{model_forward.4} parent=11 // pred_check_branch
        %259 = sbr.rel (%p257) target = $region28
      $region27: #{model_forward.4} parent=11 // pred_region
        _
      $region28: #{model_forward.4} parent=11 // pred_fallthru
        _
    $region12: #{model_forward.4} parent=5 // pred_fallthru
      _
    %p260 = scmp.lt.s32.totalorder %s20, 2
    // Predicated region
    $region29: #{model_forward.4} parent=5 // pred_check
      %p261 = pneg %p260
    $region30: #{model_forward.4} parent=5 // pred_check_branch
      %263 = sbr.rel (%p261) target = $region32
    $region31: #{model_forward.4} parent=5 // pred_region
      // Predicated region
      $region33: #{model_forward.4} parent=31 // pred_check
        %p264 = pneg %p54
      $region34: #{model_forward.4} parent=31 // pred_check_branch
        %266 = sbr.rel (%p264) target = $region36
      $region35: #{model_forward.4} parent=31 // pred_region
        %s267 = smul.u32 8, %s27
        %s268 = smul.u32 4, %s28
        %p269 = scmp.lt.s32.totalorder %s267, 15
        %s270 = scalar_select %p269, %s267, 15
        %p271 = scmp.lt.s32.totalorder %s268, 3
        %s272 = scalar_select %p271, %s268, 3
        %s273 = smul.addr %s270, 4
        %s274 = sadd.s32 %s272, %s273
        %s275 = smul.addr %s274, 8
        %s276 = scalar_lea.vmem %s1, %s275
        %s277 = smul.u32 8, %s27
        %s278 = smul.u32 4, %s28
      $region36: #{model_forward.4} parent=31 // pred_fallthru
        _
      // Predicated region
      $region37: #{model_forward.4} parent=31 // pred_check
        %p279 = pneg %p106
      $region38: #{model_forward.4} parent=31 // pred_check_branch
        %281 = sbr.rel (%p279) target = $region40
      $region39: #{model_forward.4} parent=31 // pred_region
        %s282 = smul.u32 32, %s27
        %p283 = scmp.lt.s32.totalorder %s282, 63
        %s284 = scalar_select %p283, %s282, 63
        %s285 = smul.addr %s284, 4
        %s286 = scalar_lea.vmem %s3, %s285
        %s287 = smul.u32 32, %s27
      $region40: #{model_forward.4} parent=31 // pred_fallthru
        _
      // Predicated region
      $region41: #{model_forward.4} parent=31 // pred_check
        %p288 = pneg %p132
      $region42: #{model_forward.4} parent=31 // pred_check_branch
        %290 = sbr.rel (%p288) target = $region44
      $region43: #{model_forward.4} parent=31 // pred_region
        %s291 = smul.u32 32, %s27
        %p292 = scmp.lt.s32.totalorder %s291, 63
        %s293 = scalar_select %p292, %s291, 63
        %s294 = smul.addr %s293, 8
        %s295 = scalar_lea.vmem %s4, %s294
        %s296 = smul.u32 32, %s27
      $region44: #{model_forward.4} parent=31 // pred_fallthru
        _
    $region32: #{model_forward.4} parent=5 // pred_fallthru
      _
    %p297 = scmp.le.s32.totalorder 1, %s20
    %p298 = scmp.lt.s32.totalorder %s20, 3
    %p299 = pnand %p297, %p298
    %p300 = pneg %p299
    // Predicated region
    $region45: #{model_forward.4} parent=5 // pred_check
      _
    $region46: #{model_forward.4} parent=5 // pred_check_branch
      %302 = sbr.rel (%p299) target = $region48
    $region47: #{model_forward.4} parent=5 // pred_region
      %s303 = ssub.s32 %s20, 1
      %s304 = smul.u32 8, %s29
      %s305 = smul.u32 4, %s30
      %p306 = scmp.lt.s32.totalorder %s304, 15
      %s307 = scalar_select %p306, %s304, 15
      %p308 = scmp.lt.s32.totalorder %s305, 3
      %s309 = scalar_select %p308, %s305, 3
      %s310 = smul.addr %s307, 4
      %s311 = sadd.s32 %s309, %s310
      %s312 = smul.addr %s311, 8
      %s313 = scalar_lea.vmem %s1, %s312
      %p314 = pneg %p60
      %p315 = pneg %p57
      %s316 = smul.u32 64, %s30
      %p317 = scmp.lt.s32.totalorder %s316, 63
      %s318 = scalar_select %p317, %s316, 63
      %s319 = smul.addr %s318, 4
      %s320 = scalar_lea.vmem %s2, %s319
      %p321 = pneg %p86
      %p322 = pneg %p83
      %s323 = smul.u32 32, %s29
      %p324 = scmp.lt.s32.totalorder %s323, 63
      %s325 = scalar_select %p324, %s323, 63
      %s326 = smul.addr %s325, 4
      %s327 = scalar_lea.vmem %s3, %s326
      %p328 = pneg %p112
      %p329 = pneg %p109
      %s330 = smul.u32 32, %s29
      %p331 = scmp.lt.s32.totalorder %s330, 63
      %s332 = scalar_select %p331, %s330, 63
      %s333 = smul.addr %s332, 8
      %s334 = scalar_lea.vmem %s4, %s333
      %p335 = pneg %p138
      %p336 = pneg %p135
      %p337 = pneg %p159
      %p338 = pneg %p156
      %p339 = pneg %p180
      %p340 = pneg %p177
      %p341 = pneg %p201
      %p342 = pneg %p198
      %p343 = pneg %p227
      %p344 = pneg %p224
      %s345 = smul.u32 32, %s29
      %p346 = scmp.lt.s32.totalorder %s345, 63
      %s347 = scalar_select %p346, %s345, 63
      %s348 = smul.addr %s347, 8
      %s349 = scalar_lea.vmem %s8, %s348
      %s350 = smul.u32 8, %s29
      %s351 = smul.u32 4, %s30
      %p352 = scmp.lt.s32.totalorder %s350, 15
      %s353 = scalar_select %p352, %s350, 15
      %p354 = scmp.lt.s32.totalorder %s351, 3
      %s355 = scalar_select %p354, %s351, 3
      %s356 = smul.addr %s353, 4
      %s357 = sadd.s32 %s355, %s356
      %s358 = smul.addr %s357, 8
      %s359 = scalar_lea.vmem %s1, %s358
      %s360 = smul.u32 8, %s29
      %s361 = smul.u32 4, %s30
      %s362 = smul.u32 64, %s30
      %p363 = scmp.lt.s32.totalorder %s362, 63
      %s364 = scalar_select %p363, %s362, 63
      %s365 = smul.addr %s364, 4
      %s366 = scalar_lea.vmem %s2, %s365
      %s367 = smul.u32 64, %s30
      %s368 = smul.u32 32, %s29
      %p369 = scmp.lt.s32.totalorder %s368, 63
      %s370 = scalar_select %p369, %s368, 63
      %s371 = smul.addr %s370, 4
      %s372 = scalar_lea.vmem %s3, %s371
      %s373 = smul.u32 32, %s29
      %s374 = smul.u32 32, %s29
      %p375 = scmp.lt.s32.totalorder %s374, 63
      %s376 = scalar_select %p375, %s374, 63
      %s377 = smul.addr %s376, 8
      %s378 = scalar_lea.vmem %s4, %s377
      %s379 = smul.u32 32, %s29
      %s380 = smul.u32 32, %s29
      %p381 = scmp.lt.s32.totalorder %s380, 63
      %s382 = scalar_select %p381, %s380, 63
      %s383 = smul.addr %s382, 8
      %s384 = scalar_lea.vmem %s8, %s383
      %s385 = smul.u32 32, %s29
      %p387 = scmp.eq.s32.totalorder %s30, 0
      // Predicated region
      $region49: #{model_forward.4} parent=47 // pred_check
        %p388 = pneg %p387
      $region50: #{model_forward.4} parent=47 // pred_check_branch
        %390 = sbr.rel (%p388) target = $region52
      $region51: #{model_forward.4} parent=47 // pred_region
        %391 = vst [vmem:[#allocation2] sm:$0xff] 0.0
        %392 = vst [vmem:[#allocation2 + $0x8] sm:$0xff] 0.0
        %393 = vst [vmem:[#allocation2 + $0x10] sm:$0xff] 0.0
        %394 = vst [vmem:[#allocation2 + $0x18] sm:$0xff] 0.0
        %395 = vst [vmem:[#allocation2 + $0x20] sm:$0xff] 0.0
        %396 = vst [vmem:[#allocation2 + $0x28] sm:$0xff] 0.0
        %397 = vst [vmem:[#allocation2 + $0x30] sm:$0xff] 0.0
        %398 = vst [vmem:[#allocation2 + $0x38] sm:$0xff] 0.0
        %399 = vst [vmem:[#allocation2 + $0x40] sm:$0xff] 0.0
        %400 = vst [vmem:[#allocation2 + $0x48] sm:$0xff] 0.0
        %401 = vst [vmem:[#allocation2 + $0x50] sm:$0xff] 0.0
        %402 = vst [vmem:[#allocation2 + $0x58] sm:$0xff] 0.0
        %403 = vst [vmem:[#allocation2 + $0x60] sm:$0xff] 0.0
        %404 = vst [vmem:[#allocation2 + $0x68] sm:$0xff] 0.0
        %405 = vst [vmem:[#allocation2 + $0x70] sm:$0xff] 0.0
        %406 = vst [vmem:[#allocation2 + $0x78] sm:$0xff] 0.0
        %407 = vst [vmem:[#allocation2 + $0x80] sm:$0xff] 0.0
        %408 = vst [vmem:[#allocation2 + $0x88] sm:$0xff] 0.0
        %409 = vst [vmem:[#allocation2 + $0x90] sm:$0xff] 0.0
        %410 = vst [vmem:[#allocation2 + $0x98] sm:$0xff] 0.0
        %411 = vst [vmem:[#allocation2 + $0xa0] sm:$0xff] 0.0
        %412 = vst [vmem:[#allocation2 + $0xa8] sm:$0xff] 0.0
        %413 = vst [vmem:[#allocation2 + $0xb0] sm:$0xff] 0.0
        %414 = vst [vmem:[#allocation2 + $0xb8] sm:$0xff] 0.0
        %415 = vst [vmem:[#allocation2 + $0xc0] sm:$0xff] 0.0
        %416 = vst [vmem:[#allocation2 + $0xc8] sm:$0xff] 0.0
        %417 = vst [vmem:[#allocation2 + $0xd0] sm:$0xff] 0.0
        %418 = vst [vmem:[#allocation2 + $0xd8] sm:$0xff] 0.0
        %419 = vst [vmem:[#allocation2 + $0xe0] sm:$0xff] 0.0
        %420 = vst [vmem:[#allocation2 + $0xe8] sm:$0xff] 0.0
        %421 = vst [vmem:[#allocation2 + $0xf0] sm:$0xff] 0.0
        %422 = vst [vmem:[#allocation2 + $0xf8] sm:$0xff] 0.0
      $region52: #{model_forward.4} parent=47 // pred_fallthru
        _
      %s423 = sshra.s32 %s30, 7
      %s424 = sand.u32 %s30, 127
      %s425 = sadd.s32 %s423, %s29
      %s426 = smul.u32 %s425, 128
      %s427 = sshra.s32 %s30, 7
      %s428 = sand.u32 %s30, 127
      %s429 = sadd.s32 %s426, %s428
      %s430 = sld [smem:[#allocation4 + %s429]]
      %p431 = scmp.gt.s32.totalorder %s430, 0
      // Predicated region
      $region53: #{model_forward.4} parent=47 // pred_check
        %p432 = pneg %p431
      $region54: #{model_forward.4} parent=47 // pred_check_branch
        %434 = sbr.rel (%p432) target = $region56
      $region55: #{model_forward.4} parent=47 // pred_region
        %v435 = vld [vmem:[%s359] sm:$0xff]
        %v436 = vld [vmem:[%s359 + $0x8] sm:$0xff]
        %v437 = vld [vmem:[%s359 + $0x10] sm:$0xff]
        %v438 = vld [vmem:[%s359 + $0x18] sm:$0xff]
        %v439 = vld [vmem:[%s359 + $0x20] sm:$0xff]
        %v440 = vld [vmem:[%s359 + $0x28] sm:$0xff]
        %v441 = vld [vmem:[%s359 + $0x30] sm:$0xff]
        %v442 = vld [vmem:[%s359 + $0x38] sm:$0xff]
        %v443 = vld [vmem:[%s359 + $0x40] sm:$0xff]
        %v444 = vld [vmem:[%s359 + $0x48] sm:$0xff]
        %v445 = vld [vmem:[%s359 + $0x50] sm:$0xff]
        %v446 = vld [vmem:[%s359 + $0x58] sm:$0xff]
        %v447 = vld [vmem:[%s359 + $0x60] sm:$0xff]
        %v448 = vld [vmem:[%s359 + $0x68] sm:$0xff]
        %v449 = vld [vmem:[%s359 + $0x70] sm:$0xff]
        %v450 = vld [vmem:[%s359 + $0x78] sm:$0xff]
        %v451 = vld [vmem:[%s359 + $0x80] sm:$0xff]
        %v452 = vld [vmem:[%s359 + $0x88] sm:$0xff]
        %v453 = vld [vmem:[%s359 + $0x90] sm:$0xff]
        %v454 = vld [vmem:[%s359 + $0x98] sm:$0xff]
        %v455 = vld [vmem:[%s359 + $0xa0] sm:$0xff]
        %v456 = vld [vmem:[%s359 + $0xa8] sm:$0xff]
        %v457 = vld [vmem:[%s359 + $0xb0] sm:$0xff]
        %v458 = vld [vmem:[%s359 + $0xb8] sm:$0xff]
        %v459 = vld [vmem:[%s359 + $0xc0] sm:$0xff]
        %v460 = vld [vmem:[%s359 + $0xc8] sm:$0xff]
        %v461 = vld [vmem:[%s359 + $0xd0] sm:$0xff]
        %v462 = vld [vmem:[%s359 + $0xd8] sm:$0xff]
        %v463 = vld [vmem:[%s359 + $0xe0] sm:$0xff]
        %v464 = vld [vmem:[%s359 + $0xe8] sm:$0xff]
        %v465 = vld [vmem:[%s359 + $0xf0] sm:$0xff]
        %v466 = vld [vmem:[%s359 + $0xf8] sm:$0xff]
        %v467 = vunpack.c.l.s8.bf16 %v435
        %v468 = vunpack.c.l.s8.bf16 %v436
        %v469 = vunpack.c.l.s8.bf16 %v437
        %v470 = vunpack.c.l.s8.bf16 %v438
        %v471 = vunpack.c.h.s8.bf16 %v435
        %v472 = vunpack.c.h.s8.bf16 %v436
        %v473 = vunpack.c.h.s8.bf16 %v437
        %v474 = vunpack.c.h.s8.bf16 %v438
        %v475 = vunpack.c.l.s8.bf16 %v439
        %v476 = vunpack.c.l.s8.bf16 %v440
        %v477 = vunpack.c.l.s8.bf16 %v441
        %v478 = vunpack.c.l.s8.bf16 %v442
        %v479 = vunpack.c.h.s8.bf16 %v439
        %v480 = vunpack.c.h.s8.bf16 %v440
        %v481 = vunpack.c.h.s8.bf16 %v441
        %v482 = vunpack.c.h.s8.bf16 %v442
        %v483 = vunpack.c.l.s8.bf16 %v443
        %v484 = vunpack.c.l.s8.bf16 %v444
        %v485 = vunpack.c.l.s8.bf16 %v445
        %v486 = vunpack.c.l.s8.bf16 %v446
        %v487 = vunpack.c.h.s8.bf16 %v443
        %v488 = vunpack.c.h.s8.bf16 %v444
        %v489 = vunpack.c.h.s8.bf16 %v445
        %v490 = vunpack.c.h.s8.bf16 %v446
        %v491 = vunpack.c.l.s8.bf16 %v447
        %v492 = vunpack.c.l.s8.bf16 %v448
        %v493 = vunpack.c.l.s8.bf16 %v449
        %v494 = vunpack.c.l.s8.bf16 %v450
        %v495 = vunpack.c.h.s8.bf16 %v447
        %v496 = vunpack.c.h.s8.bf16 %v448
        %v497 = vunpack.c.h.s8.bf16 %v449
        %v498 = vunpack.c.h.s8.bf16 %v450
        %v499 = vunpack.c.l.s8.bf16 %v451
        %v500 = vunpack.c.l.s8.bf16 %v452
        %v501 = vunpack.c.l.s8.bf16 %v453
        %v502 = vunpack.c.l.s8.bf16 %v454
        %v503 = vunpack.c.h.s8.bf16 %v451
        %v504 = vunpack.c.h.s8.bf16 %v452
        %v505 = vunpack.c.h.s8.bf16 %v453
        %v506 = vunpack.c.h.s8.bf16 %v454
        %v507 = vunpack.c.l.s8.bf16 %v455
        %v508 = vunpack.c.l.s8.bf16 %v456
        %v509 = vunpack.c.l.s8.bf16 %v457
        %v510 = vunpack.c.l.s8.bf16 %v458
        %v511 = vunpack.c.h.s8.bf16 %v455
        %v512 = vunpack.c.h.s8.bf16 %v456
        %v513 = vunpack.c.h.s8.bf16 %v457
        %v514 = vunpack.c.h.s8.bf16 %v458
        %v515 = vunpack.c.l.s8.bf16 %v459
        %v516 = vunpack.c.l.s8.bf16 %v460
        %v517 = vunpack.c.l.s8.bf16 %v461
        %v518 = vunpack.c.l.s8.bf16 %v462
        %v519 = vunpack.c.h.s8.bf16 %v459
        %v520 = vunpack.c.h.s8.bf16 %v460
        %v521 = vunpack.c.h.s8.bf16 %v461
        %v522 = vunpack.c.h.s8.bf16 %v462
        %v523 = vunpack.c.l.s8.bf16 %v463
        %v524 = vunpack.c.l.s8.bf16 %v464
        %v525 = vunpack.c.l.s8.bf16 %v465
        %v526 = vunpack.c.l.s8.bf16 %v466
        %v527 = vunpack.c.h.s8.bf16 %v463
        %v528 = vunpack.c.h.s8.bf16 %v464
        %v529 = vunpack.c.h.s8.bf16 %v465
        %v530 = vunpack.c.h.s8.bf16 %v466
        %v531 = vld [vmem:[#allocation2] sm:$0xff]
        %v532 = vld [vmem:[#allocation2 + $0x8] sm:$0xff]
        %v533 = vld [vmem:[#allocation2 + $0x10] sm:$0xff]
        %v534 = vld [vmem:[#allocation2 + $0x18] sm:$0xff]
        %v535 = vld [vmem:[#allocation2 + $0x20] sm:$0xff]
        %v536 = vld [vmem:[#allocation2 + $0x28] sm:$0xff]
        %v537 = vld [vmem:[#allocation2 + $0x30] sm:$0xff]
        %v538 = vld [vmem:[#allocation2 + $0x38] sm:$0xff]
        %v539 = vld [vmem:[#allocation2 + $0x40] sm:$0xff]
        %v540 = vld [vmem:[#allocation2 + $0x48] sm:$0xff]
        %v541 = vld [vmem:[#allocation2 + $0x50] sm:$0xff]
        %v542 = vld [vmem:[#allocation2 + $0x58] sm:$0xff]
        %v543 = vld [vmem:[#allocation2 + $0x60] sm:$0xff]
        %v544 = vld [vmem:[#allocation2 + $0x68] sm:$0xff]
        %v545 = vld [vmem:[#allocation2 + $0x70] sm:$0xff]
        %v546 = vld [vmem:[#allocation2 + $0x78] sm:$0xff]
        %v547 = vld [vmem:[#allocation2 + $0x80] sm:$0xff]
        %v548 = vld [vmem:[#allocation2 + $0x88] sm:$0xff]
        %v549 = vld [vmem:[#allocation2 + $0x90] sm:$0xff]
        %v550 = vld [vmem:[#allocation2 + $0x98] sm:$0xff]
        %v551 = vld [vmem:[#allocation2 + $0xa0] sm:$0xff]
        %v552 = vld [vmem:[#allocation2 + $0xa8] sm:$0xff]
        %v553 = vld [vmem:[#allocation2 + $0xb0] sm:$0xff]
        %v554 = vld [vmem:[#allocation2 + $0xb8] sm:$0xff]
        %v555 = vld [vmem:[#allocation2 + $0xc0] sm:$0xff]
        %v556 = vld [vmem:[#allocation2 + $0xc8] sm:$0xff]
        %v557 = vld [vmem:[#allocation2 + $0xd0] sm:$0xff]
        %v558 = vld [vmem:[#allocation2 + $0xd8] sm:$0xff]
        %v559 = vld [vmem:[#allocation2 + $0xe0] sm:$0xff]
        %v560 = vld [vmem:[#allocation2 + $0xe8] sm:$0xff]
        %v561 = vld [vmem:[#allocation2 + $0xf0] sm:$0xff]
        %v562 = vld [vmem:[#allocation2 + $0xf8] sm:$0xff]
        %v563 = vld [vmem:[%s366] sm:$0xf]
        %v564 = vld [vmem:[%s366 + $0x4] sm:$0xf]
        %v565 = vld [vmem:[%s366 + $0x8] sm:$0xf]
        %v566 = vld [vmem:[%s366 + $0xc] sm:$0xf]
        %v567 = vld [vmem:[%s366 + $0x10] sm:$0xf]
        %v568 = vld [vmem:[%s366 + $0x14] sm:$0xf]
        %v569 = vld [vmem:[%s366 + $0x18] sm:$0xf]
        %v570 = vld [vmem:[%s366 + $0x1c] sm:$0xf]
        %v571 = vld [vmem:[%s366 + $0x20] sm:$0xf]
        %v572 = vld [vmem:[%s366 + $0x24] sm:$0xf]
        %v573 = vld [vmem:[%s366 + $0x28] sm:$0xf]
        %v574 = vld [vmem:[%s366 + $0x2c] sm:$0xf]
        %v575 = vld [vmem:[%s366 + $0x30] sm:$0xf]
        %v576 = vld [vmem:[%s366 + $0x34] sm:$0xf]
        %v577 = vld [vmem:[%s366 + $0x38] sm:$0xf]
        %v578 = vld [vmem:[%s366 + $0x3c] sm:$0xf]
        %v579 = vld [vmem:[%s366 + $0x40] sm:$0xf]
        %v580 = vld [vmem:[%s366 + $0x44] sm:$0xf]
        %v581 = vld [vmem:[%s366 + $0x48] sm:$0xf]
        %v582 = vld [vmem:[%s366 + $0x4c] sm:$0xf]
        %v583 = vld [vmem:[%s366 + $0x50] sm:$0xf]
        %v584 = vld [vmem:[%s366 + $0x54] sm:$0xf]
        %v585 = vld [vmem:[%s366 + $0x58] sm:$0xf]
        %v586 = vld [vmem:[%s366 + $0x5c] sm:$0xf]
        %v587 = vld [vmem:[%s366 + $0x60] sm:$0xf]
        %v588 = vld [vmem:[%s366 + $0x64] sm:$0xf]
        %v589 = vld [vmem:[%s366 + $0x68] sm:$0xf]
        %v590 = vld [vmem:[%s366 + $0x6c] sm:$0xf]
        %v591 = vld [vmem:[%s366 + $0x70] sm:$0xf]
        %v592 = vld [vmem:[%s366 + $0x74] sm:$0xf]
        %v593 = vld [vmem:[%s366 + $0x78] sm:$0xf]
        %v594 = vld [vmem:[%s366 + $0x7c] sm:$0xf]
        %v595 = vld [vmem:[%s366 + $0x80] sm:$0xf]
        %v596 = vld [vmem:[%s366 + $0x84] sm:$0xf]
        %v597 = vld [vmem:[%s366 + $0x88] sm:$0xf]
        %v598 = vld [vmem:[%s366 + $0x8c] sm:$0xf]
        %v599 = vld [vmem:[%s366 + $0x90] sm:$0xf]
        %v600 = vld [vmem:[%s366 + $0x94] sm:$0xf]
        %v601 = vld [vmem:[%s366 + $0x98] sm:$0xf]
        %v602 = vld [vmem:[%s366 + $0x9c] sm:$0xf]
        %v603 = vld [vmem:[%s366 + $0xa0] sm:$0xf]
        %v604 = vld [vmem:[%s366 + $0xa4] sm:$0xf]
        %v605 = vld [vmem:[%s366 + $0xa8] sm:$0xf]
        %v606 = vld [vmem:[%s366 + $0xac] sm:$0xf]
        %v607 = vld [vmem:[%s366 + $0xb0] sm:$0xf]
        %v608 = vld [vmem:[%s366 + $0xb4] sm:$0xf]
        %v609 = vld [vmem:[%s366 + $0xb8] sm:$0xf]
        %v610 = vld [vmem:[%s366 + $0xbc] sm:$0xf]
        %v611 = vld [vmem:[%s366 + $0xc0] sm:$0xf]
        %v612 = vld [vmem:[%s366 + $0xc4] sm:$0xf]
        %v613 = vld [vmem:[%s366 + $0xc8] sm:$0xf]
        %v614 = vld [vmem:[%s366 + $0xcc] sm:$0xf]
        %v615 = vld [vmem:[%s366 + $0xd0] sm:$0xf]
        %v616 = vld [vmem:[%s366 + $0xd4] sm:$0xf]
        %v617 = vld [vmem:[%s366 + $0xd8] sm:$0xf]
        %v618 = vld [vmem:[%s366 + $0xdc] sm:$0xf]
        %v619 = vld [vmem:[%s366 + $0xe0] sm:$0xf]
        %v620 = vld [vmem:[%s366 + $0xe4] sm:$0xf]
        %v621 = vld [vmem:[%s366 + $0xe8] sm:$0xf]
        %v622 = vld [vmem:[%s366 + $0xec] sm:$0xf]
        %v623 = vld [vmem:[%s366 + $0xf0] sm:$0xf]
        %v624 = vld [vmem:[%s366 + $0xf4] sm:$0xf]
        %v625 = vld [vmem:[%s366 + $0xf8] sm:$0xf]
        %v626 = vld [vmem:[%s366 + $0xfc] sm:$0xf]
        %v691 = vunpack.c.l.b16 %v563
        %v692 = vunpack.c.l.b16 %v564
        %v693 = vunpack.c.l.b16 %v565
        %v694 = vunpack.c.l.b16 %v566
        %v695 = vunpack.c.l.b16 %v567
        %v696 = vunpack.c.l.b16 %v568
        %v697 = vunpack.c.l.b16 %v569
        %v698 = vunpack.c.l.b16 %v570
        %v699 = vunpack.c.l.b16 %v571
        %v700 = vunpack.c.l.b16 %v572
        %v701 = vunpack.c.l.b16 %v573
        %v702 = vunpack.c.l.b16 %v574
        %v703 = vunpack.c.l.b16 %v575
        %v704 = vunpack.c.l.b16 %v576
        %v705 = vunpack.c.l.b16 %v577
        %v706 = vunpack.c.l.b16 %v578
        %v707 = vunpack.c.l.b16 %v579
        %v708 = vunpack.c.l.b16 %v580
        %v709 = vunpack.c.l.b16 %v581
        %v710 = vunpack.c.l.b16 %v582
        %v711 = vunpack.c.l.b16 %v583
        %v712 = vunpack.c.l.b16 %v584
        %v713 = vunpack.c.l.b16 %v585
        %v714 = vunpack.c.l.b16 %v586
        %v715 = vunpack.c.l.b16 %v587
        %v716 = vunpack.c.l.b16 %v588
        %v717 = vunpack.c.l.b16 %v589
        %v718 = vunpack.c.l.b16 %v590
        %v719 = vunpack.c.l.b16 %v591
        %v720 = vunpack.c.l.b16 %v592
        %v721 = vunpack.c.l.b16 %v593
        %v722 = vunpack.c.l.b16 %v594
        %v723 = vunpack.c.l.b16 %v595
        %v724 = vunpack.c.l.b16 %v596
        %v725 = vunpack.c.l.b16 %v597
        %v726 = vunpack.c.l.b16 %v598
        %v727 = vunpack.c.l.b16 %v599
        %v728 = vunpack.c.l.b16 %v600
        %v729 = vunpack.c.l.b16 %v601
        %v730 = vunpack.c.l.b16 %v602
        %v731 = vunpack.c.l.b16 %v603
        %v732 = vunpack.c.l.b16 %v604
        %v733 = vunpack.c.l.b16 %v605
        %v734 = vunpack.c.l.b16 %v606
        %v735 = vunpack.c.l.b16 %v607
        %v736 = vunpack.c.l.b16 %v608
        %v737 = vunpack.c.l.b16 %v609
        %v738 = vunpack.c.l.b16 %v610
        %v739 = vunpack.c.l.b16 %v611
        %v740 = vunpack.c.l.b16 %v612
        %v741 = vunpack.c.l.b16 %v613
        %v742 = vunpack.c.l.b16 %v614
        %v743 = vunpack.c.l.b16 %v615
        %v744 = vunpack.c.l.b16 %v616
        %v745 = vunpack.c.l.b16 %v617
        %v746 = vunpack.c.l.b16 %v618
        %v747 = vunpack.c.l.b16 %v619
        %v748 = vunpack.c.l.b16 %v620
        %v749 = vunpack.c.l.b16 %v621
        %v750 = vunpack.c.l.b16 %v622
        %v751 = vunpack.c.l.b16 %v623
        %v752 = vunpack.c.l.b16 %v624
        %v753 = vunpack.c.l.b16 %v625
        %v754 = vunpack.c.l.b16 %v626
        %v755 = vpack.c.b16 %v692, %v691
        %v756 = vpack.c.b16 %v694, %v693
        %v757 = vpack.c.b16 %v696, %v695
        %v758 = vpack.c.b16 %v698, %v697
        %v759 = vpack.c.b16 %v700, %v699
        %v760 = vpack.c.b16 %v702, %v701
        %v761 = vpack.c.b16 %v704, %v703
        %v762 = vpack.c.b16 %v706, %v705
        %v763 = vpack.c.b16 %v708, %v707
        %v764 = vpack.c.b16 %v710, %v709
        %v765 = vpack.c.b16 %v712, %v711
        %v766 = vpack.c.b16 %v714, %v713
        %v767 = vpack.c.b16 %v716, %v715
        %v768 = vpack.c.b16 %v718, %v717
        %v769 = vpack.c.b16 %v720, %v719
        %v770 = vpack.c.b16 %v722, %v721
        %v771 = vpack.c.b16 %v724, %v723
        %v772 = vpack.c.b16 %v726, %v725
        %v773 = vpack.c.b16 %v728, %v727
        %v774 = vpack.c.b16 %v730, %v729
        %v775 = vpack.c.b16 %v732, %v731
        %v776 = vpack.c.b16 %v734, %v733
        %v777 = vpack.c.b16 %v736, %v735
        %v778 = vpack.c.b16 %v738, %v737
        %v779 = vpack.c.b16 %v740, %v739
        %v780 = vpack.c.b16 %v742, %v741
        %v781 = vpack.c.b16 %v744, %v743
        %v782 = vpack.c.b16 %v746, %v745
        %v783 = vpack.c.b16 %v748, %v747
        %v784 = vpack.c.b16 %v750, %v749
        %v785 = vpack.c.b16 %v752, %v751
        %v786 = vpack.c.b16 %v754, %v753
        %819 = vmatprep.subr.bf16.mxu0 0
        %820 = vmatpush1.bf16.msra.mxu0 %v755
        %821 = vmatprep.subr.bf16.mxu0 0
        %822 = vmatpush1.bf16.msra.mxu0 %v756
        %823 = vmatprep.subr.bf16.mxu0 0
        %824 = vmatpush1.bf16.msra.mxu0 %v757
        %825 = vmatprep.subr.bf16.mxu0 0
        %826 = vmatpush1.bf16.msra.mxu0 %v758
        %827 = vmatprep.subr.bf16.mxu0 0
        %828 = vmatpush1.bf16.msra.mxu0 %v759
        %829 = vmatprep.subr.bf16.mxu0 0
        %830 = vmatpush1.bf16.msra.mxu0 %v760
        %831 = vmatprep.subr.bf16.mxu0 0
        %832 = vmatpush1.bf16.msra.mxu0 %v761
        %833 = vmatprep.subr.bf16.mxu0 0
        %834 = vmatpush1.bf16.msra.mxu0 %v762
        %835 = vmatprep.subr.bf16.mxu0 0
        %836 = vmatpush1.bf16.msra.mxu0 %v763
        %837 = vmatprep.subr.bf16.mxu0 0
        %838 = vmatpush1.bf16.msra.mxu0 %v764
        %839 = vmatprep.subr.bf16.mxu0 0
        %840 = vmatpush1.bf16.msra.mxu0 %v765
        %841 = vmatprep.subr.bf16.mxu0 0
        %842 = vmatpush1.bf16.msra.mxu0 %v766
        %843 = vmatprep.subr.bf16.mxu0 0
        %844 = vmatpush1.bf16.msra.mxu0 %v767
        %845 = vmatprep.subr.bf16.mxu0 0
        %846 = vmatpush1.bf16.msra.mxu0 %v768
        %847 = vmatprep.subr.bf16.mxu0 0
        %848 = vmatpush1.bf16.msra.mxu0 %v769
        %849 = vmatprep.subr.bf16.mxu0 0
        %850 = vmatpush1.bf16.msra.mxu0 %v770
        %851 = vmatprep.mubr.bf16.mxu0 %v468
        %852 = vmatmul.mubr.bf16.gmra.mrb[0].mxu0 %v467
        %v853 = vpop.f32.mrb[0].mxu0
        %v854 = vadd.f32 0.0, %v853
        %v855 = vpop.f32.mrb[0].mxu0
        %v856 = vpop.f32.mrb[0].mxu0
        %v857 = vadd.f32 0.0, %v856
        %v858 = vpop.f32.mrb[0].mxu0
        %859 = vmatprep.mubr.bf16.mxu0 %v472
        %860 = vmatmul.mubr.bf16.gmra.mrb[0].mxu0 %v471
        %v861 = vpop.f32.mrb[0].mxu0
        %v862 = vadd.f32 0.0, %v861
        %v863 = vpop.f32.mrb[0].mxu0
        %v864 = vpop.f32.mrb[0].mxu0
        %v865 = vadd.f32 0.0, %v864
        %v866 = vpop.f32.mrb[0].mxu0
        %867 = vmatprep.mubr.bf16.mxu0 %v476
        %868 = vmatmul.mubr.bf16.gmra.mrb[0].mxu0 %v475
        %v869 = vpop.f32.mrb[0].mxu0
        %v870 = vadd.f32 0.0, %v869
        %v871 = vpop.f32.mrb[0].mxu0
        %v872 = vpop.f32.mrb[0].mxu0
        %v873 = vadd.f32 0.0, %v872
        %v874 = vpop.f32.mrb[0].mxu0
        %875 = vmatprep.mubr.bf16.mxu0 %v480
        %876 = vmatmul.mubr.bf16.gmra.mrb[0].mxu0 %v479
        %v877 = vpop.f32.mrb[0].mxu0
        %v878 = vadd.f32 0.0, %v877
        %v879 = vpop.f32.mrb[0].mxu0
        %v880 = vpop.f32.mrb[0].mxu0
        %v881 = vadd.f32 0.0, %v880
        %v882 = vpop.f32.mrb[0].mxu0
        %883 = vmatprep.mubr.bf16.mxu0 %v484
        %884 = vmatmul.mubr.bf16.gmra.mrb[0].mxu0 %v483
        %v885 = vpop.f32.mrb[0].mxu0
        %v886 = vadd.f32 0.0, %v885
        %v887 = vpop.f32.mrb[0].mxu0
        %v888 = vpop.f32.mrb[0].mxu0
        %v889 = vadd.f32 0.0, %v888
        %v890 = vpop.f32.mrb[0].mxu0
        %891 = vmatprep.mubr.bf16.mxu0 %v488
        %892 = vmatmul.mubr.bf16.gmra.mrb[0].mxu0 %v487
        %v893 = vpop.f32.mrb[0].mxu0
        %v894 = vadd.f32 0.0, %v893
        %v895 = vpop.f32.mrb[0].mxu0
        %v896 = vpop.f32.mrb[0].mxu0
        %v897 = vadd.f32 0.0, %v896
        %v898 = vpop.f32.mrb[0].mxu0
        %899 = vmatprep.mubr.bf16.mxu0 %v492
        %900 = vmatmul.mubr.bf16.gmra.mrb[0].mxu0 %v491
        %v901 = vpop.f32.mrb[0].mxu0
        %v902 = vadd.f32 0.0, %v901
        %v903 = vpop.f32.mrb[0].mxu0
        %v904 = vpop.f32.mrb[0].mxu0
        %v905 = vadd.f32 0.0, %v904
        %v906 = vpop.f32.mrb[0].mxu0
        %907 = vmatprep.mubr.bf16.mxu0 %v496
        %908 = vmatmul.mubr.bf16.gmra.mrb[0].mxu0 %v495
        %v909 = vpop.f32.mrb[0].mxu0
        %v910 = vadd.f32 0.0, %v909
        %v911 = vpop.f32.mrb[0].mxu0
        %v912 = vpop.f32.mrb[0].mxu0
        %v913 = vadd.f32 0.0, %v912
        %v914 = vpop.f32.mrb[0].mxu0
        %915 = vmatprep.mubr.bf16.mxu0 %v500
        %916 = vmatmul.mubr.bf16.gmra.mrb[0].mxu0 %v499
        %v917 = vpop.f32.mrb[0].mxu0
        %v918 = vadd.f32 0.0, %v917
        %v919 = vpop.f32.mrb[0].mxu0
        %v920 = vpop.f32.mrb[0].mxu0
        %v921 = vadd.f32 0.0, %v920
        %v922 = vpop.f32.mrb[0].mxu0
        %923 = vmatprep.mubr.bf16.mxu0 %v504
        %924 = vmatmul.mubr.bf16.gmra.mrb[0].mxu0 %v503
        %v925 = vpop.f32.mrb[0].mxu0
        %v926 = vadd.f32 0.0, %v925
        %v927 = vpop.f32.mrb[0].mxu0
        %v928 = vpop.f32.mrb[0].mxu0
        %v929 = vadd.f32 0.0, %v928
        %v930 = vpop.f32.mrb[0].mxu0
        %931 = vmatprep.mubr.bf16.mxu0 %v508
        %932 = vmatmul.mubr.bf16.gmra.mrb[0].mxu0 %v507
        %v933 = vpop.f32.mrb[0].mxu0
        %v934 = vadd.f32 0.0, %v933
        %v935 = vpop.f32.mrb[0].mxu0
        %v936 = vpop.f32.mrb[0].mxu0
        %v937 = vadd.f32 0.0, %v936
        %v938 = vpop.f32.mrb[0].mxu0
        %939 = vmatprep.mubr.bf16.mxu0 %v512
        %940 = vmatmul.mubr.bf16.gmra.mrb[0].mxu0 %v511
        %v941 = vpop.f32.mrb[0].mxu0
        %v942 = vadd.f32 0.0, %v941
        %v943 = vpop.f32.mrb[0].mxu0
        %v944 = vpop.f32.mrb[0].mxu0
        %v945 = vadd.f32 0.0, %v944
        %v946 = vpop.f32.mrb[0].mxu0
        %947 = vmatprep.mubr.bf16.mxu0 %v516
        %948 = vmatmul.mubr.bf16.gmra.mrb[0].mxu0 %v515
        %v949 = vpop.f32.mrb[0].mxu0
        %v950 = vadd.f32 0.0, %v949
        %v951 = vpop.f32.mrb[0].mxu0
        %v952 = vpop.f32.mrb[0].mxu0
        %v953 = vadd.f32 0.0, %v952
        %v954 = vpop.f32.mrb[0].mxu0
        %955 = vmatprep.mubr.bf16.mxu0 %v520
        %956 = vmatmul.mubr.bf16.gmra.mrb[0].mxu0 %v519
        %v957 = vpop.f32.mrb[0].mxu0
        %v958 = vadd.f32 0.0, %v957
        %v959 = vpop.f32.mrb[0].mxu0
        %v960 = vpop.f32.mrb[0].mxu0
        %v961 = vadd.f32 0.0, %v960
        %v962 = vpop.f32.mrb[0].mxu0
        %963 = vmatprep.mubr.bf16.mxu0 %v524
        %964 = vmatmul.mubr.bf16.gmra.mrb[0].mxu0 %v523
        %v965 = vpop.f32.mrb[0].mxu0
        %v966 = vadd.f32 0.0, %v965
        %v967 = vpop.f32.mrb[0].mxu0
        %v968 = vpop.f32.mrb[0].mxu0
        %v969 = vadd.f32 0.0, %v968
        %v970 = vpop.f32.mrb[0].mxu0
        %971 = vmatprep.mubr.bf16.mxu0 %v528
        %972 = vmatmul.mubr.bf16.gmra.mrb[0].mxu0 %v527
        %v973 = vpop.f32.mrb[0].mxu0
        %v974 = vadd.f32 0.0, %v973
        %v975 = vpop.f32.mrb[0].mxu0
        %v976 = vpop.f32.mrb[0].mxu0
        %v977 = vadd.f32 0.0, %v976
        %v978 = vpop.f32.mrb[0].mxu0
        %979 = vdwg.mxu0
        %980 = vmatprep.subr.bf16.mxu0 0
        %981 = vmatpush1.bf16.msra.mxu0 %v771
        %982 = vmatprep.subr.bf16.mxu0 0
        %983 = vmatpush1.bf16.msra.mxu0 %v772
        %984 = vmatprep.subr.bf16.mxu0 0
        %985 = vmatpush1.bf16.msra.mxu0 %v773
        %986 = vmatprep.subr.bf16.mxu0 0
        %987 = vmatpush1.bf16.msra.mxu0 %v774
        %988 = vmatprep.subr.bf16.mxu0 0
        %989 = vmatpush1.bf16.msra.mxu0 %v775
        %990 = vmatprep.subr.bf16.mxu0 0
        %991 = vmatpush1.bf16.msra.mxu0 %v776
        %992 = vmatprep.subr.bf16.mxu0 0
        %993 = vmatpush1.bf16.msra.mxu0 %v777
        %994 = vmatprep.subr.bf16.mxu0 0
        %995 = vmatpush1.bf16.msra.mxu0 %v778
        %996 = vmatprep.subr.bf16.mxu0 0
        %997 = vmatpush1.bf16.msra.mxu0 %v779
        %998 = vmatprep.subr.bf16.mxu0 0
        %999 = vmatpush1.bf16.msra.mxu0 %v780
        %1000 = vmatprep.subr.bf16.mxu0 0
        %1001 = vmatpush1.bf16.msra.mxu0 %v781
        %1002 = vmatprep.subr.bf16.mxu0 0
        %1003 = vmatpush1.bf16.msra.mxu0 %v782
        %1004 = vmatprep.subr.bf16.mxu0 0
        %1005 = vmatpush1.bf16.msra.mxu0 %v783
        %1006 = vmatprep.subr.bf16.mxu0 0
        %1007 = vmatpush1.bf16.msra.mxu0 %v784
        %1008 = vmatprep.subr.bf16.mxu0 0
        %1009 = vmatpush1.bf16.msra.mxu0 %v785
        %1010 = vmatprep.subr.bf16.mxu0 0
        %1011 = vmatpush1.bf16.msra.mxu0 %v786
        %1012 = vmatprep.mubr.bf16.mxu0 %v470
        %1013 = vmatmul.mubr.bf16.gmra.mrb[0].mxu0 %v469
        %v1014 = vpop.f32.mrb[0].mxu0
        %v1015 = vadd.f32 %v854, %v1014
        %v1016 = vpop.f32.mrb[0].mxu0
        %v1017 = vpop.f32.mrb[0].mxu0
        %v1018 = vadd.f32 %v857, %v1017
        %v1019 = vpop.f32.mrb[0].mxu0
        %1020 = vmatprep.mubr.bf16.mxu0 %v474
        %1021 = vmatmul.mubr.bf16.gmra.mrb[0].mxu0 %v473
        %v1022 = vpop.f32.mrb[0].mxu0
        %v1023 = vadd.f32 %v862, %v1022
        %v1024 = vpop.f32.mrb[0].mxu0
        %v1025 = vpop.f32.mrb[0].mxu0
        %v1026 = vadd.f32 %v865, %v1025
        %v1027 = vpop.f32.mrb[0].mxu0
        %1028 = vmatprep.mubr.bf16.mxu0 %v478
        %1029 = vmatmul.mubr.bf16.gmra.mrb[0].mxu0 %v477
        %v1030 = vpop.f32.mrb[0].mxu0
        %v1031 = vadd.f32 %v870, %v1030
        %v1032 = vpop.f32.mrb[0].mxu0
        %v1033 = vpop.f32.mrb[0].mxu0
        %v1034 = vadd.f32 %v873, %v1033
        %v1035 = vpop.f32.mrb[0].mxu0
        %1036 = vmatprep.mubr.bf16.mxu0 %v482
        %1037 = vmatmul.mubr.bf16.gmra.mrb[0].mxu0 %v481
        %v1038 = vpop.f32.mrb[0].mxu0
        %v1039 = vadd.f32 %v878, %v1038
        %v1040 = vpop.f32.mrb[0].mxu0
        %v1041 = vpop.f32.mrb[0].mxu0
        %v1042 = vadd.f32 %v881, %v1041
        %v1043 = vpop.f32.mrb[0].mxu0
        %1044 = vmatprep.mubr.bf16.mxu0 %v486
        %1045 = vmatmul.mubr.bf16.gmra.mrb[0].mxu0 %v485
        %v1046 = vpop.f32.mrb[0].mxu0
        %v1047 = vadd.f32 %v886, %v1046
        %v1048 = vpop.f32.mrb[0].mxu0
        %v1049 = vpop.f32.mrb[0].mxu0
        %v1050 = vadd.f32 %v889, %v1049
        %v1051 = vpop.f32.mrb[0].mxu0
        %1052 = vmatprep.mubr.bf16.mxu0 %v490
        %1053 = vmatmul.mubr.bf16.gmra.mrb[0].mxu0 %v489
        %v1054 = vpop.f32.mrb[0].mxu0
        %v1055 = vadd.f32 %v894, %v1054
        %v1056 = vpop.f32.mrb[0].mxu0
        %v1057 = vpop.f32.mrb[0].mxu0
        %v1058 = vadd.f32 %v897, %v1057
        %v1059 = vpop.f32.mrb[0].mxu0
        %1060 = vmatprep.mubr.bf16.mxu0 %v494
        %1061 = vmatmul.mubr.bf16.gmra.mrb[0].mxu0 %v493
        %v1062 = vpop.f32.mrb[0].mxu0
        %v1063 = vadd.f32 %v902, %v1062
        %v1064 = vpop.f32.mrb[0].mxu0
        %v1065 = vpop.f32.mrb[0].mxu0
        %v1066 = vadd.f32 %v905, %v1065
        %v1067 = vpop.f32.mrb[0].mxu0
        %1068 = vmatprep.mubr.bf16.mxu0 %v498
        %1069 = vmatmul.mubr.bf16.gmra.mrb[0].mxu0 %v497
        %v1070 = vpop.f32.mrb[0].mxu0
        %v1071 = vadd.f32 %v910, %v1070
        %v1072 = vpop.f32.mrb[0].mxu0
        %v1073 = vpop.f32.mrb[0].mxu0
        %v1074 = vadd.f32 %v913, %v1073
        %v1075 = vpop.f32.mrb[0].mxu0
        %1076 = vmatprep.mubr.bf16.mxu0 %v502
        %1077 = vmatmul.mubr.bf16.gmra.mrb[0].mxu0 %v501
        %v1078 = vpop.f32.mrb[0].mxu0
        %v1079 = vadd.f32 %v918, %v1078
        %v1080 = vpop.f32.mrb[0].mxu0
        %v1081 = vpop.f32.mrb[0].mxu0
        %v1082 = vadd.f32 %v921, %v1081
        %v1083 = vpop.f32.mrb[0].mxu0
        %1084 = vmatprep.mubr.bf16.mxu0 %v506
        %1085 = vmatmul.mubr.bf16.gmra.mrb[0].mxu0 %v505
        %v1086 = vpop.f32.mrb[0].mxu0
        %v1087 = vadd.f32 %v926, %v1086
        %v1088 = vpop.f32.mrb[0].mxu0
        %v1089 = vpop.f32.mrb[0].mxu0
        %v1090 = vadd.f32 %v929, %v1089
        %v1091 = vpop.f32.mrb[0].mxu0
        %1092 = vmatprep.mubr.bf16.mxu0 %v510
        %1093 = vmatmul.mubr.bf16.gmra.mrb[0].mxu0 %v509
        %v1094 = vpop.f32.mrb[0].mxu0
        %v1095 = vadd.f32 %v934, %v1094
        %v1096 = vpop.f32.mrb[0].mxu0
        %v1097 = vpop.f32.mrb[0].mxu0
        %v1098 = vadd.f32 %v937, %v1097
        %v1099 = vpop.f32.mrb[0].mxu0
        %1100 = vmatprep.mubr.bf16.mxu0 %v514
        %1101 = vmatmul.mubr.bf16.gmra.mrb[0].mxu0 %v513
        %v1102 = vpop.f32.mrb[0].mxu0
        %v1103 = vadd.f32 %v942, %v1102
        %v1104 = vpop.f32.mrb[0].mxu0
        %v1105 = vpop.f32.mrb[0].mxu0
        %v1106 = vadd.f32 %v945, %v1105
        %v1107 = vpop.f32.mrb[0].mxu0
        %1108 = vmatprep.mubr.bf16.mxu0 %v518
        %1109 = vmatmul.mubr.bf16.gmra.mrb[0].mxu0 %v517
        %v1110 = vpop.f32.mrb[0].mxu0
        %v1111 = vadd.f32 %v950, %v1110
        %v1112 = vpop.f32.mrb[0].mxu0
        %v1113 = vpop.f32.mrb[0].mxu0
        %v1114 = vadd.f32 %v953, %v1113
        %v1115 = vpop.f32.mrb[0].mxu0
        %1116 = vmatprep.mubr.bf16.mxu0 %v522
        %1117 = vmatmul.mubr.bf16.gmra.mrb[0].mxu0 %v521
        %v1118 = vpop.f32.mrb[0].mxu0
        %v1119 = vadd.f32 %v958, %v1118
        %v1120 = vpop.f32.mrb[0].mxu0
        %v1121 = vpop.f32.mrb[0].mxu0
        %v1122 = vadd.f32 %v961, %v1121
        %v1123 = vpop.f32.mrb[0].mxu0
        %1124 = vmatprep.mubr.bf16.mxu0 %v526
        %1125 = vmatmul.mubr.bf16.gmra.mrb[0].mxu0 %v525
        %v1126 = vpop.f32.mrb[0].mxu0
        %v1127 = vadd.f32 %v966, %v1126
        %v1128 = vpop.f32.mrb[0].mxu0
        %v1129 = vpop.f32.mrb[0].mxu0
        %v1130 = vadd.f32 %v969, %v1129
        %v1131 = vpop.f32.mrb[0].mxu0
        %1132 = vmatprep.mubr.bf16.mxu0 %v530
        %1133 = vmatmul.mubr.bf16.gmra.mrb[0].mxu0 %v529
        %v1134 = vpop.f32.mrb[0].mxu0
        %v1135 = vadd.f32 %v974, %v1134
        %v1136 = vpop.f32.mrb[0].mxu0
        %v1137 = vpop.f32.mrb[0].mxu0
        %v1138 = vadd.f32 %v977, %v1137
        %v1139 = vpop.f32.mrb[0].mxu0
        %1140 = vdwg.mxu0
        %v1141 = vadd.f32 %v531, %v1015
        %v1142 = vadd.f32 %v532, %v1018
        %v1143 = vadd.f32 %v533, %v1023
        %v1144 = vadd.f32 %v534, %v1026
        %v1145 = vadd.f32 %v535, %v1031
        %v1146 = vadd.f32 %v536, %v1034
        %v1147 = vadd.f32 %v537, %v1039
        %v1148 = vadd.f32 %v538, %v1042
        %v1149 = vadd.f32 %v539, %v1047
        %v1150 = vadd.f32 %v540, %v1050
        %v1151 = vadd.f32 %v541, %v1055
        %v1152 = vadd.f32 %v542, %v1058
        %v1153 = vadd.f32 %v543, %v1063
        %v1154 = vadd.f32 %v544, %v1066
        %v1155 = vadd.f32 %v545, %v1071
        %v1156 = vadd.f32 %v546, %v1074
        %v1157 = vadd.f32 %v547, %v1079
        %v1158 = vadd.f32 %v548, %v1082
        %v1159 = vadd.f32 %v549, %v1087
        %v1160 = vadd.f32 %v550, %v1090
        %v1161 = vadd.f32 %v551, %v1095
        %v1162 = vadd.f32 %v552, %v1098
        %v1163 = vadd.f32 %v553, %v1103
        %v1164 = vadd.f32 %v554, %v1106
        %v1165 = vadd.f32 %v555, %v1111
        %v1166 = vadd.f32 %v556, %v1114
        %v1167 = vadd.f32 %v557, %v1119
        %v1168 = vadd.f32 %v558, %v1122
        %v1169 = vadd.f32 %v559, %v1127
        %v1170 = vadd.f32 %v560, %v1130
        %v1171 = vadd.f32 %v561, %v1135
        %v1172 = vadd.f32 %v562, %v1138
        %1173 = vst [vmem:[#allocation2] sm:$0xff] %v1141
        %1174 = vst [vmem:[#allocation2 + $0x8] sm:$0xff] %v1142
        %1175 = vst [vmem:[#allocation2 + $0x10] sm:$0xff] %v1143
        %1176 = vst [vmem:[#allocation2 + $0x18] sm:$0xff] %v1144
        %1177 = vst [vmem:[#allocation2 + $0x20] sm:$0xff] %v1145
        %1178 = vst [vmem:[#allocation2 + $0x28] sm:$0xff] %v1146
        %1179 = vst [vmem:[#allocation2 + $0x30] sm:$0xff] %v1147
        %1180 = vst [vmem:[#allocation2 + $0x38] sm:$0xff] %v1148
        %1181 = vst [vmem:[#allocation2 + $0x40] sm:$0xff] %v1149
        %1182 = vst [vmem:[#allocation2 + $0x48] sm:$0xff] %v1150
        %1183 = vst [vmem:[#allocation2 + $0x50] sm:$0xff] %v1151
        %1184 = vst [vmem:[#allocation2 + $0x58] sm:$0xff] %v1152
        %1185 = vst [vmem:[#allocation2 + $0x60] sm:$0xff] %v1153
        %1186 = vst [vmem:[#allocation2 + $0x68] sm:$0xff] %v1154
        %1187 = vst [vmem:[#allocation2 + $0x70] sm:$0xff] %v1155
        %1188 = vst [vmem:[#allocation2 + $0x78] sm:$0xff] %v1156
        %1189 = vst [vmem:[#allocation2 + $0x80] sm:$0xff] %v1157
        %1190 = vst [vmem:[#allocation2 + $0x88] sm:$0xff] %v1158
        %1191 = vst [vmem:[#allocation2 + $0x90] sm:$0xff] %v1159
        %1192 = vst [vmem:[#allocation2 + $0x98] sm:$0xff] %v1160
        %1193 = vst [vmem:[#allocation2 + $0xa0] sm:$0xff] %v1161
        %1194 = vst [vmem:[#allocation2 + $0xa8] sm:$0xff] %v1162
        %1195 = vst [vmem:[#allocation2 + $0xb0] sm:$0xff] %v1163
        %1196 = vst [vmem:[#allocation2 + $0xb8] sm:$0xff] %v1164
        %1197 = vst [vmem:[#allocation2 + $0xc0] sm:$0xff] %v1165
        %1198 = vst [vmem:[#allocation2 + $0xc8] sm:$0xff] %v1166
        %1199 = vst [vmem:[#allocation2 + $0xd0] sm:$0xff] %v1167
        %1200 = vst [vmem:[#allocation2 + $0xd8] sm:$0xff] %v1168
        %1201 = vst [vmem:[#allocation2 + $0xe0] sm:$0xff] %v1169
        %1202 = vst [vmem:[#allocation2 + $0xe8] sm:$0xff] %v1170
        %1203 = vst [vmem:[#allocation2 + $0xf0] sm:$0xff] %v1171
        %1204 = vst [vmem:[#allocation2 + $0xf8] sm:$0xff] %v1172
      $region56: #{model_forward.4} parent=47 // pred_fallthru
        _
      // Predicated region
      $region57: #{model_forward.4} parent=47 // pred_check
        %p1205 = pneg %p387
      $region58: #{model_forward.4} parent=47 // pred_check_branch
        %1207 = sbr.rel (%p1205) target = $region60
      $region59: #{model_forward.4} parent=47 // pred_region
        %v1208 = vld [vmem:[#allocation2] sm:$0xff]
        %v1209 = vld [vmem:[#allocation2 + $0x8] sm:$0xff]
        %v1210 = vld [vmem:[#allocation2 + $0x10] sm:$0xff]
        %v1211 = vld [vmem:[#allocation2 + $0x18] sm:$0xff]
        %v1212 = vld [vmem:[#allocation2 + $0x20] sm:$0xff]
        %v1213 = vld [vmem:[#allocation2 + $0x28] sm:$0xff]
        %v1214 = vld [vmem:[#allocation2 + $0x30] sm:$0xff]
        %v1215 = vld [vmem:[#allocation2 + $0x38] sm:$0xff]
        %v1216 = vld [vmem:[#allocation2 + $0x40] sm:$0xff]
        %v1217 = vld [vmem:[#allocation2 + $0x48] sm:$0xff]
        %v1218 = vld [vmem:[#allocation2 + $0x50] sm:$0xff]
        %v1219 = vld [vmem:[#allocation2 + $0x58] sm:$0xff]
        %v1220 = vld [vmem:[#allocation2 + $0x60] sm:$0xff]
        %v1221 = vld [vmem:[#allocation2 + $0x68] sm:$0xff]
        %v1222 = vld [vmem:[#allocation2 + $0x70] sm:$0xff]
        %v1223 = vld [vmem:[#allocation2 + $0x78] sm:$0xff]
        %v1224 = vld [vmem:[#allocation2 + $0x80] sm:$0xff]
        %v1225 = vld [vmem:[#allocation2 + $0x88] sm:$0xff]
        %v1226 = vld [vmem:[#allocation2 + $0x90] sm:$0xff]
        %v1227 = vld [vmem:[#allocation2 + $0x98] sm:$0xff]
        %v1228 = vld [vmem:[#allocation2 + $0xa0] sm:$0xff]
        %v1229 = vld [vmem:[#allocation2 + $0xa8] sm:$0xff]
        %v1230 = vld [vmem:[#allocation2 + $0xb0] sm:$0xff]
        %v1231 = vld [vmem:[#allocation2 + $0xb8] sm:$0xff]
        %v1232 = vld [vmem:[#allocation2 + $0xc0] sm:$0xff]
        %v1233 = vld [vmem:[#allocation2 + $0xc8] sm:$0xff]
        %v1234 = vld [vmem:[#allocation2 + $0xd0] sm:$0xff]
        %v1235 = vld [vmem:[#allocation2 + $0xd8] sm:$0xff]
        %v1236 = vld [vmem:[#allocation2 + $0xe0] sm:$0xff]
        %v1237 = vld [vmem:[#allocation2 + $0xe8] sm:$0xff]
        %v1238 = vld [vmem:[#allocation2 + $0xf0] sm:$0xff]
        %v1239 = vld [vmem:[#allocation2 + $0xf8] sm:$0xff]
        %v1240 = vld [vmem:[%s378] sm:$0xff]
        %v1241 = vld [vmem:[%s378 + $0x8] sm:$0xff]
        %v1242 = vld [vmem:[%s378 + $0x10] sm:$0xff]
        %v1243 = vld [vmem:[%s378 + $0x18] sm:$0xff]
        %v1244 = vld [vmem:[%s378 + $0x20] sm:$0xff]
        %v1245 = vld [vmem:[%s378 + $0x28] sm:$0xff]
        %v1246 = vld [vmem:[%s378 + $0x30] sm:$0xff]
        %v1247 = vld [vmem:[%s378 + $0x38] sm:$0xff]
        %v1248 = vld [vmem:[%s378 + $0x40] sm:$0xff]
        %v1249 = vld [vmem:[%s378 + $0x48] sm:$0xff]
        %v1250 = vld [vmem:[%s378 + $0x50] sm:$0xff]
        %v1251 = vld [vmem:[%s378 + $0x58] sm:$0xff]
        %v1252 = vld [vmem:[%s378 + $0x60] sm:$0xff]
        %v1253 = vld [vmem:[%s378 + $0x68] sm:$0xff]
        %v1254 = vld [vmem:[%s378 + $0x70] sm:$0xff]
        %v1255 = vld [vmem:[%s378 + $0x78] sm:$0xff]
        %v1256 = vld [vmem:[%s378 + $0x80] sm:$0xff]
        %v1257 = vld [vmem:[%s378 + $0x88] sm:$0xff]
        %v1258 = vld [vmem:[%s378 + $0x90] sm:$0xff]
        %v1259 = vld [vmem:[%s378 + $0x98] sm:$0xff]
        %v1260 = vld [vmem:[%s378 + $0xa0] sm:$0xff]
        %v1261 = vld [vmem:[%s378 + $0xa8] sm:$0xff]
        %v1262 = vld [vmem:[%s378 + $0xb0] sm:$0xff]
        %v1263 = vld [vmem:[%s378 + $0xb8] sm:$0xff]
        %v1264 = vld [vmem:[%s378 + $0xc0] sm:$0xff]
        %v1265 = vld [vmem:[%s378 + $0xc8] sm:$0xff]
        %v1266 = vld [vmem:[%s378 + $0xd0] sm:$0xff]
        %v1267 = vld [vmem:[%s378 + $0xd8] sm:$0xff]
        %v1268 = vld [vmem:[%s378 + $0xe0] sm:$0xff]
        %v1269 = vld [vmem:[%s378 + $0xe8] sm:$0xff]
        %v1270 = vld [vmem:[%s378 + $0xf0] sm:$0xff]
        %v1271 = vld [vmem:[%s378 + $0xf8] sm:$0xff]
        %1273 = vset.pattern.permute.xlu0 0
        %1274 = vperm.xlu0 %1273, %v1240
        %v1275 = vpop.permute.xlu0 %1274
        %1278 = vset.pattern.permute.xlu0 0
        %1279 = vperm.xlu0 %1278, %v1241
        %v1280 = vpop.permute.xlu0 %1279
        %1283 = vset.pattern.permute.xlu0 0
        %1284 = vperm.xlu0 %1283, %v1242
        %v1285 = vpop.permute.xlu0 %1284
        %1288 = vset.pattern.permute.xlu0 0
        %1289 = vperm.xlu0 %1288, %v1243
        %v1290 = vpop.permute.xlu0 %1289
        %1293 = vset.pattern.permute.xlu0 0
        %1294 = vperm.xlu0 %1293, %v1244
        %v1295 = vpop.permute.xlu0 %1294
        %1298 = vset.pattern.permute.xlu0 0
        %1299 = vperm.xlu0 %1298, %v1245
        %v1300 = vpop.permute.xlu0 %1299
        %1303 = vset.pattern.permute.xlu0 0
        %1304 = vperm.xlu0 %1303, %v1246
        %v1305 = vpop.permute.xlu0 %1304
        %1308 = vset.pattern.permute.xlu0 0
        %1309 = vperm.xlu0 %1308, %v1247
        %v1310 = vpop.permute.xlu0 %1309
        %1313 = vset.pattern.permute.xlu0 0
        %1314 = vperm.xlu0 %1313, %v1248
        %v1315 = vpop.permute.xlu0 %1314
        %1318 = vset.pattern.permute.xlu0 0
        %1319 = vperm.xlu0 %1318, %v1249
        %v1320 = vpop.permute.xlu0 %1319
        %1323 = vset.pattern.permute.xlu0 0
        %1324 = vperm.xlu0 %1323, %v1250
        %v1325 = vpop.permute.xlu0 %1324
        %1328 = vset.pattern.permute.xlu0 0
        %1329 = vperm.xlu0 %1328, %v1251
        %v1330 = vpop.permute.xlu0 %1329
        %1333 = vset.pattern.permute.xlu0 0
        %1334 = vperm.xlu0 %1333, %v1252
        %v1335 = vpop.permute.xlu0 %1334
        %1338 = vset.pattern.permute.xlu0 0
        %1339 = vperm.xlu0 %1338, %v1253
        %v1340 = vpop.permute.xlu0 %1339
        %1343 = vset.pattern.permute.xlu0 0
        %1344 = vperm.xlu0 %1343, %v1254
        %v1345 = vpop.permute.xlu0 %1344
        %1348 = vset.pattern.permute.xlu0 0
        %1349 = vperm.xlu0 %1348, %v1255
        %v1350 = vpop.permute.xlu0 %1349
        %1353 = vset.pattern.permute.xlu0 0
        %1354 = vperm.xlu0 %1353, %v1256
        %v1355 = vpop.permute.xlu0 %1354
        %1358 = vset.pattern.permute.xlu0 0
        %1359 = vperm.xlu0 %1358, %v1257
        %v1360 = vpop.permute.xlu0 %1359
        %1363 = vset.pattern.permute.xlu0 0
        %1364 = vperm.xlu0 %1363, %v1258
        %v1365 = vpop.permute.xlu0 %1364
        %1368 = vset.pattern.permute.xlu0 0
        %1369 = vperm.xlu0 %1368, %v1259
        %v1370 = vpop.permute.xlu0 %1369
        %1373 = vset.pattern.permute.xlu0 0
        %1374 = vperm.xlu0 %1373, %v1260
        %v1375 = vpop.permute.xlu0 %1374
        %1378 = vset.pattern.permute.xlu0 0
        %1379 = vperm.xlu0 %1378, %v1261
        %v1380 = vpop.permute.xlu0 %1379
        %1383 = vset.pattern.permute.xlu0 0
        %1384 = vperm.xlu0 %1383, %v1262
        %v1385 = vpop.permute.xlu0 %1384
        %1388 = vset.pattern.permute.xlu0 0
        %1389 = vperm.xlu0 %1388, %v1263
        %v1390 = vpop.permute.xlu0 %1389
        %1393 = vset.pattern.permute.xlu0 0
        %1394 = vperm.xlu0 %1393, %v1264
        %v1395 = vpop.permute.xlu0 %1394
        %1398 = vset.pattern.permute.xlu0 0
        %1399 = vperm.xlu0 %1398, %v1265
        %v1400 = vpop.permute.xlu0 %1399
        %1403 = vset.pattern.permute.xlu0 0
        %1404 = vperm.xlu0 %1403, %v1266
        %v1405 = vpop.permute.xlu0 %1404
        %1408 = vset.pattern.permute.xlu0 0
        %1409 = vperm.xlu0 %1408, %v1267
        %v1410 = vpop.permute.xlu0 %1409
        %1413 = vset.pattern.permute.xlu0 0
        %1414 = vperm.xlu0 %1413, %v1268
        %v1415 = vpop.permute.xlu0 %1414
        %1418 = vset.pattern.permute.xlu0 0
        %1419 = vperm.xlu0 %1418, %v1269
        %v1420 = vpop.permute.xlu0 %1419
        %1423 = vset.pattern.permute.xlu0 0
        %1424 = vperm.xlu0 %1423, %v1270
        %v1425 = vpop.permute.xlu0 %1424
        %1428 = vset.pattern.permute.xlu0 0
        %1429 = vperm.xlu0 %1428, %v1271
        %v1430 = vpop.permute.xlu0 %1429
        %v1432 = vmul.f32 %v1208, %v1275
        %v1433 = vmul.f32 %v1209, %v1280
        %v1434 = vmul.f32 %v1210, %v1285
        %v1435 = vmul.f32 %v1211, %v1290
        %v1436 = vmul.f32 %v1212, %v1295
        %v1437 = vmul.f32 %v1213, %v1300
        %v1438 = vmul.f32 %v1214, %v1305
        %v1439 = vmul.f32 %v1215, %v1310
        %v1440 = vmul.f32 %v1216, %v1315
        %v1441 = vmul.f32 %v1217, %v1320
        %v1442 = vmul.f32 %v1218, %v1325
        %v1443 = vmul.f32 %v1219, %v1330
        %v1444 = vmul.f32 %v1220, %v1335
        %v1445 = vmul.f32 %v1221, %v1340
        %v1446 = vmul.f32 %v1222, %v1345
        %v1447 = vmul.f32 %v1223, %v1350
        %v1448 = vmul.f32 %v1224, %v1355
        %v1449 = vmul.f32 %v1225, %v1360
        %v1450 = vmul.f32 %v1226, %v1365
        %v1451 = vmul.f32 %v1227, %v1370
        %v1452 = vmul.f32 %v1228, %v1375
        %v1453 = vmul.f32 %v1229, %v1380
        %v1454 = vmul.f32 %v1230, %v1385
        %v1455 = vmul.f32 %v1231, %v1390
        %v1456 = vmul.f32 %v1232, %v1395
        %v1457 = vmul.f32 %v1233, %v1400
        %v1458 = vmul.f32 %v1234, %v1405
        %v1459 = vmul.f32 %v1235, %v1410
        %v1460 = vmul.f32 %v1236, %v1415
        %v1461 = vmul.f32 %v1237, %v1420
        %v1462 = vmul.f32 %v1238, %v1425
        %v1463 = vmul.f32 %v1239, %v1430
        %v1464 = vld [vmem:[%s372] sm:$0xf]
        %v1465 = vld [vmem:[%s372 + $0x4] sm:$0xf]
        %v1466 = vld [vmem:[%s372 + $0x8] sm:$0xf]
        %v1467 = vld [vmem:[%s372 + $0xc] sm:$0xf]
        %v1468 = vld [vmem:[%s372 + $0x10] sm:$0xf]
        %v1469 = vld [vmem:[%s372 + $0x14] sm:$0xf]
        %v1470 = vld [vmem:[%s372 + $0x18] sm:$0xf]
        %v1471 = vld [vmem:[%s372 + $0x1c] sm:$0xf]
        %v1472 = vld [vmem:[%s372 + $0x20] sm:$0xf]
        %v1473 = vld [vmem:[%s372 + $0x24] sm:$0xf]
        %v1474 = vld [vmem:[%s372 + $0x28] sm:$0xf]
        %v1475 = vld [vmem:[%s372 + $0x2c] sm:$0xf]
        %v1476 = vld [vmem:[%s372 + $0x30] sm:$0xf]
        %v1477 = vld [vmem:[%s372 + $0x34] sm:$0xf]
        %v1478 = vld [vmem:[%s372 + $0x38] sm:$0xf]
        %v1479 = vld [vmem:[%s372 + $0x3c] sm:$0xf]
        %v1480 = vld [vmem:[%s372 + $0x40] sm:$0xf]
        %v1481 = vld [vmem:[%s372 + $0x44] sm:$0xf]
        %v1482 = vld [vmem:[%s372 + $0x48] sm:$0xf]
        %v1483 = vld [vmem:[%s372 + $0x4c] sm:$0xf]
        %v1484 = vld [vmem:[%s372 + $0x50] sm:$0xf]
        %v1485 = vld [vmem:[%s372 + $0x54] sm:$0xf]
        %v1486 = vld [vmem:[%s372 + $0x58] sm:$0xf]
        %v1487 = vld [vmem:[%s372 + $0x5c] sm:$0xf]
        %v1488 = vld [vmem:[%s372 + $0x60] sm:$0xf]
        %v1489 = vld [vmem:[%s372 + $0x64] sm:$0xf]
        %v1490 = vld [vmem:[%s372 + $0x68] sm:$0xf]
        %v1491 = vld [vmem:[%s372 + $0x6c] sm:$0xf]
        %v1492 = vld [vmem:[%s372 + $0x70] sm:$0xf]
        %v1493 = vld [vmem:[%s372 + $0x74] sm:$0xf]
        %v1494 = vld [vmem:[%s372 + $0x78] sm:$0xf]
        %v1495 = vld [vmem:[%s372 + $0x7c] sm:$0xf]
        %v1496 = vld [vmem:[%s5] sm:$0xf]
        %v1497 = vld [vmem:[%s5 + $0x4] sm:$0xf]
        %v1498 = vld [vmem:[%s5 + $0x8] sm:$0xf]
        %v1499 = vld [vmem:[%s5 + $0xc] sm:$0xf]
        %v1500 = vld [vmem:[%s5 + $0x10] sm:$0xf]
        %v1501 = vld [vmem:[%s5 + $0x14] sm:$0xf]
        %v1502 = vld [vmem:[%s5 + $0x18] sm:$0xf]
        %v1503 = vld [vmem:[%s5 + $0x1c] sm:$0xf]
        %v1504 = vld [vmem:[%s5 + $0x20] sm:$0xf]
        %v1505 = vld [vmem:[%s5 + $0x24] sm:$0xf]
        %v1506 = vld [vmem:[%s5 + $0x28] sm:$0xf]
        %v1507 = vld [vmem:[%s5 + $0x2c] sm:$0xf]
        %v1508 = vld [vmem:[%s5 + $0x30] sm:$0xf]
        %v1509 = vld [vmem:[%s5 + $0x34] sm:$0xf]
        %v1510 = vld [vmem:[%s5 + $0x38] sm:$0xf]
        %v1511 = vld [vmem:[%s5 + $0x3c] sm:$0xf]
        %v1512 = vpack.c.bf16 %v1433, %v1432
        %v1513 = vpack.c.bf16 %v1435, %v1434
        %v1514 = vpack.c.bf16 %v1437, %v1436
        %v1515 = vpack.c.bf16 %v1439, %v1438
        %v1516 = vpack.c.bf16 %v1441, %v1440
        %v1517 = vpack.c.bf16 %v1443, %v1442
        %v1518 = vpack.c.bf16 %v1445, %v1444
        %v1519 = vpack.c.bf16 %v1447, %v1446
        %v1520 = vpack.c.bf16 %v1449, %v1448
        %v1521 = vpack.c.bf16 %v1451, %v1450
        %v1522 = vpack.c.bf16 %v1453, %v1452
        %v1523 = vpack.c.bf16 %v1455, %v1454
        %v1524 = vpack.c.bf16 %v1457, %v1456
        %v1525 = vpack.c.bf16 %v1459, %v1458
        %v1526 = vpack.c.bf16 %v1461, %v1460
        %v1527 = vpack.c.bf16 %v1463, %v1462
        %v1528 = vld [vmem:[%s6] sm:$0xf]
        %v1529 = vld [vmem:[%s6 + $0x4] sm:$0xf]
        %v1530 = vld [vmem:[%s6 + $0x8] sm:$0xf]
        %v1531 = vld [vmem:[%s6 + $0xc] sm:$0xf]
        %v1532 = vld [vmem:[%s6 + $0x10] sm:$0xf]
        %v1533 = vld [vmem:[%s6 + $0x14] sm:$0xf]
        %v1534 = vld [vmem:[%s6 + $0x18] sm:$0xf]
        %v1535 = vld [vmem:[%s6 + $0x1c] sm:$0xf]
        %v1536 = vld [vmem:[%s6 + $0x20] sm:$0xf]
        %v1537 = vld [vmem:[%s6 + $0x24] sm:$0xf]
        %v1538 = vld [vmem:[%s6 + $0x28] sm:$0xf]
        %v1539 = vld [vmem:[%s6 + $0x2c] sm:$0xf]
        %v1540 = vld [vmem:[%s6 + $0x30] sm:$0xf]
        %v1541 = vld [vmem:[%s6 + $0x34] sm:$0xf]
        %v1542 = vld [vmem:[%s6 + $0x38] sm:$0xf]
        %v1543 = vld [vmem:[%s6 + $0x3c] sm:$0xf]
        %v1560 = vunpack.c.l.b16 %v1528
        %v1561 = vunpack.c.l.b16 %v1529
        %v1562 = vunpack.c.l.b16 %v1530
        %v1563 = vunpack.c.l.b16 %v1531
        %v1564 = vunpack.c.l.b16 %v1532
        %v1565 = vunpack.c.l.b16 %v1533
        %v1566 = vunpack.c.l.b16 %v1534
        %v1567 = vunpack.c.l.b16 %v1535
        %v1568 = vunpack.c.l.b16 %v1536
        %v1569 = vunpack.c.l.b16 %v1537
        %v1570 = vunpack.c.l.b16 %v1538
        %v1571 = vunpack.c.l.b16 %v1539
        %v1572 = vunpack.c.l.b16 %v1540
        %v1573 = vunpack.c.l.b16 %v1541
        %v1574 = vunpack.c.l.b16 %v1542
        %v1575 = vunpack.c.l.b16 %v1543
        %v1576 = vpack.c.b16 %v1561, %v1560
        %v1577 = vpack.c.b16 %v1563, %v1562
        %v1578 = vpack.c.b16 %v1565, %v1564
        %v1579 = vpack.c.b16 %v1567, %v1566
        %v1580 = vpack.c.b16 %v1569, %v1568
        %v1581 = vpack.c.b16 %v1571, %v1570
        %v1582 = vpack.c.b16 %v1573, %v1572
        %v1583 = vpack.c.b16 %v1575, %v1574
        %1592 = vmatprep.subr.bf16.mxu0 0
        %1593 = vmatpush1.bf16.msra.mxu0 %v1576
        %1594 = vmatprep.subr.bf16.mxu0 0
        %1595 = vmatpush1.bf16.msra.mxu0 %v1577
        %1596 = vmatprep.subr.bf16.mxu0 0
        %1597 = vmatpush1.bf16.msra.mxu0 %v1578
        %1598 = vmatprep.subr.bf16.mxu0 0
        %1599 = vmatpush1.bf16.msra.mxu0 %v1579
        %1600 = vmatprep.subr.bf16.mxu0 0
        %1601 = vmatpush1.bf16.msra.mxu0 %v1580
        %1602 = vmatprep.subr.bf16.mxu0 0
        %1603 = vmatpush1.bf16.msra.mxu0 %v1581
        %1604 = vmatprep.subr.bf16.mxu0 0
        %1605 = vmatpush1.bf16.msra.mxu0 %v1582
        %1606 = vmatprep.subr.bf16.mxu0 0
        %1607 = vmatpush1.bf16.msra.mxu0 %v1583
        %1608 = vmatprep.subr.bf16.mxu0 0
        %1609 = vmatpush1.bf16.msra.mxu0 0
        %1610 = vmatprep.subr.bf16.mxu0 0
        %1611 = vmatpush1.bf16.msra.mxu0 0
        %1612 = vmatprep.subr.bf16.mxu0 0
        %1613 = vmatpush1.bf16.msra.mxu0 0
        %1614 = vmatprep.subr.bf16.mxu0 0
        %1615 = vmatpush1.bf16.msra.mxu0 0
        %1616 = vmatprep.subr.bf16.mxu0 0
        %1617 = vmatpush1.bf16.msra.mxu0 0
        %1618 = vmatprep.subr.bf16.mxu0 0
        %1619 = vmatpush1.bf16.msra.mxu0 0
        %1620 = vmatprep.subr.bf16.mxu0 0
        %1621 = vmatpush1.bf16.msra.mxu0 0
        %1622 = vmatprep.subr.bf16.mxu0 0
        %1623 = vmatpush1.bf16.msra.mxu0 0
        %1624 = vmatprep.mubr.bf16.mxu0 0
        %1625 = vmatmul.mubr.bf16.gmra.mrb[0].mxu0 %v1512
        %v1626 = vpop.f32.mrb[0].mxu0
        %v1627 = vadd.f32 0.0, %v1626
        %v1628 = vpop.f32.mrb[0].mxu0
        %v1629 = vpop.f32.mrb[0].mxu0
        %v1630 = vadd.f32 0.0, %v1629
        %v1631 = vpop.f32.mrb[0].mxu0
        %1632 = vmatprep.mubr.bf16.mxu0 0
        %1633 = vmatmul.mubr.bf16.gmra.mrb[0].mxu0 %v1513
        %v1634 = vpop.f32.mrb[0].mxu0
        %v1635 = vadd.f32 0.0, %v1634
        %v1636 = vpop.f32.mrb[0].mxu0
        %v1637 = vpop.f32.mrb[0].mxu0
        %v1638 = vadd.f32 0.0, %v1637
        %v1639 = vpop.f32.mrb[0].mxu0
        %1640 = vmatprep.mubr.bf16.mxu0 0
        %1641 = vmatmul.mubr.bf16.gmra.mrb[0].mxu0 %v1514
        %v1642 = vpop.f32.mrb[0].mxu0
        %v1643 = vadd.f32 0.0, %v1642
        %v1644 = vpop.f32.mrb[0].mxu0
        %v1645 = vpop.f32.mrb[0].mxu0
        %v1646 = vadd.f32 0.0, %v1645
        %v1647 = vpop.f32.mrb[0].mxu0
        %1648 = vmatprep.mubr.bf16.mxu0 0
        %1649 = vmatmul.mubr.bf16.gmra.mrb[0].mxu0 %v1515
        %v1650 = vpop.f32.mrb[0].mxu0
        %v1651 = vadd.f32 0.0, %v1650
        %v1652 = vpop.f32.mrb[0].mxu0
        %v1653 = vpop.f32.mrb[0].mxu0
        %v1654 = vadd.f32 0.0, %v1653
        %v1655 = vpop.f32.mrb[0].mxu0
        %1656 = vmatprep.mubr.bf16.mxu0 0
        %1657 = vmatmul.mubr.bf16.gmra.mrb[0].mxu0 %v1516
        %v1658 = vpop.f32.mrb[0].mxu0
        %v1659 = vadd.f32 0.0, %v1658
        %v1660 = vpop.f32.mrb[0].mxu0
        %v1661 = vpop.f32.mrb[0].mxu0
        %v1662 = vadd.f32 0.0, %v1661
        %v1663 = vpop.f32.mrb[0].mxu0
        %1664 = vmatprep.mubr.bf16.mxu0 0
        %1665 = vmatmul.mubr.bf16.gmra.mrb[0].mxu0 %v1517
        %v1666 = vpop.f32.mrb[0].mxu0
        %v1667 = vadd.f32 0.0, %v1666
        %v1668 = vpop.f32.mrb[0].mxu0
        %v1669 = vpop.f32.mrb[0].mxu0
        %v1670 = vadd.f32 0.0, %v1669
        %v1671 = vpop.f32.mrb[0].mxu0
        %1672 = vmatprep.mubr.bf16.mxu0 0
        %1673 = vmatmul.mubr.bf16.gmra.mrb[0].mxu0 %v1518
        %v1674 = vpop.f32.mrb[0].mxu0
        %v1675 = vadd.f32 0.0, %v1674
        %v1676 = vpop.f32.mrb[0].mxu0
        %v1677 = vpop.f32.mrb[0].mxu0
        %v1678 = vadd.f32 0.0, %v1677
        %v1679 = vpop.f32.mrb[0].mxu0
        %1680 = vmatprep.mubr.bf16.mxu0 0
        %1681 = vmatmul.mubr.bf16.gmra.mrb[0].mxu0 %v1519
        %v1682 = vpop.f32.mrb[0].mxu0
        %v1683 = vadd.f32 0.0, %v1682
        %v1684 = vpop.f32.mrb[0].mxu0
        %v1685 = vpop.f32.mrb[0].mxu0
        %v1686 = vadd.f32 0.0, %v1685
        %v1687 = vpop.f32.mrb[0].mxu0
        %1688 = vmatprep.mubr.bf16.mxu0 0
        %1689 = vmatmul.mubr.bf16.gmra.mrb[0].mxu0 %v1520
        %v1690 = vpop.f32.mrb[0].mxu0
        %v1691 = vadd.f32 0.0, %v1690
        %v1692 = vpop.f32.mrb[0].mxu0
        %v1693 = vpop.f32.mrb[0].mxu0
        %v1694 = vadd.f32 0.0, %v1693
        %v1695 = vpop.f32.mrb[0].mxu0
        %1696 = vmatprep.mubr.bf16.mxu0 0
        %1697 = vmatmul.mubr.bf16.gmra.mrb[0].mxu0 %v1521
        %v1698 = vpop.f32.mrb[0].mxu0
        %v1699 = vadd.f32 0.0, %v1698
        %v1700 = vpop.f32.mrb[0].mxu0
        %v1701 = vpop.f32.mrb[0].mxu0
        %v1702 = vadd.f32 0.0, %v1701
        %v1703 = vpop.f32.mrb[0].mxu0
        %1704 = vmatprep.mubr.bf16.mxu0 0
        %1705 = vmatmul.mubr.bf16.gmra.mrb[0].mxu0 %v1522
        %v1706 = vpop.f32.mrb[0].mxu0
        %v1707 = vadd.f32 0.0, %v1706
        %v1708 = vpop.f32.mrb[0].mxu0
        %v1709 = vpop.f32.mrb[0].mxu0
        %v1710 = vadd.f32 0.0, %v1709
        %v1711 = vpop.f32.mrb[0].mxu0
        %1712 = vmatprep.mubr.bf16.mxu0 0
        %1713 = vmatmul.mubr.bf16.gmra.mrb[0].mxu0 %v1523
        %v1714 = vpop.f32.mrb[0].mxu0
        %v1715 = vadd.f32 0.0, %v1714
        %v1716 = vpop.f32.mrb[0].mxu0
        %v1717 = vpop.f32.mrb[0].mxu0
        %v1718 = vadd.f32 0.0, %v1717
        %v1719 = vpop.f32.mrb[0].mxu0
        %1720 = vmatprep.mubr.bf16.mxu0 0
        %1721 = vmatmul.mubr.bf16.gmra.mrb[0].mxu0 %v1524
        %v1722 = vpop.f32.mrb[0].mxu0
        %v1723 = vadd.f32 0.0, %v1722
        %v1724 = vpop.f32.mrb[0].mxu0
        %v1725 = vpop.f32.mrb[0].mxu0
        %v1726 = vadd.f32 0.0, %v1725
        %v1727 = vpop.f32.mrb[0].mxu0
        %1728 = vmatprep.mubr.bf16.mxu0 0
        %1729 = vmatmul.mubr.bf16.gmra.mrb[0].mxu0 %v1525
        %v1730 = vpop.f32.mrb[0].mxu0
        %v1731 = vadd.f32 0.0, %v1730
        %v1732 = vpop.f32.mrb[0].mxu0
        %v1733 = vpop.f32.mrb[0].mxu0
        %v1734 = vadd.f32 0.0, %v1733
        %v1735 = vpop.f32.mrb[0].mxu0
        %1736 = vmatprep.mubr.bf16.mxu0 0
        %1737 = vmatmul.mubr.bf16.gmra.mrb[0].mxu0 %v1526
        %v1738 = vpop.f32.mrb[0].mxu0
        %v1739 = vadd.f32 0.0, %v1738
        %v1740 = vpop.f32.mrb[0].mxu0
        %v1741 = vpop.f32.mrb[0].mxu0
        %v1742 = vadd.f32 0.0, %v1741
        %v1743 = vpop.f32.mrb[0].mxu0
        %1744 = vmatprep.mubr.bf16.mxu0 0
        %1745 = vmatmul.mubr.bf16.gmra.mrb[0].mxu0 %v1527
        %v1746 = vpop.f32.mrb[0].mxu0
        %v1747 = vadd.f32 0.0, %v1746
        %v1748 = vpop.f32.mrb[0].mxu0
        %v1749 = vpop.f32.mrb[0].mxu0
        %v1750 = vadd.f32 0.0, %v1749
        %v1751 = vpop.f32.mrb[0].mxu0
        %1752 = vdwg.mxu0
        %v1785 = vunpack.c.l.b16 %v1464
        %v1786 = vunpack.c.l.b16 %v1465
        %v1787 = vunpack.c.l.b16 %v1466
        %v1788 = vunpack.c.l.b16 %v1467
        %v1789 = vunpack.c.l.b16 %v1468
        %v1790 = vunpack.c.l.b16 %v1469
        %v1791 = vunpack.c.l.b16 %v1470
        %v1792 = vunpack.c.l.b16 %v1471
        %v1793 = vunpack.c.l.b16 %v1472
        %v1794 = vunpack.c.l.b16 %v1473
        %v1795 = vunpack.c.l.b16 %v1474
        %v1796 = vunpack.c.l.b16 %v1475
        %v1797 = vunpack.c.l.b16 %v1476
        %v1798 = vunpack.c.l.b16 %v1477
        %v1799 = vunpack.c.l.b16 %v1478
        %v1800 = vunpack.c.l.b16 %v1479
        %v1801 = vunpack.c.l.b16 %v1480
        %v1802 = vunpack.c.l.b16 %v1481
        %v1803 = vunpack.c.l.b16 %v1482
        %v1804 = vunpack.c.l.b16 %v1483
        %v1805 = vunpack.c.l.b16 %v1484
        %v1806 = vunpack.c.l.b16 %v1485
        %v1807 = vunpack.c.l.b16 %v1486
        %v1808 = vunpack.c.l.b16 %v1487
        %v1809 = vunpack.c.l.b16 %v1488
        %v1810 = vunpack.c.l.b16 %v1489
        %v1811 = vunpack.c.l.b16 %v1490
        %v1812 = vunpack.c.l.b16 %v1491
        %v1813 = vunpack.c.l.b16 %v1492
        %v1814 = vunpack.c.l.b16 %v1493
        %v1815 = vunpack.c.l.b16 %v1494
        %v1816 = vunpack.c.l.b16 %v1495
        %v1817 = vpack.c.b16 %v1786, %v1785
        %v1818 = vpack.c.b16 %v1788, %v1787
        %v1819 = vpack.c.b16 %v1790, %v1789
        %v1820 = vpack.c.b16 %v1792, %v1791
        %v1821 = vpack.c.b16 %v1794, %v1793
        %v1822 = vpack.c.b16 %v1796, %v1795
        %v1823 = vpack.c.b16 %v1798, %v1797
        %v1824 = vpack.c.b16 %v1800, %v1799
        %v1825 = vpack.c.b16 %v1802, %v1801
        %v1826 = vpack.c.b16 %v1804, %v1803
        %v1827 = vpack.c.b16 %v1806, %v1805
        %v1828 = vpack.c.b16 %v1808, %v1807
        %v1829 = vpack.c.b16 %v1810, %v1809
        %v1830 = vpack.c.b16 %v1812, %v1811
        %v1831 = vpack.c.b16 %v1814, %v1813
        %v1832 = vpack.c.b16 %v1816, %v1815
        %v1865 = vunpack.c.l.b16 %v1496
        %v1866 = vunpack.c.l.b16 %v1497
        %v1867 = vunpack.c.l.b16 %v1498
        %v1868 = vunpack.c.l.b16 %v1499
        %v1869 = vunpack.c.l.b16 %v1500
        %v1870 = vunpack.c.l.b16 %v1501
        %v1871 = vunpack.c.l.b16 %v1502
        %v1872 = vunpack.c.l.b16 %v1503
        %v1873 = vunpack.c.l.b16 %v1504
        %v1874 = vunpack.c.l.b16 %v1505
        %v1875 = vunpack.c.l.b16 %v1506
        %v1876 = vunpack.c.l.b16 %v1507
        %v1877 = vunpack.c.l.b16 %v1508
        %v1878 = vunpack.c.l.b16 %v1509
        %v1879 = vunpack.c.l.b16 %v1510
        %v1880 = vunpack.c.l.b16 %v1511
        %v1881 = vpack.c.b16 %v1866, %v1865
        %v1882 = vpack.c.b16 %v1868, %v1867
        %v1883 = vpack.c.b16 %v1870, %v1869
        %v1884 = vpack.c.b16 %v1872, %v1871
        %v1885 = vpack.c.b16 %v1874, %v1873
        %v1886 = vpack.c.b16 %v1876, %v1875
        %v1887 = vpack.c.b16 %v1878, %v1877
        %v1888 = vpack.c.b16 %v1880, %v1879
        %1897 = vmatprep.subr.bf16.mxu0 0
        %1898 = vmatpush1.bf16.msra.mxu0 %v1881
        %1899 = vmatprep.subr.bf16.mxu0 0
        %1900 = vmatpush1.bf16.msra.mxu0 %v1882
        %1901 = vmatprep.subr.bf16.mxu0 0
        %1902 = vmatpush1.bf16.msra.mxu0 %v1883
        %1903 = vmatprep.subr.bf16.mxu0 0
        %1904 = vmatpush1.bf16.msra.mxu0 %v1884
        %1905 = vmatprep.subr.bf16.mxu0 0
        %1906 = vmatpush1.bf16.msra.mxu0 %v1885
        %1907 = vmatprep.subr.bf16.mxu0 0
        %1908 = vmatpush1.bf16.msra.mxu0 %v1886
        %1909 = vmatprep.subr.bf16.mxu0 0
        %1910 = vmatpush1.bf16.msra.mxu0 %v1887
        %1911 = vmatprep.subr.bf16.mxu0 0
        %1912 = vmatpush1.bf16.msra.mxu0 %v1888
        %1913 = vmatprep.subr.bf16.mxu0 0
        %1914 = vmatpush1.bf16.msra.mxu0 0
        %1915 = vmatprep.subr.bf16.mxu0 0
        %1916 = vmatpush1.bf16.msra.mxu0 0
        %1917 = vmatprep.subr.bf16.mxu0 0
        %1918 = vmatpush1.bf16.msra.mxu0 0
        %1919 = vmatprep.subr.bf16.mxu0 0
        %1920 = vmatpush1.bf16.msra.mxu0 0
        %1921 = vmatprep.subr.bf16.mxu0 0
        %1922 = vmatpush1.bf16.msra.mxu0 0
        %1923 = vmatprep.subr.bf16.mxu0 0
        %1924 = vmatpush1.bf16.msra.mxu0 0
        %1925 = vmatprep.subr.bf16.mxu0 0
        %1926 = vmatpush1.bf16.msra.mxu0 0
        %1927 = vmatprep.subr.bf16.mxu0 0
        %1928 = vmatpush1.bf16.msra.mxu0 0
        %1929 = vmatprep.mubr.bf16.mxu0 0
        %1930 = vmatmul.mubr.bf16.gmra.mrb[0].mxu0 %v1817
        %v1931 = vpop.f32.mrb[0].mxu0
        %v1932 = vadd.f32 %v1627, %v1931
        %v1933 = vpop.f32.mrb[0].mxu0
        %v1934 = vpop.f32.mrb[0].mxu0
        %v1935 = vadd.f32 %v1630, %v1934
        %v1936 = vpop.f32.mrb[0].mxu0
        %1937 = vmatprep.mubr.bf16.mxu0 0
        %1938 = vmatmul.mubr.bf16.gmra.mrb[0].mxu0 %v1818
        %v1939 = vpop.f32.mrb[0].mxu0
        %v1940 = vadd.f32 %v1635, %v1939
        %v1941 = vpop.f32.mrb[0].mxu0
        %v1942 = vpop.f32.mrb[0].mxu0
        %v1943 = vadd.f32 %v1638, %v1942
        %v1944 = vpop.f32.mrb[0].mxu0
        %1945 = vmatprep.mubr.bf16.mxu0 0
        %1946 = vmatmul.mubr.bf16.gmra.mrb[0].mxu0 %v1819
        %v1947 = vpop.f32.mrb[0].mxu0
        %v1948 = vadd.f32 %v1643, %v1947
        %v1949 = vpop.f32.mrb[0].mxu0
        %v1950 = vpop.f32.mrb[0].mxu0
        %v1951 = vadd.f32 %v1646, %v1950
        %v1952 = vpop.f32.mrb[0].mxu0
        %1953 = vmatprep.mubr.bf16.mxu0 0
        %1954 = vmatmul.mubr.bf16.gmra.mrb[0].mxu0 %v1820
        %v1955 = vpop.f32.mrb[0].mxu0
        %v1956 = vadd.f32 %v1651, %v1955
        %v1957 = vpop.f32.mrb[0].mxu0
        %v1958 = vpop.f32.mrb[0].mxu0
        %v1959 = vadd.f32 %v1654, %v1958
        %v1960 = vpop.f32.mrb[0].mxu0
        %1961 = vmatprep.mubr.bf16.mxu0 0
        %1962 = vmatmul.mubr.bf16.gmra.mrb[0].mxu0 %v1821
        %v1963 = vpop.f32.mrb[0].mxu0
        %v1964 = vadd.f32 %v1659, %v1963
        %v1965 = vpop.f32.mrb[0].mxu0
        %v1966 = vpop.f32.mrb[0].mxu0
        %v1967 = vadd.f32 %v1662, %v1966
        %v1968 = vpop.f32.mrb[0].mxu0
        %1969 = vmatprep.mubr.bf16.mxu0 0
        %1970 = vmatmul.mubr.bf16.gmra.mrb[0].mxu0 %v1822
        %v1971 = vpop.f32.mrb[0].mxu0
        %v1972 = vadd.f32 %v1667, %v1971
        %v1973 = vpop.f32.mrb[0].mxu0
        %v1974 = vpop.f32.mrb[0].mxu0
        %v1975 = vadd.f32 %v1670, %v1974
        %v1976 = vpop.f32.mrb[0].mxu0
        %1977 = vmatprep.mubr.bf16.mxu0 0
        %1978 = vmatmul.mubr.bf16.gmra.mrb[0].mxu0 %v1823
        %v1979 = vpop.f32.mrb[0].mxu0
        %v1980 = vadd.f32 %v1675, %v1979
        %v1981 = vpop.f32.mrb[0].mxu0
        %v1982 = vpop.f32.mrb[0].mxu0
        %v1983 = vadd.f32 %v1678, %v1982
        %v1984 = vpop.f32.mrb[0].mxu0
        %1985 = vmatprep.mubr.bf16.mxu0 0
        %1986 = vmatmul.mubr.bf16.gmra.mrb[0].mxu0 %v1824
        %v1987 = vpop.f32.mrb[0].mxu0
        %v1988 = vadd.f32 %v1683, %v1987
        %v1989 = vpop.f32.mrb[0].mxu0
        %v1990 = vpop.f32.mrb[0].mxu0
        %v1991 = vadd.f32 %v1686, %v1990
        %v1992 = vpop.f32.mrb[0].mxu0
        %1993 = vmatprep.mubr.bf16.mxu0 0
        %1994 = vmatmul.mubr.bf16.gmra.mrb[0].mxu0 %v1825
        %v1995 = vpop.f32.mrb[0].mxu0
        %v1996 = vadd.f32 %v1691, %v1995
        %v1997 = vpop.f32.mrb[0].mxu0
        %v1998 = vpop.f32.mrb[0].mxu0
        %v1999 = vadd.f32 %v1694, %v1998
        %v2000 = vpop.f32.mrb[0].mxu0
        %2001 = vmatprep.mubr.bf16.mxu0 0
        %2002 = vmatmul.mubr.bf16.gmra.mrb[0].mxu0 %v1826
        %v2003 = vpop.f32.mrb[0].mxu0
        %v2004 = vadd.f32 %v1699, %v2003
        %v2005 = vpop.f32.mrb[0].mxu0
        %v2006 = vpop.f32.mrb[0].mxu0
        %v2007 = vadd.f32 %v1702, %v2006
        %v2008 = vpop.f32.mrb[0].mxu0
        %2009 = vmatprep.mubr.bf16.mxu0 0
        %2010 = vmatmul.mubr.bf16.gmra.mrb[0].mxu0 %v1827
        %v2011 = vpop.f32.mrb[0].mxu0
        %v2012 = vadd.f32 %v1707, %v2011
        %v2013 = vpop.f32.mrb[0].mxu0
        %v2014 = vpop.f32.mrb[0].mxu0
        %v2015 = vadd.f32 %v1710, %v2014
        %v2016 = vpop.f32.mrb[0].mxu0
        %2017 = vmatprep.mubr.bf16.mxu0 0
        %2018 = vmatmul.mubr.bf16.gmra.mrb[0].mxu0 %v1828
        %v2019 = vpop.f32.mrb[0].mxu0
        %v2020 = vadd.f32 %v1715, %v2019
        %v2021 = vpop.f32.mrb[0].mxu0
        %v2022 = vpop.f32.mrb[0].mxu0
        %v2023 = vadd.f32 %v1718, %v2022
        %v2024 = vpop.f32.mrb[0].mxu0
        %2025 = vmatprep.mubr.bf16.mxu0 0
        %2026 = vmatmul.mubr.bf16.gmra.mrb[0].mxu0 %v1829
        %v2027 = vpop.f32.mrb[0].mxu0
        %v2028 = vadd.f32 %v1723, %v2027
        %v2029 = vpop.f32.mrb[0].mxu0
        %v2030 = vpop.f32.mrb[0].mxu0
        %v2031 = vadd.f32 %v1726, %v2030
        %v2032 = vpop.f32.mrb[0].mxu0
        %2033 = vmatprep.mubr.bf16.mxu0 0
        %2034 = vmatmul.mubr.bf16.gmra.mrb[0].mxu0 %v1830
        %v2035 = vpop.f32.mrb[0].mxu0
        %v2036 = vadd.f32 %v1731, %v2035
        %v2037 = vpop.f32.mrb[0].mxu0
        %v2038 = vpop.f32.mrb[0].mxu0
        %v2039 = vadd.f32 %v1734, %v2038
        %v2040 = vpop.f32.mrb[0].mxu0
        %2041 = vmatprep.mubr.bf16.mxu0 0
        %2042 = vmatmul.mubr.bf16.gmra.mrb[0].mxu0 %v1831
        %v2043 = vpop.f32.mrb[0].mxu0
        %v2044 = vadd.f32 %v1739, %v2043
        %v2045 = vpop.f32.mrb[0].mxu0
        %v2046 = vpop.f32.mrb[0].mxu0
        %v2047 = vadd.f32 %v1742, %v2046
        %v2048 = vpop.f32.mrb[0].mxu0
        %2049 = vmatprep.mubr.bf16.mxu0 0
        %2050 = vmatmul.mubr.bf16.gmra.mrb[0].mxu0 %v1832
        %v2051 = vpop.f32.mrb[0].mxu0
        %v2052 = vadd.f32 %v1747, %v2051
        %v2053 = vpop.f32.mrb[0].mxu0
        %v2054 = vpop.f32.mrb[0].mxu0
        %v2055 = vadd.f32 %v1750, %v2054
        %v2056 = vpop.f32.mrb[0].mxu0
        %2057 = vdwg.mxu0
        %v2058 = vld [vmem:[%s7] sm:$0x1]
        %v2060 = vlaneseq
        %v2061 = vshrl.u32 %v2060, 7
        %v2062 = vsub.s32 0, %v2061
        %v2063 = vrot.slane %v2058, %v2062
        %v2065 = vadd.f32 %v1932, %v2063
        %v2066 = vadd.f32 %v1935, %v2063
        %v2067 = vadd.f32 %v1940, %v2063
        %v2068 = vadd.f32 %v1943, %v2063
        %v2069 = vadd.f32 %v1948, %v2063
        %v2070 = vadd.f32 %v1951, %v2063
        %v2071 = vadd.f32 %v1956, %v2063
        %v2072 = vadd.f32 %v1959, %v2063
        %v2073 = vadd.f32 %v1964, %v2063
        %v2074 = vadd.f32 %v1967, %v2063
        %v2075 = vadd.f32 %v1972, %v2063
        %v2076 = vadd.f32 %v1975, %v2063
        %v2077 = vadd.f32 %v1980, %v2063
        %v2078 = vadd.f32 %v1983, %v2063
        %v2079 = vadd.f32 %v1988, %v2063
        %v2080 = vadd.f32 %v1991, %v2063
        %v2081 = vadd.f32 %v1996, %v2063
        %v2082 = vadd.f32 %v1999, %v2063
        %v2083 = vadd.f32 %v2004, %v2063
        %v2084 = vadd.f32 %v2007, %v2063
        %v2085 = vadd.f32 %v2012, %v2063
        %v2086 = vadd.f32 %v2015, %v2063
        %v2087 = vadd.f32 %v2020, %v2063
        %v2088 = vadd.f32 %v2023, %v2063
        %v2089 = vadd.f32 %v2028, %v2063
        %v2090 = vadd.f32 %v2031, %v2063
        %v2091 = vadd.f32 %v2036, %v2063
        %v2092 = vadd.f32 %v2039, %v2063
        %v2093 = vadd.f32 %v2044, %v2063
        %v2094 = vadd.f32 %v2047, %v2063
        %v2095 = vadd.f32 %v2052, %v2063
        %v2096 = vadd.f32 %v2055, %v2063
        %2097 = vst [vmem:[%s384] sm:$0xff] %v2065
        %2098 = vst [vmem:[%s384 + $0x8] sm:$0xff] %v2066
        %2099 = vst [vmem:[%s384 + $0x10] sm:$0xff] %v2067
        %2100 = vst [vmem:[%s384 + $0x18] sm:$0xff] %v2068
        %2101 = vst [vmem:[%s384 + $0x20] sm:$0xff] %v2069
        %2102 = vst [vmem:[%s384 + $0x28] sm:$0xff] %v2070
        %2103 = vst [vmem:[%s384 + $0x30] sm:$0xff] %v2071
        %2104 = vst [vmem:[%s384 + $0x38] sm:$0xff] %v2072
        %2105 = vst [vmem:[%s384 + $0x40] sm:$0xff] %v2073
        %2106 = vst [vmem:[%s384 + $0x48] sm:$0xff] %v2074
        %2107 = vst [vmem:[%s384 + $0x50] sm:$0xff] %v2075
        %2108 = vst [vmem:[%s384 + $0x58] sm:$0xff] %v2076
        %2109 = vst [vmem:[%s384 + $0x60] sm:$0xff] %v2077
        %2110 = vst [vmem:[%s384 + $0x68] sm:$0xff] %v2078
        %2111 = vst [vmem:[%s384 + $0x70] sm:$0xff] %v2079
        %2112 = vst [vmem:[%s384 + $0x78] sm:$0xff] %v2080
        %2113 = vst [vmem:[%s384 + $0x80] sm:$0xff] %v2081
        %2114 = vst [vmem:[%s384 + $0x88] sm:$0xff] %v2082
        %2115 = vst [vmem:[%s384 + $0x90] sm:$0xff] %v2083
        %2116 = vst [vmem:[%s384 + $0x98] sm:$0xff] %v2084
        %2117 = vst [vmem:[%s384 + $0xa0] sm:$0xff] %v2085
        %2118 = vst [vmem:[%s384 + $0xa8] sm:$0xff] %v2086
        %2119 = vst [vmem:[%s384 + $0xb0] sm:$0xff] %v2087
        %2120 = vst [vmem:[%s384 + $0xb8] sm:$0xff] %v2088
        %2121 = vst [vmem:[%s384 + $0xc0] sm:$0xff] %v2089
        %2122 = vst [vmem:[%s384 + $0xc8] sm:$0xff] %v2090
        %2123 = vst [vmem:[%s384 + $0xd0] sm:$0xff] %v2091
        %2124 = vst [vmem:[%s384 + $0xd8] sm:$0xff] %v2092
        %2125 = vst [vmem:[%s384 + $0xe0] sm:$0xff] %v2093
        %2126 = vst [vmem:[%s384 + $0xe8] sm:$0xff] %v2094
        %2127 = vst [vmem:[%s384 + $0xf0] sm:$0xff] %v2095
        %2128 = vst [vmem:[%s384 + $0xf8] sm:$0xff] %v2096
      $region60: #{model_forward.4} parent=47 // pred_fallthru
        _
      %s2129 = smul.u32 32, %s29
      %p2130 = scmp.lt.s32.totalorder %s2129, 63
      %s2131 = scalar_select %p2130, %s2129, 63
      %s2132 = smul.addr %s2131, 8
      %s2133 = scalar_lea.vmem %s8, %s2132
      // Predicated region
      $region61: #{model_forward.4} parent=47 // pred_check
        %p2134 = pneg %p224
      $region62: #{model_forward.4} parent=47 // pred_check_branch
        %2136 = sbr.rel (%p2134) target = $region64
      $region63: #{model_forward.4} parent=47 // pred_region
        %s2137 = smul.u32 32, %s29
      $region64: #{model_forward.4} parent=47 // pred_fallthru
        _
    $region48: #{model_forward.4} parent=5 // pred_fallthru
      _
    %p2138 = scmp.le.s32.totalorder 2, %s20
    // Predicated region
    $region65: #{model_forward.4} parent=5 // pred_check
      %p2139 = pneg %p2138
    $region66: #{model_forward.4} parent=5 // pred_check_branch
      %2141 = sbr.rel (%p2139) target = $region68
    $region67: #{model_forward.4} parent=5 // pred_region
      %s2142 = ssub.s32 %s20, 2
      // Predicated region
      $region69: #{model_forward.4} parent=67 // pred_check
        %p2143 = pneg %p230
      $region70: #{model_forward.4} parent=67 // pred_check_branch
        %2145 = sbr.rel (%p2143) target = $region72
      $region71: #{model_forward.4} parent=67 // pred_region
        %s2146 = smul.u32 32, %s31
        %p2147 = scmp.lt.s32.totalorder %s2146, 63
        %s2148 = scalar_select %p2147, %s2146, 63
        %s2149 = smul.addr %s2148, 8
        %s2150 = scalar_lea.vmem %s8, %s2149
      $region72: #{model_forward.4} parent=67 // pred_fallthru
        _
    $region68: #{model_forward.4} parent=5 // pred_fallthru
      _
  $region6: #{model_forward.4} parent=0 // loop_footer
    %s24 = sadd.s32 1, %s20
  $region7: #{model_forward.4} parent=0 // loop_footer_branch
    %19 = sbr.rel target = $region3
  $region8: #{model_forward.4} parent=0 // loop_exit
    _

// kernel: model_forward.5
$region0: #{model_forward.5}
  #allocation0 [shape = 'u32[]', space=smem, size = 0x4, offset = 0x4, fixed_abs, tag = 'smem constant byte address 0x4 - core index']
  #allocation1 [shape = 'u32[144,128]{1,0:T(1,128)}', space=vmem, size = 0x12000, scoped, tag = 'internal scratch']
  %s0 = inlined_call_operand.vmem [shape: f32[512,128], index: 0, kind: input, shape index: {}]
  %s1 = inlined_call_operand.vmem [shape: s32[1,640], index: 1, kind: input, shape index: {}]
  %s2 = inlined_call_operand.vmem [shape: s32[1,640], index: 2, kind: input, shape index: {}]
  %s3 = inlined_call_operand.hbm [shape: f32[1,640], index: 3, kind: output, shape index: {}]
  %s4 = sld [smem:[#allocation0]]
  $region22: #{model_forward.5} parent=0
    _
  %s6 = ssub.s32 1, %s4
  %s7 = scalar_select 0, %s6, %s4
  $region1: #{model_forward.5} parent=0
    #allocation2 [shape = 'u8[2560]{0}', space=vmem, size = 0xc00, scoped, tag = 'output window, operand 0, single buffered']
    #allocation3 [shape = 's32[1]{0}', space=sflag, size = 0x4, scoped, tag = 'scoped memory for model_forward.5']
    %8 = vsyncpa [#allocation3], 0
    // Predicated region
    $region2: #{model_forward.5} parent=1 // pred_check
      _
    $region3: #{model_forward.5} parent=1 // pred_check_branch
      %10 = sbr.rel (0) target = $region5
    $region4: #{model_forward.5} parent=1 // pred_region
      _
    $region5: #{model_forward.5} parent=1 // pred_fallthru
      _
    // Predicated region
    $region6: #{model_forward.5} parent=1 // pred_check
      _
    $region7: #{model_forward.5} parent=1 // pred_check_branch
      %12 = sbr.rel (0) target = $region9
    $region8: #{model_forward.5} parent=1 // pred_region
      _
    $region9: #{model_forward.5} parent=1 // pred_fallthru
      _
    // Predicated region
    $region10: #{model_forward.5} parent=1 // pred_check
      _
    $region11: #{model_forward.5} parent=1 // pred_check_branch
      %14 = sbr.rel (0) target = $region13
    $region12: #{model_forward.5} parent=1 // pred_region
      _
    $region13: #{model_forward.5} parent=1 // pred_fallthru
      _
    %v15 = vld [vmem:[%s0] sm:$0xff]
    %v16 = vld [vmem:[%s0 + $0x8] sm:$0xff]
    %v17 = vld [vmem:[%s0 + $0x10] sm:$0xff]
    %v18 = vld [vmem:[%s0 + $0x18] sm:$0xff]
    %v19 = vld [vmem:[%s0 + $0x20] sm:$0xff]
    %v20 = vld [vmem:[%s0 + $0x28] sm:$0xff]
    %v21 = vld [vmem:[%s0 + $0x30] sm:$0xff]
    %v22 = vld [vmem:[%s0 + $0x38] sm:$0xff]
    %v23 = vld [vmem:[%s0 + $0x40] sm:$0xff]
    %v24 = vld [vmem:[%s0 + $0x48] sm:$0xff]
    %v25 = vld [vmem:[%s0 + $0x50] sm:$0xff]
    %v26 = vld [vmem:[%s0 + $0x58] sm:$0xff]
    %v27 = vld [vmem:[%s0 + $0x60] sm:$0xff]
    %v28 = vld [vmem:[%s0 + $0x68] sm:$0xff]
    %v29 = vld [vmem:[%s0 + $0x70] sm:$0xff]
    %v30 = vld [vmem:[%s0 + $0x78] sm:$0xff]
    %v31 = vld [vmem:[%s0 + $0x80] sm:$0xff]
    %v32 = vld [vmem:[%s0 + $0x88] sm:$0xff]
    %v33 = vld [vmem:[%s0 + $0x90] sm:$0xff]
    %v34 = vld [vmem:[%s0 + $0x98] sm:$0xff]
    %v35 = vld [vmem:[%s0 + $0xa0] sm:$0xff]
    %v36 = vld [vmem:[%s0 + $0xa8] sm:$0xff]
    %v37 = vld [vmem:[%s0 + $0xb0] sm:$0xff]
    %v38 = vld [vmem:[%s0 + $0xb8] sm:$0xff]
    %v39 = vld [vmem:[%s0 + $0xc0] sm:$0xff]
    %v40 = vld [vmem:[%s0 + $0xc8] sm:$0xff]
    %v41 = vld [vmem:[%s0 + $0xd0] sm:$0xff]
    %v42 = vld [vmem:[%s0 + $0xd8] sm:$0xff]
    %v43 = vld [vmem:[%s0 + $0xe0] sm:$0xff]
    %v44 = vld [vmem:[%s0 + $0xe8] sm:$0xff]
    %v45 = vld [vmem:[%s0 + $0xf0] sm:$0xff]
    %v46 = vld [vmem:[%s0 + $0xf8] sm:$0xff]
    %v47 = vld [vmem:[%s0 + $0x100] sm:$0xff]
    %v48 = vld [vmem:[%s0 + $0x108] sm:$0xff]
    %v49 = vld [vmem:[%s0 + $0x110] sm:$0xff]
    %v50 = vld [vmem:[%s0 + $0x118] sm:$0xff]
    %v51 = vld [vmem:[%s0 + $0x120] sm:$0xff]
    %v52 = vld [vmem:[%s0 + $0x128] sm:$0xff]
    %v53 = vld [vmem:[%s0 + $0x130] sm:$0xff]
    %v54 = vld [vmem:[%s0 + $0x138] sm:$0xff]
    %v55 = vld [vmem:[%s0 + $0x140] sm:$0xff]
    %v56 = vld [vmem:[%s0 + $0x148] sm:$0xff]
    %v57 = vld [vmem:[%s0 + $0x150] sm:$0xff]
    %v58 = vld [vmem:[%s0 + $0x158] sm:$0xff]
    %v59 = vld [vmem:[%s0 + $0x160] sm:$0xff]
    %v60 = vld [vmem:[%s0 + $0x168] sm:$0xff]
    %v61 = vld [vmem:[%s0 + $0x170] sm:$0xff]
    %v62 = vld [vmem:[%s0 + $0x178] sm:$0xff]
    %v63 = vld [vmem:[%s0 + $0x180] sm:$0xff]
    %v64 = vld [vmem:[%s0 + $0x188] sm:$0xff]
    %v65 = vld [vmem:[%s0 + $0x190] sm:$0xff]
    %v66 = vld [vmem:[%s0 + $0x198] sm:$0xff]
    %v67 = vld [vmem:[%s0 + $0x1a0] sm:$0xff]
    %v68 = vld [vmem:[%s0 + $0x1a8] sm:$0xff]
    %v69 = vld [vmem:[%s0 + $0x1b0] sm:$0xff]
    %v70 = vld [vmem:[%s0 + $0x1b8] sm:$0xff]
    %v71 = vld [vmem:[%s0 + $0x1c0] sm:$0xff]
    %v72 = vld [vmem:[%s0 + $0x1c8] sm:$0xff]
    %v73 = vld [vmem:[%s0 + $0x1d0] sm:$0xff]
    %v74 = vld [vmem:[%s0 + $0x1d8] sm:$0xff]
    %v75 = vld [vmem:[%s0 + $0x1e0] sm:$0xff]
    %v76 = vld [vmem:[%s0 + $0x1e8] sm:$0xff]
    %v77 = vld [vmem:[%s0 + $0x1f0] sm:$0xff]
    %v78 = vld [vmem:[%s0 + $0x1f8] sm:$0xff]
    %v79 = vlaneseq
    %v80 = vshrl.u32 %v79, 7
    %v81 = vadd.s32 %v80, 8
    %v82 = vadd.s32 %v80, 16
    %v83 = vadd.s32 %v80, 24
    %v84 = vadd.s32 %v80, 32
    %v85 = vadd.s32 %v80, 40
    %v86 = vadd.s32 %v80, 48
    %v87 = vadd.s32 %v80, 56
    %v88 = vadd.s32 %v80, 64
    %v89 = vadd.s32 %v80, 72
    %v90 = vadd.s32 %v80, 80
    %v91 = vadd.s32 %v80, 88
    %v92 = vadd.s32 %v80, 96
    %v93 = vadd.s32 %v80, 104
    %v94 = vadd.s32 %v80, 112
    %v95 = vadd.s32 %v80, 120
    %v96 = vadd.s32 %v80, 128
    %v97 = vadd.s32 %v80, 136
    %v98 = vadd.s32 %v80, 144
    %v99 = vadd.s32 %v80, 152
    %v100 = vadd.s32 %v80, 160
    %v101 = vadd.s32 %v80, 168
    %v102 = vadd.s32 %v80, 176
    %v103 = vadd.s32 %v80, 184
    %v104 = vadd.s32 %v80, 192
    %v105 = vadd.s32 %v80, 200
    %v106 = vadd.s32 %v80, 208
    %v107 = vadd.s32 %v80, 216
    %v108 = vadd.s32 %v80, 224
    %v109 = vadd.s32 %v80, 232
    %v110 = vadd.s32 %v80, 240
    %v111 = vadd.s32 %v80, 248
    %v112 = vadd.s32 %v80, 256
    %v113 = vadd.s32 %v80, 264
    %v114 = vadd.s32 %v80, 272
    %v115 = vadd.s32 %v80, 280
    %v116 = vadd.s32 %v80, 288
    %v117 = vadd.s32 %v80, 296
    %v118 = vadd.s32 %v80, 304
    %v119 = vadd.s32 %v80, 312
    %v120 = vadd.s32 %v80, 320
    %v121 = vadd.s32 %v80, 328
    %v122 = vadd.s32 %v80, 336
    %v123 = vadd.s32 %v80, 344
    %v124 = vadd.s32 %v80, 352
    %v125 = vadd.s32 %v80, 360
    %v126 = vadd.s32 %v80, 368
    %v127 = vadd.s32 %v80, 376
    %v128 = vadd.s32 %v80, 384
    %v129 = vadd.s32 %v80, 392
    %v130 = vadd.s32 %v80, 400
    %v131 = vadd.s32 %v80, 408
    %v132 = vadd.s32 %v80, 416
    %v133 = vadd.s32 %v80, 424
    %v134 = vadd.s32 %v80, 432
    %v135 = vadd.s32 %v80, 440
    %v136 = vadd.s32 %v80, 448
    %v137 = vadd.s32 %v80, 456
    %v138 = vadd.s32 %v80, 464
    %v139 = vadd.s32 %v80, 472
    %v140 = vadd.s32 %v80, 480
    %v141 = vadd.s32 %v80, 488
    %v142 = vadd.s32 %v80, 496
    %v143 = vadd.s32 %v80, 504
    %v144 = vld [vmem:[%s1] sm:$0x1f]
    %v145 = vlaneseq
    %v146 = vshrl.u32 %v145, 7
    %v147 = vsub.s32 0, %v146
    %v148 = vrot.slane %v144, %v147
    %v149 = vlaneseq
    %v150 = vshrl.u32 %v149, 7
    %v151 = vsub.s32 1, %v150
    %v152 = vrot.slane %v144, %v151
    %v153 = vlaneseq
    %v154 = vshrl.u32 %v153, 7
    %v155 = vsub.s32 2, %v154
    %v156 = vrot.slane %v144, %v155
    %v157 = vlaneseq
    %v158 = vshrl.u32 %v157, 7
    %v159 = vsub.s32 3, %v158
    %v160 = vrot.slane %v144, %v159
    %v161 = vlaneseq
    %v162 = vshrl.u32 %v161, 7
    %v163 = vsub.s32 4, %v162
    %v164 = vrot.slane %v144, %v163
    %vm165 = vcmp.eq.s32.totalorder %v80, %v148
    %vm166 = vcmp.eq.s32.totalorder %v80, %v152
    %vm167 = vcmp.eq.s32.totalorder %v80, %v156
    %vm168 = vcmp.eq.s32.totalorder %v80, %v160
    %vm169 = vcmp.eq.s32.totalorder %v80, %v164
    %vm170 = vcmp.eq.s32.totalorder %v81, %v148
    %vm171 = vcmp.eq.s32.totalorder %v81, %v152
    %vm172 = vcmp.eq.s32.totalorder %v81, %v156
    %vm173 = vcmp.eq.s32.totalorder %v81, %v160
    %vm174 = vcmp.eq.s32.totalorder %v81, %v164
    %vm175 = vcmp.eq.s32.totalorder %v82, %v148
    %vm176 = vcmp.eq.s32.totalorder %v82, %v152
    %vm177 = vcmp.eq.s32.totalorder %v82, %v156
    %vm178 = vcmp.eq.s32.totalorder %v82, %v160
    %vm179 = vcmp.eq.s32.totalorder %v82, %v164
    %vm180 = vcmp.eq.s32.totalorder %v83, %v148
    %vm181 = vcmp.eq.s32.totalorder %v83, %v152
    %vm182 = vcmp.eq.s32.totalorder %v83, %v156
    %vm183 = vcmp.eq.s32.totalorder %v83, %v160
    %vm184 = vcmp.eq.s32.totalorder %v83, %v164
    %vm185 = vcmp.eq.s32.totalorder %v84, %v148
    %vm186 = vcmp.eq.s32.totalorder %v84, %v152
    %vm187 = vcmp.eq.s32.totalorder %v84, %v156
    %vm188 = vcmp.eq.s32.totalorder %v84, %v160
    %vm189 = vcmp.eq.s32.totalorder %v84, %v164
    %vm190 = vcmp.eq.s32.totalorder %v85, %v148
    %vm191 = vcmp.eq.s32.totalorder %v85, %v152
    %vm192 = vcmp.eq.s32.totalorder %v85, %v156
    %vm193 = vcmp.eq.s32.totalorder %v85, %v160
    %vm194 = vcmp.eq.s32.totalorder %v85, %v164
    %vm195 = vcmp.eq.s32.totalorder %v86, %v148
    %vm196 = vcmp.eq.s32.totalorder %v86, %v152
    %vm197 = vcmp.eq.s32.totalorder %v86, %v156
    %vm198 = vcmp.eq.s32.totalorder %v86, %v160
    %vm199 = vcmp.eq.s32.totalorder %v86, %v164
    %vm200 = vcmp.eq.s32.totalorder %v87, %v148
    %vm201 = vcmp.eq.s32.totalorder %v87, %v152
    %vm202 = vcmp.eq.s32.totalorder %v87, %v156
    %vm203 = vcmp.eq.s32.totalorder %v87, %v160
    %vm204 = vcmp.eq.s32.totalorder %v87, %v164
    %vm205 = vcmp.eq.s32.totalorder %v88, %v148
    %vm206 = vcmp.eq.s32.totalorder %v88, %v152
    %vm207 = vcmp.eq.s32.totalorder %v88, %v156
    %vm208 = vcmp.eq.s32.totalorder %v88, %v160
    %vm209 = vcmp.eq.s32.totalorder %v88, %v164
    %vm210 = vcmp.eq.s32.totalorder %v89, %v148
    %vm211 = vcmp.eq.s32.totalorder %v89, %v152
    %vm212 = vcmp.eq.s32.totalorder %v89, %v156
    %vm213 = vcmp.eq.s32.totalorder %v89, %v160
    %vm214 = vcmp.eq.s32.totalorder %v89, %v164
    %vm215 = vcmp.eq.s32.totalorder %v90, %v148
    %vm216 = vcmp.eq.s32.totalorder %v90, %v152
    %vm217 = vcmp.eq.s32.totalorder %v90, %v156
    %vm218 = vcmp.eq.s32.totalorder %v90, %v160
    %vm219 = vcmp.eq.s32.totalorder %v90, %v164
    %vm220 = vcmp.eq.s32.totalorder %v91, %v148
    %vm221 = vcmp.eq.s32.totalorder %v91, %v152
    %vm222 = vcmp.eq.s32.totalorder %v91, %v156
    %vm223 = vcmp.eq.s32.totalorder %v91, %v160
    %vm224 = vcmp.eq.s32.totalorder %v91, %v164
    %vm225 = vcmp.eq.s32.totalorder %v92, %v148
    %vm226 = vcmp.eq.s32.totalorder %v92, %v152
    %vm227 = vcmp.eq.s32.totalorder %v92, %v156
    %vm228 = vcmp.eq.s32.totalorder %v92, %v160
    %vm229 = vcmp.eq.s32.totalorder %v92, %v164
    %vm230 = vcmp.eq.s32.totalorder %v93, %v148
    %vm231 = vcmp.eq.s32.totalorder %v93, %v152
    %vm232 = vcmp.eq.s32.totalorder %v93, %v156
    %vm233 = vcmp.eq.s32.totalorder %v93, %v160
    %vm234 = vcmp.eq.s32.totalorder %v93, %v164
    %vm235 = vcmp.eq.s32.totalorder %v94, %v148
    %vm236 = vcmp.eq.s32.totalorder %v94, %v152
    %vm237 = vcmp.eq.s32.totalorder %v94, %v156
    %vm238 = vcmp.eq.s32.totalorder %v94, %v160
    %vm239 = vcmp.eq.s32.totalorder %v94, %v164
    %vm240 = vcmp.eq.s32.totalorder %v95, %v148
    %vm241 = vcmp.eq.s32.totalorder %v95, %v152
    %vm242 = vcmp.eq.s32.totalorder %v95, %v156
    %vm243 = vcmp.eq.s32.totalorder %v95, %v160
    %vm244 = vcmp.eq.s32.totalorder %v95, %v164
    %vm245 = vcmp.eq.s32.totalorder %v96, %v148
    %vm246 = vcmp.eq.s32.totalorder %v96, %v152
    %vm247 = vcmp.eq.s32.totalorder %v96, %v156
    %vm248 = vcmp.eq.s32.totalorder %v96, %v160
    %vm249 = vcmp.eq.s32.totalorder %v96, %v164
    %vm250 = vcmp.eq.s32.totalorder %v97, %v148
    %vm251 = vcmp.eq.s32.totalorder %v97, %v152
    %vm252 = vcmp.eq.s32.totalorder %v97, %v156
    %vm253 = vcmp.eq.s32.totalorder %v97, %v160
    %vm254 = vcmp.eq.s32.totalorder %v97, %v164
    %vm255 = vcmp.eq.s32.totalorder %v98, %v148
    %vm256 = vcmp.eq.s32.totalorder %v98, %v152
    %vm257 = vcmp.eq.s32.totalorder %v98, %v156
    %vm258 = vcmp.eq.s32.totalorder %v98, %v160
    %vm259 = vcmp.eq.s32.totalorder %v98, %v164
    %vm260 = vcmp.eq.s32.totalorder %v99, %v148
    %vm261 = vcmp.eq.s32.totalorder %v99, %v152
    %vm262 = vcmp.eq.s32.totalorder %v99, %v156
    %vm263 = vcmp.eq.s32.totalorder %v99, %v160
    %vm264 = vcmp.eq.s32.totalorder %v99, %v164
    %vm265 = vcmp.eq.s32.totalorder %v100, %v148
    %vm266 = vcmp.eq.s32.totalorder %v100, %v152
    %vm267 = vcmp.eq.s32.totalorder %v100, %v156
    %vm268 = vcmp.eq.s32.totalorder %v100, %v160
    %vm269 = vcmp.eq.s32.totalorder %v100, %v164
    %vm270 = vcmp.eq.s32.totalorder %v101, %v148
    %vm271 = vcmp.eq.s32.totalorder %v101, %v152
    %vm272 = vcmp.eq.s32.totalorder %v101, %v156
    %vm273 = vcmp.eq.s32.totalorder %v101, %v160
    %vm274 = vcmp.eq.s32.totalorder %v101, %v164
    %vm275 = vcmp.eq.s32.totalorder %v102, %v148
    %vm276 = vcmp.eq.s32.totalorder %v102, %v152
    %vm277 = vcmp.eq.s32.totalorder %v102, %v156
    %vm278 = vcmp.eq.s32.totalorder %v102, %v160
    %vm279 = vcmp.eq.s32.totalorder %v102, %v164
    %vm280 = vcmp.eq.s32.totalorder %v103, %v148
    %vm281 = vcmp.eq.s32.totalorder %v103, %v152
    %vm282 = vcmp.eq.s32.totalorder %v103, %v156
    %vm283 = vcmp.eq.s32.totalorder %v103, %v160
    %vm284 = vcmp.eq.s32.totalorder %v103, %v164
    %vm285 = vcmp.eq.s32.totalorder %v104, %v148
    %vm286 = vcmp.eq.s32.totalorder %v104, %v152
    %vm287 = vcmp.eq.s32.totalorder %v104, %v156
    %vm288 = vcmp.eq.s32.totalorder %v104, %v160
    %vm289 = vcmp.eq.s32.totalorder %v104, %v164
    %vm290 = vcmp.eq.s32.totalorder %v105, %v148
    %vm291 = vcmp.eq.s32.totalorder %v105, %v152
    %vm292 = vcmp.eq.s32.totalorder %v105, %v156
    %vm293 = vcmp.eq.s32.totalorder %v105, %v160
    %vm294 = vcmp.eq.s32.totalorder %v105, %v164
    %vm295 = vcmp.eq.s32.totalorder %v106, %v148
    %vm296 = vcmp.eq.s32.totalorder %v106, %v152
    %vm297 = vcmp.eq.s32.totalorder %v106, %v156
    %vm298 = vcmp.eq.s32.totalorder %v106, %v160
    %vm299 = vcmp.eq.s32.totalorder %v106, %v164
    %vm300 = vcmp.eq.s32.totalorder %v107, %v148
    %vm301 = vcmp.eq.s32.totalorder %v107, %v152
    %vm302 = vcmp.eq.s32.totalorder %v107, %v156
    %vm303 = vcmp.eq.s32.totalorder %v107, %v160
    %vm304 = vcmp.eq.s32.totalorder %v107, %v164
    %vm305 = vcmp.eq.s32.totalorder %v108, %v148
    %vm306 = vcmp.eq.s32.totalorder %v108, %v152
    %vm307 = vcmp.eq.s32.totalorder %v108, %v156
    %vm308 = vcmp.eq.s32.totalorder %v108, %v160
    %vm309 = vcmp.eq.s32.totalorder %v108, %v164
    %vm310 = vcmp.eq.s32.totalorder %v109, %v148
    %vm311 = vcmp.eq.s32.totalorder %v109, %v152
    %vm312 = vcmp.eq.s32.totalorder %v109, %v156
    %vm313 = vcmp.eq.s32.totalorder %v109, %v160
    %vm314 = vcmp.eq.s32.totalorder %v109, %v164
    %vm315 = vcmp.eq.s32.totalorder %v110, %v148
    %vm316 = vcmp.eq.s32.totalorder %v110, %v152
    %vm317 = vcmp.eq.s32.totalorder %v110, %v156
    %vm318 = vcmp.eq.s32.totalorder %v110, %v160
    %vm319 = vcmp.eq.s32.totalorder %v110, %v164
    %vm320 = vcmp.eq.s32.totalorder %v111, %v148
    %vm321 = vcmp.eq.s32.totalorder %v111, %v152
    %vm322 = vcmp.eq.s32.totalorder %v111, %v156
    %vm323 = vcmp.eq.s32.totalorder %v111, %v160
    %vm324 = vcmp.eq.s32.totalorder %v111, %v164
    %vm325 = vcmp.eq.s32.totalorder %v112, %v148
    %vm326 = vcmp.eq.s32.totalorder %v112, %v152
    %vm327 = vcmp.eq.s32.totalorder %v112, %v156
    %vm328 = vcmp.eq.s32.totalorder %v112, %v160
    %vm329 = vcmp.eq.s32.totalorder %v112, %v164
    %vm330 = vcmp.eq.s32.totalorder %v113, %v148
    %vm331 = vcmp.eq.s32.totalorder %v113, %v152
    %vm332 = vcmp.eq.s32.totalorder %v113, %v156
    %vm333 = vcmp.eq.s32.totalorder %v113, %v160
    %vm334 = vcmp.eq.s32.totalorder %v113, %v164
    %vm335 = vcmp.eq.s32.totalorder %v114, %v148
    %vm336 = vcmp.eq.s32.totalorder %v114, %v152
    %vm337 = vcmp.eq.s32.totalorder %v114, %v156
    %vm338 = vcmp.eq.s32.totalorder %v114, %v160
    %vm339 = vcmp.eq.s32.totalorder %v114, %v164
    %vm340 = vcmp.eq.s32.totalorder %v115, %v148
    %vm341 = vcmp.eq.s32.totalorder %v115, %v152
    %vm342 = vcmp.eq.s32.totalorder %v115, %v156
    %vm343 = vcmp.eq.s32.totalorder %v115, %v160
    %vm344 = vcmp.eq.s32.totalorder %v115, %v164
    %vm345 = vcmp.eq.s32.totalorder %v116, %v148
    %vm346 = vcmp.eq.s32.totalorder %v116, %v152
    %vm347 = vcmp.eq.s32.totalorder %v116, %v156
    %vm348 = vcmp.eq.s32.totalorder %v116, %v160
    %vm349 = vcmp.eq.s32.totalorder %v116, %v164
    %vm350 = vcmp.eq.s32.totalorder %v117, %v148
    %vm351 = vcmp.eq.s32.totalorder %v117, %v152
    %vm352 = vcmp.eq.s32.totalorder %v117, %v156
    %vm353 = vcmp.eq.s32.totalorder %v117, %v160
    %vm354 = vcmp.eq.s32.totalorder %v117, %v164
    %vm355 = vcmp.eq.s32.totalorder %v118, %v148
    %vm356 = vcmp.eq.s32.totalorder %v118, %v152
    %vm357 = vcmp.eq.s32.totalorder %v118, %v156
    %vm358 = vcmp.eq.s32.totalorder %v118, %v160
    %vm359 = vcmp.eq.s32.totalorder %v118, %v164
    %vm360 = vcmp.eq.s32.totalorder %v119, %v148
    %vm361 = vcmp.eq.s32.totalorder %v119, %v152
    %vm362 = vcmp.eq.s32.totalorder %v119, %v156
    %vm363 = vcmp.eq.s32.totalorder %v119, %v160
    %vm364 = vcmp.eq.s32.totalorder %v119, %v164
    %vm365 = vcmp.eq.s32.totalorder %v120, %v148
    %vm366 = vcmp.eq.s32.totalorder %v120, %v152
    %vm367 = vcmp.eq.s32.totalorder %v120, %v156
    %vm368 = vcmp.eq.s32.totalorder %v120, %v160
    %vm369 = vcmp.eq.s32.totalorder %v120, %v164
    %vm370 = vcmp.eq.s32.totalorder %v121, %v148
    %vm371 = vcmp.eq.s32.totalorder %v121, %v152
    %vm372 = vcmp.eq.s32.totalorder %v121, %v156
    %vm373 = vcmp.eq.s32.totalorder %v121, %v160
    %vm374 = vcmp.eq.s32.totalorder %v121, %v164
    %vm375 = vcmp.eq.s32.totalorder %v122, %v148
    %vm376 = vcmp.eq.s32.totalorder %v122, %v152
    %vm377 = vcmp.eq.s32.totalorder %v122, %v156
    %vm378 = vcmp.eq.s32.totalorder %v122, %v160
    %vm379 = vcmp.eq.s32.totalorder %v122, %v164
    %vm380 = vcmp.eq.s32.totalorder %v123, %v148
    %vm381 = vcmp.eq.s32.totalorder %v123, %v152
    %vm382 = vcmp.eq.s32.totalorder %v123, %v156
    %vm383 = vcmp.eq.s32.totalorder %v123, %v160
    %vm384 = vcmp.eq.s32.totalorder %v123, %v164
    %vm385 = vcmp.eq.s32.totalorder %v124, %v148
    %vm386 = vcmp.eq.s32.totalorder %v124, %v152
    %vm387 = vcmp.eq.s32.totalorder %v124, %v156
    %vm388 = vcmp.eq.s32.totalorder %v124, %v160
    %vm389 = vcmp.eq.s32.totalorder %v124, %v164
    %vm390 = vcmp.eq.s32.totalorder %v125, %v148
    %vm391 = vcmp.eq.s32.totalorder %v125, %v152
    %vm392 = vcmp.eq.s32.totalorder %v125, %v156
    %vm393 = vcmp.eq.s32.totalorder %v125, %v160
    %vm394 = vcmp.eq.s32.totalorder %v125, %v164
    %vm395 = vcmp.eq.s32.totalorder %v126, %v148
    %vm396 = vcmp.eq.s32.totalorder %v126, %v152
    %vm397 = vcmp.eq.s32.totalorder %v126, %v156
    %vm398 = vcmp.eq.s32.totalorder %v126, %v160
    %vm399 = vcmp.eq.s32.totalorder %v126, %v164
    %vm400 = vcmp.eq.s32.totalorder %v127, %v148
    %vm401 = vcmp.eq.s32.totalorder %v127, %v152
    %vm402 = vcmp.eq.s32.totalorder %v127, %v156
    %vm403 = vcmp.eq.s32.totalorder %v127, %v160
    %vm404 = vcmp.eq.s32.totalorder %v127, %v164
    %vm405 = vcmp.eq.s32.totalorder %v128, %v148
    %vm406 = vcmp.eq.s32.totalorder %v128, %v152
    %vm407 = vcmp.eq.s32.totalorder %v128, %v156
    %vm408 = vcmp.eq.s32.totalorder %v128, %v160
    %vm409 = vcmp.eq.s32.totalorder %v128, %v164
    %vm410 = vcmp.eq.s32.totalorder %v129, %v148
    %vm411 = vcmp.eq.s32.totalorder %v129, %v152
    %vm412 = vcmp.eq.s32.totalorder %v129, %v156
    %vm413 = vcmp.eq.s32.totalorder %v129, %v160
    %vm414 = vcmp.eq.s32.totalorder %v129, %v164
    %vm415 = vcmp.eq.s32.totalorder %v130, %v148
    %vm416 = vcmp.eq.s32.totalorder %v130, %v152
    %vm417 = vcmp.eq.s32.totalorder %v130, %v156
    %vm418 = vcmp.eq.s32.totalorder %v130, %v160
    %vm419 = vcmp.eq.s32.totalorder %v130, %v164
    %vm420 = vcmp.eq.s32.totalorder %v131, %v148
    %vm421 = vcmp.eq.s32.totalorder %v131, %v152
    %vm422 = vcmp.eq.s32.totalorder %v131, %v156
    %vm423 = vcmp.eq.s32.totalorder %v131, %v160
    %vm424 = vcmp.eq.s32.totalorder %v131, %v164
    %vm425 = vcmp.eq.s32.totalorder %v132, %v148
    %vm426 = vcmp.eq.s32.totalorder %v132, %v152
    %vm427 = vcmp.eq.s32.totalorder %v132, %v156
    %vm428 = vcmp.eq.s32.totalorder %v132, %v160
    %vm429 = vcmp.eq.s32.totalorder %v132, %v164
    %vm430 = vcmp.eq.s32.totalorder %v133, %v148
    %vm431 = vcmp.eq.s32.totalorder %v133, %v152
    %vm432 = vcmp.eq.s32.totalorder %v133, %v156
    %vm433 = vcmp.eq.s32.totalorder %v133, %v160
    %vm434 = vcmp.eq.s32.totalorder %v133, %v164
    %vm435 = vcmp.eq.s32.totalorder %v134, %v148
    %vm436 = vcmp.eq.s32.totalorder %v134, %v152
    %vm437 = vcmp.eq.s32.totalorder %v134, %v156
    %vm438 = vcmp.eq.s32.totalorder %v134, %v160
    %vm439 = vcmp.eq.s32.totalorder %v134, %v164
    %vm440 = vcmp.eq.s32.totalorder %v135, %v148
    %vm441 = vcmp.eq.s32.totalorder %v135, %v152
    %vm442 = vcmp.eq.s32.totalorder %v135, %v156
    %vm443 = vcmp.eq.s32.totalorder %v135, %v160
    %vm444 = vcmp.eq.s32.totalorder %v135, %v164
    %vm445 = vcmp.eq.s32.totalorder %v136, %v148
    %vm446 = vcmp.eq.s32.totalorder %v136, %v152
    %vm447 = vcmp.eq.s32.totalorder %v136, %v156
    %vm448 = vcmp.eq.s32.totalorder %v136, %v160
    %vm449 = vcmp.eq.s32.totalorder %v136, %v164
    %vm450 = vcmp.eq.s32.totalorder %v137, %v148
    %vm451 = vcmp.eq.s32.totalorder %v137, %v152
    %vm452 = vcmp.eq.s32.totalorder %v137, %v156
    %vm453 = vcmp.eq.s32.totalorder %v137, %v160
    %vm454 = vcmp.eq.s32.totalorder %v137, %v164
    %vm455 = vcmp.eq.s32.totalorder %v138, %v148
    %vm456 = vcmp.eq.s32.totalorder %v138, %v152
    %vm457 = vcmp.eq.s32.totalorder %v138, %v156
    %vm458 = vcmp.eq.s32.totalorder %v138, %v160
    %vm459 = vcmp.eq.s32.totalorder %v138, %v164
    %vm460 = vcmp.eq.s32.totalorder %v139, %v148
    %vm461 = vcmp.eq.s32.totalorder %v139, %v152
    %vm462 = vcmp.eq.s32.totalorder %v139, %v156
    %vm463 = vcmp.eq.s32.totalorder %v139, %v160
    %vm464 = vcmp.eq.s32.totalorder %v139, %v164
    %vm465 = vcmp.eq.s32.totalorder %v140, %v148
    %vm466 = vcmp.eq.s32.totalorder %v140, %v152
    %vm467 = vcmp.eq.s32.totalorder %v140, %v156
    %vm468 = vcmp.eq.s32.totalorder %v140, %v160
    %vm469 = vcmp.eq.s32.totalorder %v140, %v164
    %vm470 = vcmp.eq.s32.totalorder %v141, %v148
    %vm471 = vcmp.eq.s32.totalorder %v141, %v152
    %vm472 = vcmp.eq.s32.totalorder %v141, %v156
    %vm473 = vcmp.eq.s32.totalorder %v141, %v160
    %vm474 = vcmp.eq.s32.totalorder %v141, %v164
    %vm475 = vcmp.eq.s32.totalorder %v142, %v148
    %vm476 = vcmp.eq.s32.totalorder %v142, %v152
    %vm477 = vcmp.eq.s32.totalorder %v142, %v156
    %vm478 = vcmp.eq.s32.totalorder %v142, %v160
    %vm479 = vcmp.eq.s32.totalorder %v142, %v164
    %vm480 = vcmp.eq.s32.totalorder %v143, %v148
    %vm481 = vcmp.eq.s32.totalorder %v143, %v152
    %vm482 = vcmp.eq.s32.totalorder %v143, %v156
    %vm483 = vcmp.eq.s32.totalorder %v143, %v160
    %vm484 = vcmp.eq.s32.totalorder %v143, %v164
    %v485 = vsel %vm165, 1, 0
    %v486 = vsel %vm166, 1, 0
    %v487 = vsel %vm167, 1, 0
    %v488 = vsel %vm168, 1, 0
    %v489 = vsel %vm169, 1, 0
    %v490 = vsel %vm170, 1, 0
    %v491 = vsel %vm171, 1, 0
    %v492 = vsel %vm172, 1, 0
    %v493 = vsel %vm173, 1, 0
    %v494 = vsel %vm174, 1, 0
    %v495 = vsel %vm175, 1, 0
    %v496 = vsel %vm176, 1, 0
    %v497 = vsel %vm177, 1, 0
    %v498 = vsel %vm178, 1, 0
    %v499 = vsel %vm179, 1, 0
    %v500 = vsel %vm180, 1, 0
    %v501 = vsel %vm181, 1, 0
    %v502 = vsel %vm182, 1, 0
    %v503 = vsel %vm183, 1, 0
    %v504 = vsel %vm184, 1, 0
    %v505 = vsel %vm185, 1, 0
    %v506 = vsel %vm186, 1, 0
    %v507 = vsel %vm187, 1, 0
    %v508 = vsel %vm188, 1, 0
    %v509 = vsel %vm189, 1, 0
    %v510 = vsel %vm190, 1, 0
    %v511 = vsel %vm191, 1, 0
    %v512 = vsel %vm192, 1, 0
    %v513 = vsel %vm193, 1, 0
    %v514 = vsel %vm194, 1, 0
    %v515 = vsel %vm195, 1, 0
    %v516 = vsel %vm196, 1, 0
    %v517 = vsel %vm197, 1, 0
    %v518 = vsel %vm198, 1, 0
    %v519 = vsel %vm199, 1, 0
    %v520 = vsel %vm200, 1, 0
    %v521 = vsel %vm201, 1, 0
    %v522 = vsel %vm202, 1, 0
    %v523 = vsel %vm203, 1, 0
    %v524 = vsel %vm204, 1, 0
    %v525 = vsel %vm205, 1, 0
    %v526 = vsel %vm206, 1, 0
    %v527 = vsel %vm207, 1, 0
    %v528 = vsel %vm208, 1, 0
    %v529 = vsel %vm209, 1, 0
    %v530 = vsel %vm210, 1, 0
    %v531 = vsel %vm211, 1, 0
    %v532 = vsel %vm212, 1, 0
    %v533 = vsel %vm213, 1, 0
    %v534 = vsel %vm214, 1, 0
    %v535 = vsel %vm215, 1, 0
    %v536 = vsel %vm216, 1, 0
    %v537 = vsel %vm217, 1, 0
    %v538 = vsel %vm218, 1, 0
    %v539 = vsel %vm219, 1, 0
    %v540 = vsel %vm220, 1, 0
    %v541 = vsel %vm221, 1, 0
    %v542 = vsel %vm222, 1, 0
    %v543 = vsel %vm223, 1, 0
    %v544 = vsel %vm224, 1, 0
    %v545 = vsel %vm225, 1, 0
    %v546 = vsel %vm226, 1, 0
    %v547 = vsel %vm227, 1, 0
    %v548 = vsel %vm228, 1, 0
    %v549 = vsel %vm229, 1, 0
    %v550 = vsel %vm230, 1, 0
    %v551 = vsel %vm231, 1, 0
    %v552 = vsel %vm232, 1, 0
    %v553 = vsel %vm233, 1, 0
    %v554 = vsel %vm234, 1, 0
    %v555 = vsel %vm235, 1, 0
    %v556 = vsel %vm236, 1, 0
    %v557 = vsel %vm237, 1, 0
    %v558 = vsel %vm238, 1, 0
    %v559 = vsel %vm239, 1, 0
    %v560 = vsel %vm240, 1, 0
    %v561 = vsel %vm241, 1, 0
    %v562 = vsel %vm242, 1, 0
    %v563 = vsel %vm243, 1, 0
    %v564 = vsel %vm244, 1, 0
    %v565 = vsel %vm245, 1, 0
    %v566 = vsel %vm246, 1, 0
    %v567 = vsel %vm247, 1, 0
    %v568 = vsel %vm248, 1, 0
    %v569 = vsel %vm249, 1, 0
    %v570 = vsel %vm250, 1, 0
    %v571 = vsel %vm251, 1, 0
    %v572 = vsel %vm252, 1, 0
    %v573 = vsel %vm253, 1, 0
    %v574 = vsel %vm254, 1, 0
    %v575 = vsel %vm255, 1, 0
    %v576 = vsel %vm256, 1, 0
    %v577 = vsel %vm257, 1, 0
    %v578 = vsel %vm258, 1, 0
    %v579 = vsel %vm259, 1, 0
    %v580 = vsel %vm260, 1, 0
    %v581 = vsel %vm261, 1, 0
    %v582 = vsel %vm262, 1, 0
    %v583 = vsel %vm263, 1, 0
    %v584 = vsel %vm264, 1, 0
    %v585 = vsel %vm265, 1, 0
    %v586 = vsel %vm266, 1, 0
    %v587 = vsel %vm267, 1, 0
    %v588 = vsel %vm268, 1, 0
    %v589 = vsel %vm269, 1, 0
    %v590 = vsel %vm270, 1, 0
    %v591 = vsel %vm271, 1, 0
    %v592 = vsel %vm272, 1, 0
    %v593 = vsel %vm273, 1, 0
    %v594 = vsel %vm274, 1, 0
    %v595 = vsel %vm275, 1, 0
    %v596 = vsel %vm276, 1, 0
    %v597 = vsel %vm277, 1, 0
    %v598 = vsel %vm278, 1, 0
    %v599 = vsel %vm279, 1, 0
    %v600 = vsel %vm280, 1, 0
    %v601 = vsel %vm281, 1, 0
    %v602 = vsel %vm282, 1, 0
    %v603 = vsel %vm283, 1, 0
    %v604 = vsel %vm284, 1, 0
    %v605 = vsel %vm285, 1, 0
    %v606 = vsel %vm286, 1, 0
    %v607 = vsel %vm287, 1, 0
    %v608 = vsel %vm288, 1, 0
    %v609 = vsel %vm289, 1, 0
    %v610 = vsel %vm290, 1, 0
    %v611 = vsel %vm291, 1, 0
    %v612 = vsel %vm292, 1, 0
    %v613 = vsel %vm293, 1, 0
    %v614 = vsel %vm294, 1, 0
    %v615 = vsel %vm295, 1, 0
    %v616 = vsel %vm296, 1, 0
    %v617 = vsel %vm297, 1, 0
    %v618 = vsel %vm298, 1, 0
    %v619 = vsel %vm299, 1, 0
    %v620 = vsel %vm300, 1, 0
    %v621 = vsel %vm301, 1, 0
    %v622 = vsel %vm302, 1, 0
    %v623 = vsel %vm303, 1, 0
    %v624 = vsel %vm304, 1, 0
    %v625 = vsel %vm305, 1, 0
    %v626 = vsel %vm306, 1, 0
    %v627 = vsel %vm307, 1, 0
    %v628 = vsel %vm308, 1, 0
    %v629 = vsel %vm309, 1, 0
    %v630 = vsel %vm310, 1, 0
    %v631 = vsel %vm311, 1, 0
    %v632 = vsel %vm312, 1, 0
    %v633 = vsel %vm313, 1, 0
    %v634 = vsel %vm314, 1, 0
    %v635 = vsel %vm315, 1, 0
    %v636 = vsel %vm316, 1, 0
    %v637 = vsel %vm317, 1, 0
    %v638 = vsel %vm318, 1, 0
    %v639 = vsel %vm319, 1, 0
    %v640 = vsel %vm320, 1, 0
    %v641 = vsel %vm321, 1, 0
    %v642 = vsel %vm322, 1, 0
    %v643 = vsel %vm323, 1, 0
    %v644 = vsel %vm324, 1, 0
    %v645 = vsel %vm325, 1, 0
    %v646 = vsel %vm326, 1, 0
    %v647 = vsel %vm327, 1, 0
    %v648 = vsel %vm328, 1, 0
    %v649 = vsel %vm329, 1, 0
    %v650 = vsel %vm330, 1, 0
    %v651 = vsel %vm331, 1, 0
    %v652 = vsel %vm332, 1, 0
    %v653 = vsel %vm333, 1, 0
    %v654 = vsel %vm334, 1, 0
    %v655 = vsel %vm335, 1, 0
    %v656 = vsel %vm336, 1, 0
    %v657 = vsel %vm337, 1, 0
    %v658 = vsel %vm338, 1, 0
    %v659 = vsel %vm339, 1, 0
    %v660 = vsel %vm340, 1, 0
    %v661 = vsel %vm341, 1, 0
    %v662 = vsel %vm342, 1, 0
    %v663 = vsel %vm343, 1, 0
    %v664 = vsel %vm344, 1, 0
    %v665 = vsel %vm345, 1, 0
    %v666 = vsel %vm346, 1, 0
    %v667 = vsel %vm347, 1, 0
    %v668 = vsel %vm348, 1, 0
    %v669 = vsel %vm349, 1, 0
    %v670 = vsel %vm350, 1, 0
    %v671 = vsel %vm351, 1, 0
    %v672 = vsel %vm352, 1, 0
    %v673 = vsel %vm353, 1, 0
    %v674 = vsel %vm354, 1, 0
    %v675 = vsel %vm355, 1, 0
    %v676 = vsel %vm356, 1, 0
    %v677 = vsel %vm357, 1, 0
    %v678 = vsel %vm358, 1, 0
    %v679 = vsel %vm359, 1, 0
    %v680 = vsel %vm360, 1, 0
    %v681 = vsel %vm361, 1, 0
    %v682 = vsel %vm362, 1, 0
    %v683 = vsel %vm363, 1, 0
    %v684 = vsel %vm364, 1, 0
    %v685 = vsel %vm365, 1, 0
    %v686 = vsel %vm366, 1, 0
    %v687 = vsel %vm367, 1, 0
    %v688 = vsel %vm368, 1, 0
    %v689 = vsel %vm369, 1, 0
    %v690 = vsel %vm370, 1, 0
    %v691 = vsel %vm371, 1, 0
    %v692 = vsel %vm372, 1, 0
    %v693 = vsel %vm373, 1, 0
    %v694 = vsel %vm374, 1, 0
    %v695 = vsel %vm375, 1, 0
    %v696 = vsel %vm376, 1, 0
    %v697 = vsel %vm377, 1, 0
    %v698 = vsel %vm378, 1, 0
    %v699 = vsel %vm379, 1, 0
    %v700 = vsel %vm380, 1, 0
    %v701 = vsel %vm381, 1, 0
    %v702 = vsel %vm382, 1, 0
    %v703 = vsel %vm383, 1, 0
    %v704 = vsel %vm384, 1, 0
    %v705 = vsel %vm385, 1, 0
    %v706 = vsel %vm386, 1, 0
    %v707 = vsel %vm387, 1, 0
    %v708 = vsel %vm388, 1, 0
    %v709 = vsel %vm389, 1, 0
    %v710 = vsel %vm390, 1, 0
    %v711 = vsel %vm391, 1, 0
    %v712 = vsel %vm392, 1, 0
    %v713 = vsel %vm393, 1, 0
    %v714 = vsel %vm394, 1, 0
    %v715 = vsel %vm395, 1, 0
    %v716 = vsel %vm396, 1, 0
    %v717 = vsel %vm397, 1, 0
    %v718 = vsel %vm398, 1, 0
    %v719 = vsel %vm399, 1, 0
    %v720 = vsel %vm400, 1, 0
    %v721 = vsel %vm401, 1, 0
    %v722 = vsel %vm402, 1, 0
    %v723 = vsel %vm403, 1, 0
    %v724 = vsel %vm404, 1, 0
    %v725 = vsel %vm405, 1, 0
    %v726 = vsel %vm406, 1, 0
    %v727 = vsel %vm407, 1, 0
    %v728 = vsel %vm408, 1, 0
    %v729 = vsel %vm409, 1, 0
    %v730 = vsel %vm410, 1, 0
    %v731 = vsel %vm411, 1, 0
    %v732 = vsel %vm412, 1, 0
    %v733 = vsel %vm413, 1, 0
    %v734 = vsel %vm414, 1, 0
    %v735 = vsel %vm415, 1, 0
    %v736 = vsel %vm416, 1, 0
    %v737 = vsel %vm417, 1, 0
    %v738 = vsel %vm418, 1, 0
    %v739 = vsel %vm419, 1, 0
    %v740 = vsel %vm420, 1, 0
    %v741 = vsel %vm421, 1, 0
    %v742 = vsel %vm422, 1, 0
    %v743 = vsel %vm423, 1, 0
    %v744 = vsel %vm424, 1, 0
    %v745 = vsel %vm425, 1, 0
    %v746 = vsel %vm426, 1, 0
    %v747 = vsel %vm427, 1, 0
    %v748 = vsel %vm428, 1, 0
    %v749 = vsel %vm429, 1, 0
    %v750 = vsel %vm430, 1, 0
    %v751 = vsel %vm431, 1, 0
    %v752 = vsel %vm432, 1, 0
    %v753 = vsel %vm433, 1, 0
    %v754 = vsel %vm434, 1, 0
    %v755 = vsel %vm435, 1, 0
    %v756 = vsel %vm436, 1, 0
    %v757 = vsel %vm437, 1, 0
    %v758 = vsel %vm438, 1, 0
    %v759 = vsel %vm439, 1, 0
    %v760 = vsel %vm440, 1, 0
    %v761 = vsel %vm441, 1, 0
    %v762 = vsel %vm442, 1, 0
    %v763 = vsel %vm443, 1, 0
    %v764 = vsel %vm444, 1, 0
    %v765 = vsel %vm445, 1, 0
    %v766 = vsel %vm446, 1, 0
    %v767 = vsel %vm447, 1, 0
    %v768 = vsel %vm448, 1, 0
    %v769 = vsel %vm449, 1, 0
    %v770 = vsel %vm450, 1, 0
    %v771 = vsel %vm451, 1, 0
    %v772 = vsel %vm452, 1, 0
    %v773 = vsel %vm453, 1, 0
    %v774 = vsel %vm454, 1, 0
    %v775 = vsel %vm455, 1, 0
    %v776 = vsel %vm456, 1, 0
    %v777 = vsel %vm457, 1, 0
    %v778 = vsel %vm458, 1, 0
    %v779 = vsel %vm459, 1, 0
    %v780 = vsel %vm460, 1, 0
    %v781 = vsel %vm461, 1, 0
    %v782 = vsel %vm462, 1, 0
    %v783 = vsel %vm463, 1, 0
    %v784 = vsel %vm464, 1, 0
    %v785 = vsel %vm465, 1, 0
    %v786 = vsel %vm466, 1, 0
    %v787 = vsel %vm467, 1, 0
    %v788 = vsel %vm468, 1, 0
    %v789 = vsel %vm469, 1, 0
    %v790 = vsel %vm470, 1, 0
    %v791 = vsel %vm471, 1, 0
    %v792 = vsel %vm472, 1, 0
    %v793 = vsel %vm473, 1, 0
    %v794 = vsel %vm474, 1, 0
    %v795 = vsel %vm475, 1, 0
    %v796 = vsel %vm476, 1, 0
    %v797 = vsel %vm477, 1, 0
    %v798 = vsel %vm478, 1, 0
    %v799 = vsel %vm479, 1, 0
    %v800 = vsel %vm480, 1, 0
    %v801 = vsel %vm481, 1, 0
    %v802 = vsel %vm482, 1, 0
    %v803 = vsel %vm483, 1, 0
    %v804 = vsel %vm484, 1, 0
    %v805 = vcvt.s32.f32 %v485
    %v806 = vcvt.s32.f32 %v486
    %v807 = vcvt.s32.f32 %v487
    %v808 = vcvt.s32.f32 %v488
    %v809 = vcvt.s32.f32 %v489
    %v810 = vcvt.s32.f32 %v490
    %v811 = vcvt.s32.f32 %v491
    %v812 = vcvt.s32.f32 %v492
    %v813 = vcvt.s32.f32 %v493
    %v814 = vcvt.s32.f32 %v494
    %v815 = vcvt.s32.f32 %v495
    %v816 = vcvt.s32.f32 %v496
    %v817 = vcvt.s32.f32 %v497
    %v818 = vcvt.s32.f32 %v498
    %v819 = vcvt.s32.f32 %v499
    %v820 = vcvt.s32.f32 %v500
    %v821 = vcvt.s32.f32 %v501
    %v822 = vcvt.s32.f32 %v502
    %v823 = vcvt.s32.f32 %v503
    %v824 = vcvt.s32.f32 %v504
    %v825 = vcvt.s32.f32 %v505
    %v826 = vcvt.s32.f32 %v506
    %v827 = vcvt.s32.f32 %v507
    %v828 = vcvt.s32.f32 %v508
    %v829 = vcvt.s32.f32 %v509
    %v830 = vcvt.s32.f32 %v510
    %v831 = vcvt.s32.f32 %v511
    %v832 = vcvt.s32.f32 %v512
    %v833 = vcvt.s32.f32 %v513
    %v834 = vcvt.s32.f32 %v514
    %v835 = vcvt.s32.f32 %v515
    %v836 = vcvt.s32.f32 %v516
    %v837 = vcvt.s32.f32 %v517
    %v838 = vcvt.s32.f32 %v518
    %v839 = vcvt.s32.f32 %v519
    %v840 = vcvt.s32.f32 %v520
    %v841 = vcvt.s32.f32 %v521
    %v842 = vcvt.s32.f32 %v522
    %v843 = vcvt.s32.f32 %v523
    %v844 = vcvt.s32.f32 %v524
    %v845 = vcvt.s32.f32 %v525
    %v846 = vcvt.s32.f32 %v526
    %v847 = vcvt.s32.f32 %v527
    %v848 = vcvt.s32.f32 %v528
    %v849 = vcvt.s32.f32 %v529
    %v850 = vcvt.s32.f32 %v530
    %v851 = vcvt.s32.f32 %v531
    %v852 = vcvt.s32.f32 %v532
    %v853 = vcvt.s32.f32 %v533
    %v854 = vcvt.s32.f32 %v534
    %v855 = vcvt.s32.f32 %v535
    %v856 = vcvt.s32.f32 %v536
    %v857 = vcvt.s32.f32 %v537
    %v858 = vcvt.s32.f32 %v538
    %v859 = vcvt.s32.f32 %v539
    %v860 = vcvt.s32.f32 %v540
    %v861 = vcvt.s32.f32 %v541
    %v862 = vcvt.s32.f32 %v542
    %v863 = vcvt.s32.f32 %v543
    %v864 = vcvt.s32.f32 %v544
    %v865 = vcvt.s32.f32 %v545
    %v866 = vcvt.s32.f32 %v546
    %v867 = vcvt.s32.f32 %v547
    %v868 = vcvt.s32.f32 %v548
    %v869 = vcvt.s32.f32 %v549
    %v870 = vcvt.s32.f32 %v550
    %v871 = vcvt.s32.f32 %v551
    %v872 = vcvt.s32.f32 %v552
    %v873 = vcvt.s32.f32 %v553
    %v874 = vcvt.s32.f32 %v554
    %v875 = vcvt.s32.f32 %v555
    %v876 = vcvt.s32.f32 %v556
    %v877 = vcvt.s32.f32 %v557
    %v878 = vcvt.s32.f32 %v558
    %v879 = vcvt.s32.f32 %v559
    %v880 = vcvt.s32.f32 %v560
    %v881 = vcvt.s32.f32 %v561
    %v882 = vcvt.s32.f32 %v562
    %v883 = vcvt.s32.f32 %v563
    %v884 = vcvt.s32.f32 %v564
    %v885 = vcvt.s32.f32 %v565
    %v886 = vcvt.s32.f32 %v566
    %v887 = vcvt.s32.f32 %v567
    %v888 = vcvt.s32.f32 %v568
    %v889 = vcvt.s32.f32 %v569
    %v890 = vcvt.s32.f32 %v570
    %v891 = vcvt.s32.f32 %v571
    %v892 = vcvt.s32.f32 %v572
    %v893 = vcvt.s32.f32 %v573
    %v894 = vcvt.s32.f32 %v574
    %v895 = vcvt.s32.f32 %v575
    %v896 = vcvt.s32.f32 %v576
    %v897 = vcvt.s32.f32 %v577
    %v898 = vcvt.s32.f32 %v578
    %v899 = vcvt.s32.f32 %v579
    %v900 = vcvt.s32.f32 %v580
    %v901 = vcvt.s32.f32 %v581
    %v902 = vcvt.s32.f32 %v582
    %v903 = vcvt.s32.f32 %v583
    %v904 = vcvt.s32.f32 %v584
    %v905 = vcvt.s32.f32 %v585
    %v906 = vcvt.s32.f32 %v586
    %v907 = vcvt.s32.f32 %v587
    %v908 = vcvt.s32.f32 %v588
    %v909 = vcvt.s32.f32 %v589
    %v910 = vcvt.s32.f32 %v590
    %v911 = vcvt.s32.f32 %v591
    %v912 = vcvt.s32.f32 %v592
    %v913 = vcvt.s32.f32 %v593
    %v914 = vcvt.s32.f32 %v594
    %v915 = vcvt.s32.f32 %v595
    %v916 = vcvt.s32.f32 %v596
    %v917 = vcvt.s32.f32 %v597
    %v918 = vcvt.s32.f32 %v598
    %v919 = vcvt.s32.f32 %v599
    %v920 = vcvt.s32.f32 %v600
    %v921 = vcvt.s32.f32 %v601
    %v922 = vcvt.s32.f32 %v602
    %v923 = vcvt.s32.f32 %v603
    %v924 = vcvt.s32.f32 %v604
    %v925 = vcvt.s32.f32 %v605
    %v926 = vcvt.s32.f32 %v606
    %v927 = vcvt.s32.f32 %v607
    %v928 = vcvt.s32.f32 %v608
    %v929 = vcvt.s32.f32 %v609
    %v930 = vcvt.s32.f32 %v610
    %v931 = vcvt.s32.f32 %v611
    %v932 = vcvt.s32.f32 %v612
    %v933 = vcvt.s32.f32 %v613
    %v934 = vcvt.s32.f32 %v614
    %v935 = vcvt.s32.f32 %v615
    %v936 = vcvt.s32.f32 %v616
    %v937 = vcvt.s32.f32 %v617
    %v938 = vcvt.s32.f32 %v618
    %v939 = vcvt.s32.f32 %v619
    %v940 = vcvt.s32.f32 %v620
    %v941 = vcvt.s32.f32 %v621
    %v942 = vcvt.s32.f32 %v622
    %v943 = vcvt.s32.f32 %v623
    %v944 = vcvt.s32.f32 %v624
    %v945 = vcvt.s32.f32 %v625
    %v946 = vcvt.s32.f32 %v626
    %v947 = vcvt.s32.f32 %v627
    %v948 = vcvt.s32.f32 %v628
    %v949 = vcvt.s32.f32 %v629
    %v950 = vcvt.s32.f32 %v630
    %v951 = vcvt.s32.f32 %v631
    %v952 = vcvt.s32.f32 %v632
    %v953 = vcvt.s32.f32 %v633
    %v954 = vcvt.s32.f32 %v634
    %v955 = vcvt.s32.f32 %v635
    %v956 = vcvt.s32.f32 %v636
    %v957 = vcvt.s32.f32 %v637
    %v958 = vcvt.s32.f32 %v638
    %v959 = vcvt.s32.f32 %v639
    %v960 = vcvt.s32.f32 %v640
    %v961 = vcvt.s32.f32 %v641
    %v962 = vcvt.s32.f32 %v642
    %v963 = vcvt.s32.f32 %v643
    %v964 = vcvt.s32.f32 %v644
    %v965 = vcvt.s32.f32 %v645
    %v966 = vcvt.s32.f32 %v646
    %v967 = vcvt.s32.f32 %v647
    %v968 = vcvt.s32.f32 %v648
    %v969 = vcvt.s32.f32 %v649
    %v970 = vcvt.s32.f32 %v650
    %v971 = vcvt.s32.f32 %v651
    %v972 = vcvt.s32.f32 %v652
    %v973 = vcvt.s32.f32 %v653
    %v974 = vcvt.s32.f32 %v654
    %v975 = vcvt.s32.f32 %v655
    %v976 = vcvt.s32.f32 %v656
    %v977 = vcvt.s32.f32 %v657
    %v978 = vcvt.s32.f32 %v658
    %v979 = vcvt.s32.f32 %v659
    %v980 = vcvt.s32.f32 %v660
    %v981 = vcvt.s32.f32 %v661
    %v982 = vcvt.s32.f32 %v662
    %v983 = vcvt.s32.f32 %v663
    %v984 = vcvt.s32.f32 %v664
    %v985 = vcvt.s32.f32 %v665
    %v986 = vcvt.s32.f32 %v666
    %v987 = vcvt.s32.f32 %v667
    %v988 = vcvt.s32.f32 %v668
    %v989 = vcvt.s32.f32 %v669
    %v990 = vcvt.s32.f32 %v670
    %v991 = vcvt.s32.f32 %v671
    %v992 = vcvt.s32.f32 %v672
    %v993 = vcvt.s32.f32 %v673
    %v994 = vcvt.s32.f32 %v674
    %v995 = vcvt.s32.f32 %v675
    %v996 = vcvt.s32.f32 %v676
    %v997 = vcvt.s32.f32 %v677
    %v998 = vcvt.s32.f32 %v678
    %v999 = vcvt.s32.f32 %v679
    %v1000 = vcvt.s32.f32 %v680
    %v1001 = vcvt.s32.f32 %v681
    %v1002 = vcvt.s32.f32 %v682
    %v1003 = vcvt.s32.f32 %v683
    %v1004 = vcvt.s32.f32 %v684
    %v1005 = vcvt.s32.f32 %v685
    %v1006 = vcvt.s32.f32 %v686
    %v1007 = vcvt.s32.f32 %v687
    %v1008 = vcvt.s32.f32 %v688
    %v1009 = vcvt.s32.f32 %v689
    %v1010 = vcvt.s32.f32 %v690
    %v1011 = vcvt.s32.f32 %v691
    %v1012 = vcvt.s32.f32 %v692
    %v1013 = vcvt.s32.f32 %v693
    %v1014 = vcvt.s32.f32 %v694
    %v1015 = vcvt.s32.f32 %v695
    %v1016 = vcvt.s32.f32 %v696
    %v1017 = vcvt.s32.f32 %v697
    %v1018 = vcvt.s32.f32 %v698
    %v1019 = vcvt.s32.f32 %v699
    %v1020 = vcvt.s32.f32 %v700
    %v1021 = vcvt.s32.f32 %v701
    %v1022 = vcvt.s32.f32 %v702
    %v1023 = vcvt.s32.f32 %v703
    %v1024 = vcvt.s32.f32 %v704
    %v1025 = vcvt.s32.f32 %v705
    %v1026 = vcvt.s32.f32 %v706
    %v1027 = vcvt.s32.f32 %v707
    %v1028 = vcvt.s32.f32 %v708
    %v1029 = vcvt.s32.f32 %v709
    %v1030 = vcvt.s32.f32 %v710
    %v1031 = vcvt.s32.f32 %v711
    %v1032 = vcvt.s32.f32 %v712
    %v1033 = vcvt.s32.f32 %v713
    %v1034 = vcvt.s32.f32 %v714
    %v1035 = vcvt.s32.f32 %v715
    %v1036 = vcvt.s32.f32 %v716
    %v1037 = vcvt.s32.f32 %v717
    %v1038 = vcvt.s32.f32 %v718
    %v1039 = vcvt.s32.f32 %v719
    %v1040 = vcvt.s32.f32 %v720
    %v1041 = vcvt.s32.f32 %v721
    %v1042 = vcvt.s32.f32 %v722
    %v1043 = vcvt.s32.f32 %v723
    %v1044 = vcvt.s32.f32 %v724
    %v1045 = vcvt.s32.f32 %v725
    %v1046 = vcvt.s32.f32 %v726
    %v1047 = vcvt.s32.f32 %v727
    %v1048 = vcvt.s32.f32 %v728
    %v1049 = vcvt.s32.f32 %v729
    %v1050 = vcvt.s32.f32 %v730
    %v1051 = vcvt.s32.f32 %v731
    %v1052 = vcvt.s32.f32 %v732
    %v1053 = vcvt.s32.f32 %v733
    %v1054 = vcvt.s32.f32 %v734
    %v1055 = vcvt.s32.f32 %v735
    %v1056 = vcvt.s32.f32 %v736
    %v1057 = vcvt.s32.f32 %v737
    %v1058 = vcvt.s32.f32 %v738
    %v1059 = vcvt.s32.f32 %v739
    %v1060 = vcvt.s32.f32 %v740
    %v1061 = vcvt.s32.f32 %v741
    %v1062 = vcvt.s32.f32 %v742
    %v1063 = vcvt.s32.f32 %v743
    %v1064 = vcvt.s32.f32 %v744
    %v1065 = vcvt.s32.f32 %v745
    %v1066 = vcvt.s32.f32 %v746
    %v1067 = vcvt.s32.f32 %v747
    %v1068 = vcvt.s32.f32 %v748
    %v1069 = vcvt.s32.f32 %v749
    %v1070 = vcvt.s32.f32 %v750
    %v1071 = vcvt.s32.f32 %v751
    %v1072 = vcvt.s32.f32 %v752
    %v1073 = vcvt.s32.f32 %v753
    %v1074 = vcvt.s32.f32 %v754
    %v1075 = vcvt.s32.f32 %v755
    %v1076 = vcvt.s32.f32 %v756
    %v1077 = vcvt.s32.f32 %v757
    %v1078 = vcvt.s32.f32 %v758
    %v1079 = vcvt.s32.f32 %v759
    %v1080 = vcvt.s32.f32 %v760
    %v1081 = vcvt.s32.f32 %v761
    %v1082 = vcvt.s32.f32 %v762
    %v1083 = vcvt.s32.f32 %v763
    %v1084 = vcvt.s32.f32 %v764
    %v1085 = vcvt.s32.f32 %v765
    %v1086 = vcvt.s32.f32 %v766
    %v1087 = vcvt.s32.f32 %v767
    %v1088 = vcvt.s32.f32 %v768
    %v1089 = vcvt.s32.f32 %v769
    %v1090 = vcvt.s32.f32 %v770
    %v1091 = vcvt.s32.f32 %v771
    %v1092 = vcvt.s32.f32 %v772
    %v1093 = vcvt.s32.f32 %v773
    %v1094 = vcvt.s32.f32 %v774
    %v1095 = vcvt.s32.f32 %v775
    %v1096 = vcvt.s32.f32 %v776
    %v1097 = vcvt.s32.f32 %v777
    %v1098 = vcvt.s32.f32 %v778
    %v1099 = vcvt.s32.f32 %v779
    %v1100 = vcvt.s32.f32 %v780
    %v1101 = vcvt.s32.f32 %v781
    %v1102 = vcvt.s32.f32 %v782
    %v1103 = vcvt.s32.f32 %v783
    %v1104 = vcvt.s32.f32 %v784
    %v1105 = vcvt.s32.f32 %v785
    %v1106 = vcvt.s32.f32 %v786
    %v1107 = vcvt.s32.f32 %v787
    %v1108 = vcvt.s32.f32 %v788
    %v1109 = vcvt.s32.f32 %v789
    %v1110 = vcvt.s32.f32 %v790
    %v1111 = vcvt.s32.f32 %v791
    %v1112 = vcvt.s32.f32 %v792
    %v1113 = vcvt.s32.f32 %v793
    %v1114 = vcvt.s32.f32 %v794
    %v1115 = vcvt.s32.f32 %v795
    %v1116 = vcvt.s32.f32 %v796
    %v1117 = vcvt.s32.f32 %v797
    %v1118 = vcvt.s32.f32 %v798
    %v1119 = vcvt.s32.f32 %v799
    %v1120 = vcvt.s32.f32 %v800
    %v1121 = vcvt.s32.f32 %v801
    %v1122 = vcvt.s32.f32 %v802
    %v1123 = vcvt.s32.f32 %v803
    %v1124 = vcvt.s32.f32 %v804
    %v1125 = vld [vmem:[%s2] sm:$0x1f]
    %v1126 = vlaneseq
    %v1127 = vshrl.u32 %v1126, 7
    %v1128 = vsub.s32 0, %v1127
    %v1129 = vrot.slane %v1125, %v1128
    %v1130 = vlaneseq
    %v1131 = vshrl.u32 %v1130, 7
    %v1132 = vsub.s32 1, %v1131
    %v1133 = vrot.slane %v1125, %v1132
    %v1134 = vlaneseq
    %v1135 = vshrl.u32 %v1134, 7
    %v1136 = vsub.s32 2, %v1135
    %v1137 = vrot.slane %v1125, %v1136
    %v1138 = vlaneseq
    %v1139 = vshrl.u32 %v1138, 7
    %v1140 = vsub.s32 3, %v1139
    %v1141 = vrot.slane %v1125, %v1140
    %v1142 = vlaneseq
    %v1143 = vshrl.u32 %v1142, 7
    %v1144 = vsub.s32 4, %v1143
    %v1145 = vrot.slane %v1125, %v1144
    %vm1146 = vcmp.eq.s32.totalorder %v80, %v1129
    %vm1147 = vcmp.eq.s32.totalorder %v80, %v1133
    %vm1148 = vcmp.eq.s32.totalorder %v80, %v1137
    %vm1149 = vcmp.eq.s32.totalorder %v80, %v1141
    %vm1150 = vcmp.eq.s32.totalorder %v80, %v1145
    %vm1151 = vcmp.eq.s32.totalorder %v81, %v1129
    %vm1152 = vcmp.eq.s32.totalorder %v81, %v1133
    %vm1153 = vcmp.eq.s32.totalorder %v81, %v1137
    %vm1154 = vcmp.eq.s32.totalorder %v81, %v1141
    %vm1155 = vcmp.eq.s32.totalorder %v81, %v1145
    %vm1156 = vcmp.eq.s32.totalorder %v82, %v1129
    %vm1157 = vcmp.eq.s32.totalorder %v82, %v1133
    %vm1158 = vcmp.eq.s32.totalorder %v82, %v1137
    %vm1159 = vcmp.eq.s32.totalorder %v82, %v1141
    %vm1160 = vcmp.eq.s32.totalorder %v82, %v1145
    %vm1161 = vcmp.eq.s32.totalorder %v83, %v1129
    %vm1162 = vcmp.eq.s32.totalorder %v83, %v1133
    %vm1163 = vcmp.eq.s32.totalorder %v83, %v1137
    %vm1164 = vcmp.eq.s32.totalorder %v83, %v1141
    %vm1165 = vcmp.eq.s32.totalorder %v83, %v1145
    %vm1166 = vcmp.eq.s32.totalorder %v84, %v1129
    %vm1167 = vcmp.eq.s32.totalorder %v84, %v1133
    %vm1168 = vcmp.eq.s32.totalorder %v84, %v1137
    %vm1169 = vcmp.eq.s32.totalorder %v84, %v1141
    %vm1170 = vcmp.eq.s32.totalorder %v84, %v1145
    %vm1171 = vcmp.eq.s32.totalorder %v85, %v1129
    %vm1172 = vcmp.eq.s32.totalorder %v85, %v1133
    %vm1173 = vcmp.eq.s32.totalorder %v85, %v1137
    %vm1174 = vcmp.eq.s32.totalorder %v85, %v1141
    %vm1175 = vcmp.eq.s32.totalorder %v85, %v1145
    %vm1176 = vcmp.eq.s32.totalorder %v86, %v1129
    %vm1177 = vcmp.eq.s32.totalorder %v86, %v1133
    %vm1178 = vcmp.eq.s32.totalorder %v86, %v1137
    %vm1179 = vcmp.eq.s32.totalorder %v86, %v1141
    %vm1180 = vcmp.eq.s32.totalorder %v86, %v1145
    %vm1181 = vcmp.eq.s32.totalorder %v87, %v1129
    %vm1182 = vcmp.eq.s32.totalorder %v87, %v1133
    %vm1183 = vcmp.eq.s32.totalorder %v87, %v1137
    %vm1184 = vcmp.eq.s32.totalorder %v87, %v1141
    %vm1185 = vcmp.eq.s32.totalorder %v87, %v1145
    %vm1186 = vcmp.eq.s32.totalorder %v88, %v1129
    %vm1187 = vcmp.eq.s32.totalorder %v88, %v1133
    %vm1188 = vcmp.eq.s32.totalorder %v88, %v1137
    %vm1189 = vcmp.eq.s32.totalorder %v88, %v1141
    %vm1190 = vcmp.eq.s32.totalorder %v88, %v1145
    %vm1191 = vcmp.eq.s32.totalorder %v89, %v1129
    %vm1192 = vcmp.eq.s32.totalorder %v89, %v1133
    %vm1193 = vcmp.eq.s32.totalorder %v89, %v1137
    %vm1194 = vcmp.eq.s32.totalorder %v89, %v1141
    %vm1195 = vcmp.eq.s32.totalorder %v89, %v1145
    %vm1196 = vcmp.eq.s32.totalorder %v90, %v1129
    %vm1197 = vcmp.eq.s32.totalorder %v90, %v1133
    %vm1198 = vcmp.eq.s32.totalorder %v90, %v1137
    %vm1199 = vcmp.eq.s32.totalorder %v90, %v1141
    %vm1200 = vcmp.eq.s32.totalorder %v90, %v1145
    %vm1201 = vcmp.eq.s32.totalorder %v91, %v1129
    %vm1202 = vcmp.eq.s32.totalorder %v91, %v1133
    %vm1203 = vcmp.eq.s32.totalorder %v91, %v1137
    %vm1204 = vcmp.eq.s32.totalorder %v91, %v1141
    %vm1205 = vcmp.eq.s32.totalorder %v91, %v1145
    %vm1206 = vcmp.eq.s32.totalorder %v92, %v1129
    %vm1207 = vcmp.eq.s32.totalorder %v92, %v1133
    %vm1208 = vcmp.eq.s32.totalorder %v92, %v1137
    %vm1209 = vcmp.eq.s32.totalorder %v92, %v1141
    %vm1210 = vcmp.eq.s32.totalorder %v92, %v1145
    %vm1211 = vcmp.eq.s32.totalorder %v93, %v1129
    %vm1212 = vcmp.eq.s32.totalorder %v93, %v1133
    %vm1213 = vcmp.eq.s32.totalorder %v93, %v1137
    %vm1214 = vcmp.eq.s32.totalorder %v93, %v1141
    %vm1215 = vcmp.eq.s32.totalorder %v93, %v1145
    %vm1216 = vcmp.eq.s32.totalorder %v94, %v1129
    %vm1217 = vcmp.eq.s32.totalorder %v94, %v1133
    %vm1218 = vcmp.eq.s32.totalorder %v94, %v1137
    %vm1219 = vcmp.eq.s32.totalorder %v94, %v1141
    %vm1220 = vcmp.eq.s32.totalorder %v94, %v1145
    %vm1221 = vcmp.eq.s32.totalorder %v95, %v1129
    %vm1222 = vcmp.eq.s32.totalorder %v95, %v1133
    %vm1223 = vcmp.eq.s32.totalorder %v95, %v1137
    %vm1224 = vcmp.eq.s32.totalorder %v95, %v1141
    %vm1225 = vcmp.eq.s32.totalorder %v95, %v1145
    %vm1226 = vcmp.eq.s32.totalorder %v96, %v1129
    %vm1227 = vcmp.eq.s32.totalorder %v96, %v1133
    %vm1228 = vcmp.eq.s32.totalorder %v96, %v1137
    %vm1229 = vcmp.eq.s32.totalorder %v96, %v1141
    %vm1230 = vcmp.eq.s32.totalorder %v96, %v1145
    %vm1231 = vcmp.eq.s32.totalorder %v97, %v1129
    %vm1232 = vcmp.eq.s32.totalorder %v97, %v1133
    %vm1233 = vcmp.eq.s32.totalorder %v97, %v1137
    %vm1234 = vcmp.eq.s32.totalorder %v97, %v1141
    %vm1235 = vcmp.eq.s32.totalorder %v97, %v1145
    %vm1236 = vcmp.eq.s32.totalorder %v98, %v1129
    %vm1237 = vcmp.eq.s32.totalorder %v98, %v1133
    %vm1238 = vcmp.eq.s32.totalorder %v98, %v1137
    %vm1239 = vcmp.eq.s32.totalorder %v98, %v1141
    %vm1240 = vcmp.eq.s32.totalorder %v98, %v1145
    %vm1241 = vcmp.eq.s32.totalorder %v99, %v1129
    %vm1242 = vcmp.eq.s32.totalorder %v99, %v1133
    %vm1243 = vcmp.eq.s32.totalorder %v99, %v1137
    %vm1244 = vcmp.eq.s32.totalorder %v99, %v1141
    %vm1245 = vcmp.eq.s32.totalorder %v99, %v1145
    %vm1246 = vcmp.eq.s32.totalorder %v100, %v1129
    %vm1247 = vcmp.eq.s32.totalorder %v100, %v1133
    %vm1248 = vcmp.eq.s32.totalorder %v100, %v1137
    %vm1249 = vcmp.eq.s32.totalorder %v100, %v1141
    %vm1250 = vcmp.eq.s32.totalorder %v100, %v1145
    %vm1251 = vcmp.eq.s32.totalorder %v101, %v1129
    %vm1252 = vcmp.eq.s32.totalorder %v101, %v1133
    %vm1253 = vcmp.eq.s32.totalorder %v101, %v1137
    %vm1254 = vcmp.eq.s32.totalorder %v101, %v1141
    %vm1255 = vcmp.eq.s32.totalorder %v101, %v1145
    %vm1256 = vcmp.eq.s32.totalorder %v102, %v1129
    %vm1257 = vcmp.eq.s32.totalorder %v102, %v1133
    %vm1258 = vcmp.eq.s32.totalorder %v102, %v1137
    %vm1259 = vcmp.eq.s32.totalorder %v102, %v1141
    %vm1260 = vcmp.eq.s32.totalorder %v102, %v1145
    %vm1261 = vcmp.eq.s32.totalorder %v103, %v1129
    %vm1262 = vcmp.eq.s32.totalorder %v103, %v1133
    %vm1263 = vcmp.eq.s32.totalorder %v103, %v1137
    %vm1264 = vcmp.eq.s32.totalorder %v103, %v1141
    %vm1265 = vcmp.eq.s32.totalorder %v103, %v1145
    %vm1266 = vcmp.eq.s32.totalorder %v104, %v1129
    %vm1267 = vcmp.eq.s32.totalorder %v104, %v1133
    %vm1268 = vcmp.eq.s32.totalorder %v104, %v1137
    %vm1269 = vcmp.eq.s32.totalorder %v104, %v1141
    %vm1270 = vcmp.eq.s32.totalorder %v104, %v1145
    %vm1271 = vcmp.eq.s32.totalorder %v105, %v1129
    %vm1272 = vcmp.eq.s32.totalorder %v105, %v1133
    %vm1273 = vcmp.eq.s32.totalorder %v105, %v1137
    %vm1274 = vcmp.eq.s32.totalorder %v105, %v1141
    %vm1275 = vcmp.eq.s32.totalorder %v105, %v1145
    %vm1276 = vcmp.eq.s32.totalorder %v106, %v1129
    %vm1277 = vcmp.eq.s32.totalorder %v106, %v1133
    %vm1278 = vcmp.eq.s32.totalorder %v106, %v1137
    %vm1279 = vcmp.eq.s32.totalorder %v106, %v1141
    %vm1280 = vcmp.eq.s32.totalorder %v106, %v1145
    %vm1281 = vcmp.eq.s32.totalorder %v107, %v1129
    %vm1282 = vcmp.eq.s32.totalorder %v107, %v1133
    %vm1283 = vcmp.eq.s32.totalorder %v107, %v1137
    %vm1284 = vcmp.eq.s32.totalorder %v107, %v1141
    %vm1285 = vcmp.eq.s32.totalorder %v107, %v1145
    %vm1286 = vcmp.eq.s32.totalorder %v108, %v1129
    %vm1287 = vcmp.eq.s32.totalorder %v108, %v1133
    %vm1288 = vcmp.eq.s32.totalorder %v108, %v1137
    %vm1289 = vcmp.eq.s32.totalorder %v108, %v1141
    %vm1290 = vcmp.eq.s32.totalorder %v108, %v1145
    %vm1291 = vcmp.eq.s32.totalorder %v109, %v1129
    %vm1292 = vcmp.eq.s32.totalorder %v109, %v1133
    %vm1293 = vcmp.eq.s32.totalorder %v109, %v1137
    %vm1294 = vcmp.eq.s32.totalorder %v109, %v1141
    %vm1295 = vcmp.eq.s32.totalorder %v109, %v1145
    %vm1296 = vcmp.eq.s32.totalorder %v110, %v1129
    %vm1297 = vcmp.eq.s32.totalorder %v110, %v1133
    %vm1298 = vcmp.eq.s32.totalorder %v110, %v1137
    %vm1299 = vcmp.eq.s32.totalorder %v110, %v1141
    %vm1300 = vcmp.eq.s32.totalorder %v110, %v1145
    %vm1301 = vcmp.eq.s32.totalorder %v111, %v1129
    %vm1302 = vcmp.eq.s32.totalorder %v111, %v1133
    %vm1303 = vcmp.eq.s32.totalorder %v111, %v1137
    %vm1304 = vcmp.eq.s32.totalorder %v111, %v1141
    %vm1305 = vcmp.eq.s32.totalorder %v111, %v1145
    %vm1306 = vcmp.eq.s32.totalorder %v112, %v1129
    %vm1307 = vcmp.eq.s32.totalorder %v112, %v1133
    %vm1308 = vcmp.eq.s32.totalorder %v112, %v1137
    %vm1309 = vcmp.eq.s32.totalorder %v112, %v1141
    %vm1310 = vcmp.eq.s32.totalorder %v112, %v1145
    %vm1311 = vcmp.eq.s32.totalorder %v113, %v1129
    %vm1312 = vcmp.eq.s32.totalorder %v113, %v1133
    %vm1313 = vcmp.eq.s32.totalorder %v113, %v1137
    %vm1314 = vcmp.eq.s32.totalorder %v113, %v1141
    %vm1315 = vcmp.eq.s32.totalorder %v113, %v1145
    %vm1316 = vcmp.eq.s32.totalorder %v114, %v1129
    %vm1317 = vcmp.eq.s32.totalorder %v114, %v1133
    %vm1318 = vcmp.eq.s32.totalorder %v114, %v1137
    %vm1319 = vcmp.eq.s32.totalorder %v114, %v1141
    %vm1320 = vcmp.eq.s32.totalorder %v114, %v1145
    %vm1321 = vcmp.eq.s32.totalorder %v115, %v1129
    %vm1322 = vcmp.eq.s32.totalorder %v115, %v1133
    %vm1323 = vcmp.eq.s32.totalorder %v115, %v1137
    %vm1324 = vcmp.eq.s32.totalorder %v115, %v1141
    %vm1325 = vcmp.eq.s32.totalorder %v115, %v1145
    %vm1326 = vcmp.eq.s32.totalorder %v116, %v1129
    %vm1327 = vcmp.eq.s32.totalorder %v116, %v1133
    %vm1328 = vcmp.eq.s32.totalorder %v116, %v1137
    %vm1329 = vcmp.eq.s32.totalorder %v116, %v1141
    %vm1330 = vcmp.eq.s32.totalorder %v116, %v1145
    %vm1331 = vcmp.eq.s32.totalorder %v117, %v1129
    %vm1332 = vcmp.eq.s32.totalorder %v117, %v1133
    %vm1333 = vcmp.eq.s32.totalorder %v117, %v1137
    %vm1334 = vcmp.eq.s32.totalorder %v117, %v1141
    %vm1335 = vcmp.eq.s32.totalorder %v117, %v1145
    %vm1336 = vcmp.eq.s32.totalorder %v118, %v1129
    %vm1337 = vcmp.eq.s32.totalorder %v118, %v1133
    %vm1338 = vcmp.eq.s32.totalorder %v118, %v1137
    %vm1339 = vcmp.eq.s32.totalorder %v118, %v1141
    %vm1340 = vcmp.eq.s32.totalorder %v118, %v1145
    %vm1341 = vcmp.eq.s32.totalorder %v119, %v1129
    %vm1342 = vcmp.eq.s32.totalorder %v119, %v1133
    %vm1343 = vcmp.eq.s32.totalorder %v119, %v1137
    %vm1344 = vcmp.eq.s32.totalorder %v119, %v1141
    %vm1345 = vcmp.eq.s32.totalorder %v119, %v1145
    %vm1346 = vcmp.eq.s32.totalorder %v120, %v1129
    %vm1347 = vcmp.eq.s32.totalorder %v120, %v1133
    %vm1348 = vcmp.eq.s32.totalorder %v120, %v1137
    %vm1349 = vcmp.eq.s32.totalorder %v120, %v1141
    %vm1350 = vcmp.eq.s32.totalorder %v120, %v1145
    %vm1351 = vcmp.eq.s32.totalorder %v121, %v1129
    %vm1352 = vcmp.eq.s32.totalorder %v121, %v1133
    %vm1353 = vcmp.eq.s32.totalorder %v121, %v1137
    %vm1354 = vcmp.eq.s32.totalorder %v121, %v1141
    %vm1355 = vcmp.eq.s32.totalorder %v121, %v1145
    %vm1356 = vcmp.eq.s32.totalorder %v122, %v1129
    %vm1357 = vcmp.eq.s32.totalorder %v122, %v1133
    %vm1358 = vcmp.eq.s32.totalorder %v122, %v1137
    %vm1359 = vcmp.eq.s32.totalorder %v122, %v1141
    %vm1360 = vcmp.eq.s32.totalorder %v122, %v1145
    %vm1361 = vcmp.eq.s32.totalorder %v123, %v1129
    %vm1362 = vcmp.eq.s32.totalorder %v123, %v1133
    %vm1363 = vcmp.eq.s32.totalorder %v123, %v1137
    %vm1364 = vcmp.eq.s32.totalorder %v123, %v1141
    %vm1365 = vcmp.eq.s32.totalorder %v123, %v1145
    %vm1366 = vcmp.eq.s32.totalorder %v124, %v1129
    %vm1367 = vcmp.eq.s32.totalorder %v124, %v1133
    %vm1368 = vcmp.eq.s32.totalorder %v124, %v1137
    %vm1369 = vcmp.eq.s32.totalorder %v124, %v1141
    %vm1370 = vcmp.eq.s32.totalorder %v124, %v1145
    %vm1371 = vcmp.eq.s32.totalorder %v125, %v1129
    %vm1372 = vcmp.eq.s32.totalorder %v125, %v1133
    %vm1373 = vcmp.eq.s32.totalorder %v125, %v1137
    %vm1374 = vcmp.eq.s32.totalorder %v125, %v1141
    %vm1375 = vcmp.eq.s32.totalorder %v125, %v1145
    %vm1376 = vcmp.eq.s32.totalorder %v126, %v1129
    %vm1377 = vcmp.eq.s32.totalorder %v126, %v1133
    %vm1378 = vcmp.eq.s32.totalorder %v126, %v1137
    %vm1379 = vcmp.eq.s32.totalorder %v126, %v1141
    %vm1380 = vcmp.eq.s32.totalorder %v126, %v1145
    %vm1381 = vcmp.eq.s32.totalorder %v127, %v1129
    %vm1382 = vcmp.eq.s32.totalorder %v127, %v1133
    %vm1383 = vcmp.eq.s32.totalorder %v127, %v1137
    %vm1384 = vcmp.eq.s32.totalorder %v127, %v1141
    %vm1385 = vcmp.eq.s32.totalorder %v127, %v1145
    %vm1386 = vcmp.eq.s32.totalorder %v128, %v1129
    %vm1387 = vcmp.eq.s32.totalorder %v128, %v1133
    %vm1388 = vcmp.eq.s32.totalorder %v128, %v1137
    %vm1389 = vcmp.eq.s32.totalorder %v128, %v1141
    %vm1390 = vcmp.eq.s32.totalorder %v128, %v1145
    %vm1391 = vcmp.eq.s32.totalorder %v129, %v1129
    %vm1392 = vcmp.eq.s32.totalorder %v129, %v1133
    %vm1393 = vcmp.eq.s32.totalorder %v129, %v1137
    %vm1394 = vcmp.eq.s32.totalorder %v129, %v1141
    %vm1395 = vcmp.eq.s32.totalorder %v129, %v1145
    %vm1396 = vcmp.eq.s32.totalorder %v130, %v1129
    %vm1397 = vcmp.eq.s32.totalorder %v130, %v1133
    %vm1398 = vcmp.eq.s32.totalorder %v130, %v1137
    %vm1399 = vcmp.eq.s32.totalorder %v130, %v1141
    %vm1400 = vcmp.eq.s32.totalorder %v130, %v1145
    %vm1401 = vcmp.eq.s32.totalorder %v131, %v1129
    %vm1402 = vcmp.eq.s32.totalorder %v131, %v1133
    %vm1403 = vcmp.eq.s32.totalorder %v131, %v1137
    %vm1404 = vcmp.eq.s32.totalorder %v131, %v1141
    %vm1405 = vcmp.eq.s32.totalorder %v131, %v1145
    %vm1406 = vcmp.eq.s32.totalorder %v132, %v1129
    %vm1407 = vcmp.eq.s32.totalorder %v132, %v1133
    %vm1408 = vcmp.eq.s32.totalorder %v132, %v1137
    %vm1409 = vcmp.eq.s32.totalorder %v132, %v1141
    %vm1410 = vcmp.eq.s32.totalorder %v132, %v1145
    %vm1411 = vcmp.eq.s32.totalorder %v133, %v1129
    %vm1412 = vcmp.eq.s32.totalorder %v133, %v1133
    %vm1413 = vcmp.eq.s32.totalorder %v133, %v1137
    %vm1414 = vcmp.eq.s32.totalorder %v133, %v1141
    %vm1415 = vcmp.eq.s32.totalorder %v133, %v1145
    %vm1416 = vcmp.eq.s32.totalorder %v134, %v1129
    %vm1417 = vcmp.eq.s32.totalorder %v134, %v1133
    %vm1418 = vcmp.eq.s32.totalorder %v134, %v1137
    %vm1419 = vcmp.eq.s32.totalorder %v134, %v1141
    %vm1420 = vcmp.eq.s32.totalorder %v134, %v1145
    %vm1421 = vcmp.eq.s32.totalorder %v135, %v1129
    %vm1422 = vcmp.eq.s32.totalorder %v135, %v1133
    %vm1423 = vcmp.eq.s32.totalorder %v135, %v1137
    %vm1424 = vcmp.eq.s32.totalorder %v135, %v1141
    %vm1425 = vcmp.eq.s32.totalorder %v135, %v1145
    %vm1426 = vcmp.eq.s32.totalorder %v136, %v1129
    %vm1427 = vcmp.eq.s32.totalorder %v136, %v1133
    %vm1428 = vcmp.eq.s32.totalorder %v136, %v1137
    %vm1429 = vcmp.eq.s32.totalorder %v136, %v1141
    %vm1430 = vcmp.eq.s32.totalorder %v136, %v1145
    %vm1431 = vcmp.eq.s32.totalorder %v137, %v1129
    %vm1432 = vcmp.eq.s32.totalorder %v137, %v1133
    %vm1433 = vcmp.eq.s32.totalorder %v137, %v1137
    %vm1434 = vcmp.eq.s32.totalorder %v137, %v1141
    %vm1435 = vcmp.eq.s32.totalorder %v137, %v1145
    %vm1436 = vcmp.eq.s32.totalorder %v138, %v1129
    %vm1437 = vcmp.eq.s32.totalorder %v138, %v1133
    %vm1438 = vcmp.eq.s32.totalorder %v138, %v1137
    %vm1439 = vcmp.eq.s32.totalorder %v138, %v1141
    %vm1440 = vcmp.eq.s32.totalorder %v138, %v1145
    %vm1441 = vcmp.eq.s32.totalorder %v139, %v1129
    %vm1442 = vcmp.eq.s32.totalorder %v139, %v1133
    %vm1443 = vcmp.eq.s32.totalorder %v139, %v1137
    %vm1444 = vcmp.eq.s32.totalorder %v139, %v1141
    %vm1445 = vcmp.eq.s32.totalorder %v139, %v1145
    %vm1446 = vcmp.eq.s32.totalorder %v140, %v1129
    %vm1447 = vcmp.eq.s32.totalorder %v140, %v1133
    %vm1448 = vcmp.eq.s32.totalorder %v140, %v1137
    %vm1449 = vcmp.eq.s32.totalorder %v140, %v1141
    %vm1450 = vcmp.eq.s32.totalorder %v140, %v1145
    %vm1451 = vcmp.eq.s32.totalorder %v141, %v1129
    %vm1452 = vcmp.eq.s32.totalorder %v141, %v1133
    %vm1453 = vcmp.eq.s32.totalorder %v141, %v1137
    %vm1454 = vcmp.eq.s32.totalorder %v141, %v1141
    %vm1455 = vcmp.eq.s32.totalorder %v141, %v1145
    %vm1456 = vcmp.eq.s32.totalorder %v142, %v1129
    %vm1457 = vcmp.eq.s32.totalorder %v142, %v1133
    %vm1458 = vcmp.eq.s32.totalorder %v142, %v1137
    %vm1459 = vcmp.eq.s32.totalorder %v142, %v1141
    %vm1460 = vcmp.eq.s32.totalorder %v142, %v1145
    %vm1461 = vcmp.eq.s32.totalorder %v143, %v1129
    %vm1462 = vcmp.eq.s32.totalorder %v143, %v1133
    %vm1463 = vcmp.eq.s32.totalorder %v143, %v1137
    %vm1464 = vcmp.eq.s32.totalorder %v143, %v1141
    %vm1465 = vcmp.eq.s32.totalorder %v143, %v1145
    %v1466 = vsel %vm1146, 1, 0
    %v1467 = vsel %vm1147, 1, 0
    %v1468 = vsel %vm1148, 1, 0
    %v1469 = vsel %vm1149, 1, 0
    %v1470 = vsel %vm1150, 1, 0
    %v1471 = vsel %vm1151, 1, 0
    %v1472 = vsel %vm1152, 1, 0
    %v1473 = vsel %vm1153, 1, 0
    %v1474 = vsel %vm1154, 1, 0
    %v1475 = vsel %vm1155, 1, 0
    %v1476 = vsel %vm1156, 1, 0
    %v1477 = vsel %vm1157, 1, 0
    %v1478 = vsel %vm1158, 1, 0
    %v1479 = vsel %vm1159, 1, 0
    %v1480 = vsel %vm1160, 1, 0
    %v1481 = vsel %vm1161, 1, 0
    %v1482 = vsel %vm1162, 1, 0
    %v1483 = vsel %vm1163, 1, 0
    %v1484 = vsel %vm1164, 1, 0
    %v1485 = vsel %vm1165, 1, 0
    %v1486 = vsel %vm1166, 1, 0
    %v1487 = vsel %vm1167, 1, 0
    %v1488 = vsel %vm1168, 1, 0
    %v1489 = vsel %vm1169, 1, 0
    %v1490 = vsel %vm1170, 1, 0
    %v1491 = vsel %vm1171, 1, 0
    %v1492 = vsel %vm1172, 1, 0
    %v1493 = vsel %vm1173, 1, 0
    %v1494 = vsel %vm1174, 1, 0
    %v1495 = vsel %vm1175, 1, 0
    %v1496 = vsel %vm1176, 1, 0
    %v1497 = vsel %vm1177, 1, 0
    %v1498 = vsel %vm1178, 1, 0
    %v1499 = vsel %vm1179, 1, 0
    %v1500 = vsel %vm1180, 1, 0
    %v1501 = vsel %vm1181, 1, 0
    %v1502 = vsel %vm1182, 1, 0
    %v1503 = vsel %vm1183, 1, 0
    %v1504 = vsel %vm1184, 1, 0
    %v1505 = vsel %vm1185, 1, 0
    %v1506 = vsel %vm1186, 1, 0
    %v1507 = vsel %vm1187, 1, 0
    %v1508 = vsel %vm1188, 1, 0
    %v1509 = vsel %vm1189, 1, 0
    %v1510 = vsel %vm1190, 1, 0
    %v1511 = vsel %vm1191, 1, 0
    %v1512 = vsel %vm1192, 1, 0
    %v1513 = vsel %vm1193, 1, 0
    %v1514 = vsel %vm1194, 1, 0
    %v1515 = vsel %vm1195, 1, 0
    %v1516 = vsel %vm1196, 1, 0
    %v1517 = vsel %vm1197, 1, 0
    %v1518 = vsel %vm1198, 1, 0
    %v1519 = vsel %vm1199, 1, 0
    %v1520 = vsel %vm1200, 1, 0
    %v1521 = vsel %vm1201, 1, 0
    %v1522 = vsel %vm1202, 1, 0
    %v1523 = vsel %vm1203, 1, 0
    %v1524 = vsel %vm1204, 1, 0
    %v1525 = vsel %vm1205, 1, 0
    %v1526 = vsel %vm1206, 1, 0
    %v1527 = vsel %vm1207, 1, 0
    %v1528 = vsel %vm1208, 1, 0
    %v1529 = vsel %vm1209, 1, 0
    %v1530 = vsel %vm1210, 1, 0
    %v1531 = vsel %vm1211, 1, 0
    %v1532 = vsel %vm1212, 1, 0
    %v1533 = vsel %vm1213, 1, 0
    %v1534 = vsel %vm1214, 1, 0
    %v1535 = vsel %vm1215, 1, 0
    %v1536 = vsel %vm1216, 1, 0
    %v1537 = vsel %vm1217, 1, 0
    %v1538 = vsel %vm1218, 1, 0
    %v1539 = vsel %vm1219, 1, 0
    %v1540 = vsel %vm1220, 1, 0
    %v1541 = vsel %vm1221, 1, 0
    %v1542 = vsel %vm1222, 1, 0
    %v1543 = vsel %vm1223, 1, 0
    %v1544 = vsel %vm1224, 1, 0
    %v1545 = vsel %vm1225, 1, 0
    %v1546 = vsel %vm1226, 1, 0
    %v1547 = vsel %vm1227, 1, 0
    %v1548 = vsel %vm1228, 1, 0
    %v1549 = vsel %vm1229, 1, 0
    %v1550 = vsel %vm1230, 1, 0
    %v1551 = vsel %vm1231, 1, 0
    %v1552 = vsel %vm1232, 1, 0
    %v1553 = vsel %vm1233, 1, 0
    %v1554 = vsel %vm1234, 1, 0
    %v1555 = vsel %vm1235, 1, 0
    %v1556 = vsel %vm1236, 1, 0
    %v1557 = vsel %vm1237, 1, 0
    %v1558 = vsel %vm1238, 1, 0
    %v1559 = vsel %vm1239, 1, 0
    %v1560 = vsel %vm1240, 1, 0
    %v1561 = vsel %vm1241, 1, 0
    %v1562 = vsel %vm1242, 1, 0
    %v1563 = vsel %vm1243, 1, 0
    %v1564 = vsel %vm1244, 1, 0
    %v1565 = vsel %vm1245, 1, 0
    %v1566 = vsel %vm1246, 1, 0
    %v1567 = vsel %vm1247, 1, 0
    %v1568 = vsel %vm1248, 1, 0
    %v1569 = vsel %vm1249, 1, 0
    %v1570 = vsel %vm1250, 1, 0
    %v1571 = vsel %vm1251, 1, 0
    %v1572 = vsel %vm1252, 1, 0
    %v1573 = vsel %vm1253, 1, 0
    %v1574 = vsel %vm1254, 1, 0
    %v1575 = vsel %vm1255, 1, 0
    %v1576 = vsel %vm1256, 1, 0
    %v1577 = vsel %vm1257, 1, 0
    %v1578 = vsel %vm1258, 1, 0
    %v1579 = vsel %vm1259, 1, 0
    %v1580 = vsel %vm1260, 1, 0
    %v1581 = vsel %vm1261, 1, 0
    %v1582 = vsel %vm1262, 1, 0
    %v1583 = vsel %vm1263, 1, 0
    %v1584 = vsel %vm1264, 1, 0
    %v1585 = vsel %vm1265, 1, 0
    %v1586 = vsel %vm1266, 1, 0
    %v1587 = vsel %vm1267, 1, 0
    %v1588 = vsel %vm1268, 1, 0
    %v1589 = vsel %vm1269, 1, 0
    %v1590 = vsel %vm1270, 1, 0
    %v1591 = vsel %vm1271, 1, 0
    %v1592 = vsel %vm1272, 1, 0
    %v1593 = vsel %vm1273, 1, 0
    %v1594 = vsel %vm1274, 1, 0
    %v1595 = vsel %vm1275, 1, 0
    %v1596 = vsel %vm1276, 1, 0
    %v1597 = vsel %vm1277, 1, 0
    %v1598 = vsel %vm1278, 1, 0
    %v1599 = vsel %vm1279, 1, 0
    %v1600 = vsel %vm1280, 1, 0
    %v1601 = vsel %vm1281, 1, 0
    %v1602 = vsel %vm1282, 1, 0
    %v1603 = vsel %vm1283, 1, 0
    %v1604 = vsel %vm1284, 1, 0
    %v1605 = vsel %vm1285, 1, 0
    %v1606 = vsel %vm1286, 1, 0
    %v1607 = vsel %vm1287, 1, 0
    %v1608 = vsel %vm1288, 1, 0
    %v1609 = vsel %vm1289, 1, 0
    %v1610 = vsel %vm1290, 1, 0
    %v1611 = vsel %vm1291, 1, 0
    %v1612 = vsel %vm1292, 1, 0
    %v1613 = vsel %vm1293, 1, 0
    %v1614 = vsel %vm1294, 1, 0
    %v1615 = vsel %vm1295, 1, 0
    %v1616 = vsel %vm1296, 1, 0
    %v1617 = vsel %vm1297, 1, 0
    %v1618 = vsel %vm1298, 1, 0
    %v1619 = vsel %vm1299, 1, 0
    %v1620 = vsel %vm1300, 1, 0
    %v1621 = vsel %vm1301, 1, 0
    %v1622 = vsel %vm1302, 1, 0
    %v1623 = vsel %vm1303, 1, 0
    %v1624 = vsel %vm1304, 1, 0
    %v1625 = vsel %vm1305, 1, 0
    %v1626 = vsel %vm1306, 1, 0
    %v1627 = vsel %vm1307, 1, 0
    %v1628 = vsel %vm1308, 1, 0
    %v1629 = vsel %vm1309, 1, 0
    %v1630 = vsel %vm1310, 1, 0
    %v1631 = vsel %vm1311, 1, 0
    %v1632 = vsel %vm1312, 1, 0
    %v1633 = vsel %vm1313, 1, 0
    %v1634 = vsel %vm1314, 1, 0
    %v1635 = vsel %vm1315, 1, 0
    %v1636 = vsel %vm1316, 1, 0
    %v1637 = vsel %vm1317, 1, 0
    %v1638 = vsel %vm1318, 1, 0
    %v1639 = vsel %vm1319, 1, 0
    %v1640 = vsel %vm1320, 1, 0
    %v1641 = vsel %vm1321, 1, 0
    %v1642 = vsel %vm1322, 1, 0
    %v1643 = vsel %vm1323, 1, 0
    %v1644 = vsel %vm1324, 1, 0
    %v1645 = vsel %vm1325, 1, 0
    %v1646 = vsel %vm1326, 1, 0
    %v1647 = vsel %vm1327, 1, 0
    %v1648 = vsel %vm1328, 1, 0
    %v1649 = vsel %vm1329, 1, 0
    %v1650 = vsel %vm1330, 1, 0
    %v1651 = vsel %vm1331, 1, 0
    %v1652 = vsel %vm1332, 1, 0
    %v1653 = vsel %vm1333, 1, 0
    %v1654 = vsel %vm1334, 1, 0
    %v1655 = vsel %vm1335, 1, 0
    %v1656 = vsel %vm1336, 1, 0
    %v1657 = vsel %vm1337, 1, 0
    %v1658 = vsel %vm1338, 1, 0
    %v1659 = vsel %vm1339, 1, 0
    %v1660 = vsel %vm1340, 1, 0
    %v1661 = vsel %vm1341, 1, 0
    %v1662 = vsel %vm1342, 1, 0
    %v1663 = vsel %vm1343, 1, 0
    %v1664 = vsel %vm1344, 1, 0
    %v1665 = vsel %vm1345, 1, 0
    %v1666 = vsel %vm1346, 1, 0
    %v1667 = vsel %vm1347, 1, 0
    %v1668 = vsel %vm1348, 1, 0
    %v1669 = vsel %vm1349, 1, 0
    %v1670 = vsel %vm1350, 1, 0
    %v1671 = vsel %vm1351, 1, 0
    %v1672 = vsel %vm1352, 1, 0
    %v1673 = vsel %vm1353, 1, 0
    %v1674 = vsel %vm1354, 1, 0
    %v1675 = vsel %vm1355, 1, 0
    %v1676 = vsel %vm1356, 1, 0
    %v1677 = vsel %vm1357, 1, 0
    %v1678 = vsel %vm1358, 1, 0
    %v1679 = vsel %vm1359, 1, 0
    %v1680 = vsel %vm1360, 1, 0
    %v1681 = vsel %vm1361, 1, 0
    %v1682 = vsel %vm1362, 1, 0
    %v1683 = vsel %vm1363, 1, 0
    %v1684 = vsel %vm1364, 1, 0
    %v1685 = vsel %vm1365, 1, 0
    %v1686 = vsel %vm1366, 1, 0
    %v1687 = vsel %vm1367, 1, 0
    %v1688 = vsel %vm1368, 1, 0
    %v1689 = vsel %vm1369, 1, 0
    %v1690 = vsel %vm1370, 1, 0
    %v1691 = vsel %vm1371, 1, 0
    %v1692 = vsel %vm1372, 1, 0
    %v1693 = vsel %vm1373, 1, 0
    %v1694 = vsel %vm1374, 1, 0
    %v1695 = vsel %vm1375, 1, 0
    %v1696 = vsel %vm1376, 1, 0
    %v1697 = vsel %vm1377, 1, 0
    %v1698 = vsel %vm1378, 1, 0
    %v1699 = vsel %vm1379, 1, 0
    %v1700 = vsel %vm1380, 1, 0
    %v1701 = vsel %vm1381, 1, 0
    %v1702 = vsel %vm1382, 1, 0
    %v1703 = vsel %vm1383, 1, 0
    %v1704 = vsel %vm1384, 1, 0
    %v1705 = vsel %vm1385, 1, 0
    %v1706 = vsel %vm1386, 1, 0
    %v1707 = vsel %vm1387, 1, 0
    %v1708 = vsel %vm1388, 1, 0
    %v1709 = vsel %vm1389, 1, 0
    %v1710 = vsel %vm1390, 1, 0
    %v1711 = vsel %vm1391, 1, 0
    %v1712 = vsel %vm1392, 1, 0
    %v1713 = vsel %vm1393, 1, 0
    %v1714 = vsel %vm1394, 1, 0
    %v1715 = vsel %vm1395, 1, 0
    %v1716 = vsel %vm1396, 1, 0
    %v1717 = vsel %vm1397, 1, 0
    %v1718 = vsel %vm1398, 1, 0
    %v1719 = vsel %vm1399, 1, 0
    %v1720 = vsel %vm1400, 1, 0
    %v1721 = vsel %vm1401, 1, 0
    %v1722 = vsel %vm1402, 1, 0
    %v1723 = vsel %vm1403, 1, 0
    %v1724 = vsel %vm1404, 1, 0
    %v1725 = vsel %vm1405, 1, 0
    %v1726 = vsel %vm1406, 1, 0
    %v1727 = vsel %vm1407, 1, 0
    %v1728 = vsel %vm1408, 1, 0
    %v1729 = vsel %vm1409, 1, 0
    %v1730 = vsel %vm1410, 1, 0
    %v1731 = vsel %vm1411, 1, 0
    %v1732 = vsel %vm1412, 1, 0
    %v1733 = vsel %vm1413, 1, 0
    %v1734 = vsel %vm1414, 1, 0
    %v1735 = vsel %vm1415, 1, 0
    %v1736 = vsel %vm1416, 1, 0
    %v1737 = vsel %vm1417, 1, 0
    %v1738 = vsel %vm1418, 1, 0
    %v1739 = vsel %vm1419, 1, 0
    %v1740 = vsel %vm1420, 1, 0
    %v1741 = vsel %vm1421, 1, 0
    %v1742 = vsel %vm1422, 1, 0
    %v1743 = vsel %vm1423, 1, 0
    %v1744 = vsel %vm1424, 1, 0
    %v1745 = vsel %vm1425, 1, 0
    %v1746 = vsel %vm1426, 1, 0
    %v1747 = vsel %vm1427, 1, 0
    %v1748 = vsel %vm1428, 1, 0
    %v1749 = vsel %vm1429, 1, 0
    %v1750 = vsel %vm1430, 1, 0
    %v1751 = vsel %vm1431, 1, 0
    %v1752 = vsel %vm1432, 1, 0
    %v1753 = vsel %vm1433, 1, 0
    %v1754 = vsel %vm1434, 1, 0
    %v1755 = vsel %vm1435, 1, 0
    %v1756 = vsel %vm1436, 1, 0
    %v1757 = vsel %vm1437, 1, 0
    %v1758 = vsel %vm1438, 1, 0
    %v1759 = vsel %vm1439, 1, 0
    %v1760 = vsel %vm1440, 1, 0
    %v1761 = vsel %vm1441, 1, 0
    %v1762 = vsel %vm1442, 1, 0
    %v1763 = vsel %vm1443, 1, 0
    %v1764 = vsel %vm1444, 1, 0
    %v1765 = vsel %vm1445, 1, 0
    %v1766 = vsel %vm1446, 1, 0
    %v1767 = vsel %vm1447, 1, 0
    %v1768 = vsel %vm1448, 1, 0
    %v1769 = vsel %vm1449, 1, 0
    %v1770 = vsel %vm1450, 1, 0
    %v1771 = vsel %vm1451, 1, 0
    %v1772 = vsel %vm1452, 1, 0
    %v1773 = vsel %vm1453, 1, 0
    %v1774 = vsel %vm1454, 1, 0
    %v1775 = vsel %vm1455, 1, 0
    %v1776 = vsel %vm1456, 1, 0
    %v1777 = vsel %vm1457, 1, 0
    %v1778 = vsel %vm1458, 1, 0
    %v1779 = vsel %vm1459, 1, 0
    %v1780 = vsel %vm1460, 1, 0
    %v1781 = vsel %vm1461, 1, 0
    %v1782 = vsel %vm1462, 1, 0
    %v1783 = vsel %vm1463, 1, 0
    %v1784 = vsel %vm1464, 1, 0
    %v1785 = vsel %vm1465, 1, 0
    %v1786 = vcvt.s32.f32 %v1466
    %v1787 = vcvt.s32.f32 %v1467
    %v1788 = vcvt.s32.f32 %v1468
    %v1789 = vcvt.s32.f32 %v1469
    %v1790 = vcvt.s32.f32 %v1470
    %v1791 = vcvt.s32.f32 %v1471
    %v1792 = vcvt.s32.f32 %v1472
    %v1793 = vcvt.s32.f32 %v1473
    %v1794 = vcvt.s32.f32 %v1474
    %v1795 = vcvt.s32.f32 %v1475
    %v1796 = vcvt.s32.f32 %v1476
    %v1797 = vcvt.s32.f32 %v1477
    %v1798 = vcvt.s32.f32 %v1478
    %v1799 = vcvt.s32.f32 %v1479
    %v1800 = vcvt.s32.f32 %v1480
    %v1801 = vcvt.s32.f32 %v1481
    %v1802 = vcvt.s32.f32 %v1482
    %v1803 = vcvt.s32.f32 %v1483
    %v1804 = vcvt.s32.f32 %v1484
    %v1805 = vcvt.s32.f32 %v1485
    %v1806 = vcvt.s32.f32 %v1486
    %v1807 = vcvt.s32.f32 %v1487
    %v1808 = vcvt.s32.f32 %v1488
    %v1809 = vcvt.s32.f32 %v1489
    %v1810 = vcvt.s32.f32 %v1490
    %v1811 = vcvt.s32.f32 %v1491
    %v1812 = vcvt.s32.f32 %v1492
    %v1813 = vcvt.s32.f32 %v1493
    %v1814 = vcvt.s32.f32 %v1494
    %v1815 = vcvt.s32.f32 %v1495
    %v1816 = vcvt.s32.f32 %v1496
    %v1817 = vcvt.s32.f32 %v1497
    %v1818 = vcvt.s32.f32 %v1498
    %v1819 = vcvt.s32.f32 %v1499
    %v1820 = vcvt.s32.f32 %v1500
    %v1821 = vcvt.s32.f32 %v1501
    %v1822 = vcvt.s32.f32 %v1502
    %v1823 = vcvt.s32.f32 %v1503
    %v1824 = vcvt.s32.f32 %v1504
    %v1825 = vcvt.s32.f32 %v1505
    %v1826 = vcvt.s32.f32 %v1506
    %v1827 = vcvt.s32.f32 %v1507
    %v1828 = vcvt.s32.f32 %v1508
    %v1829 = vcvt.s32.f32 %v1509
    %v1830 = vcvt.s32.f32 %v1510
    %v1831 = vcvt.s32.f32 %v1511
    %v1832 = vcvt.s32.f32 %v1512
    %v1833 = vcvt.s32.f32 %v1513
    %v1834 = vcvt.s32.f32 %v1514
    %v1835 = vcvt.s32.f32 %v1515
    %v1836 = vcvt.s32.f32 %v1516
    %v1837 = vcvt.s32.f32 %v1517
    %v1838 = vcvt.s32.f32 %v1518
    %v1839 = vcvt.s32.f32 %v1519
    %v1840 = vcvt.s32.f32 %v1520
    %v1841 = vcvt.s32.f32 %v1521
    %v1842 = vcvt.s32.f32 %v1522
    %v1843 = vcvt.s32.f32 %v1523
    %v1844 = vcvt.s32.f32 %v1524
    %v1845 = vcvt.s32.f32 %v1525
    %v1846 = vcvt.s32.f32 %v1526
    %v1847 = vcvt.s32.f32 %v1527
    %v1848 = vcvt.s32.f32 %v1528
    %v1849 = vcvt.s32.f32 %v1529
    %v1850 = vcvt.s32.f32 %v1530
    %v1851 = vcvt.s32.f32 %v1531
    %v1852 = vcvt.s32.f32 %v1532
    %v1853 = vcvt.s32.f32 %v1533
    %v1854 = vcvt.s32.f32 %v1534
    %v1855 = vcvt.s32.f32 %v1535
    %v1856 = vcvt.s32.f32 %v1536
    %v1857 = vcvt.s32.f32 %v1537
    %v1858 = vcvt.s32.f32 %v1538
    %v1859 = vcvt.s32.f32 %v1539
    %v1860 = vcvt.s32.f32 %v1540
    %v1861 = vcvt.s32.f32 %v1541
    %v1862 = vcvt.s32.f32 %v1542
    %v1863 = vcvt.s32.f32 %v1543
    %v1864 = vcvt.s32.f32 %v1544
    %v1865 = vcvt.s32.f32 %v1545
    %v1866 = vcvt.s32.f32 %v1546
    %v1867 = vcvt.s32.f32 %v1547
    %v1868 = vcvt.s32.f32 %v1548
    %v1869 = vcvt.s32.f32 %v1549
    %v1870 = vcvt.s32.f32 %v1550
    %v1871 = vcvt.s32.f32 %v1551
    %v1872 = vcvt.s32.f32 %v1552
    %v1873 = vcvt.s32.f32 %v1553
    %v1874 = vcvt.s32.f32 %v1554
    %v1875 = vcvt.s32.f32 %v1555
    %v1876 = vcvt.s32.f32 %v1556
    %v1877 = vcvt.s32.f32 %v1557
    %v1878 = vcvt.s32.f32 %v1558
    %v1879 = vcvt.s32.f32 %v1559
    %v1880 = vcvt.s32.f32 %v1560
    %v1881 = vcvt.s32.f32 %v1561
    %v1882 = vcvt.s32.f32 %v1562
    %v1883 = vcvt.s32.f32 %v1563
    %v1884 = vcvt.s32.f32 %v1564
    %v1885 = vcvt.s32.f32 %v1565
    %v1886 = vcvt.s32.f32 %v1566
    %v1887 = vcvt.s32.f32 %v1567
    %v1888 = vcvt.s32.f32 %v1568
    %v1889 = vcvt.s32.f32 %v1569
    %v1890 = vcvt.s32.f32 %v1570
    %v1891 = vcvt.s32.f32 %v1571
    %v1892 = vcvt.s32.f32 %v1572
    %v1893 = vcvt.s32.f32 %v1573
    %v1894 = vcvt.s32.f32 %v1574
    %v1895 = vcvt.s32.f32 %v1575
    %v1896 = vcvt.s32.f32 %v1576
    %v1897 = vcvt.s32.f32 %v1577
    %v1898 = vcvt.s32.f32 %v1578
    %v1899 = vcvt.s32.f32 %v1579
    %v1900 = vcvt.s32.f32 %v1580
    %v1901 = vcvt.s32.f32 %v1581
    %v1902 = vcvt.s32.f32 %v1582
    %v1903 = vcvt.s32.f32 %v1583
    %v1904 = vcvt.s32.f32 %v1584
    %v1905 = vcvt.s32.f32 %v1585
    %v1906 = vcvt.s32.f32 %v1586
    %v1907 = vcvt.s32.f32 %v1587
    %v1908 = vcvt.s32.f32 %v1588
    %v1909 = vcvt.s32.f32 %v1589
    %v1910 = vcvt.s32.f32 %v1590
    %v1911 = vcvt.s32.f32 %v1591
    %v1912 = vcvt.s32.f32 %v1592
    %v1913 = vcvt.s32.f32 %v1593
    %v1914 = vcvt.s32.f32 %v1594
    %v1915 = vcvt.s32.f32 %v1595
    %v1916 = vcvt.s32.f32 %v1596
    %v1917 = vcvt.s32.f32 %v1597
    %v1918 = vcvt.s32.f32 %v1598
    %v1919 = vcvt.s32.f32 %v1599
    %v1920 = vcvt.s32.f32 %v1600
    %v1921 = vcvt.s32.f32 %v1601
    %v1922 = vcvt.s32.f32 %v1602
    %v1923 = vcvt.s32.f32 %v1603
    %v1924 = vcvt.s32.f32 %v1604
    %v1925 = vcvt.s32.f32 %v1605
    %v1926 = vcvt.s32.f32 %v1606
    %v1927 = vcvt.s32.f32 %v1607
    %v1928 = vcvt.s32.f32 %v1608
    %v1929 = vcvt.s32.f32 %v1609
    %v1930 = vcvt.s32.f32 %v1610
    %v1931 = vcvt.s32.f32 %v1611
    %v1932 = vcvt.s32.f32 %v1612
    %v1933 = vcvt.s32.f32 %v1613
    %v1934 = vcvt.s32.f32 %v1614
    %v1935 = vcvt.s32.f32 %v1615
    %v1936 = vcvt.s32.f32 %v1616
    %v1937 = vcvt.s32.f32 %v1617
    %v1938 = vcvt.s32.f32 %v1618
    %v1939 = vcvt.s32.f32 %v1619
    %v1940 = vcvt.s32.f32 %v1620
    %v1941 = vcvt.s32.f32 %v1621
    %v1942 = vcvt.s32.f32 %v1622
    %v1943 = vcvt.s32.f32 %v1623
    %v1944 = vcvt.s32.f32 %v1624
    %v1945 = vcvt.s32.f32 %v1625
    %v1946 = vcvt.s32.f32 %v1626
    %v1947 = vcvt.s32.f32 %v1627
    %v1948 = vcvt.s32.f32 %v1628
    %v1949 = vcvt.s32.f32 %v1629
    %v1950 = vcvt.s32.f32 %v1630
    %v1951 = vcvt.s32.f32 %v1631
    %v1952 = vcvt.s32.f32 %v1632
    %v1953 = vcvt.s32.f32 %v1633
    %v1954 = vcvt.s32.f32 %v1634
    %v1955 = vcvt.s32.f32 %v1635
    %v1956 = vcvt.s32.f32 %v1636
    %v1957 = vcvt.s32.f32 %v1637
    %v1958 = vcvt.s32.f32 %v1638
    %v1959 = vcvt.s32.f32 %v1639
    %v1960 = vcvt.s32.f32 %v1640
    %v1961 = vcvt.s32.f32 %v1641
    %v1962 = vcvt.s32.f32 %v1642
    %v1963 = vcvt.s32.f32 %v1643
    %v1964 = vcvt.s32.f32 %v1644
    %v1965 = vcvt.s32.f32 %v1645
    %v1966 = vcvt.s32.f32 %v1646
    %v1967 = vcvt.s32.f32 %v1647
    %v1968 = vcvt.s32.f32 %v1648
    %v1969 = vcvt.s32.f32 %v1649
    %v1970 = vcvt.s32.f32 %v1650
    %v1971 = vcvt.s32.f32 %v1651
    %v1972 = vcvt.s32.f32 %v1652
    %v1973 = vcvt.s32.f32 %v1653
    %v1974 = vcvt.s32.f32 %v1654
    %v1975 = vcvt.s32.f32 %v1655
    %v1976 = vcvt.s32.f32 %v1656
    %v1977 = vcvt.s32.f32 %v1657
    %v1978 = vcvt.s32.f32 %v1658
    %v1979 = vcvt.s32.f32 %v1659
    %v1980 = vcvt.s32.f32 %v1660
    %v1981 = vcvt.s32.f32 %v1661
    %v1982 = vcvt.s32.f32 %v1662
    %v1983 = vcvt.s32.f32 %v1663
    %v1984 = vcvt.s32.f32 %v1664
    %v1985 = vcvt.s32.f32 %v1665
    %v1986 = vcvt.s32.f32 %v1666
    %v1987 = vcvt.s32.f32 %v1667
    %v1988 = vcvt.s32.f32 %v1668
    %v1989 = vcvt.s32.f32 %v1669
    %v1990 = vcvt.s32.f32 %v1670
    %v1991 = vcvt.s32.f32 %v1671
    %v1992 = vcvt.s32.f32 %v1672
    %v1993 = vcvt.s32.f32 %v1673
    %v1994 = vcvt.s32.f32 %v1674
    %v1995 = vcvt.s32.f32 %v1675
    %v1996 = vcvt.s32.f32 %v1676
    %v1997 = vcvt.s32.f32 %v1677
    %v1998 = vcvt.s32.f32 %v1678
    %v1999 = vcvt.s32.f32 %v1679
    %v2000 = vcvt.s32.f32 %v1680
    %v2001 = vcvt.s32.f32 %v1681
    %v2002 = vcvt.s32.f32 %v1682
    %v2003 = vcvt.s32.f32 %v1683
    %v2004 = vcvt.s32.f32 %v1684
    %v2005 = vcvt.s32.f32 %v1685
    %v2006 = vcvt.s32.f32 %v1686
    %v2007 = vcvt.s32.f32 %v1687
    %v2008 = vcvt.s32.f32 %v1688
    %v2009 = vcvt.s32.f32 %v1689
    %v2010 = vcvt.s32.f32 %v1690
    %v2011 = vcvt.s32.f32 %v1691
    %v2012 = vcvt.s32.f32 %v1692
    %v2013 = vcvt.s32.f32 %v1693
    %v2014 = vcvt.s32.f32 %v1694
    %v2015 = vcvt.s32.f32 %v1695
    %v2016 = vcvt.s32.f32 %v1696
    %v2017 = vcvt.s32.f32 %v1697
    %v2018 = vcvt.s32.f32 %v1698
    %v2019 = vcvt.s32.f32 %v1699
    %v2020 = vcvt.s32.f32 %v1700
    %v2021 = vcvt.s32.f32 %v1701
    %v2022 = vcvt.s32.f32 %v1702
    %v2023 = vcvt.s32.f32 %v1703
    %v2024 = vcvt.s32.f32 %v1704
    %v2025 = vcvt.s32.f32 %v1705
    %v2026 = vcvt.s32.f32 %v1706
    %v2027 = vcvt.s32.f32 %v1707
    %v2028 = vcvt.s32.f32 %v1708
    %v2029 = vcvt.s32.f32 %v1709
    %v2030 = vcvt.s32.f32 %v1710
    %v2031 = vcvt.s32.f32 %v1711
    %v2032 = vcvt.s32.f32 %v1712
    %v2033 = vcvt.s32.f32 %v1713
    %v2034 = vcvt.s32.f32 %v1714
    %v2035 = vcvt.s32.f32 %v1715
    %v2036 = vcvt.s32.f32 %v1716
    %v2037 = vcvt.s32.f32 %v1717
    %v2038 = vcvt.s32.f32 %v1718
    %v2039 = vcvt.s32.f32 %v1719
    %v2040 = vcvt.s32.f32 %v1720
    %v2041 = vcvt.s32.f32 %v1721
    %v2042 = vcvt.s32.f32 %v1722
    %v2043 = vcvt.s32.f32 %v1723
    %v2044 = vcvt.s32.f32 %v1724
    %v2045 = vcvt.s32.f32 %v1725
    %v2046 = vcvt.s32.f32 %v1726
    %v2047 = vcvt.s32.f32 %v1727
    %v2048 = vcvt.s32.f32 %v1728
    %v2049 = vcvt.s32.f32 %v1729
    %v2050 = vcvt.s32.f32 %v1730
    %v2051 = vcvt.s32.f32 %v1731
    %v2052 = vcvt.s32.f32 %v1732
    %v2053 = vcvt.s32.f32 %v1733
    %v2054 = vcvt.s32.f32 %v1734
    %v2055 = vcvt.s32.f32 %v1735
    %v2056 = vcvt.s32.f32 %v1736
    %v2057 = vcvt.s32.f32 %v1737
    %v2058 = vcvt.s32.f32 %v1738
    %v2059 = vcvt.s32.f32 %v1739
    %v2060 = vcvt.s32.f32 %v1740
    %v2061 = vcvt.s32.f32 %v1741
    %v2062 = vcvt.s32.f32 %v1742
    %v2063 = vcvt.s32.f32 %v1743
    %v2064 = vcvt.s32.f32 %v1744
    %v2065 = vcvt.s32.f32 %v1745
    %v2066 = vcvt.s32.f32 %v1746
    %v2067 = vcvt.s32.f32 %v1747
    %v2068 = vcvt.s32.f32 %v1748
    %v2069 = vcvt.s32.f32 %v1749
    %v2070 = vcvt.s32.f32 %v1750
    %v2071 = vcvt.s32.f32 %v1751
    %v2072 = vcvt.s32.f32 %v1752
    %v2073 = vcvt.s32.f32 %v1753
    %v2074 = vcvt.s32.f32 %v1754
    %v2075 = vcvt.s32.f32 %v1755
    %v2076 = vcvt.s32.f32 %v1756
    %v2077 = vcvt.s32.f32 %v1757
    %v2078 = vcvt.s32.f32 %v1758
    %v2079 = vcvt.s32.f32 %v1759
    %v2080 = vcvt.s32.f32 %v1760
    %v2081 = vcvt.s32.f32 %v1761
    %v2082 = vcvt.s32.f32 %v1762
    %v2083 = vcvt.s32.f32 %v1763
    %v2084 = vcvt.s32.f32 %v1764
    %v2085 = vcvt.s32.f32 %v1765
    %v2086 = vcvt.s32.f32 %v1766
    %v2087 = vcvt.s32.f32 %v1767
    %v2088 = vcvt.s32.f32 %v1768
    %v2089 = vcvt.s32.f32 %v1769
    %v2090 = vcvt.s32.f32 %v1770
    %v2091 = vcvt.s32.f32 %v1771
    %v2092 = vcvt.s32.f32 %v1772
    %v2093 = vcvt.s32.f32 %v1773
    %v2094 = vcvt.s32.f32 %v1774
    %v2095 = vcvt.s32.f32 %v1775
    %v2096 = vcvt.s32.f32 %v1776
    %v2097 = vcvt.s32.f32 %v1777
    %v2098 = vcvt.s32.f32 %v1778
    %v2099 = vcvt.s32.f32 %v1779
    %v2100 = vcvt.s32.f32 %v1780
    %v2101 = vcvt.s32.f32 %v1781
    %v2102 = vcvt.s32.f32 %v1782
    %v2103 = vcvt.s32.f32 %v1783
    %v2104 = vcvt.s32.f32 %v1784
    %v2105 = vcvt.s32.f32 %v1785
    %2106 = vxpose.xlu0.b32.start [1/16] %v15, 128
    %2107 = vxpose.xlu0.b32.cont [2/16] %v16, 128
    %2108 = vxpose.xlu0.b32.cont [3/16] %v17, 128
    %2109 = vxpose.xlu0.b32.cont [4/16] %v18, 128
    %2110 = vxpose.xlu0.b32.cont [5/16] %v19, 128
    %2111 = vxpose.xlu0.b32.cont [6/16] %v20, 128
    %2112 = vxpose.xlu0.b32.cont [7/16] %v21, 128
    %2113 = vxpose.xlu0.b32.cont [8/16] %v22, 128
    %2114 = vxpose.xlu0.b32.cont [9/16] %v23, 128
    %2115 = vxpose.xlu0.b32.cont [10/16] %v24, 128
    %2116 = vxpose.xlu0.b32.cont [11/16] %v25, 128
    %2117 = vxpose.xlu0.b32.cont [12/16] %v26, 128
    %2118 = vxpose.xlu0.b32.cont [13/16] %v27, 128
    %2119 = vxpose.xlu0.b32.cont [14/16] %v28, 128
    %2120 = vxpose.xlu0.b32.cont [15/16] %v29, 128
    %2121 = vxpose.xlu0.b32.end [16/16] %v30, 128
    %v2122 = vpop.trf.xlu0
    %v2123 = vpop.trf.xlu0
    %v2124 = vpop.trf.xlu0
    %v2125 = vpop.trf.xlu0
    %v2126 = vpop.trf.xlu0
    %v2127 = vpop.trf.xlu0
    %v2128 = vpop.trf.xlu0
    %v2129 = vpop.trf.xlu0
    %v2130 = vpop.trf.xlu0
    %v2131 = vpop.trf.xlu0
    %v2132 = vpop.trf.xlu0
    %v2133 = vpop.trf.xlu0
    %v2134 = vpop.trf.xlu0
    %v2135 = vpop.trf.xlu0
    %v2136 = vpop.trf.xlu0
    %v2137 = vpop.trf.xlu0
    %2138 = vxpose.xlu0.b32.start [1/16] %v31, 128
    %2139 = vxpose.xlu0.b32.cont [2/16] %v32, 128
    %2140 = vxpose.xlu0.b32.cont [3/16] %v33, 128
    %2141 = vxpose.xlu0.b32.cont [4/16] %v34, 128
    %2142 = vxpose.xlu0.b32.cont [5/16] %v35, 128
    %2143 = vxpose.xlu0.b32.cont [6/16] %v36, 128
    %2144 = vxpose.xlu0.b32.cont [7/16] %v37, 128
    %2145 = vxpose.xlu0.b32.cont [8/16] %v38, 128
    %2146 = vxpose.xlu0.b32.cont [9/16] %v39, 128
    %2147 = vxpose.xlu0.b32.cont [10/16] %v40, 128
    %2148 = vxpose.xlu0.b32.cont [11/16] %v41, 128
    %2149 = vxpose.xlu0.b32.cont [12/16] %v42, 128
    %2150 = vxpose.xlu0.b32.cont [13/16] %v43, 128
    %2151 = vxpose.xlu0.b32.cont [14/16] %v44, 128
    %2152 = vxpose.xlu0.b32.cont [15/16] %v45, 128
    %2153 = vxpose.xlu0.b32.end [16/16] %v46, 128
    %v2154 = vpop.trf.xlu0
    %v2155 = vpop.trf.xlu0
    %v2156 = vpop.trf.xlu0
    %v2157 = vpop.trf.xlu0
    %v2158 = vpop.trf.xlu0
    %v2159 = vpop.trf.xlu0
    %v2160 = vpop.trf.xlu0
    %v2161 = vpop.trf.xlu0
    %v2162 = vpop.trf.xlu0
    %v2163 = vpop.trf.xlu0
    %v2164 = vpop.trf.xlu0
    %v2165 = vpop.trf.xlu0
    %v2166 = vpop.trf.xlu0
    %v2167 = vpop.trf.xlu0
    %v2168 = vpop.trf.xlu0
    %v2169 = vpop.trf.xlu0
    %2170 = vxpose.xlu0.b32.start [1/16] %v47, 128
    %2171 = vxpose.xlu0.b32.cont [2/16] %v48, 128
    %2172 = vxpose.xlu0.b32.cont [3/16] %v49, 128
    %2173 = vxpose.xlu0.b32.cont [4/16] %v50, 128
    %2174 = vxpose.xlu0.b32.cont [5/16] %v51, 128
    %2175 = vxpose.xlu0.b32.cont [6/16] %v52, 128
    %2176 = vxpose.xlu0.b32.cont [7/16] %v53, 128
    %2177 = vxpose.xlu0.b32.cont [8/16] %v54, 128
    %2178 = vxpose.xlu0.b32.cont [9/16] %v55, 128
    %2179 = vxpose.xlu0.b32.cont [10/16] %v56, 128
    %2180 = vxpose.xlu0.b32.cont [11/16] %v57, 128
    %2181 = vxpose.xlu0.b32.cont [12/16] %v58, 128
    %2182 = vxpose.xlu0.b32.cont [13/16] %v59, 128
    %2183 = vxpose.xlu0.b32.cont [14/16] %v60, 128
    %2184 = vxpose.xlu0.b32.cont [15/16] %v61, 128
    %2185 = vxpose.xlu0.b32.end [16/16] %v62, 128
    %v2186 = vpop.trf.xlu0
    %v2187 = vpop.trf.xlu0
    %v2188 = vpop.trf.xlu0
    %v2189 = vpop.trf.xlu0
    %v2190 = vpop.trf.xlu0
    %v2191 = vpop.trf.xlu0
    %v2192 = vpop.trf.xlu0
    %v2193 = vpop.trf.xlu0
    %v2194 = vpop.trf.xlu0
    %v2195 = vpop.trf.xlu0
    %v2196 = vpop.trf.xlu0
    %v2197 = vpop.trf.xlu0
    %v2198 = vpop.trf.xlu0
    %v2199 = vpop.trf.xlu0
    %v2200 = vpop.trf.xlu0
    %v2201 = vpop.trf.xlu0
    %2202 = vxpose.xlu0.b32.start [1/16] %v63, 128
    %2203 = vxpose.xlu0.b32.cont [2/16] %v64, 128
    %2204 = vxpose.xlu0.b32.cont [3/16] %v65, 128
    %2205 = vxpose.xlu0.b32.cont [4/16] %v66, 128
    %2206 = vxpose.xlu0.b32.cont [5/16] %v67, 128
    %2207 = vxpose.xlu0.b32.cont [6/16] %v68, 128
    %2208 = vxpose.xlu0.b32.cont [7/16] %v69, 128
    %2209 = vxpose.xlu0.b32.cont [8/16] %v70, 128
    %2210 = vxpose.xlu0.b32.cont [9/16] %v71, 128
    %2211 = vxpose.xlu0.b32.cont [10/16] %v72, 128
    %2212 = vxpose.xlu0.b32.cont [11/16] %v73, 128
    %2213 = vxpose.xlu0.b32.cont [12/16] %v74, 128
    %2214 = vxpose.xlu0.b32.cont [13/16] %v75, 128
    %2215 = vxpose.xlu0.b32.cont [14/16] %v76, 128
    %2216 = vxpose.xlu0.b32.cont [15/16] %v77, 128
    %2217 = vxpose.xlu0.b32.end [16/16] %v78, 128
    %v2218 = vpop.trf.xlu0
    %v2219 = vpop.trf.xlu0
    %v2220 = vpop.trf.xlu0
    %v2221 = vpop.trf.xlu0
    %v2222 = vpop.trf.xlu0
    %v2223 = vpop.trf.xlu0
    %v2224 = vpop.trf.xlu0
    %v2225 = vpop.trf.xlu0
    %v2226 = vpop.trf.xlu0
    %v2227 = vpop.trf.xlu0
    %v2228 = vpop.trf.xlu0
    %v2229 = vpop.trf.xlu0
    %v2230 = vpop.trf.xlu0
    %v2231 = vpop.trf.xlu0
    %v2232 = vpop.trf.xlu0
    %v2233 = vpop.trf.xlu0
    %2234 = vmatprep.subr.mxu0 %v806
    %2235 = vmatpush1.msra.mxu0 %v805
    %2236 = vmatprep.subr.mxu0 %v811
    %2237 = vmatpush1.msra.mxu0 %v810
    %2238 = vmatprep.subr.mxu0 %v816
    %2239 = vmatpush1.msra.mxu0 %v815
    %2240 = vmatprep.subr.mxu0 %v821
    %2241 = vmatpush1.msra.mxu0 %v820
    %2242 = vmatprep.subr.mxu0 %v826
    %2243 = vmatpush1.msra.mxu0 %v825
    %2244 = vmatprep.subr.mxu0 %v831
    %2245 = vmatpush1.msra.mxu0 %v830
    %2246 = vmatprep.subr.mxu0 %v836
    %2247 = vmatpush1.msra.mxu0 %v835
    %2248 = vmatprep.subr.mxu0 %v841
    %2249 = vmatpush1.msra.mxu0 %v840
    %2250 = vmatprep.subr.mxu0 %v846
    %2251 = vmatpush1.msra.mxu0 %v845
    %2252 = vmatprep.subr.mxu0 %v851
    %2253 = vmatpush1.msra.mxu0 %v850
    %2254 = vmatprep.subr.mxu0 %v856
    %2255 = vmatpush1.msra.mxu0 %v855
    %2256 = vmatprep.subr.mxu0 %v861
    %2257 = vmatpush1.msra.mxu0 %v860
    %2258 = vmatprep.subr.mxu0 %v866
    %2259 = vmatpush1.msra.mxu0 %v865
    %2260 = vmatprep.subr.mxu0 %v871
    %2261 = vmatpush1.msra.mxu0 %v870
    %2262 = vmatprep.subr.mxu0 %v876
    %2263 = vmatpush1.msra.mxu0 %v875
    %2264 = vmatprep.subr.mxu0 %v881
    %2265 = vmatpush1.msra.mxu0 %v880
    %2266 = vmatprep.subr.mxu0 %v886
    %2267 = vmatpush1.msra.mxu0 %v885
    %2268 = vmatprep.subr.mxu0 %v891
    %2269 = vmatpush1.msra.mxu0 %v890
    %2270 = vmatprep.subr.mxu0 %v896
    %2271 = vmatpush1.msra.mxu0 %v895
    %2272 = vmatprep.subr.mxu0 %v901
    %2273 = vmatpush1.msra.mxu0 %v900
    %2274 = vmatprep.subr.mxu0 %v906
    %2275 = vmatpush1.msra.mxu0 %v905
    %2276 = vmatprep.subr.mxu0 %v911
    %2277 = vmatpush1.msra.mxu0 %v910
    %2278 = vmatprep.subr.mxu0 %v916
    %2279 = vmatpush1.msra.mxu0 %v915
    %2280 = vmatprep.subr.mxu0 %v921
    %2281 = vmatpush1.msra.mxu0 %v920
    %2282 = vmatprep.subr.mxu0 %v926
    %2283 = vmatpush1.msra.mxu0 %v925
    %2284 = vmatprep.subr.mxu0 %v931
    %2285 = vmatpush1.msra.mxu0 %v930
    %2286 = vmatprep.subr.mxu0 %v936
    %2287 = vmatpush1.msra.mxu0 %v935
    %2288 = vmatprep.subr.mxu0 %v941
    %2289 = vmatpush1.msra.mxu0 %v940
    %2290 = vmatprep.subr.mxu0 %v946
    %2291 = vmatpush1.msra.mxu0 %v945
    %2292 = vmatprep.subr.mxu0 %v951
    %2293 = vmatpush1.msra.mxu0 %v950
    %2294 = vmatprep.subr.mxu0 %v956
    %2295 = vmatpush1.msra.mxu0 %v955
    %2296 = vmatprep.subr.mxu0 %v961
    %2297 = vmatpush1.msra.mxu0 %v960
    %2298 = vmatprep.mubr.f32.mxu0 %v2154
    %2299 = vmatmul.mubr.f32.gmra.mrb[0].mxu0 %v2122
    %v2300 = vpop.f32.mrb[0].mxu0
    %v2301 = vadd.f32 0.0, %v2300
    %v2302 = vpop.f32.mrb[0].mxu0
    %v2303 = vadd.f32 0.0, %v2302
    %2304 = vmatprep.mubr.f32.mxu0 %v2155
    %2305 = vmatmul.mubr.f32.gmra.mrb[0].mxu0 %v2123
    %v2306 = vpop.f32.mrb[0].mxu0
    %v2307 = vadd.f32 0.0, %v2306
    %v2308 = vpop.f32.mrb[0].mxu0
    %v2309 = vadd.f32 0.0, %v2308
    %2310 = vmatprep.mubr.f32.mxu0 %v2156
    %2311 = vmatmul.mubr.f32.gmra.mrb[0].mxu0 %v2124
    %v2312 = vpop.f32.mrb[0].mxu0
    %v2313 = vadd.f32 0.0, %v2312
    %v2314 = vpop.f32.mrb[0].mxu0
    %v2315 = vadd.f32 0.0, %v2314
    %2316 = vmatprep.mubr.f32.mxu0 %v2157
    %2317 = vmatmul.mubr.f32.gmra.mrb[0].mxu0 %v2125
    %v2318 = vpop.f32.mrb[0].mxu0
    %v2319 = vadd.f32 0.0, %v2318
    %v2320 = vpop.f32.mrb[0].mxu0
    %v2321 = vadd.f32 0.0, %v2320
    %2322 = vmatprep.mubr.f32.mxu0 %v2158
    %2323 = vmatmul.mubr.f32.gmra.mrb[0].mxu0 %v2126
    %v2324 = vpop.f32.mrb[0].mxu0
    %v2325 = vadd.f32 0.0, %v2324
    %v2326 = vpop.f32.mrb[0].mxu0
    %v2327 = vadd.f32 0.0, %v2326
    %2328 = vmatprep.mubr.f32.mxu0 %v2159
    %2329 = vmatmul.mubr.f32.gmra.mrb[0].mxu0 %v2127
    %v2330 = vpop.f32.mrb[0].mxu0
    %v2331 = vadd.f32 0.0, %v2330
    %v2332 = vpop.f32.mrb[0].mxu0
    %v2333 = vadd.f32 0.0, %v2332
    %2334 = vmatprep.mubr.f32.mxu0 %v2160
    %2335 = vmatmul.mubr.f32.gmra.mrb[0].mxu0 %v2128
    %v2336 = vpop.f32.mrb[0].mxu0
    %v2337 = vadd.f32 0.0, %v2336
    %v2338 = vpop.f32.mrb[0].mxu0
    %v2339 = vadd.f32 0.0, %v2338
    %2340 = vmatprep.mubr.f32.mxu0 %v2161
    %2341 = vmatmul.mubr.f32.gmra.mrb[0].mxu0 %v2129
    %v2342 = vpop.f32.mrb[0].mxu0
    %v2343 = vadd.f32 0.0, %v2342
    %v2344 = vpop.f32.mrb[0].mxu0
    %v2345 = vadd.f32 0.0, %v2344
    %2346 = vmatprep.mubr.f32.mxu0 %v2162
    %2347 = vmatmul.mubr.f32.gmra.mrb[0].mxu0 %v2130
    %v2348 = vpop.f32.mrb[0].mxu0
    %v2349 = vadd.f32 0.0, %v2348
    %v2350 = vpop.f32.mrb[0].mxu0
    %v2351 = vadd.f32 0.0, %v2350
    %2352 = vmatprep.mubr.f32.mxu0 %v2163
    %2353 = vmatmul.mubr.f32.gmra.mrb[0].mxu0 %v2131
    %v2354 = vpop.f32.mrb[0].mxu0
    %v2355 = vadd.f32 0.0, %v2354
    %v2356 = vpop.f32.mrb[0].mxu0
    %v2357 = vadd.f32 0.0, %v2356
    %2358 = vmatprep.mubr.f32.mxu0 %v2164
    %2359 = vmatmul.mubr.f32.gmra.mrb[0].mxu0 %v2132
    %v2360 = vpop.f32.mrb[0].mxu0
    %v2361 = vadd.f32 0.0, %v2360
    %v2362 = vpop.f32.mrb[0].mxu0
    %v2363 = vadd.f32 0.0, %v2362
    %2364 = vmatprep.mubr.f32.mxu0 %v2165
    %2365 = vmatmul.mubr.f32.gmra.mrb[0].mxu0 %v2133
    %v2366 = vpop.f32.mrb[0].mxu0
    %v2367 = vadd.f32 0.0, %v2366
    %v2368 = vpop.f32.mrb[0].mxu0
    %v2369 = vadd.f32 0.0, %v2368
    %2370 = vmatprep.mubr.f32.mxu0 %v2166
    %2371 = vmatmul.mubr.f32.gmra.mrb[0].mxu0 %v2134
    %v2372 = vpop.f32.mrb[0].mxu0
    %v2373 = vadd.f32 0.0, %v2372
    %v2374 = vpop.f32.mrb[0].mxu0
    %v2375 = vadd.f32 0.0, %v2374
    %2376 = vmatprep.mubr.f32.mxu0 %v2167
    %2377 = vmatmul.mubr.f32.gmra.mrb[0].mxu0 %v2135
    %v2378 = vpop.f32.mrb[0].mxu0
    %v2379 = vadd.f32 0.0, %v2378
    %v2380 = vpop.f32.mrb[0].mxu0
    %v2381 = vadd.f32 0.0, %v2380
    %2382 = vmatprep.mubr.f32.mxu0 %v2168
    %2383 = vmatmul.mubr.f32.gmra.mrb[0].mxu0 %v2136
    %v2384 = vpop.f32.mrb[0].mxu0
    %v2385 = vadd.f32 0.0, %v2384
    %v2386 = vpop.f32.mrb[0].mxu0
    %v2387 = vadd.f32 0.0, %v2386
    %2388 = vmatprep.mubr.f32.mxu0 %v2169
    %2389 = vmatmul.mubr.f32.gmra.mrb[0].mxu0 %v2137
    %v2390 = vpop.f32.mrb[0].mxu0
    %v2391 = vadd.f32 0.0, %v2390
    %v2392 = vpop.f32.mrb[0].mxu0
    %v2393 = vadd.f32 0.0, %v2392
    %2394 = vdwg.mxu0
    %2395 = vmatprep.subr.mxu0 %v966
    %2396 = vmatpush1.msra.mxu0 %v965
    %2397 = vmatprep.subr.mxu0 %v971
    %2398 = vmatpush1.msra.mxu0 %v970
    %2399 = vmatprep.subr.mxu0 %v976
    %2400 = vmatpush1.msra.mxu0 %v975
    %2401 = vmatprep.subr.mxu0 %v981
    %2402 = vmatpush1.msra.mxu0 %v980
    %2403 = vmatprep.subr.mxu0 %v986
    %2404 = vmatpush1.msra.mxu0 %v985
    %2405 = vmatprep.subr.mxu0 %v991
    %2406 = vmatpush1.msra.mxu0 %v990
    %2407 = vmatprep.subr.mxu0 %v996
    %2408 = vmatpush1.msra.mxu0 %v995
    %2409 = vmatprep.subr.mxu0 %v1001
    %2410 = vmatpush1.msra.mxu0 %v1000
    %2411 = vmatprep.subr.mxu0 %v1006
    %2412 = vmatpush1.msra.mxu0 %v1005
    %2413 = vmatprep.subr.mxu0 %v1011
    %2414 = vmatpush1.msra.mxu0 %v1010
    %2415 = vmatprep.subr.mxu0 %v1016
    %2416 = vmatpush1.msra.mxu0 %v1015
    %2417 = vmatprep.subr.mxu0 %v1021
    %2418 = vmatpush1.msra.mxu0 %v1020
    %2419 = vmatprep.subr.mxu0 %v1026
    %2420 = vmatpush1.msra.mxu0 %v1025
    %2421 = vmatprep.subr.mxu0 %v1031
    %2422 = vmatpush1.msra.mxu0 %v1030
    %2423 = vmatprep.subr.mxu0 %v1036
    %2424 = vmatpush1.msra.mxu0 %v1035
    %2425 = vmatprep.subr.mxu0 %v1041
    %2426 = vmatpush1.msra.mxu0 %v1040
    %2427 = vmatprep.subr.mxu0 %v1046
    %2428 = vmatpush1.msra.mxu0 %v1045
    %2429 = vmatprep.subr.mxu0 %v1051
    %2430 = vmatpush1.msra.mxu0 %v1050
    %2431 = vmatprep.subr.mxu0 %v1056
    %2432 = vmatpush1.msra.mxu0 %v1055
    %2433 = vmatprep.subr.mxu0 %v1061
    %2434 = vmatpush1.msra.mxu0 %v1060
    %2435 = vmatprep.subr.mxu0 %v1066
    %2436 = vmatpush1.msra.mxu0 %v1065
    %2437 = vmatprep.subr.mxu0 %v1071
    %2438 = vmatpush1.msra.mxu0 %v1070
    %2439 = vmatprep.subr.mxu0 %v1076
    %2440 = vmatpush1.msra.mxu0 %v1075
    %2441 = vmatprep.subr.mxu0 %v1081
    %2442 = vmatpush1.msra.mxu0 %v1080
    %2443 = vmatprep.subr.mxu0 %v1086
    %2444 = vmatpush1.msra.mxu0 %v1085
    %2445 = vmatprep.subr.mxu0 %v1091
    %2446 = vmatpush1.msra.mxu0 %v1090
    %2447 = vmatprep.subr.mxu0 %v1096
    %2448 = vmatpush1.msra.mxu0 %v1095
    %2449 = vmatprep.subr.mxu0 %v1101
    %2450 = vmatpush1.msra.mxu0 %v1100
    %2451 = vmatprep.subr.mxu0 %v1106
    %2452 = vmatpush1.msra.mxu0 %v1105
    %2453 = vmatprep.subr.mxu0 %v1111
    %2454 = vmatpush1.msra.mxu0 %v1110
    %2455 = vmatprep.subr.mxu0 %v1116
    %2456 = vmatpush1.msra.mxu0 %v1115
    %2457 = vmatprep.subr.mxu0 %v1121
    %2458 = vmatpush1.msra.mxu0 %v1120
    %2459 = vmatprep.mubr.f32.mxu0 %v2218
    %2460 = vmatmul.mubr.f32.gmra.mrb[0].mxu0 %v2186
    %v2461 = vpop.f32.mrb[0].mxu0
    %v2462 = vadd.f32 %v2301, %v2461
    %v2463 = vpop.f32.mrb[0].mxu0
    %v2464 = vadd.f32 %v2303, %v2463
    %2465 = vmatprep.mubr.f32.mxu0 %v2219
    %2466 = vmatmul.mubr.f32.gmra.mrb[0].mxu0 %v2187
    %v2467 = vpop.f32.mrb[0].mxu0
    %v2468 = vadd.f32 %v2307, %v2467
    %v2469 = vpop.f32.mrb[0].mxu0
    %v2470 = vadd.f32 %v2309, %v2469
    %2471 = vmatprep.mubr.f32.mxu0 %v2220
    %2472 = vmatmul.mubr.f32.gmra.mrb[0].mxu0 %v2188
    %v2473 = vpop.f32.mrb[0].mxu0
    %v2474 = vadd.f32 %v2313, %v2473
    %v2475 = vpop.f32.mrb[0].mxu0
    %v2476 = vadd.f32 %v2315, %v2475
    %2477 = vmatprep.mubr.f32.mxu0 %v2221
    %2478 = vmatmul.mubr.f32.gmra.mrb[0].mxu0 %v2189
    %v2479 = vpop.f32.mrb[0].mxu0
    %v2480 = vadd.f32 %v2319, %v2479
    %v2481 = vpop.f32.mrb[0].mxu0
    %v2482 = vadd.f32 %v2321, %v2481
    %2483 = vmatprep.mubr.f32.mxu0 %v2222
    %2484 = vmatmul.mubr.f32.gmra.mrb[0].mxu0 %v2190
    %v2485 = vpop.f32.mrb[0].mxu0
    %v2486 = vadd.f32 %v2325, %v2485
    %v2487 = vpop.f32.mrb[0].mxu0
    %v2488 = vadd.f32 %v2327, %v2487
    %2489 = vmatprep.mubr.f32.mxu0 %v2223
    %2490 = vmatmul.mubr.f32.gmra.mrb[0].mxu0 %v2191
    %v2491 = vpop.f32.mrb[0].mxu0
    %v2492 = vadd.f32 %v2331, %v2491
    %v2493 = vpop.f32.mrb[0].mxu0
    %v2494 = vadd.f32 %v2333, %v2493
    %2495 = vmatprep.mubr.f32.mxu0 %v2224
    %2496 = vmatmul.mubr.f32.gmra.mrb[0].mxu0 %v2192
    %v2497 = vpop.f32.mrb[0].mxu0
    %v2498 = vadd.f32 %v2337, %v2497
    %v2499 = vpop.f32.mrb[0].mxu0
    %v2500 = vadd.f32 %v2339, %v2499
    %2501 = vmatprep.mubr.f32.mxu0 %v2225
    %2502 = vmatmul.mubr.f32.gmra.mrb[0].mxu0 %v2193
    %v2503 = vpop.f32.mrb[0].mxu0
    %v2504 = vadd.f32 %v2343, %v2503
    %v2505 = vpop.f32.mrb[0].mxu0
    %v2506 = vadd.f32 %v2345, %v2505
    %2507 = vmatprep.mubr.f32.mxu0 %v2226
    %2508 = vmatmul.mubr.f32.gmra.mrb[0].mxu0 %v2194
    %v2509 = vpop.f32.mrb[0].mxu0
    %v2510 = vadd.f32 %v2349, %v2509
    %v2511 = vpop.f32.mrb[0].mxu0
    %v2512 = vadd.f32 %v2351, %v2511
    %2513 = vmatprep.mubr.f32.mxu0 %v2227
    %2514 = vmatmul.mubr.f32.gmra.mrb[0].mxu0 %v2195
    %v2515 = vpop.f32.mrb[0].mxu0
    %v2516 = vadd.f32 %v2355, %v2515
    %v2517 = vpop.f32.mrb[0].mxu0
    %v2518 = vadd.f32 %v2357, %v2517
    %2519 = vmatprep.mubr.f32.mxu0 %v2228
    %2520 = vmatmul.mubr.f32.gmra.mrb[0].mxu0 %v2196
    %v2521 = vpop.f32.mrb[0].mxu0
    %v2522 = vadd.f32 %v2361, %v2521
    %v2523 = vpop.f32.mrb[0].mxu0
    %v2524 = vadd.f32 %v2363, %v2523
    %2525 = vmatprep.mubr.f32.mxu0 %v2229
    %2526 = vmatmul.mubr.f32.gmra.mrb[0].mxu0 %v2197
    %v2527 = vpop.f32.mrb[0].mxu0
    %v2528 = vadd.f32 %v2367, %v2527
    %v2529 = vpop.f32.mrb[0].mxu0
    %v2530 = vadd.f32 %v2369, %v2529
    %2531 = vmatprep.mubr.f32.mxu0 %v2230
    %2532 = vmatmul.mubr.f32.gmra.mrb[0].mxu0 %v2198
    %v2533 = vpop.f32.mrb[0].mxu0
    %v2534 = vadd.f32 %v2373, %v2533
    %v2535 = vpop.f32.mrb[0].mxu0
    %v2536 = vadd.f32 %v2375, %v2535
    %2537 = vmatprep.mubr.f32.mxu0 %v2231
    %2538 = vmatmul.mubr.f32.gmra.mrb[0].mxu0 %v2199
    %v2539 = vpop.f32.mrb[0].mxu0
    %v2540 = vadd.f32 %v2379, %v2539
    %v2541 = vpop.f32.mrb[0].mxu0
    %v2542 = vadd.f32 %v2381, %v2541
    %2543 = vmatprep.mubr.f32.mxu0 %v2232
    %2544 = vmatmul.mubr.f32.gmra.mrb[0].mxu0 %v2200
    %v2545 = vpop.f32.mrb[0].mxu0
    %v2546 = vadd.f32 %v2385, %v2545
    %v2547 = vpop.f32.mrb[0].mxu0
    %v2548 = vadd.f32 %v2387, %v2547
    %2549 = vmatprep.mubr.f32.mxu0 %v2233
    %2550 = vmatmul.mubr.f32.gmra.mrb[0].mxu0 %v2201
    %v2551 = vpop.f32.mrb[0].mxu0
    %v2552 = vadd.f32 %v2391, %v2551
    %v2553 = vpop.f32.mrb[0].mxu0
    %v2554 = vadd.f32 %v2393, %v2553
    %2555 = vdwg.mxu0
    %2556 = vmatprep.subr.mxu0 %v808
    %2557 = vmatpush1.msra.mxu0 %v807
    %2558 = vmatprep.subr.mxu0 %v813
    %2559 = vmatpush1.msra.mxu0 %v812
    %2560 = vmatprep.subr.mxu0 %v818
    %2561 = vmatpush1.msra.mxu0 %v817
    %2562 = vmatprep.subr.mxu0 %v823
    %2563 = vmatpush1.msra.mxu0 %v822
    %2564 = vmatprep.subr.mxu0 %v828
    %2565 = vmatpush1.msra.mxu0 %v827
    %2566 = vmatprep.subr.mxu0 %v833
    %2567 = vmatpush1.msra.mxu0 %v832
    %2568 = vmatprep.subr.mxu0 %v838
    %2569 = vmatpush1.msra.mxu0 %v837
    %2570 = vmatprep.subr.mxu0 %v843
    %2571 = vmatpush1.msra.mxu0 %v842
    %2572 = vmatprep.subr.mxu0 %v848
    %2573 = vmatpush1.msra.mxu0 %v847
    %2574 = vmatprep.subr.mxu0 %v853
    %2575 = vmatpush1.msra.mxu0 %v852
    %2576 = vmatprep.subr.mxu0 %v858
    %2577 = vmatpush1.msra.mxu0 %v857
    %2578 = vmatprep.subr.mxu0 %v863
    %2579 = vmatpush1.msra.mxu0 %v862
    %2580 = vmatprep.subr.mxu0 %v868
    %2581 = vmatpush1.msra.mxu0 %v867
    %2582 = vmatprep.subr.mxu0 %v873
    %2583 = vmatpush1.msra.mxu0 %v872
    %2584 = vmatprep.subr.mxu0 %v878
    %2585 = vmatpush1.msra.mxu0 %v877
    %2586 = vmatprep.subr.mxu0 %v883
    %2587 = vmatpush1.msra.mxu0 %v882
    %2588 = vmatprep.subr.mxu0 %v888
    %2589 = vmatpush1.msra.mxu0 %v887
    %2590 = vmatprep.subr.mxu0 %v893
    %2591 = vmatpush1.msra.mxu0 %v892
    %2592 = vmatprep.subr.mxu0 %v898
    %2593 = vmatpush1.msra.mxu0 %v897
    %2594 = vmatprep.subr.mxu0 %v903
    %2595 = vmatpush1.msra.mxu0 %v902
    %2596 = vmatprep.subr.mxu0 %v908
    %2597 = vmatpush1.msra.mxu0 %v907
    %2598 = vmatprep.subr.mxu0 %v913
    %2599 = vmatpush1.msra.mxu0 %v912
    %2600 = vmatprep.subr.mxu0 %v918
    %2601 = vmatpush1.msra.mxu0 %v917
    %2602 = vmatprep.subr.mxu0 %v923
    %2603 = vmatpush1.msra.mxu0 %v922
    %2604 = vmatprep.subr.mxu0 %v928
    %2605 = vmatpush1.msra.mxu0 %v927
    %2606 = vmatprep.subr.mxu0 %v933
    %2607 = vmatpush1.msra.mxu0 %v932
    %2608 = vmatprep.subr.mxu0 %v938
    %2609 = vmatpush1.msra.mxu0 %v937
    %2610 = vmatprep.subr.mxu0 %v943
    %2611 = vmatpush1.msra.mxu0 %v942
    %2612 = vmatprep.subr.mxu0 %v948
    %2613 = vmatpush1.msra.mxu0 %v947
    %2614 = vmatprep.subr.mxu0 %v953
    %2615 = vmatpush1.msra.mxu0 %v952
    %2616 = vmatprep.subr.mxu0 %v958
    %2617 = vmatpush1.msra.mxu0 %v957
    %2618 = vmatprep.subr.mxu0 %v963
    %2619 = vmatpush1.msra.mxu0 %v962
    %2620 = vmatprep.mubr.f32.mxu0 %v2154
    %2621 = vmatmul.mubr.f32.gmra.mrb[0].mxu0 %v2122
    %v2622 = vpop.f32.mrb[0].mxu0
    %v2623 = vadd.f32 0.0, %v2622
    %v2624 = vpop.f32.mrb[0].mxu0
    %v2625 = vadd.f32 0.0, %v2624
    %2626 = vmatprep.mubr.f32.mxu0 %v2155
    %2627 = vmatmul.mubr.f32.gmra.mrb[0].mxu0 %v2123
    %v2628 = vpop.f32.mrb[0].mxu0
    %v2629 = vadd.f32 0.0, %v2628
    %v2630 = vpop.f32.mrb[0].mxu0
    %v2631 = vadd.f32 0.0, %v2630
    %2632 = vmatprep.mubr.f32.mxu0 %v2156
    %2633 = vmatmul.mubr.f32.gmra.mrb[0].mxu0 %v2124
    %v2634 = vpop.f32.mrb[0].mxu0
    %v2635 = vadd.f32 0.0, %v2634
    %v2636 = vpop.f32.mrb[0].mxu0
    %v2637 = vadd.f32 0.0, %v2636
    %2638 = vmatprep.mubr.f32.mxu0 %v2157
    %2639 = vmatmul.mubr.f32.gmra.mrb[0].mxu0 %v2125
    %v2640 = vpop.f32.mrb[0].mxu0
    %v2641 = vadd.f32 0.0, %v2640
    %v2642 = vpop.f32.mrb[0].mxu0
    %v2643 = vadd.f32 0.0, %v2642
    %2644 = vmatprep.mubr.f32.mxu0 %v2158
    %2645 = vmatmul.mubr.f32.gmra.mrb[0].mxu0 %v2126
    %v2646 = vpop.f32.mrb[0].mxu0
    %v2647 = vadd.f32 0.0, %v2646
    %v2648 = vpop.f32.mrb[0].mxu0
    %v2649 = vadd.f32 0.0, %v2648
    %2650 = vmatprep.mubr.f32.mxu0 %v2159
    %2651 = vmatmul.mubr.f32.gmra.mrb[0].mxu0 %v2127
    %v2652 = vpop.f32.mrb[0].mxu0
    %v2653 = vadd.f32 0.0, %v2652
    %v2654 = vpop.f32.mrb[0].mxu0
    %v2655 = vadd.f32 0.0, %v2654
    %2656 = vmatprep.mubr.f32.mxu0 %v2160
    %2657 = vmatmul.mubr.f32.gmra.mrb[0].mxu0 %v2128
    %v2658 = vpop.f32.mrb[0].mxu0
    %v2659 = vadd.f32 0.0, %v2658
    %v2660 = vpop.f32.mrb[0].mxu0
    %v2661 = vadd.f32 0.0, %v2660
    %2662 = vmatprep.mubr.f32.mxu0 %v2161
    %2663 = vmatmul.mubr.f32.gmra.mrb[0].mxu0 %v2129
    %v2664 = vpop.f32.mrb[0].mxu0
    %v2665 = vadd.f32 0.0, %v2664
    %v2666 = vpop.f32.mrb[0].mxu0
    %v2667 = vadd.f32 0.0, %v2666
    %2668 = vmatprep.mubr.f32.mxu0 %v2162
    %2669 = vmatmul.mubr.f32.gmra.mrb[0].mxu0 %v2130
    %v2670 = vpop.f32.mrb[0].mxu0
    %v2671 = vadd.f32 0.0, %v2670
    %v2672 = vpop.f32.mrb[0].mxu0
    %v2673 = vadd.f32 0.0, %v2672
    %2674 = vmatprep.mubr.f32.mxu0 %v2163
    %2675 = vmatmul.mubr.f32.gmra.mrb[0].mxu0 %v2131
    %v2676 = vpop.f32.mrb[0].mxu0
    %v2677 = vadd.f32 0.0, %v2676
    %v2678 = vpop.f32.mrb[0].mxu0
    %v2679 = vadd.f32 0.0, %v2678
    %2680 = vmatprep.mubr.f32.mxu0 %v2164
    %2681 = vmatmul.mubr.f32.gmra.mrb[0].mxu0 %v2132
    %v2682 = vpop.f32.mrb[0].mxu0
    %v2683 = vadd.f32 0.0, %v2682
    %v2684 = vpop.f32.mrb[0].mxu0
    %v2685 = vadd.f32 0.0, %v2684
    %2686 = vmatprep.mubr.f32.mxu0 %v2165
    %2687 = vmatmul.mubr.f32.gmra.mrb[0].mxu0 %v2133
    %v2688 = vpop.f32.mrb[0].mxu0
    %v2689 = vadd.f32 0.0, %v2688
    %v2690 = vpop.f32.mrb[0].mxu0
    %v2691 = vadd.f32 0.0, %v2690
    %2692 = vmatprep.mubr.f32.mxu0 %v2166
    %2693 = vmatmul.mubr.f32.gmra.mrb[0].mxu0 %v2134
    %v2694 = vpop.f32.mrb[0].mxu0
    %v2695 = vadd.f32 0.0, %v2694
    %v2696 = vpop.f32.mrb[0].mxu0
    %v2697 = vadd.f32 0.0, %v2696
    %2698 = vmatprep.mubr.f32.mxu0 %v2167
    %2699 = vmatmul.mubr.f32.gmra.mrb[0].mxu0 %v2135
    %v2700 = vpop.f32.mrb[0].mxu0
    %v2701 = vadd.f32 0.0, %v2700
    %v2702 = vpop.f32.mrb[0].mxu0
    %v2703 = vadd.f32 0.0, %v2702
    %2704 = vmatprep.mubr.f32.mxu0 %v2168
    %2705 = vmatmul.mubr.f32.gmra.mrb[0].mxu0 %v2136
    %v2706 = vpop.f32.mrb[0].mxu0
    %v2707 = vadd.f32 0.0, %v2706
    %v2708 = vpop.f32.mrb[0].mxu0
    %v2709 = vadd.f32 0.0, %v2708
    %2710 = vmatprep.mubr.f32.mxu0 %v2169
    %2711 = vmatmul.mubr.f32.gmra.mrb[0].mxu0 %v2137
    %v2712 = vpop.f32.mrb[0].mxu0
    %v2713 = vadd.f32 0.0, %v2712
    %v2714 = vpop.f32.mrb[0].mxu0
    %v2715 = vadd.f32 0.0, %v2714
    %2716 = vdwg.mxu0
    %2717 = vmatprep.subr.mxu0 %v968
    %2718 = vmatpush1.msra.mxu0 %v967
    %2719 = vmatprep.subr.mxu0 %v973
    %2720 = vmatpush1.msra.mxu0 %v972
    %2721 = vmatprep.subr.mxu0 %v978
    %2722 = vmatpush1.msra.mxu0 %v977
    %2723 = vmatprep.subr.mxu0 %v983
    %2724 = vmatpush1.msra.mxu0 %v982
    %2725 = vmatprep.subr.mxu0 %v988
    %2726 = vmatpush1.msra.mxu0 %v987
    %2727 = vmatprep.subr.mxu0 %v993
    %2728 = vmatpush1.msra.mxu0 %v992
    %2729 = vmatprep.subr.mxu0 %v998
    %2730 = vmatpush1.msra.mxu0 %v997
    %2731 = vmatprep.subr.mxu0 %v1003
    %2732 = vmatpush1.msra.mxu0 %v1002
    %2733 = vmatprep.subr.mxu0 %v1008
    %2734 = vmatpush1.msra.mxu0 %v1007
    %2735 = vmatprep.subr.mxu0 %v1013
    %2736 = vmatpush1.msra.mxu0 %v1012
    %2737 = vmatprep.subr.mxu0 %v1018
    %2738 = vmatpush1.msra.mxu0 %v1017
    %2739 = vmatprep.subr.mxu0 %v1023
    %2740 = vmatpush1.msra.mxu0 %v1022
    %2741 = vmatprep.subr.mxu0 %v1028
    %2742 = vmatpush1.msra.mxu0 %v1027
    %2743 = vmatprep.subr.mxu0 %v1033
    %2744 = vmatpush1.msra.mxu0 %v1032
    %2745 = vmatprep.subr.mxu0 %v1038
    %2746 = vmatpush1.msra.mxu0 %v1037
    %2747 = vmatprep.subr.mxu0 %v1043
    %2748 = vmatpush1.msra.mxu0 %v1042
    %2749 = vmatprep.subr.mxu0 %v1048
    %2750 = vmatpush1.msra.mxu0 %v1047
    %2751 = vmatprep.subr.mxu0 %v1053
    %2752 = vmatpush1.msra.mxu0 %v1052
    %2753 = vmatprep.subr.mxu0 %v1058
    %2754 = vmatpush1.msra.mxu0 %v1057
    %2755 = vmatprep.subr.mxu0 %v1063
    %2756 = vmatpush1.msra.mxu0 %v1062
    %2757 = vmatprep.subr.mxu0 %v1068
    %2758 = vmatpush1.msra.mxu0 %v1067
    %2759 = vmatprep.subr.mxu0 %v1073
    %2760 = vmatpush1.msra.mxu0 %v1072
    %2761 = vmatprep.subr.mxu0 %v1078
    %2762 = vmatpush1.msra.mxu0 %v1077
    %2763 = vmatprep.subr.mxu0 %v1083
    %2764 = vmatpush1.msra.mxu0 %v1082
    %2765 = vmatprep.subr.mxu0 %v1088
    %2766 = vmatpush1.msra.mxu0 %v1087
    %2767 = vmatprep.subr.mxu0 %v1093
    %2768 = vmatpush1.msra.mxu0 %v1092
    %2769 = vmatprep.subr.mxu0 %v1098
    %2770 = vmatpush1.msra.mxu0 %v1097
    %2771 = vmatprep.subr.mxu0 %v1103
    %2772 = vmatpush1.msra.mxu0 %v1102
    %2773 = vmatprep.subr.mxu0 %v1108
    %2774 = vmatpush1.msra.mxu0 %v1107
    %2775 = vmatprep.subr.mxu0 %v1113
    %2776 = vmatpush1.msra.mxu0 %v1112
    %2777 = vmatprep.subr.mxu0 %v1118
    %2778 = vmatpush1.msra.mxu0 %v1117
    %2779 = vmatprep.subr.mxu0 %v1123
    %2780 = vmatpush1.msra.mxu0 %v1122
    %2781 = vmatprep.mubr.f32.mxu0 %v2218
    %2782 = vmatmul.mubr.f32.gmra.mrb[0].mxu0 %v2186
    %v2783 = vpop.f32.mrb[0].mxu0
    %v2784 = vadd.f32 %v2623, %v2783
    %v2785 = vpop.f32.mrb[0].mxu0
    %v2786 = vadd.f32 %v2625, %v2785
    %2787 = vmatprep.mubr.f32.mxu0 %v2219
    %2788 = vmatmul.mubr.f32.gmra.mrb[0].mxu0 %v2187
    %v2789 = vpop.f32.mrb[0].mxu0
    %v2790 = vadd.f32 %v2629, %v2789
    %v2791 = vpop.f32.mrb[0].mxu0
    %v2792 = vadd.f32 %v2631, %v2791
    %2793 = vmatprep.mubr.f32.mxu0 %v2220
    %2794 = vmatmul.mubr.f32.gmra.mrb[0].mxu0 %v2188
    %v2795 = vpop.f32.mrb[0].mxu0
    %v2796 = vadd.f32 %v2635, %v2795
    %v2797 = vpop.f32.mrb[0].mxu0
    %v2798 = vadd.f32 %v2637, %v2797
    %2799 = vmatprep.mubr.f32.mxu0 %v2221
    %2800 = vmatmul.mubr.f32.gmra.mrb[0].mxu0 %v2189
    %v2801 = vpop.f32.mrb[0].mxu0
    %v2802 = vadd.f32 %v2641, %v2801
    %v2803 = vpop.f32.mrb[0].mxu0
    %v2804 = vadd.f32 %v2643, %v2803
    %2805 = vmatprep.mubr.f32.mxu0 %v2222
    %2806 = vmatmul.mubr.f32.gmra.mrb[0].mxu0 %v2190
    %v2807 = vpop.f32.mrb[0].mxu0
    %v2808 = vadd.f32 %v2647, %v2807
    %v2809 = vpop.f32.mrb[0].mxu0
    %v2810 = vadd.f32 %v2649, %v2809
    %2811 = vmatprep.mubr.f32.mxu0 %v2223
    %2812 = vmatmul.mubr.f32.gmra.mrb[0].mxu0 %v2191
    %v2813 = vpop.f32.mrb[0].mxu0
    %v2814 = vadd.f32 %v2653, %v2813
    %v2815 = vpop.f32.mrb[0].mxu0
    %v2816 = vadd.f32 %v2655, %v2815
    %2817 = vmatprep.mubr.f32.mxu0 %v2224
    %2818 = vmatmul.mubr.f32.gmra.mrb[0].mxu0 %v2192
    %v2819 = vpop.f32.mrb[0].mxu0
    %v2820 = vadd.f32 %v2659, %v2819
    %v2821 = vpop.f32.mrb[0].mxu0
    %v2822 = vadd.f32 %v2661, %v2821
    %2823 = vmatprep.mubr.f32.mxu0 %v2225
    %2824 = vmatmul.mubr.f32.gmra.mrb[0].mxu0 %v2193
    %v2825 = vpop.f32.mrb[0].mxu0
    %v2826 = vadd.f32 %v2665, %v2825
    %v2827 = vpop.f32.mrb[0].mxu0
    %v2828 = vadd.f32 %v2667, %v2827
    %2829 = vmatprep.mubr.f32.mxu0 %v2226
    %2830 = vmatmul.mubr.f32.gmra.mrb[0].mxu0 %v2194
    %v2831 = vpop.f32.mrb[0].mxu0
    %v2832 = vadd.f32 %v2671, %v2831
    %v2833 = vpop.f32.mrb[0].mxu0
    %v2834 = vadd.f32 %v2673, %v2833
    %2835 = vmatprep.mubr.f32.mxu0 %v2227
    %2836 = vmatmul.mubr.f32.gmra.mrb[0].mxu0 %v2195
    %v2837 = vpop.f32.mrb[0].mxu0
    %v2838 = vadd.f32 %v2677, %v2837
    %v2839 = vpop.f32.mrb[0].mxu0
    %v2840 = vadd.f32 %v2679, %v2839
    %2841 = vmatprep.mubr.f32.mxu0 %v2228
    %2842 = vmatmul.mubr.f32.gmra.mrb[0].mxu0 %v2196
    %v2843 = vpop.f32.mrb[0].mxu0
    %v2844 = vadd.f32 %v2683, %v2843
    %v2845 = vpop.f32.mrb[0].mxu0
    %v2846 = vadd.f32 %v2685, %v2845
    %2847 = vmatprep.mubr.f32.mxu0 %v2229
    %2848 = vmatmul.mubr.f32.gmra.mrb[0].mxu0 %v2197
    %v2849 = vpop.f32.mrb[0].mxu0
    %v2850 = vadd.f32 %v2689, %v2849
    %v2851 = vpop.f32.mrb[0].mxu0
    %v2852 = vadd.f32 %v2691, %v2851
    %2853 = vmatprep.mubr.f32.mxu0 %v2230
    %2854 = vmatmul.mubr.f32.gmra.mrb[0].mxu0 %v2198
    %v2855 = vpop.f32.mrb[0].mxu0
    %v2856 = vadd.f32 %v2695, %v2855
    %v2857 = vpop.f32.mrb[0].mxu0
    %v2858 = vadd.f32 %v2697, %v2857
    %2859 = vmatprep.mubr.f32.mxu0 %v2231
    %2860 = vmatmul.mubr.f32.gmra.mrb[0].mxu0 %v2199
    %v2861 = vpop.f32.mrb[0].mxu0
    %v2862 = vadd.f32 %v2701, %v2861
    %v2863 = vpop.f32.mrb[0].mxu0
    %v2864 = vadd.f32 %v2703, %v2863
    %2865 = vmatprep.mubr.f32.mxu0 %v2232
    %2866 = vmatmul.mubr.f32.gmra.mrb[0].mxu0 %v2200
    %v2867 = vpop.f32.mrb[0].mxu0
    %v2868 = vadd.f32 %v2707, %v2867
    %v2869 = vpop.f32.mrb[0].mxu0
    %v2870 = vadd.f32 %v2709, %v2869
    %2871 = vmatprep.mubr.f32.mxu0 %v2233
    %2872 = vmatmul.mubr.f32.gmra.mrb[0].mxu0 %v2201
    %v2873 = vpop.f32.mrb[0].mxu0
    %v2874 = vadd.f32 %v2713, %v2873
    %v2875 = vpop.f32.mrb[0].mxu0
    %v2876 = vadd.f32 %v2715, %v2875
    %2877 = vdwg.mxu0
    %2878 = vmatprep.subr.mxu0 0.0
    %2879 = vmatpush1.msra.mxu0 %v809
    %2880 = vmatprep.subr.mxu0 0.0
    %2881 = vmatpush1.msra.mxu0 %v814
    %2882 = vmatprep.subr.mxu0 0.0
    %2883 = vmatpush1.msra.mxu0 %v819
    %2884 = vmatprep.subr.mxu0 0.0
    %2885 = vmatpush1.msra.mxu0 %v824
    %2886 = vmatprep.subr.mxu0 0.0
    %2887 = vmatpush1.msra.mxu0 %v829
    %2888 = vmatprep.subr.mxu0 0.0
    %2889 = vmatpush1.msra.mxu0 %v834
    %2890 = vmatprep.subr.mxu0 0.0
    %2891 = vmatpush1.msra.mxu0 %v839
    %2892 = vmatprep.subr.mxu0 0.0
    %2893 = vmatpush1.msra.mxu0 %v844
    %2894 = vmatprep.subr.mxu0 0.0
    %2895 = vmatpush1.msra.mxu0 %v849
    %2896 = vmatprep.subr.mxu0 0.0
    %2897 = vmatpush1.msra.mxu0 %v854
    %2898 = vmatprep.subr.mxu0 0.0
    %2899 = vmatpush1.msra.mxu0 %v859
    %2900 = vmatprep.subr.mxu0 0.0
    %2901 = vmatpush1.msra.mxu0 %v864
    %2902 = vmatprep.subr.mxu0 0.0
    %2903 = vmatpush1.msra.mxu0 %v869
    %2904 = vmatprep.subr.mxu0 0.0
    %2905 = vmatpush1.msra.mxu0 %v874
    %2906 = vmatprep.subr.mxu0 0.0
    %2907 = vmatpush1.msra.mxu0 %v879
    %2908 = vmatprep.subr.mxu0 0.0
    %2909 = vmatpush1.msra.mxu0 %v884
    %2910 = vmatprep.subr.mxu0 0.0
    %2911 = vmatpush1.msra.mxu0 %v889
    %2912 = vmatprep.subr.mxu0 0.0
    %2913 = vmatpush1.msra.mxu0 %v894
    %2914 = vmatprep.subr.mxu0 0.0
    %2915 = vmatpush1.msra.mxu0 %v899
    %2916 = vmatprep.subr.mxu0 0.0
    %2917 = vmatpush1.msra.mxu0 %v904
    %2918 = vmatprep.subr.mxu0 0.0
    %2919 = vmatpush1.msra.mxu0 %v909
    %2920 = vmatprep.subr.mxu0 0.0
    %2921 = vmatpush1.msra.mxu0 %v914
    %2922 = vmatprep.subr.mxu0 0.0
    %2923 = vmatpush1.msra.mxu0 %v919
    %2924 = vmatprep.subr.mxu0 0.0
    %2925 = vmatpush1.msra.mxu0 %v924
    %2926 = vmatprep.subr.mxu0 0.0
    %2927 = vmatpush1.msra.mxu0 %v929
    %2928 = vmatprep.subr.mxu0 0.0
    %2929 = vmatpush1.msra.mxu0 %v934
    %2930 = vmatprep.subr.mxu0 0.0
    %2931 = vmatpush1.msra.mxu0 %v939
    %2932 = vmatprep.subr.mxu0 0.0
    %2933 = vmatpush1.msra.mxu0 %v944
    %2934 = vmatprep.subr.mxu0 0.0
    %2935 = vmatpush1.msra.mxu0 %v949
    %2936 = vmatprep.subr.mxu0 0.0
    %2937 = vmatpush1.msra.mxu0 %v954
    %2938 = vmatprep.subr.mxu0 0.0
    %2939 = vmatpush1.msra.mxu0 %v959
    %2940 = vmatprep.subr.mxu0 0.0
    %2941 = vmatpush1.msra.mxu0 %v964
    %2942 = vmatprep.mubr.f32.mxu0 %v2154
    %2943 = vmatmul.mubr.f32.gmra.mrb[0].mxu0 %v2122
    %v2944 = vpop.f32.mrb[0].mxu0
    %v2945 = vadd.f32 0.0, %v2944
    %v2946 = vpop.f32.mrb[0].mxu0
    %2947 = vmatprep.mubr.f32.mxu0 %v2155
    %2948 = vmatmul.mubr.f32.gmra.mrb[0].mxu0 %v2123
    %v2949 = vpop.f32.mrb[0].mxu0
    %v2950 = vadd.f32 0.0, %v2949
    %v2951 = vpop.f32.mrb[0].mxu0
    %2952 = vmatprep.mubr.f32.mxu0 %v2156
    %2953 = vmatmul.mubr.f32.gmra.mrb[0].mxu0 %v2124
    %v2954 = vpop.f32.mrb[0].mxu0
    %v2955 = vadd.f32 0.0, %v2954
    %v2956 = vpop.f32.mrb[0].mxu0
    %2957 = vmatprep.mubr.f32.mxu0 %v2157
    %2958 = vmatmul.mubr.f32.gmra.mrb[0].mxu0 %v2125
    %v2959 = vpop.f32.mrb[0].mxu0
    %v2960 = vadd.f32 0.0, %v2959
    %v2961 = vpop.f32.mrb[0].mxu0
    %2962 = vmatprep.mubr.f32.mxu0 %v2158
    %2963 = vmatmul.mubr.f32.gmra.mrb[0].mxu0 %v2126
    %v2964 = vpop.f32.mrb[0].mxu0
    %v2965 = vadd.f32 0.0, %v2964
    %v2966 = vpop.f32.mrb[0].mxu0
    %2967 = vmatprep.mubr.f32.mxu0 %v2159
    %2968 = vmatmul.mubr.f32.gmra.mrb[0].mxu0 %v2127
    %v2969 = vpop.f32.mrb[0].mxu0
    %v2970 = vadd.f32 0.0, %v2969
    %v2971 = vpop.f32.mrb[0].mxu0
    %2972 = vmatprep.mubr.f32.mxu0 %v2160
    %2973 = vmatmul.mubr.f32.gmra.mrb[0].mxu0 %v2128
    %v2974 = vpop.f32.mrb[0].mxu0
    %v2975 = vadd.f32 0.0, %v2974
    %v2976 = vpop.f32.mrb[0].mxu0
    %2977 = vmatprep.mubr.f32.mxu0 %v2161
    %2978 = vmatmul.mubr.f32.gmra.mrb[0].mxu0 %v2129
    %v2979 = vpop.f32.mrb[0].mxu0
    %v2980 = vadd.f32 0.0, %v2979
    %v2981 = vpop.f32.mrb[0].mxu0
    %2982 = vmatprep.mubr.f32.mxu0 %v2162
    %2983 = vmatmul.mubr.f32.gmra.mrb[0].mxu0 %v2130
    %v2984 = vpop.f32.mrb[0].mxu0
    %v2985 = vadd.f32 0.0, %v2984
    %v2986 = vpop.f32.mrb[0].mxu0
    %2987 = vmatprep.mubr.f32.mxu0 %v2163
    %2988 = vmatmul.mubr.f32.gmra.mrb[0].mxu0 %v2131
    %v2989 = vpop.f32.mrb[0].mxu0
    %v2990 = vadd.f32 0.0, %v2989
    %v2991 = vpop.f32.mrb[0].mxu0
    %2992 = vmatprep.mubr.f32.mxu0 %v2164
    %2993 = vmatmul.mubr.f32.gmra.mrb[0].mxu0 %v2132
    %v2994 = vpop.f32.mrb[0].mxu0
    %v2995 = vadd.f32 0.0, %v2994
    %v2996 = vpop.f32.mrb[0].mxu0
    %2997 = vmatprep.mubr.f32.mxu0 %v2165
    %2998 = vmatmul.mubr.f32.gmra.mrb[0].mxu0 %v2133
    %v2999 = vpop.f32.mrb[0].mxu0
    %v3000 = vadd.f32 0.0, %v2999
    %v3001 = vpop.f32.mrb[0].mxu0
    %3002 = vmatprep.mubr.f32.mxu0 %v2166
    %3003 = vmatmul.mubr.f32.gmra.mrb[0].mxu0 %v2134
    %v3004 = vpop.f32.mrb[0].mxu0
    %v3005 = vadd.f32 0.0, %v3004
    %v3006 = vpop.f32.mrb[0].mxu0
    %3007 = vmatprep.mubr.f32.mxu0 %v2167
    %3008 = vmatmul.mubr.f32.gmra.mrb[0].mxu0 %v2135
    %v3009 = vpop.f32.mrb[0].mxu0
    %v3010 = vadd.f32 0.0, %v3009
    %v3011 = vpop.f32.mrb[0].mxu0
    %3012 = vmatprep.mubr.f32.mxu0 %v2168
    %3013 = vmatmul.mubr.f32.gmra.mrb[0].mxu0 %v2136
    %v3014 = vpop.f32.mrb[0].mxu0
    %v3015 = vadd.f32 0.0, %v3014
    %v3016 = vpop.f32.mrb[0].mxu0
    %3017 = vmatprep.mubr.f32.mxu0 %v2169
    %3018 = vmatmul.mubr.f32.gmra.mrb[0].mxu0 %v2137
    %v3019 = vpop.f32.mrb[0].mxu0
    %v3020 = vadd.f32 0.0, %v3019
    %v3021 = vpop.f32.mrb[0].mxu0
    %3022 = vdwg.mxu0
    %3023 = vmatprep.subr.mxu0 0.0
    %3024 = vmatpush1.msra.mxu0 %v969
    %3025 = vmatprep.subr.mxu0 0.0
    %3026 = vmatpush1.msra.mxu0 %v974
    %3027 = vmatprep.subr.mxu0 0.0
    %3028 = vmatpush1.msra.mxu0 %v979
    %3029 = vmatprep.subr.mxu0 0.0
    %3030 = vmatpush1.msra.mxu0 %v984
    %3031 = vmatprep.subr.mxu0 0.0
    %3032 = vmatpush1.msra.mxu0 %v989
    %3033 = vmatprep.subr.mxu0 0.0
    %3034 = vmatpush1.msra.mxu0 %v994
    %3035 = vmatprep.subr.mxu0 0.0
    %3036 = vmatpush1.msra.mxu0 %v999
    %3037 = vmatprep.subr.mxu0 0.0
    %3038 = vmatpush1.msra.mxu0 %v1004
    %3039 = vmatprep.subr.mxu0 0.0
    %3040 = vmatpush1.msra.mxu0 %v1009
    %3041 = vmatprep.subr.mxu0 0.0
    %3042 = vmatpush1.msra.mxu0 %v1014
    %3043 = vmatprep.subr.mxu0 0.0
    %3044 = vmatpush1.msra.mxu0 %v1019
    %3045 = vmatprep.subr.mxu0 0.0
    %3046 = vmatpush1.msra.mxu0 %v1024
    %3047 = vmatprep.subr.mxu0 0.0
    %3048 = vmatpush1.msra.mxu0 %v1029
    %3049 = vmatprep.subr.mxu0 0.0
    %3050 = vmatpush1.msra.mxu0 %v1034
    %3051 = vmatprep.subr.mxu0 0.0
    %3052 = vmatpush1.msra.mxu0 %v1039
    %3053 = vmatprep.subr.mxu0 0.0
    %3054 = vmatpush1.msra.mxu0 %v1044
    %3055 = vmatprep.subr.mxu0 0.0
    %3056 = vmatpush1.msra.mxu0 %v1049
    %3057 = vmatprep.subr.mxu0 0.0
    %3058 = vmatpush1.msra.mxu0 %v1054
    %3059 = vmatprep.subr.mxu0 0.0
    %3060 = vmatpush1.msra.mxu0 %v1059
    %3061 = vmatprep.subr.mxu0 0.0
    %3062 = vmatpush1.msra.mxu0 %v1064
    %3063 = vmatprep.subr.mxu0 0.0
    %3064 = vmatpush1.msra.mxu0 %v1069
    %3065 = vmatprep.subr.mxu0 0.0
    %3066 = vmatpush1.msra.mxu0 %v1074
    %3067 = vmatprep.subr.mxu0 0.0
    %3068 = vmatpush1.msra.mxu0 %v1079
    %3069 = vmatprep.subr.mxu0 0.0
    %3070 = vmatpush1.msra.mxu0 %v1084
    %3071 = vmatprep.subr.mxu0 0.0
    %3072 = vmatpush1.msra.mxu0 %v1089
    %3073 = vmatprep.subr.mxu0 0.0
    %3074 = vmatpush1.msra.mxu0 %v1094
    %3075 = vmatprep.subr.mxu0 0.0
    %3076 = vmatpush1.msra.mxu0 %v1099
    %3077 = vmatprep.subr.mxu0 0.0
    %3078 = vmatpush1.msra.mxu0 %v1104
    %3079 = vmatprep.subr.mxu0 0.0
    %3080 = vmatpush1.msra.mxu0 %v1109
    %3081 = vmatprep.subr.mxu0 0.0
    %3082 = vmatpush1.msra.mxu0 %v1114
    %3083 = vmatprep.subr.mxu0 0.0
    %3084 = vmatpush1.msra.mxu0 %v1119
    %3085 = vmatprep.subr.mxu0 0.0
    %3086 = vmatpush1.msra.mxu0 %v1124
    %3087 = vmatprep.mubr.f32.mxu0 %v2218
    %3088 = vmatmul.mubr.f32.gmra.mrb[0].mxu0 %v2186
    %v3089 = vpop.f32.mrb[0].mxu0
    %v3090 = vadd.f32 %v2945, %v3089
    %v3091 = vpop.f32.mrb[0].mxu0
    %3092 = vmatprep.mubr.f32.mxu0 %v2219
    %3093 = vmatmul.mubr.f32.gmra.mrb[0].mxu0 %v2187
    %v3094 = vpop.f32.mrb[0].mxu0
    %v3095 = vadd.f32 %v2950, %v3094
    %v3096 = vpop.f32.mrb[0].mxu0
    %3097 = vmatprep.mubr.f32.mxu0 %v2220
    %3098 = vmatmul.mubr.f32.gmra.mrb[0].mxu0 %v2188
    %v3099 = vpop.f32.mrb[0].mxu0
    %v3100 = vadd.f32 %v2955, %v3099
    %v3101 = vpop.f32.mrb[0].mxu0
    %3102 = vmatprep.mubr.f32.mxu0 %v2221
    %3103 = vmatmul.mubr.f32.gmra.mrb[0].mxu0 %v2189
    %v3104 = vpop.f32.mrb[0].mxu0
    %v3105 = vadd.f32 %v2960, %v3104
    %v3106 = vpop.f32.mrb[0].mxu0
    %3107 = vmatprep.mubr.f32.mxu0 %v2222
    %3108 = vmatmul.mubr.f32.gmra.mrb[0].mxu0 %v2190
    %v3109 = vpop.f32.mrb[0].mxu0
    %v3110 = vadd.f32 %v2965, %v3109
    %v3111 = vpop.f32.mrb[0].mxu0
    %3112 = vmatprep.mubr.f32.mxu0 %v2223
    %3113 = vmatmul.mubr.f32.gmra.mrb[0].mxu0 %v2191
    %v3114 = vpop.f32.mrb[0].mxu0
    %v3115 = vadd.f32 %v2970, %v3114
    %v3116 = vpop.f32.mrb[0].mxu0
    %3117 = vmatprep.mubr.f32.mxu0 %v2224
    %3118 = vmatmul.mubr.f32.gmra.mrb[0].mxu0 %v2192
    %v3119 = vpop.f32.mrb[0].mxu0
    %v3120 = vadd.f32 %v2975, %v3119
    %v3121 = vpop.f32.mrb[0].mxu0
    %3122 = vmatprep.mubr.f32.mxu0 %v2225
    %3123 = vmatmul.mubr.f32.gmra.mrb[0].mxu0 %v2193
    %v3124 = vpop.f32.mrb[0].mxu0
    %v3125 = vadd.f32 %v2980, %v3124
    %v3126 = vpop.f32.mrb[0].mxu0
    %3127 = vmatprep.mubr.f32.mxu0 %v2226
    %3128 = vmatmul.mubr.f32.gmra.mrb[0].mxu0 %v2194
    %v3129 = vpop.f32.mrb[0].mxu0
    %v3130 = vadd.f32 %v2985, %v3129
    %v3131 = vpop.f32.mrb[0].mxu0
    %3132 = vmatprep.mubr.f32.mxu0 %v2227
    %3133 = vmatmul.mubr.f32.gmra.mrb[0].mxu0 %v2195
    %v3134 = vpop.f32.mrb[0].mxu0
    %v3135 = vadd.f32 %v2990, %v3134
    %v3136 = vpop.f32.mrb[0].mxu0
    %3137 = vmatprep.mubr.f32.mxu0 %v2228
    %3138 = vmatmul.mubr.f32.gmra.mrb[0].mxu0 %v2196
    %v3139 = vpop.f32.mrb[0].mxu0
    %v3140 = vadd.f32 %v2995, %v3139
    %v3141 = vpop.f32.mrb[0].mxu0
    %3142 = vmatprep.mubr.f32.mxu0 %v2229
    %3143 = vmatmul.mubr.f32.gmra.mrb[0].mxu0 %v2197
    %v3144 = vpop.f32.mrb[0].mxu0
    %v3145 = vadd.f32 %v3000, %v3144
    %v3146 = vpop.f32.mrb[0].mxu0
    %3147 = vmatprep.mubr.f32.mxu0 %v2230
    %3148 = vmatmul.mubr.f32.gmra.mrb[0].mxu0 %v2198
    %v3149 = vpop.f32.mrb[0].mxu0
    %v3150 = vadd.f32 %v3005, %v3149
    %v3151 = vpop.f32.mrb[0].mxu0
    %3152 = vmatprep.mubr.f32.mxu0 %v2231
    %3153 = vmatmul.mubr.f32.gmra.mrb[0].mxu0 %v2199
    %v3154 = vpop.f32.mrb[0].mxu0
    %v3155 = vadd.f32 %v3010, %v3154
    %v3156 = vpop.f32.mrb[0].mxu0
    %3157 = vmatprep.mubr.f32.mxu0 %v2232
    %3158 = vmatmul.mubr.f32.gmra.mrb[0].mxu0 %v2200
    %v3159 = vpop.f32.mrb[0].mxu0
    %v3160 = vadd.f32 %v3015, %v3159
    %v3161 = vpop.f32.mrb[0].mxu0
    %3162 = vmatprep.mubr.f32.mxu0 %v2233
    %3163 = vmatmul.mubr.f32.gmra.mrb[0].mxu0 %v2201
    %v3164 = vpop.f32.mrb[0].mxu0
    %v3165 = vadd.f32 %v3020, %v3164
    %v3166 = vpop.f32.mrb[0].mxu0
    %3167 = vdwg.mxu0
    %3168 = vmatprep.subr.mxu0 %v1787
    %3169 = vmatpush1.msra.mxu0 %v1786
    %3170 = vmatprep.subr.mxu0 %v1792
    %3171 = vmatpush1.msra.mxu0 %v1791
    %3172 = vmatprep.subr.mxu0 %v1797
    %3173 = vmatpush1.msra.mxu0 %v1796
    %3174 = vmatprep.subr.mxu0 %v1802
    %3175 = vmatpush1.msra.mxu0 %v1801
    %3176 = vmatprep.subr.mxu0 %v1807
    %3177 = vmatpush1.msra.mxu0 %v1806
    %3178 = vmatprep.subr.mxu0 %v1812
    %3179 = vmatpush1.msra.mxu0 %v1811
    %3180 = vmatprep.subr.mxu0 %v1817
    %3181 = vmatpush1.msra.mxu0 %v1816
    %3182 = vmatprep.subr.mxu0 %v1822
    %3183 = vmatpush1.msra.mxu0 %v1821
    %3184 = vmatprep.subr.mxu0 %v1827
    %3185 = vmatpush1.msra.mxu0 %v1826
    %3186 = vmatprep.subr.mxu0 %v1832
    %3187 = vmatpush1.msra.mxu0 %v1831
    %3188 = vmatprep.subr.mxu0 %v1837
    %3189 = vmatpush1.msra.mxu0 %v1836
    %3190 = vmatprep.subr.mxu0 %v1842
    %3191 = vmatpush1.msra.mxu0 %v1841
    %3192 = vmatprep.subr.mxu0 %v1847
    %3193 = vmatpush1.msra.mxu0 %v1846
    %3194 = vmatprep.subr.mxu0 %v1852
    %3195 = vmatpush1.msra.mxu0 %v1851
    %3196 = vmatprep.subr.mxu0 %v1857
    %3197 = vmatpush1.msra.mxu0 %v1856
    %3198 = vmatprep.subr.mxu0 %v1862
    %3199 = vmatpush1.msra.mxu0 %v1861
    %3200 = vmatprep.subr.mxu0 %v1867
    %3201 = vmatpush1.msra.mxu0 %v1866
    %3202 = vmatprep.subr.mxu0 %v1872
    %3203 = vmatpush1.msra.mxu0 %v1871
    %3204 = vmatprep.subr.mxu0 %v1877
    %3205 = vmatpush1.msra.mxu0 %v1876
    %3206 = vmatprep.subr.mxu0 %v1882
    %3207 = vmatpush1.msra.mxu0 %v1881
    %3208 = vmatprep.subr.mxu0 %v1887
    %3209 = vmatpush1.msra.mxu0 %v1886
    %3210 = vmatprep.subr.mxu0 %v1892
    %3211 = vmatpush1.msra.mxu0 %v1891
    %3212 = vmatprep.subr.mxu0 %v1897
    %3213 = vmatpush1.msra.mxu0 %v1896
    %3214 = vmatprep.subr.mxu0 %v1902
    %3215 = vmatpush1.msra.mxu0 %v1901
    %3216 = vmatprep.subr.mxu0 %v1907
    %3217 = vmatpush1.msra.mxu0 %v1906
    %3218 = vmatprep.subr.mxu0 %v1912
    %3219 = vmatpush1.msra.mxu0 %v1911
    %3220 = vmatprep.subr.mxu0 %v1917
    %3221 = vmatpush1.msra.mxu0 %v1916
    %3222 = vmatprep.subr.mxu0 %v1922
    %3223 = vmatpush1.msra.mxu0 %v1921
    %3224 = vmatprep.subr.mxu0 %v1927
    %3225 = vmatpush1.msra.mxu0 %v1926
    %3226 = vmatprep.subr.mxu0 %v1932
    %3227 = vmatpush1.msra.mxu0 %v1931
    %3228 = vmatprep.subr.mxu0 %v1937
    %3229 = vmatpush1.msra.mxu0 %v1936
    %3230 = vmatprep.subr.mxu0 %v1942
    %3231 = vmatpush1.msra.mxu0 %v1941
    %3232 = vmatprep.mubr.f32.mxu0 %v2154
    %3233 = vmatmul.mubr.f32.gmra.mrb[0].mxu0 %v2122
    %v3234 = vpop.f32.mrb[0].mxu0
    %v3235 = vadd.f32 0.0, %v3234
    %v3236 = vpop.f32.mrb[0].mxu0
    %v3237 = vadd.f32 0.0, %v3236
    %3238 = vmatprep.mubr.f32.mxu0 %v2155
    %3239 = vmatmul.mubr.f32.gmra.mrb[0].mxu0 %v2123
    %v3240 = vpop.f32.mrb[0].mxu0
    %v3241 = vadd.f32 0.0, %v3240
    %v3242 = vpop.f32.mrb[0].mxu0
    %v3243 = vadd.f32 0.0, %v3242
    %3244 = vmatprep.mubr.f32.mxu0 %v2156
    %3245 = vmatmul.mubr.f32.gmra.mrb[0].mxu0 %v2124
    %v3246 = vpop.f32.mrb[0].mxu0
    %v3247 = vadd.f32 0.0, %v3246
    %v3248 = vpop.f32.mrb[0].mxu0
    %v3249 = vadd.f32 0.0, %v3248
    %3250 = vmatprep.mubr.f32.mxu0 %v2157
    %3251 = vmatmul.mubr.f32.gmra.mrb[0].mxu0 %v2125
    %v3252 = vpop.f32.mrb[0].mxu0
    %v3253 = vadd.f32 0.0, %v3252
    %v3254 = vpop.f32.mrb[0].mxu0
    %v3255 = vadd.f32 0.0, %v3254
    %3256 = vmatprep.mubr.f32.mxu0 %v2158
    %3257 = vmatmul.mubr.f32.gmra.mrb[0].mxu0 %v2126
    %v3258 = vpop.f32.mrb[0].mxu0
    %v3259 = vadd.f32 0.0, %v3258
    %v3260 = vpop.f32.mrb[0].mxu0
    %v3261 = vadd.f32 0.0, %v3260
    %3262 = vmatprep.mubr.f32.mxu0 %v2159
    %3263 = vmatmul.mubr.f32.gmra.mrb[0].mxu0 %v2127
    %v3264 = vpop.f32.mrb[0].mxu0
    %v3265 = vadd.f32 0.0, %v3264
    %v3266 = vpop.f32.mrb[0].mxu0
    %v3267 = vadd.f32 0.0, %v3266
    %3268 = vmatprep.mubr.f32.mxu0 %v2160
    %3269 = vmatmul.mubr.f32.gmra.mrb[0].mxu0 %v2128
    %v3270 = vpop.f32.mrb[0].mxu0
    %v3271 = vadd.f32 0.0, %v3270
    %v3272 = vpop.f32.mrb[0].mxu0
    %v3273 = vadd.f32 0.0, %v3272
    %3274 = vmatprep.mubr.f32.mxu0 %v2161
    %3275 = vmatmul.mubr.f32.gmra.mrb[0].mxu0 %v2129
    %v3276 = vpop.f32.mrb[0].mxu0
    %v3277 = vadd.f32 0.0, %v3276
    %v3278 = vpop.f32.mrb[0].mxu0
    %v3279 = vadd.f32 0.0, %v3278
    %3280 = vmatprep.mubr.f32.mxu0 %v2162
    %3281 = vmatmul.mubr.f32.gmra.mrb[0].mxu0 %v2130
    %v3282 = vpop.f32.mrb[0].mxu0
    %v3283 = vadd.f32 0.0, %v3282
    %v3284 = vpop.f32.mrb[0].mxu0
    %v3285 = vadd.f32 0.0, %v3284
    %3286 = vmatprep.mubr.f32.mxu0 %v2163
    %3287 = vmatmul.mubr.f32.gmra.mrb[0].mxu0 %v2131
    %v3288 = vpop.f32.mrb[0].mxu0
    %v3289 = vadd.f32 0.0, %v3288
    %v3290 = vpop.f32.mrb[0].mxu0
    %v3291 = vadd.f32 0.0, %v3290
    %3292 = vmatprep.mubr.f32.mxu0 %v2164
    %3293 = vmatmul.mubr.f32.gmra.mrb[0].mxu0 %v2132
    %v3294 = vpop.f32.mrb[0].mxu0
    %v3295 = vadd.f32 0.0, %v3294
    %v3296 = vpop.f32.mrb[0].mxu0
    %v3297 = vadd.f32 0.0, %v3296
    %3298 = vmatprep.mubr.f32.mxu0 %v2165
    %3299 = vmatmul.mubr.f32.gmra.mrb[0].mxu0 %v2133
    %v3300 = vpop.f32.mrb[0].mxu0
    %v3301 = vadd.f32 0.0, %v3300
    %v3302 = vpop.f32.mrb[0].mxu0
    %v3303 = vadd.f32 0.0, %v3302
    %3304 = vmatprep.mubr.f32.mxu0 %v2166
    %3305 = vmatmul.mubr.f32.gmra.mrb[0].mxu0 %v2134
    %v3306 = vpop.f32.mrb[0].mxu0
    %v3307 = vadd.f32 0.0, %v3306
    %v3308 = vpop.f32.mrb[0].mxu0
    %v3309 = vadd.f32 0.0, %v3308
    %3310 = vmatprep.mubr.f32.mxu0 %v2167
    %3311 = vmatmul.mubr.f32.gmra.mrb[0].mxu0 %v2135
    %v3312 = vpop.f32.mrb[0].mxu0
    %v3313 = vadd.f32 0.0, %v3312
    %v3314 = vpop.f32.mrb[0].mxu0
    %v3315 = vadd.f32 0.0, %v3314
    %3316 = vmatprep.mubr.f32.mxu0 %v2168
    %3317 = vmatmul.mubr.f32.gmra.mrb[0].mxu0 %v2136
    %v3318 = vpop.f32.mrb[0].mxu0
    %v3319 = vadd.f32 0.0, %v3318
    %v3320 = vpop.f32.mrb[0].mxu0
    %v3321 = vadd.f32 0.0, %v3320
    %3322 = vmatprep.mubr.f32.mxu0 %v2169
    %3323 = vmatmul.mubr.f32.gmra.mrb[0].mxu0 %v2137
    %v3324 = vpop.f32.mrb[0].mxu0
    %v3325 = vadd.f32 0.0, %v3324
    %v3326 = vpop.f32.mrb[0].mxu0
    %v3327 = vadd.f32 0.0, %v3326
    %3328 = vdwg.mxu0
    %3329 = vmatprep.subr.mxu0 %v1947
    %3330 = vmatpush1.msra.mxu0 %v1946
    %3331 = vmatprep.subr.mxu0 %v1952
    %3332 = vmatpush1.msra.mxu0 %v1951
    %3333 = vmatprep.subr.mxu0 %v1957
    %3334 = vmatpush1.msra.mxu0 %v1956
    %3335 = vmatprep.subr.mxu0 %v1962
    %3336 = vmatpush1.msra.mxu0 %v1961
    %3337 = vmatprep.subr.mxu0 %v1967
    %3338 = vmatpush1.msra.mxu0 %v1966
    %3339 = vmatprep.subr.mxu0 %v1972
    %3340 = vmatpush1.msra.mxu0 %v1971
    %3341 = vmatprep.subr.mxu0 %v1977
    %3342 = vmatpush1.msra.mxu0 %v1976
    %3343 = vmatprep.subr.mxu0 %v1982
    %3344 = vmatpush1.msra.mxu0 %v1981
    %3345 = vmatprep.subr.mxu0 %v1987
    %3346 = vmatpush1.msra.mxu0 %v1986
    %3347 = vmatprep.subr.mxu0 %v1992
    %3348 = vmatpush1.msra.mxu0 %v1991
    %3349 = vmatprep.subr.mxu0 %v1997
    %3350 = vmatpush1.msra.mxu0 %v1996
    %3351 = vmatprep.subr.mxu0 %v2002
    %3352 = vmatpush1.msra.mxu0 %v2001
    %3353 = vmatprep.subr.mxu0 %v2007
    %3354 = vmatpush1.msra.mxu0 %v2006
    %3355 = vmatprep.subr.mxu0 %v2012
    %3356 = vmatpush1.msra.mxu0 %v2011
    %3357 = vmatprep.subr.mxu0 %v2017
    %3358 = vmatpush1.msra.mxu0 %v2016
    %3359 = vmatprep.subr.mxu0 %v2022
    %3360 = vmatpush1.msra.mxu0 %v2021
    %3361 = vmatprep.subr.mxu0 %v2027
    %3362 = vmatpush1.msra.mxu0 %v2026
    %3363 = vmatprep.subr.mxu0 %v2032
    %3364 = vmatpush1.msra.mxu0 %v2031
    %3365 = vmatprep.subr.mxu0 %v2037
    %3366 = vmatpush1.msra.mxu0 %v2036
    %3367 = vmatprep.subr.mxu0 %v2042
    %3368 = vmatpush1.msra.mxu0 %v2041
    %3369 = vmatprep.subr.mxu0 %v2047
    %3370 = vmatpush1.msra.mxu0 %v2046
    %3371 = vmatprep.subr.mxu0 %v2052
    %3372 = vmatpush1.msra.mxu0 %v2051
    %3373 = vmatprep.subr.mxu0 %v2057
    %3374 = vmatpush1.msra.mxu0 %v2056
    %3375 = vmatprep.subr.mxu0 %v2062
    %3376 = vmatpush1.msra.mxu0 %v2061
    %3377 = vmatprep.subr.mxu0 %v2067
    %3378 = vmatpush1.msra.mxu0 %v2066
    %3379 = vmatprep.subr.mxu0 %v2072
    %3380 = vmatpush1.msra.mxu0 %v2071
    %3381 = vmatprep.subr.mxu0 %v2077
    %3382 = vmatpush1.msra.mxu0 %v2076
    %3383 = vmatprep.subr.mxu0 %v2082
    %3384 = vmatpush1.msra.mxu0 %v2081
    %3385 = vmatprep.subr.mxu0 %v2087
    %3386 = vmatpush1.msra.mxu0 %v2086
    %3387 = vmatprep.subr.mxu0 %v2092
    %3388 = vmatpush1.msra.mxu0 %v2091
    %3389 = vmatprep.subr.mxu0 %v2097
    %3390 = vmatpush1.msra.mxu0 %v2096
    %3391 = vmatprep.subr.mxu0 %v2102
    %3392 = vmatpush1.msra.mxu0 %v2101
    %3393 = vmatprep.mubr.f32.mxu0 %v2218
    %3394 = vmatmul.mubr.f32.gmra.mrb[0].mxu0 %v2186
    %v3395 = vpop.f32.mrb[0].mxu0
    %v3396 = vadd.f32 %v3235, %v3395
    %v3397 = vpop.f32.mrb[0].mxu0
    %v3398 = vadd.f32 %v3237, %v3397
    %3399 = vmatprep.mubr.f32.mxu0 %v2219
    %3400 = vmatmul.mubr.f32.gmra.mrb[0].mxu0 %v2187
    %v3401 = vpop.f32.mrb[0].mxu0
    %v3402 = vadd.f32 %v3241, %v3401
    %v3403 = vpop.f32.mrb[0].mxu0
    %v3404 = vadd.f32 %v3243, %v3403
    %3405 = vmatprep.mubr.f32.mxu0 %v2220
    %3406 = vmatmul.mubr.f32.gmra.mrb[0].mxu0 %v2188
    %v3407 = vpop.f32.mrb[0].mxu0
    %v3408 = vadd.f32 %v3247, %v3407
    %v3409 = vpop.f32.mrb[0].mxu0
    %v3410 = vadd.f32 %v3249, %v3409
    %3411 = vmatprep.mubr.f32.mxu0 %v2221
    %3412 = vmatmul.mubr.f32.gmra.mrb[0].mxu0 %v2189
    %v3413 = vpop.f32.mrb[0].mxu0
    %v3414 = vadd.f32 %v3253, %v3413
    %v3415 = vpop.f32.mrb[0].mxu0
    %v3416 = vadd.f32 %v3255, %v3415
    %3417 = vmatprep.mubr.f32.mxu0 %v2222
    %3418 = vmatmul.mubr.f32.gmra.mrb[0].mxu0 %v2190
    %v3419 = vpop.f32.mrb[0].mxu0
    %v3420 = vadd.f32 %v3259, %v3419
    %v3421 = vpop.f32.mrb[0].mxu0
    %v3422 = vadd.f32 %v3261, %v3421
    %3423 = vmatprep.mubr.f32.mxu0 %v2223
    %3424 = vmatmul.mubr.f32.gmra.mrb[0].mxu0 %v2191
    %v3425 = vpop.f32.mrb[0].mxu0
    %v3426 = vadd.f32 %v3265, %v3425
    %v3427 = vpop.f32.mrb[0].mxu0
    %v3428 = vadd.f32 %v3267, %v3427
    %3429 = vmatprep.mubr.f32.mxu0 %v2224
    %3430 = vmatmul.mubr.f32.gmra.mrb[0].mxu0 %v2192
    %v3431 = vpop.f32.mrb[0].mxu0
    %v3432 = vadd.f32 %v3271, %v3431
    %v3433 = vpop.f32.mrb[0].mxu0
    %v3434 = vadd.f32 %v3273, %v3433
    %3435 = vmatprep.mubr.f32.mxu0 %v2225
    %3436 = vmatmul.mubr.f32.gmra.mrb[0].mxu0 %v2193
    %v3437 = vpop.f32.mrb[0].mxu0
    %v3438 = vadd.f32 %v3277, %v3437
    %v3439 = vpop.f32.mrb[0].mxu0
    %v3440 = vadd.f32 %v3279, %v3439
    %3441 = vmatprep.mubr.f32.mxu0 %v2226
    %3442 = vmatmul.mubr.f32.gmra.mrb[0].mxu0 %v2194
    %v3443 = vpop.f32.mrb[0].mxu0
    %v3444 = vadd.f32 %v3283, %v3443
    %v3445 = vpop.f32.mrb[0].mxu0
    %v3446 = vadd.f32 %v3285, %v3445
    %3447 = vmatprep.mubr.f32.mxu0 %v2227
    %3448 = vmatmul.mubr.f32.gmra.mrb[0].mxu0 %v2195
    %v3449 = vpop.f32.mrb[0].mxu0
    %v3450 = vadd.f32 %v3289, %v3449
    %v3451 = vpop.f32.mrb[0].mxu0
    %v3452 = vadd.f32 %v3291, %v3451
    %3453 = vmatprep.mubr.f32.mxu0 %v2228
    %3454 = vmatmul.mubr.f32.gmra.mrb[0].mxu0 %v2196
    %v3455 = vpop.f32.mrb[0].mxu0
    %v3456 = vadd.f32 %v3295, %v3455
    %v3457 = vpop.f32.mrb[0].mxu0
    %v3458 = vadd.f32 %v3297, %v3457
    %3459 = vmatprep.mubr.f32.mxu0 %v2229
    %3460 = vmatmul.mubr.f32.gmra.mrb[0].mxu0 %v2197
    %v3461 = vpop.f32.mrb[0].mxu0
    %v3462 = vadd.f32 %v3301, %v3461
    %v3463 = vpop.f32.mrb[0].mxu0
    %v3464 = vadd.f32 %v3303, %v3463
    %3465 = vmatprep.mubr.f32.mxu0 %v2230
    %3466 = vmatmul.mubr.f32.gmra.mrb[0].mxu0 %v2198
    %v3467 = vpop.f32.mrb[0].mxu0
    %v3468 = vadd.f32 %v3307, %v3467
    %v3469 = vpop.f32.mrb[0].mxu0
    %v3470 = vadd.f32 %v3309, %v3469
    %3471 = vmatprep.mubr.f32.mxu0 %v2231
    %3472 = vmatmul.mubr.f32.gmra.mrb[0].mxu0 %v2199
    %v3473 = vpop.f32.mrb[0].mxu0
    %v3474 = vadd.f32 %v3313, %v3473
    %v3475 = vpop.f32.mrb[0].mxu0
    %v3476 = vadd.f32 %v3315, %v3475
    %3477 = vmatprep.mubr.f32.mxu0 %v2232
    %3478 = vmatmul.mubr.f32.gmra.mrb[0].mxu0 %v2200
    %v3479 = vpop.f32.mrb[0].mxu0
    %v3480 = vadd.f32 %v3319, %v3479
    %v3481 = vpop.f32.mrb[0].mxu0
    %v3482 = vadd.f32 %v3321, %v3481
    %3483 = vmatprep.mubr.f32.mxu0 %v2233
    %3484 = vmatmul.mubr.f32.gmra.mrb[0].mxu0 %v2201
    %v3485 = vpop.f32.mrb[0].mxu0
    %v3486 = vadd.f32 %v3325, %v3485
    %v3487 = vpop.f32.mrb[0].mxu0
    %v3488 = vadd.f32 %v3327, %v3487
    %3489 = vdwg.mxu0
    %3490 = vmatprep.subr.mxu0 %v1789
    %3491 = vmatpush1.msra.mxu0 %v1788
    %3492 = vmatprep.subr.mxu0 %v1794
    %3493 = vmatpush1.msra.mxu0 %v1793
    %3494 = vmatprep.subr.mxu0 %v1799
    %3495 = vmatpush1.msra.mxu0 %v1798
    %3496 = vmatprep.subr.mxu0 %v1804
    %3497 = vmatpush1.msra.mxu0 %v1803
    %3498 = vmatprep.subr.mxu0 %v1809
    %3499 = vmatpush1.msra.mxu0 %v1808
    %3500 = vmatprep.subr.mxu0 %v1814
    %3501 = vmatpush1.msra.mxu0 %v1813
    %3502 = vmatprep.subr.mxu0 %v1819
    %3503 = vmatpush1.msra.mxu0 %v1818
    %3504 = vmatprep.subr.mxu0 %v1824
    %3505 = vmatpush1.msra.mxu0 %v1823
    %3506 = vmatprep.subr.mxu0 %v1829
    %3507 = vmatpush1.msra.mxu0 %v1828
    %3508 = vmatprep.subr.mxu0 %v1834
    %3509 = vmatpush1.msra.mxu0 %v1833
    %3510 = vmatprep.subr.mxu0 %v1839
    %3511 = vmatpush1.msra.mxu0 %v1838
    %3512 = vmatprep.subr.mxu0 %v1844
    %3513 = vmatpush1.msra.mxu0 %v1843
    %3514 = vmatprep.subr.mxu0 %v1849
    %3515 = vmatpush1.msra.mxu0 %v1848
    %3516 = vmatprep.subr.mxu0 %v1854
    %3517 = vmatpush1.msra.mxu0 %v1853
    %3518 = vmatprep.subr.mxu0 %v1859
    %3519 = vmatpush1.msra.mxu0 %v1858
    %3520 = vmatprep.subr.mxu0 %v1864
    %3521 = vmatpush1.msra.mxu0 %v1863
    %3522 = vmatprep.subr.mxu0 %v1869
    %3523 = vmatpush1.msra.mxu0 %v1868
    %3524 = vmatprep.subr.mxu0 %v1874
    %3525 = vmatpush1.msra.mxu0 %v1873
    %3526 = vmatprep.subr.mxu0 %v1879
    %3527 = vmatpush1.msra.mxu0 %v1878
    %3528 = vmatprep.subr.mxu0 %v1884
    %3529 = vmatpush1.msra.mxu0 %v1883
    %3530 = vmatprep.subr.mxu0 %v1889
    %3531 = vmatpush1.msra.mxu0 %v1888
    %3532 = vmatprep.subr.mxu0 %v1894
    %3533 = vmatpush1.msra.mxu0 %v1893
    %3534 = vmatprep.subr.mxu0 %v1899
    %3535 = vmatpush1.msra.mxu0 %v1898
    %3536 = vmatprep.subr.mxu0 %v1904
    %3537 = vmatpush1.msra.mxu0 %v1903
    %3538 = vmatprep.subr.mxu0 %v1909
    %3539 = vmatpush1.msra.mxu0 %v1908
    %3540 = vmatprep.subr.mxu0 %v1914
    %3541 = vmatpush1.msra.mxu0 %v1913
    %3542 = vmatprep.subr.mxu0 %v1919
    %3543 = vmatpush1.msra.mxu0 %v1918
    %3544 = vmatprep.subr.mxu0 %v1924
    %3545 = vmatpush1.msra.mxu0 %v1923
    %3546 = vmatprep.subr.mxu0 %v1929
    %3547 = vmatpush1.msra.mxu0 %v1928
    %3548 = vmatprep.subr.mxu0 %v1934
    %3549 = vmatpush1.msra.mxu0 %v1933
    %3550 = vmatprep.subr.mxu0 %v1939
    %3551 = vmatpush1.msra.mxu0 %v1938
    %3552 = vmatprep.subr.mxu0 %v1944
    %3553 = vmatpush1.msra.mxu0 %v1943
    %3554 = vmatprep.mubr.f32.mxu0 %v2154
    %3555 = vmatmul.mubr.f32.gmra.mrb[0].mxu0 %v2122
    %v3556 = vpop.f32.mrb[0].mxu0
    %v3557 = vadd.f32 0.0, %v3556
    %v3558 = vpop.f32.mrb[0].mxu0
    %v3559 = vadd.f32 0.0, %v3558
    %3560 = vmatprep.mubr.f32.mxu0 %v2155
    %3561 = vmatmul.mubr.f32.gmra.mrb[0].mxu0 %v2123
    %v3562 = vpop.f32.mrb[0].mxu0
    %v3563 = vadd.f32 0.0, %v3562
    %v3564 = vpop.f32.mrb[0].mxu0
    %v3565 = vadd.f32 0.0, %v3564
    %3566 = vmatprep.mubr.f32.mxu0 %v2156
    %3567 = vmatmul.mubr.f32.gmra.mrb[0].mxu0 %v2124
    %v3568 = vpop.f32.mrb[0].mxu0
    %v3569 = vadd.f32 0.0, %v3568
    %v3570 = vpop.f32.mrb[0].mxu0
    %v3571 = vadd.f32 0.0, %v3570
    %3572 = vmatprep.mubr.f32.mxu0 %v2157
    %3573 = vmatmul.mubr.f32.gmra.mrb[0].mxu0 %v2125
    %v3574 = vpop.f32.mrb[0].mxu0
    %v3575 = vadd.f32 0.0, %v3574
    %v3576 = vpop.f32.mrb[0].mxu0
    %v3577 = vadd.f32 0.0, %v3576
    %3578 = vmatprep.mubr.f32.mxu0 %v2158
    %3579 = vmatmul.mubr.f32.gmra.mrb[0].mxu0 %v2126
    %v3580 = vpop.f32.mrb[0].mxu0
    %v3581 = vadd.f32 0.0, %v3580
    %v3582 = vpop.f32.mrb[0].mxu0
    %v3583 = vadd.f32 0.0, %v3582
    %3584 = vmatprep.mubr.f32.mxu0 %v2159
    %3585 = vmatmul.mubr.f32.gmra.mrb[0].mxu0 %v2127
    %v3586 = vpop.f32.mrb[0].mxu0
    %v3587 = vadd.f32 0.0, %v3586
    %v3588 = vpop.f32.mrb[0].mxu0
    %v3589 = vadd.f32 0.0, %v3588
    %3590 = vmatprep.mubr.f32.mxu0 %v2160
    %3591 = vmatmul.mubr.f32.gmra.mrb[0].mxu0 %v2128
    %v3592 = vpop.f32.mrb[0].mxu0
    %v3593 = vadd.f32 0.0, %v3592
    %v3594 = vpop.f32.mrb[0].mxu0
    %v3595 = vadd.f32 0.0, %v3594
    %3596 = vmatprep.mubr.f32.mxu0 %v2161
    %3597 = vmatmul.mubr.f32.gmra.mrb[0].mxu0 %v2129
    %v3598 = vpop.f32.mrb[0].mxu0
    %v3599 = vadd.f32 0.0, %v3598
    %v3600 = vpop.f32.mrb[0].mxu0
    %v3601 = vadd.f32 0.0, %v3600
    %3602 = vmatprep.mubr.f32.mxu0 %v2162
    %3603 = vmatmul.mubr.f32.gmra.mrb[0].mxu0 %v2130
    %v3604 = vpop.f32.mrb[0].mxu0
    %v3605 = vadd.f32 0.0, %v3604
    %v3606 = vpop.f32.mrb[0].mxu0
    %v3607 = vadd.f32 0.0, %v3606
    %3608 = vmatprep.mubr.f32.mxu0 %v2163
    %3609 = vmatmul.mubr.f32.gmra.mrb[0].mxu0 %v2131
    %v3610 = vpop.f32.mrb[0].mxu0
    %v3611 = vadd.f32 0.0, %v3610
    %v3612 = vpop.f32.mrb[0].mxu0
    %v3613 = vadd.f32 0.0, %v3612
    %3614 = vmatprep.mubr.f32.mxu0 %v2164
    %3615 = vmatmul.mubr.f32.gmra.mrb[0].mxu0 %v2132
    %v3616 = vpop.f32.mrb[0].mxu0
    %v3617 = vadd.f32 0.0, %v3616
    %v3618 = vpop.f32.mrb[0].mxu0
    %v3619 = vadd.f32 0.0, %v3618
    %3620 = vmatprep.mubr.f32.mxu0 %v2165
    %3621 = vmatmul.mubr.f32.gmra.mrb[0].mxu0 %v2133
    %v3622 = vpop.f32.mrb[0].mxu0
    %v3623 = vadd.f32 0.0, %v3622
    %v3624 = vpop.f32.mrb[0].mxu0
    %v3625 = vadd.f32 0.0, %v3624
    %3626 = vmatprep.mubr.f32.mxu0 %v2166
    %3627 = vmatmul.mubr.f32.gmra.mrb[0].mxu0 %v2134
    %v3628 = vpop.f32.mrb[0].mxu0
    %v3629 = vadd.f32 0.0, %v3628
    %v3630 = vpop.f32.mrb[0].mxu0
    %v3631 = vadd.f32 0.0, %v3630
    %3632 = vmatprep.mubr.f32.mxu0 %v2167
    %3633 = vmatmul.mubr.f32.gmra.mrb[0].mxu0 %v2135
    %v3634 = vpop.f32.mrb[0].mxu0
    %v3635 = vadd.f32 0.0, %v3634
    %v3636 = vpop.f32.mrb[0].mxu0
    %v3637 = vadd.f32 0.0, %v3636
    %3638 = vmatprep.mubr.f32.mxu0 %v2168
    %3639 = vmatmul.mubr.f32.gmra.mrb[0].mxu0 %v2136
    %v3640 = vpop.f32.mrb[0].mxu0
    %v3641 = vadd.f32 0.0, %v3640
    %v3642 = vpop.f32.mrb[0].mxu0
    %v3643 = vadd.f32 0.0, %v3642
    %3644 = vmatprep.mubr.f32.mxu0 %v2169
    %3645 = vmatmul.mubr.f32.gmra.mrb[0].mxu0 %v2137
    %v3646 = vpop.f32.mrb[0].mxu0
    %v3647 = vadd.f32 0.0, %v3646
    %v3648 = vpop.f32.mrb[0].mxu0
    %v3649 = vadd.f32 0.0, %v3648
    %3650 = vdwg.mxu0
    %3651 = vmatprep.subr.mxu0 %v1949
    %3652 = vmatpush1.msra.mxu0 %v1948
    %3653 = vmatprep.subr.mxu0 %v1954
    %3654 = vmatpush1.msra.mxu0 %v1953
    %3655 = vmatprep.subr.mxu0 %v1959
    %3656 = vmatpush1.msra.mxu0 %v1958
    %3657 = vmatprep.subr.mxu0 %v1964
    %3658 = vmatpush1.msra.mxu0 %v1963
    %3659 = vmatprep.subr.mxu0 %v1969
    %3660 = vmatpush1.msra.mxu0 %v1968
    %3661 = vmatprep.subr.mxu0 %v1974
    %3662 = vmatpush1.msra.mxu0 %v1973
    %3663 = vmatprep.subr.mxu0 %v1979
    %3664 = vmatpush1.msra.mxu0 %v1978
    %3665 = vmatprep.subr.mxu0 %v1984
    %3666 = vmatpush1.msra.mxu0 %v1983
    %3667 = vmatprep.subr.mxu0 %v1989
    %3668 = vmatpush1.msra.mxu0 %v1988
    %3669 = vmatprep.subr.mxu0 %v1994
    %3670 = vmatpush1.msra.mxu0 %v1993
    %3671 = vmatprep.subr.mxu0 %v1999
    %3672 = vmatpush1.msra.mxu0 %v1998
    %3673 = vmatprep.subr.mxu0 %v2004
    %3674 = vmatpush1.msra.mxu0 %v2003
    %3675 = vmatprep.subr.mxu0 %v2009
    %3676 = vmatpush1.msra.mxu0 %v2008
    %3677 = vmatprep.subr.mxu0 %v2014
    %3678 = vmatpush1.msra.mxu0 %v2013
    %3679 = vmatprep.subr.mxu0 %v2019
    %3680 = vmatpush1.msra.mxu0 %v2018
    %3681 = vmatprep.subr.mxu0 %v2024
    %3682 = vmatpush1.msra.mxu0 %v2023
    %3683 = vmatprep.subr.mxu0 %v2029
    %3684 = vmatpush1.msra.mxu0 %v2028
    %3685 = vmatprep.subr.mxu0 %v2034
    %3686 = vmatpush1.msra.mxu0 %v2033
    %3687 = vmatprep.subr.mxu0 %v2039
    %3688 = vmatpush1.msra.mxu0 %v2038
    %3689 = vmatprep.subr.mxu0 %v2044
    %3690 = vmatpush1.msra.mxu0 %v2043
    %3691 = vmatprep.subr.mxu0 %v2049
    %3692 = vmatpush1.msra.mxu0 %v2048
    %3693 = vmatprep.subr.mxu0 %v2054
    %3694 = vmatpush1.msra.mxu0 %v2053
    %3695 = vmatprep.subr.mxu0 %v2059
    %3696 = vmatpush1.msra.mxu0 %v2058
    %3697 = vmatprep.subr.mxu0 %v2064
    %3698 = vmatpush1.msra.mxu0 %v2063
    %3699 = vmatprep.subr.mxu0 %v2069
    %3700 = vmatpush1.msra.mxu0 %v2068
    %3701 = vmatprep.subr.mxu0 %v2074
    %3702 = vmatpush1.msra.mxu0 %v2073
    %3703 = vmatprep.subr.mxu0 %v2079
    %3704 = vmatpush1.msra.mxu0 %v2078
    %3705 = vmatprep.subr.mxu0 %v2084
    %3706 = vmatpush1.msra.mxu0 %v2083
    %3707 = vmatprep.subr.mxu0 %v2089
    %3708 = vmatpush1.msra.mxu0 %v2088
    %3709 = vmatprep.subr.mxu0 %v2094
    %3710 = vmatpush1.msra.mxu0 %v2093
    %3711 = vmatprep.subr.mxu0 %v2099
    %3712 = vmatpush1.msra.mxu0 %v2098
    %3713 = vmatprep.subr.mxu0 %v2104
    %3714 = vmatpush1.msra.mxu0 %v2103
    %3715 = vmatprep.mubr.f32.mxu0 %v2218
    %3716 = vmatmul.mubr.f32.gmra.mrb[0].mxu0 %v2186
    %v3717 = vpop.f32.mrb[0].mxu0
    %v3718 = vadd.f32 %v3557, %v3717
    %v3719 = vpop.f32.mrb[0].mxu0
    %v3720 = vadd.f32 %v3559, %v3719
    %3721 = vmatprep.mubr.f32.mxu0 %v2219
    %3722 = vmatmul.mubr.f32.gmra.mrb[0].mxu0 %v2187
    %v3723 = vpop.f32.mrb[0].mxu0
    %v3724 = vadd.f32 %v3563, %v3723
    %v3725 = vpop.f32.mrb[0].mxu0
    %v3726 = vadd.f32 %v3565, %v3725
    %3727 = vmatprep.mubr.f32.mxu0 %v2220
    %3728 = vmatmul.mubr.f32.gmra.mrb[0].mxu0 %v2188
    %v3729 = vpop.f32.mrb[0].mxu0
    %v3730 = vadd.f32 %v3569, %v3729
    %v3731 = vpop.f32.mrb[0].mxu0
    %v3732 = vadd.f32 %v3571, %v3731
    %3733 = vmatprep.mubr.f32.mxu0 %v2221
    %3734 = vmatmul.mubr.f32.gmra.mrb[0].mxu0 %v2189
    %v3735 = vpop.f32.mrb[0].mxu0
    %v3736 = vadd.f32 %v3575, %v3735
    %v3737 = vpop.f32.mrb[0].mxu0
    %v3738 = vadd.f32 %v3577, %v3737
    %3739 = vmatprep.mubr.f32.mxu0 %v2222
    %3740 = vmatmul.mubr.f32.gmra.mrb[0].mxu0 %v2190
    %v3741 = vpop.f32.mrb[0].mxu0
    %v3742 = vadd.f32 %v3581, %v3741
    %v3743 = vpop.f32.mrb[0].mxu0
    %v3744 = vadd.f32 %v3583, %v3743
    %3745 = vmatprep.mubr.f32.mxu0 %v2223
    %3746 = vmatmul.mubr.f32.gmra.mrb[0].mxu0 %v2191
    %v3747 = vpop.f32.mrb[0].mxu0
    %v3748 = vadd.f32 %v3587, %v3747
    %v3749 = vpop.f32.mrb[0].mxu0
    %v3750 = vadd.f32 %v3589, %v3749
    %3751 = vmatprep.mubr.f32.mxu0 %v2224
    %3752 = vmatmul.mubr.f32.gmra.mrb[0].mxu0 %v2192
    %v3753 = vpop.f32.mrb[0].mxu0
    %v3754 = vadd.f32 %v3593, %v3753
    %v3755 = vpop.f32.mrb[0].mxu0
    %v3756 = vadd.f32 %v3595, %v3755
    %3757 = vmatprep.mubr.f32.mxu0 %v2225
    %3758 = vmatmul.mubr.f32.gmra.mrb[0].mxu0 %v2193
    %v3759 = vpop.f32.mrb[0].mxu0
    %v3760 = vadd.f32 %v3599, %v3759
    %v3761 = vpop.f32.mrb[0].mxu0
    %v3762 = vadd.f32 %v3601, %v3761
    %3763 = vmatprep.mubr.f32.mxu0 %v2226
    %3764 = vmatmul.mubr.f32.gmra.mrb[0].mxu0 %v2194
    %v3765 = vpop.f32.mrb[0].mxu0
    %v3766 = vadd.f32 %v3605, %v3765
    %v3767 = vpop.f32.mrb[0].mxu0
    %v3768 = vadd.f32 %v3607, %v3767
    %3769 = vmatprep.mubr.f32.mxu0 %v2227
    %3770 = vmatmul.mubr.f32.gmra.mrb[0].mxu0 %v2195
    %v3771 = vpop.f32.mrb[0].mxu0
    %v3772 = vadd.f32 %v3611, %v3771
    %v3773 = vpop.f32.mrb[0].mxu0
    %v3774 = vadd.f32 %v3613, %v3773
    %3775 = vmatprep.mubr.f32.mxu0 %v2228
    %3776 = vmatmul.mubr.f32.gmra.mrb[0].mxu0 %v2196
    %v3777 = vpop.f32.mrb[0].mxu0
    %v3778 = vadd.f32 %v3617, %v3777
    %v3779 = vpop.f32.mrb[0].mxu0
    %v3780 = vadd.f32 %v3619, %v3779
    %3781 = vmatprep.mubr.f32.mxu0 %v2229
    %3782 = vmatmul.mubr.f32.gmra.mrb[0].mxu0 %v2197
    %v3783 = vpop.f32.mrb[0].mxu0
    %v3784 = vadd.f32 %v3623, %v3783
    %v3785 = vpop.f32.mrb[0].mxu0
    %v3786 = vadd.f32 %v3625, %v3785
    %3787 = vmatprep.mubr.f32.mxu0 %v2230
    %3788 = vmatmul.mubr.f32.gmra.mrb[0].mxu0 %v2198
    %v3789 = vpop.f32.mrb[0].mxu0
    %v3790 = vadd.f32 %v3629, %v3789
    %v3791 = vpop.f32.mrb[0].mxu0
    %v3792 = vadd.f32 %v3631, %v3791
    %3793 = vmatprep.mubr.f32.mxu0 %v2231
    %3794 = vmatmul.mubr.f32.gmra.mrb[0].mxu0 %v2199
    %v3795 = vpop.f32.mrb[0].mxu0
    %v3796 = vadd.f32 %v3635, %v3795
    %v3797 = vpop.f32.mrb[0].mxu0
    %v3798 = vadd.f32 %v3637, %v3797
    %3799 = vmatprep.mubr.f32.mxu0 %v2232
    %3800 = vmatmul.mubr.f32.gmra.mrb[0].mxu0 %v2200
    %v3801 = vpop.f32.mrb[0].mxu0
    %v3802 = vadd.f32 %v3641, %v3801
    %v3803 = vpop.f32.mrb[0].mxu0
    %v3804 = vadd.f32 %v3643, %v3803
    %3805 = vmatprep.mubr.f32.mxu0 %v2233
    %3806 = vmatmul.mubr.f32.gmra.mrb[0].mxu0 %v2201
    %v3807 = vpop.f32.mrb[0].mxu0
    %v3808 = vadd.f32 %v3647, %v3807
    %v3809 = vpop.f32.mrb[0].mxu0
    %v3810 = vadd.f32 %v3649, %v3809
    %3811 = vdwg.mxu0
    %3812 = vmatprep.subr.mxu0 0.0
    %3813 = vmatpush1.msra.mxu0 %v1790
    %3814 = vmatprep.subr.mxu0 0.0
    %3815 = vmatpush1.msra.mxu0 %v1795
    %3816 = vmatprep.subr.mxu0 0.0
    %3817 = vmatpush1.msra.mxu0 %v1800
    %3818 = vmatprep.subr.mxu0 0.0
    %3819 = vmatpush1.msra.mxu0 %v1805
    %3820 = vmatprep.subr.mxu0 0.0
    %3821 = vmatpush1.msra.mxu0 %v1810
    %3822 = vmatprep.subr.mxu0 0.0
    %3823 = vmatpush1.msra.mxu0 %v1815
    %3824 = vmatprep.subr.mxu0 0.0
    %3825 = vmatpush1.msra.mxu0 %v1820
    %3826 = vmatprep.subr.mxu0 0.0
    %3827 = vmatpush1.msra.mxu0 %v1825
    %3828 = vmatprep.subr.mxu0 0.0
    %3829 = vmatpush1.msra.mxu0 %v1830
    %3830 = vmatprep.subr.mxu0 0.0
    %3831 = vmatpush1.msra.mxu0 %v1835
    %3832 = vmatprep.subr.mxu0 0.0
    %3833 = vmatpush1.msra.mxu0 %v1840
    %3834 = vmatprep.subr.mxu0 0.0
    %3835 = vmatpush1.msra.mxu0 %v1845
    %3836 = vmatprep.subr.mxu0 0.0
    %3837 = vmatpush1.msra.mxu0 %v1850
    %3838 = vmatprep.subr.mxu0 0.0
    %3839 = vmatpush1.msra.mxu0 %v1855
    %3840 = vmatprep.subr.mxu0 0.0
    %3841 = vmatpush1.msra.mxu0 %v1860
    %3842 = vmatprep.subr.mxu0 0.0
    %3843 = vmatpush1.msra.mxu0 %v1865
    %3844 = vmatprep.subr.mxu0 0.0
    %3845 = vmatpush1.msra.mxu0 %v1870
    %3846 = vmatprep.subr.mxu0 0.0
    %3847 = vmatpush1.msra.mxu0 %v1875
    %3848 = vmatprep.subr.mxu0 0.0
    %3849 = vmatpush1.msra.mxu0 %v1880
    %3850 = vmatprep.subr.mxu0 0.0
    %3851 = vmatpush1.msra.mxu0 %v1885
    %3852 = vmatprep.subr.mxu0 0.0
    %3853 = vmatpush1.msra.mxu0 %v1890
    %3854 = vmatprep.subr.mxu0 0.0
    %3855 = vmatpush1.msra.mxu0 %v1895
    %3856 = vmatprep.subr.mxu0 0.0
    %3857 = vmatpush1.msra.mxu0 %v1900
    %3858 = vmatprep.subr.mxu0 0.0
    %3859 = vmatpush1.msra.mxu0 %v1905
    %3860 = vmatprep.subr.mxu0 0.0
    %3861 = vmatpush1.msra.mxu0 %v1910
    %3862 = vmatprep.subr.mxu0 0.0
    %3863 = vmatpush1.msra.mxu0 %v1915
    %3864 = vmatprep.subr.mxu0 0.0
    %3865 = vmatpush1.msra.mxu0 %v1920
    %3866 = vmatprep.subr.mxu0 0.0
    %3867 = vmatpush1.msra.mxu0 %v1925
    %3868 = vmatprep.subr.mxu0 0.0
    %3869 = vmatpush1.msra.mxu0 %v1930
    %3870 = vmatprep.subr.mxu0 0.0
    %3871 = vmatpush1.msra.mxu0 %v1935
    %3872 = vmatprep.subr.mxu0 0.0
    %3873 = vmatpush1.msra.mxu0 %v1940
    %3874 = vmatprep.subr.mxu0 0.0
    %3875 = vmatpush1.msra.mxu0 %v1945
    %3876 = vmatprep.mubr.f32.mxu0 %v2154
    %3877 = vmatmul.mubr.f32.gmra.mrb[0].mxu0 %v2122
    %v3878 = vpop.f32.mrb[0].mxu0
    %v3879 = vadd.f32 0.0, %v3878
    %v3880 = vpop.f32.mrb[0].mxu0
    %3881 = vmatprep.mubr.f32.mxu0 %v2155
    %3882 = vmatmul.mubr.f32.gmra.mrb[0].mxu0 %v2123
    %v3883 = vpop.f32.mrb[0].mxu0
    %v3884 = vadd.f32 0.0, %v3883
    %v3885 = vpop.f32.mrb[0].mxu0
    %3886 = vmatprep.mubr.f32.mxu0 %v2156
    %3887 = vmatmul.mubr.f32.gmra.mrb[0].mxu0 %v2124
    %v3888 = vpop.f32.mrb[0].mxu0
    %v3889 = vadd.f32 0.0, %v3888
    %v3890 = vpop.f32.mrb[0].mxu0
    %3891 = vmatprep.mubr.f32.mxu0 %v2157
    %3892 = vmatmul.mubr.f32.gmra.mrb[0].mxu0 %v2125
    %v3893 = vpop.f32.mrb[0].mxu0
    %v3894 = vadd.f32 0.0, %v3893
    %v3895 = vpop.f32.mrb[0].mxu0
    %3896 = vmatprep.mubr.f32.mxu0 %v2158
    %3897 = vmatmul.mubr.f32.gmra.mrb[0].mxu0 %v2126
    %v3898 = vpop.f32.mrb[0].mxu0
    %v3899 = vadd.f32 0.0, %v3898
    %v3900 = vpop.f32.mrb[0].mxu0
    %3901 = vmatprep.mubr.f32.mxu0 %v2159
    %3902 = vmatmul.mubr.f32.gmra.mrb[0].mxu0 %v2127
    %v3903 = vpop.f32.mrb[0].mxu0
    %v3904 = vadd.f32 0.0, %v3903
    %v3905 = vpop.f32.mrb[0].mxu0
    %3906 = vmatprep.mubr.f32.mxu0 %v2160
    %3907 = vmatmul.mubr.f32.gmra.mrb[0].mxu0 %v2128
    %v3908 = vpop.f32.mrb[0].mxu0
    %v3909 = vadd.f32 0.0, %v3908
    %v3910 = vpop.f32.mrb[0].mxu0
    %3911 = vmatprep.mubr.f32.mxu0 %v2161
    %3912 = vmatmul.mubr.f32.gmra.mrb[0].mxu0 %v2129
    %v3913 = vpop.f32.mrb[0].mxu0
    %v3914 = vadd.f32 0.0, %v3913
    %v3915 = vpop.f32.mrb[0].mxu0
    %3916 = vmatprep.mubr.f32.mxu0 %v2162
    %3917 = vmatmul.mubr.f32.gmra.mrb[0].mxu0 %v2130
    %v3918 = vpop.f32.mrb[0].mxu0
    %v3919 = vadd.f32 0.0, %v3918
    %v3920 = vpop.f32.mrb[0].mxu0
    %3921 = vmatprep.mubr.f32.mxu0 %v2163
    %3922 = vmatmul.mubr.f32.gmra.mrb[0].mxu0 %v2131
    %v3923 = vpop.f32.mrb[0].mxu0
    %v3924 = vadd.f32 0.0, %v3923
    %v3925 = vpop.f32.mrb[0].mxu0
    %3926 = vmatprep.mubr.f32.mxu0 %v2164
    %3927 = vmatmul.mubr.f32.gmra.mrb[0].mxu0 %v2132
    %v3928 = vpop.f32.mrb[0].mxu0
    %v3929 = vadd.f32 0.0, %v3928
    %v3930 = vpop.f32.mrb[0].mxu0
    %3931 = vmatprep.mubr.f32.mxu0 %v2165
    %3932 = vmatmul.mubr.f32.gmra.mrb[0].mxu0 %v2133
    %v3933 = vpop.f32.mrb[0].mxu0
    %v3934 = vadd.f32 0.0, %v3933
    %v3935 = vpop.f32.mrb[0].mxu0
    %3936 = vmatprep.mubr.f32.mxu0 %v2166
    %3937 = vmatmul.mubr.f32.gmra.mrb[0].mxu0 %v2134
    %v3938 = vpop.f32.mrb[0].mxu0
    %v3939 = vadd.f32 0.0, %v3938
    %v3940 = vpop.f32.mrb[0].mxu0
    %3941 = vmatprep.mubr.f32.mxu0 %v2167
    %3942 = vmatmul.mubr.f32.gmra.mrb[0].mxu0 %v2135
    %v3943 = vpop.f32.mrb[0].mxu0
    %v3944 = vadd.f32 0.0, %v3943
    %v3945 = vpop.f32.mrb[0].mxu0
    %3946 = vmatprep.mubr.f32.mxu0 %v2168
    %3947 = vmatmul.mubr.f32.gmra.mrb[0].mxu0 %v2136
    %v3948 = vpop.f32.mrb[0].mxu0
    %v3949 = vadd.f32 0.0, %v3948
    %v3950 = vpop.f32.mrb[0].mxu0
    %3951 = vmatprep.mubr.f32.mxu0 %v2169
    %3952 = vmatmul.mubr.f32.gmra.mrb[0].mxu0 %v2137
    %v3953 = vpop.f32.mrb[0].mxu0
    %v3954 = vadd.f32 0.0, %v3953
    %v3955 = vpop.f32.mrb[0].mxu0
    %3956 = vdwg.mxu0
    %3957 = vmatprep.subr.mxu0 0.0
    %3958 = vmatpush1.msra.mxu0 %v1950
    %3959 = vmatprep.subr.mxu0 0.0
    %3960 = vmatpush1.msra.mxu0 %v1955
    %3961 = vmatprep.subr.mxu0 0.0
    %3962 = vmatpush1.msra.mxu0 %v1960
    %3963 = vmatprep.subr.mxu0 0.0
    %3964 = vmatpush1.msra.mxu0 %v1965
    %3965 = vmatprep.subr.mxu0 0.0
    %3966 = vmatpush1.msra.mxu0 %v1970
    %3967 = vmatprep.subr.mxu0 0.0
    %3968 = vmatpush1.msra.mxu0 %v1975
    %3969 = vmatprep.subr.mxu0 0.0
    %3970 = vmatpush1.msra.mxu0 %v1980
    %3971 = vmatprep.subr.mxu0 0.0
    %3972 = vmatpush1.msra.mxu0 %v1985
    %3973 = vmatprep.subr.mxu0 0.0
    %3974 = vmatpush1.msra.mxu0 %v1990
    %3975 = vmatprep.subr.mxu0 0.0
    %3976 = vmatpush1.msra.mxu0 %v1995
    %3977 = vmatprep.subr.mxu0 0.0
    %3978 = vmatpush1.msra.mxu0 %v2000
    %3979 = vmatprep.subr.mxu0 0.0
    %3980 = vmatpush1.msra.mxu0 %v2005
    %3981 = vmatprep.subr.mxu0 0.0
    %3982 = vmatpush1.msra.mxu0 %v2010
    %3983 = vmatprep.subr.mxu0 0.0
    %3984 = vmatpush1.msra.mxu0 %v2015
    %3985 = vmatprep.subr.mxu0 0.0
    %3986 = vmatpush1.msra.mxu0 %v2020
    %3987 = vmatprep.subr.mxu0 0.0
    %3988 = vmatpush1.msra.mxu0 %v2025
    %3989 = vmatprep.subr.mxu0 0.0
    %3990 = vmatpush1.msra.mxu0 %v2030
    %3991 = vmatprep.subr.mxu0 0.0
    %3992 = vmatpush1.msra.mxu0 %v2035
    %3993 = vmatprep.subr.mxu0 0.0
    %3994 = vmatpush1.msra.mxu0 %v2040
    %3995 = vmatprep.subr.mxu0 0.0
    %3996 = vmatpush1.msra.mxu0 %v2045
    %3997 = vmatprep.subr.mxu0 0.0
    %3998 = vmatpush1.msra.mxu0 %v2050
    %3999 = vmatprep.subr.mxu0 0.0
    %4000 = vmatpush1.msra.mxu0 %v2055
    %4001 = vmatprep.subr.mxu0 0.0
    %4002 = vmatpush1.msra.mxu0 %v2060
    %4003 = vmatprep.subr.mxu0 0.0
    %4004 = vmatpush1.msra.mxu0 %v2065
    %4005 = vmatprep.subr.mxu0 0.0
    %4006 = vmatpush1.msra.mxu0 %v2070
    %4007 = vmatprep.subr.mxu0 0.0
    %4008 = vmatpush1.msra.mxu0 %v2075
    %4009 = vmatprep.subr.mxu0 0.0
    %4010 = vmatpush1.msra.mxu0 %v2080
    %4011 = vmatprep.subr.mxu0 0.0
    %4012 = vmatpush1.msra.mxu0 %v2085
    %4013 = vmatprep.subr.mxu0 0.0
    %4014 = vmatpush1.msra.mxu0 %v2090
    %4015 = vmatprep.subr.mxu0 0.0
    %4016 = vmatpush1.msra.mxu0 %v2095
    %4017 = vmatprep.subr.mxu0 0.0
    %4018 = vmatpush1.msra.mxu0 %v2100
    %4019 = vmatprep.subr.mxu0 0.0
    %4020 = vmatpush1.msra.mxu0 %v2105
    %4021 = vmatprep.mubr.f32.mxu0 %v2218
    %4022 = vmatmul.mubr.f32.gmra.mrb[0].mxu0 %v2186
    %v4023 = vpop.f32.mrb[0].mxu0
    %v4024 = vadd.f32 %v3879, %v4023
    %v4025 = vpop.f32.mrb[0].mxu0
    %4026 = vmatprep.mubr.f32.mxu0 %v2219
    %4027 = vmatmul.mubr.f32.gmra.mrb[0].mxu0 %v2187
    %v4028 = vpop.f32.mrb[0].mxu0
    %v4029 = vadd.f32 %v3884, %v4028
    %v4030 = vpop.f32.mrb[0].mxu0
    %4031 = vmatprep.mubr.f32.mxu0 %v2220
    %4032 = vmatmul.mubr.f32.gmra.mrb[0].mxu0 %v2188
    %v4033 = vpop.f32.mrb[0].mxu0
    %v4034 = vadd.f32 %v3889, %v4033
    %v4035 = vpop.f32.mrb[0].mxu0
    %4036 = vmatprep.mubr.f32.mxu0 %v2221
    %4037 = vmatmul.mubr.f32.gmra.mrb[0].mxu0 %v2189
    %v4038 = vpop.f32.mrb[0].mxu0
    %v4039 = vadd.f32 %v3894, %v4038
    %v4040 = vpop.f32.mrb[0].mxu0
    %4041 = vmatprep.mubr.f32.mxu0 %v2222
    %4042 = vmatmul.mubr.f32.gmra.mrb[0].mxu0 %v2190
    %v4043 = vpop.f32.mrb[0].mxu0
    %v4044 = vadd.f32 %v3899, %v4043
    %v4045 = vpop.f32.mrb[0].mxu0
    %4046 = vmatprep.mubr.f32.mxu0 %v2223
    %4047 = vmatmul.mubr.f32.gmra.mrb[0].mxu0 %v2191
    %v4048 = vpop.f32.mrb[0].mxu0
    %v4049 = vadd.f32 %v3904, %v4048
    %v4050 = vpop.f32.mrb[0].mxu0
    %4051 = vmatprep.mubr.f32.mxu0 %v2224
    %4052 = vmatmul.mubr.f32.gmra.mrb[0].mxu0 %v2192
    %v4053 = vpop.f32.mrb[0].mxu0
    %v4054 = vadd.f32 %v3909, %v4053
    %v4055 = vpop.f32.mrb[0].mxu0
    %4056 = vmatprep.mubr.f32.mxu0 %v2225
    %4057 = vmatmul.mubr.f32.gmra.mrb[0].mxu0 %v2193
    %v4058 = vpop.f32.mrb[0].mxu0
    %v4059 = vadd.f32 %v3914, %v4058
    %v4060 = vpop.f32.mrb[0].mxu0
    %4061 = vmatprep.mubr.f32.mxu0 %v2226
    %4062 = vmatmul.mubr.f32.gmra.mrb[0].mxu0 %v2194
    %v4063 = vpop.f32.mrb[0].mxu0
    %v4064 = vadd.f32 %v3919, %v4063
    %v4065 = vpop.f32.mrb[0].mxu0
    %4066 = vmatprep.mubr.f32.mxu0 %v2227
    %4067 = vmatmul.mubr.f32.gmra.mrb[0].mxu0 %v2195
    %v4068 = vpop.f32.mrb[0].mxu0
    %v4069 = vadd.f32 %v3924, %v4068
    %v4070 = vpop.f32.mrb[0].mxu0
    %4071 = vmatprep.mubr.f32.mxu0 %v2228
    %4072 = vmatmul.mubr.f32.gmra.mrb[0].mxu0 %v2196
    %v4073 = vpop.f32.mrb[0].mxu0
    %v4074 = vadd.f32 %v3929, %v4073
    %v4075 = vpop.f32.mrb[0].mxu0
    %4076 = vmatprep.mubr.f32.mxu0 %v2229
    %4077 = vmatmul.mubr.f32.gmra.mrb[0].mxu0 %v2197
    %v4078 = vpop.f32.mrb[0].mxu0
    %v4079 = vadd.f32 %v3934, %v4078
    %v4080 = vpop.f32.mrb[0].mxu0
    %4081 = vmatprep.mubr.f32.mxu0 %v2230
    %4082 = vmatmul.mubr.f32.gmra.mrb[0].mxu0 %v2198
    %v4083 = vpop.f32.mrb[0].mxu0
    %v4084 = vadd.f32 %v3939, %v4083
    %v4085 = vpop.f32.mrb[0].mxu0
    %4086 = vmatprep.mubr.f32.mxu0 %v2231
    %4087 = vmatmul.mubr.f32.gmra.mrb[0].mxu0 %v2199
    %v4088 = vpop.f32.mrb[0].mxu0
    %v4089 = vadd.f32 %v3944, %v4088
    %v4090 = vpop.f32.mrb[0].mxu0
    %4091 = vmatprep.mubr.f32.mxu0 %v2232
    %4092 = vmatmul.mubr.f32.gmra.mrb[0].mxu0 %v2200
    %v4093 = vpop.f32.mrb[0].mxu0
    %v4094 = vadd.f32 %v3949, %v4093
    %v4095 = vpop.f32.mrb[0].mxu0
    %4096 = vmatprep.mubr.f32.mxu0 %v2233
    %4097 = vmatmul.mubr.f32.gmra.mrb[0].mxu0 %v2201
    %v4098 = vpop.f32.mrb[0].mxu0
    %v4099 = vadd.f32 %v3954, %v4098
    %v4100 = vpop.f32.mrb[0].mxu0
    %4101 = vdwg.mxu0
    %v4102 = vmul.f32 %v2462, %v3396
    %v4103 = vmul.f32 %v2464, %v3398
    %v4104 = vmul.f32 %v2784, %v3718
    %v4105 = vmul.f32 %v2786, %v3720
    %v4106 = vmul.f32 %v3090, %v4024
    %v4107 = vmul.f32 %v2468, %v3402
    %v4108 = vmul.f32 %v2470, %v3404
    %v4109 = vmul.f32 %v2790, %v3724
    %v4110 = vmul.f32 %v2792, %v3726
    %v4111 = vmul.f32 %v3095, %v4029
    %v4112 = vmul.f32 %v2474, %v3408
    %v4113 = vmul.f32 %v2476, %v3410
    %v4114 = vmul.f32 %v2796, %v3730
    %v4115 = vmul.f32 %v2798, %v3732
    %v4116 = vmul.f32 %v3100, %v4034
    %v4117 = vmul.f32 %v2480, %v3414
    %v4118 = vmul.f32 %v2482, %v3416
    %v4119 = vmul.f32 %v2802, %v3736
    %v4120 = vmul.f32 %v2804, %v3738
    %v4121 = vmul.f32 %v3105, %v4039
    %v4122 = vmul.f32 %v2486, %v3420
    %v4123 = vmul.f32 %v2488, %v3422
    %v4124 = vmul.f32 %v2808, %v3742
    %v4125 = vmul.f32 %v2810, %v3744
    %v4126 = vmul.f32 %v3110, %v4044
    %v4127 = vmul.f32 %v2492, %v3426
    %v4128 = vmul.f32 %v2494, %v3428
    %v4129 = vmul.f32 %v2814, %v3748
    %v4130 = vmul.f32 %v2816, %v3750
    %v4131 = vmul.f32 %v3115, %v4049
    %v4132 = vmul.f32 %v2498, %v3432
    %v4133 = vmul.f32 %v2500, %v3434
    %v4134 = vmul.f32 %v2820, %v3754
    %v4135 = vmul.f32 %v2822, %v3756
    %v4136 = vmul.f32 %v3120, %v4054
    %v4137 = vmul.f32 %v2504, %v3438
    %v4138 = vmul.f32 %v2506, %v3440
    %v4139 = vmul.f32 %v2826, %v3760
    %v4140 = vmul.f32 %v2828, %v3762
    %v4141 = vmul.f32 %v3125, %v4059
    %v4142 = vmul.f32 %v2510, %v3444
    %v4143 = vmul.f32 %v2512, %v3446
    %v4144 = vmul.f32 %v2832, %v3766
    %v4145 = vmul.f32 %v2834, %v3768
    %v4146 = vmul.f32 %v3130, %v4064
    %v4147 = vmul.f32 %v2516, %v3450
    %v4148 = vmul.f32 %v2518, %v3452
    %v4149 = vmul.f32 %v2838, %v3772
    %v4150 = vmul.f32 %v2840, %v3774
    %v4151 = vmul.f32 %v3135, %v4069
    %v4152 = vmul.f32 %v2522, %v3456
    %v4153 = vmul.f32 %v2524, %v3458
    %v4154 = vmul.f32 %v2844, %v3778
    %v4155 = vmul.f32 %v2846, %v3780
    %v4156 = vmul.f32 %v3140, %v4074
    %v4157 = vmul.f32 %v2528, %v3462
    %v4158 = vmul.f32 %v2530, %v3464
    %v4159 = vmul.f32 %v2850, %v3784
    %v4160 = vmul.f32 %v2852, %v3786
    %v4161 = vmul.f32 %v3145, %v4079
    %v4162 = vmul.f32 %v2534, %v3468
    %v4163 = vmul.f32 %v2536, %v3470
    %v4164 = vmul.f32 %v2856, %v3790
    %v4165 = vmul.f32 %v2858, %v3792
    %v4166 = vmul.f32 %v3150, %v4084
    %v4167 = vmul.f32 %v2540, %v3474
    %v4168 = vmul.f32 %v2542, %v3476
    %v4169 = vmul.f32 %v2862, %v3796
    %v4170 = vmul.f32 %v2864, %v3798
    %v4171 = vmul.f32 %v3155, %v4089
    %v4172 = vmul.f32 %v2546, %v3480
    %v4173 = vmul.f32 %v2548, %v3482
    %v4174 = vmul.f32 %v2868, %v3802
    %v4175 = vmul.f32 %v2870, %v3804
    %v4176 = vmul.f32 %v3160, %v4094
    %v4177 = vmul.f32 %v2552, %v3486
    %v4178 = vmul.f32 %v2554, %v3488
    %v4179 = vmul.f32 %v2874, %v3808
    %v4180 = vmul.f32 %v2876, %v3810
    %v4181 = vmul.f32 %v3165, %v4099
    %v4182 = vadd.f32 %v4102, %v4107
    %v4183 = vadd.f32 %v4182, %v4112
    %v4184 = vadd.f32 %v4183, %v4117
    %v4185 = vadd.f32 %v4184, %v4122
    %v4186 = vadd.f32 %v4185, %v4127
    %v4187 = vadd.f32 %v4186, %v4132
    %v4188 = vadd.f32 %v4187, %v4137
    %v4189 = vadd.f32 %v4188, %v4142
    %v4190 = vadd.f32 %v4189, %v4147
    %v4191 = vadd.f32 %v4190, %v4152
    %v4192 = vadd.f32 %v4191, %v4157
    %v4193 = vadd.f32 %v4192, %v4162
    %v4194 = vadd.f32 %v4193, %v4167
    %v4195 = vadd.f32 %v4194, %v4172
    %v4196 = vadd.f32 %v4195, %v4177
    %v4197 = vrot.slane %v4196, 4
    %v4198 = vadd.f32 %v4196, %v4197
    %v4199 = vrot.slane %v4198, 2
    %v4200 = vadd.f32 %v4198, %v4199
    %v4201 = vrot.slane %v4200, 1
    %v4202 = vadd.f32 %v4200, %v4201
    %v4203 = vadd.f32 %v4103, %v4108
    %v4204 = vadd.f32 %v4203, %v4113
    %v4205 = vadd.f32 %v4204, %v4118
    %v4206 = vadd.f32 %v4205, %v4123
    %v4207 = vadd.f32 %v4206, %v4128
    %v4208 = vadd.f32 %v4207, %v4133
    %v4209 = vadd.f32 %v4208, %v4138
    %v4210 = vadd.f32 %v4209, %v4143
    %v4211 = vadd.f32 %v4210, %v4148
    %v4212 = vadd.f32 %v4211, %v4153
    %v4213 = vadd.f32 %v4212, %v4158
    %v4214 = vadd.f32 %v4213, %v4163
    %v4215 = vadd.f32 %v4214, %v4168
    %v4216 = vadd.f32 %v4215, %v4173
    %v4217 = vadd.f32 %v4216, %v4178
    %v4218 = vrot.slane %v4217, 4
    %v4219 = vadd.f32 %v4217, %v4218
    %v4220 = vrot.slane %v4219, 2
    %v4221 = vadd.f32 %v4219, %v4220
    %v4222 = vrot.slane %v4221, 1
    %v4223 = vadd.f32 %v4221, %v4222
    %v4224 = vadd.f32 %v4104, %v4109
    %v4225 = vadd.f32 %v4224, %v4114
    %v4226 = vadd.f32 %v4225, %v4119
    %v4227 = vadd.f32 %v4226, %v4124
    %v4228 = vadd.f32 %v4227, %v4129
    %v4229 = vadd.f32 %v4228, %v4134
    %v4230 = vadd.f32 %v4229, %v4139
    %v4231 = vadd.f32 %v4230, %v4144
    %v4232 = vadd.f32 %v4231, %v4149
    %v4233 = vadd.f32 %v4232, %v4154
    %v4234 = vadd.f32 %v4233, %v4159
    %v4235 = vadd.f32 %v4234, %v4164
    %v4236 = vadd.f32 %v4235, %v4169
    %v4237 = vadd.f32 %v4236, %v4174
    %v4238 = vadd.f32 %v4237, %v4179
    %v4239 = vrot.slane %v4238, 4
    %v4240 = vadd.f32 %v4238, %v4239
    %v4241 = vrot.slane %v4240, 2
    %v4242 = vadd.f32 %v4240, %v4241
    %v4243 = vrot.slane %v4242, 1
    %v4244 = vadd.f32 %v4242, %v4243
    %v4245 = vadd.f32 %v4105, %v4110
    %v4246 = vadd.f32 %v4245, %v4115
    %v4247 = vadd.f32 %v4246, %v4120
    %v4248 = vadd.f32 %v4247, %v4125
    %v4249 = vadd.f32 %v4248, %v4130
    %v4250 = vadd.f32 %v4249, %v4135
    %v4251 = vadd.f32 %v4250, %v4140
    %v4252 = vadd.f32 %v4251, %v4145
    %v4253 = vadd.f32 %v4252, %v4150
    %v4254 = vadd.f32 %v4253, %v4155
    %v4255 = vadd.f32 %v4254, %v4160
    %v4256 = vadd.f32 %v4255, %v4165
    %v4257 = vadd.f32 %v4256, %v4170
    %v4258 = vadd.f32 %v4257, %v4175
    %v4259 = vadd.f32 %v4258, %v4180
    %v4260 = vrot.slane %v4259, 4
    %v4261 = vadd.f32 %v4259, %v4260
    %v4262 = vrot.slane %v4261, 2
    %v4263 = vadd.f32 %v4261, %v4262
    %v4264 = vrot.slane %v4263, 1
    %v4265 = vadd.f32 %v4263, %v4264
    %v4266 = vadd.f32 %v4106, %v4111
    %v4267 = vadd.f32 %v4266, %v4116
    %v4268 = vadd.f32 %v4267, %v4121
    %v4269 = vadd.f32 %v4268, %v4126
    %v4270 = vadd.f32 %v4269, %v4131
    %v4271 = vadd.f32 %v4270, %v4136
    %v4272 = vadd.f32 %v4271, %v4141
    %v4273 = vadd.f32 %v4272, %v4146
    %v4274 = vadd.f32 %v4273, %v4151
    %v4275 = vadd.f32 %v4274, %v4156
    %v4276 = vadd.f32 %v4275, %v4161
    %v4277 = vadd.f32 %v4276, %v4166
    %v4278 = vadd.f32 %v4277, %v4171
    %v4279 = vadd.f32 %v4278, %v4176
    %v4280 = vadd.f32 %v4279, %v4181
    %v4281 = vrot.slane %v4280, 4
    %v4282 = vadd.f32 %v4280, %v4281
    %v4283 = vrot.slane %v4282, 2
    %v4284 = vadd.f32 %v4282, %v4283
    %v4285 = vrot.slane %v4284, 1
    %v4286 = vadd.f32 %v4284, %v4285
    %v4292 = vcombine.low %v4202, %v4223
    %v4293 = vcombine.low %v4244, %v4265
    %v4295 = vunpack.c.l.s4 1966171168
    %v4296 = vunpack.c.0.s8 %v4295
    %v4297 = vlaneseq
    %v4298 = vshrl.u32 %v4297, 7
    %v4299 = vsub.s32 %v4296, %v4298
    %v4300 = vrot.slane %v4292, %v4299
    %v4302 = vunpack.c.l.s4 1966171168
    %v4303 = vunpack.c.0.s8 %v4302
    %v4304 = vlaneseq
    %v4305 = vshrl.u32 %v4304, 7
    %v4306 = vsub.s32 %v4303, %v4305
    %v4307 = vrot.slane %v4293, %v4306
    %v4309 = vunpack.c.l.s4 1966171168
    %v4310 = vunpack.c.0.s8 %v4309
    %v4311 = vlaneseq
    %v4312 = vshrl.u32 %v4311, 7
    %v4313 = vsub.s32 %v4310, %v4312
    %v4314 = vrot.slane %v4286, %v4313
    %v4315 = vcombine.low %v4300, %v4307
    %v4317 = vunpack.c.l.s4 1966171168
    %v4318 = vunpack.c.0.s8 %v4317
    %v4319 = vlaneseq
    %v4320 = vshrl.u32 %v4319, 7
    %v4321 = vsub.s32 %v4318, %v4320
    %v4322 = vrot.slane %v4315, %v4321
    %v4324 = vunpack.c.l.s4 1966171168
    %v4325 = vunpack.c.0.s8 %v4324
    %v4326 = vlaneseq
    %v4327 = vshrl.u32 %v4326, 7
    %v4328 = vsub.s32 %v4325, %v4327
    %v4329 = vrot.slane %v4314, %v4328
    %v4330 = vcombine.low %v4322, %v4329
    %v4332 = vlaneseq
    %vm4333 = vcmp.ge.s32.totalorder %v4332, 0
    %vm4334 = vcmp.lt.s32.totalorder %v4332, 640
    %vm4335 = vmand %vm4333, %vm4334
    %4336 = vst.msk [vmem:[#allocation2] sm:$0x1f] %vm4335, %v4330
    // Predicated region
    $region14: #{model_forward.5} parent=1 // pred_check
      _
    $region15: #{model_forward.5} parent=1 // pred_check_branch
      %4338 = sbr.rel (0) target = $region17
    $region16: #{model_forward.5} parent=1 // pred_region
      %s4340 = ssub.s32 80, 80
      %4341 = vsyncadd [#allocation3], %s4340
      %s4343 = sshll.u32 [#allocation2], 4
      %s4344 = int_to_ptr.vmem [resolvable:$true] %s4343
      %4346 = dma.vmem_to_hbm [thread:$0]  %s4344, 80, %s3, [#allocation3]
    $region17: #{model_forward.5} parent=1 // pred_fallthru
      _
    // Predicated region
    $region18: #{model_forward.5} parent=1 // pred_check
      _
    $region19: #{model_forward.5} parent=1 // pred_check_branch
      %4348 = sbr.rel (0) target = $region21
    $region20: #{model_forward.5} parent=1 // pred_region
      %4349 = dma.done [#allocation3], 80
    $region21: #{model_forward.5} parent=1 // pred_fallthru
      _
    %4350 = vsyncpa [#allocation3], 1

</llo_original>
